<compile_context>
chip_gen: v7x
topology: tpu7x:2x2x1
jax: 0.10.0
libtpu: 0.0.40
codegen_flags: <defaults>
</compile_context>

<pallas_src>
import numpy as np
import jax
import jax.numpy as jnp
from jax.experimental import pallas as pl
from jax.experimental.pallas import tpu as pltpu


# ----------------------------------------------------------------------------
# cfg (embedded, deterministic) + parser (string version of parse_cfg)
# ----------------------------------------------------------------------------
CFG_TEXT = """
[net]
height=32
width=32
channels=3

[convolutional]
batch_normalize=1
filters=8
size=3
stride=1
pad=1
activation=leaky

[maxpool]
size=2
stride=2

[convolutional]
batch_normalize=1
filters=16
size=3
stride=1
pad=1
activation=leaky

[convolutional]
batch_normalize=1
filters=16
size=1
stride=1
pad=1
activation=leaky

[shortcut]
from=-2
activation=linear

[convolutional]
batch_normalize=1
filters=16
size=3
stride=2
pad=1
activation=leaky

[convolutional]
size=1
stride=1
pad=1
filters=21
activation=linear

[yolo]
mask=0,1,2
anchors=10,14, 23,27, 37,58, 81,82, 135,169, 344,319
classes=2
num=6
jitter=.3
ignore_thresh=.7
truth_thresh=1
random=1

[route]
layers=-3

[upsample]
stride=2

[route]
layers=-1,-6

[convolutional]
batch_normalize=1
filters=16
size=3
stride=1
pad=1
activation=leaky

[convolutional]
size=1
stride=1
pad=1
filters=21
activation=linear

[yolo]
mask=3,4,5
anchors=10,14, 23,27, 37,58, 81,82, 135,169, 344,319
classes=2
num=6
jitter=.3
ignore_thresh=.7
truth_thresh=1
random=1
"""


def parse_cfg_text(text):
    lines = [ln.strip() for ln in text.split("\n")]
    lines = [ln for ln in lines if len(ln) > 0 and ln[0] != "#"]
    block, blocks = {}, []
    for line in lines:
        if line[0] == "[":
            if len(block) != 0:
                blocks.append(block)
                block = {}
            block["type"] = line[1:-1].rstrip()
        else:
            key, value = line.split("=")
            block[key.rstrip()] = value.lstrip()
    blocks.append(block)
    return blocks


# ----------------------------------------------------------------------------
# Parameter construction (deterministic, mirrors create_modules shapes)
# ----------------------------------------------------------------------------
def build_params(blocks, key):
    net_info = blocks[0]
    prev_filters = int(net_info.get("channels", 3))
    output_filters = []
    params = []
    for index, b in enumerate(blocks[1:]):
        p = {}
        t = b["type"]
        if t == "convolutional":
            filters = int(b["filters"])
            k = int(b["size"])
            stride = int(b["stride"])
            pad = (k - 1) // 2 if int(b["pad"]) else 0
            bn = int(b.get("batch_normalize", 0))
            leaky = b["activation"] == "leaky"
            key, k1, k2, k3, k4, k5 = jax.random.split(key, 6)
            fan_in, fan_out = prev_filters * k * k, filters * k * k
            limit = float(np.sqrt(6.0 / (fan_in + fan_out)))
            w = jax.random.uniform(k1, (filters, prev_filters, k, k),
                                   jnp.float32, -limit, limit)
            if bn:
                gamma = jax.random.uniform(k2, (filters,), jnp.float32, 0.5, 1.5)
                beta = 0.1 * jax.random.normal(k3, (filters,), jnp.float32)
                rmean = 0.1 * jax.random.normal(k4, (filters,), jnp.float32)
                rvar = jax.random.uniform(k5, (filters,), jnp.float32, 0.5, 1.5)
                scale = gamma / jnp.sqrt(rvar + 1e-5)      # eval-mode BN fold
                shift = beta - rmean * scale
            else:
                scale = jnp.ones((filters,), jnp.float32)
                shift = 0.1 * jax.random.normal(k2, (filters,), jnp.float32)
            p = dict(w=w, scale=scale, shift=shift, k=k, stride=stride, pad=pad,
                     leaky=leaky, bn=bn, cin=prev_filters, cout=filters)
            prev_filters = filters
        elif t == "route":
            layers = [int(a) for a in b["layers"].split(",")]
            start = layers[0]
            end = layers[1] if len(layers) > 1 else 0
            if start > 0:
                start -= index
            if end > 0:
                end -= index
            if end < 0:
                prev_filters = output_filters[index + start] + output_filters[index + end]
            else:
                prev_filters = output_filters[index + start]
            p = dict(layers=layers)
        elif t in ("yolo", "region"):
            mask = [int(m) for m in b["mask"].split(",")]
            anchors = [float(a) for a in b["anchors"].split(",")]
            anchors = [(anchors[j], anchors[j + 1]) for j in range(0, len(anchors), 2)]
            anchors = [anchors[m] for m in mask]
            p = dict(anchors=anchors, num_classes=int(b["classes"]),
                     img_dim=int(net_info["height"]))
        elif t == "reorg":
            # TODO(synk): reorg block not present in this cfg; not implemented.
            prev_filters *= 4
        output_filters.append(prev_filters)
        params.append(p)
    return params


def pack_fused(blocks, params):
    """Verify the cfg matches the architecture the fused kernel hard-codes and
    lay the weights out for the in-kernel per-tap matmuls."""
    types = [b["type"] for b in blocks[1:]]
    expected = ["convolutional", "maxpool", "convolutional", "convolutional",
                "shortcut", "convolutional", "convolutional", "yolo",
                "route", "upsample", "route", "convolutional", "convolutional",
                "yolo"]
    assert types == expected, types
    c0, c2, c3, c5, c6, c11, c12 = (params[i] for i in (0, 2, 3, 5, 6, 11, 12))
    y7, y13 = params[7], params[13]
    assert (c0["cin"], c0["cout"], c0["k"], c0["stride"], c0["pad"]) == (3, 8, 3, 1, 1)
    assert (c2["cin"], c2["cout"], c2["k"], c2["stride"], c2["pad"]) == (8, 16, 3, 1, 1)
    assert (c3["cin"], c3["cout"], c3["k"], c3["pad"]) == (16, 16, 1, 0)
    assert (c5["cin"], c5["cout"], c5["k"], c5["stride"], c5["pad"]) == (16, 16, 3, 2, 1)
    assert (c6["cin"], c6["cout"], c6["k"]) == (16, 21, 1) and not c6["leaky"]
    assert (c11["cin"], c11["cout"], c11["k"], c11["stride"], c11["pad"]) == (32, 16, 3, 1, 1)
    assert (c12["cin"], c12["cout"], c12["k"]) == (16, 21, 1) and not c12["leaky"]
    assert int(blocks[2]["size"]) == 2 and int(blocks[2]["stride"]) == 2
    assert int(blocks[5]["from"]) == -2
    assert params[8]["layers"] == [-3] and params[10]["layers"] == [-1, -6]
    assert y7["num_classes"] == 2 and y13["num_classes"] == 2

    def taps(w):              # (cout, cin, 3, 3) -> (9, cout, cin), d = di*3+dj
        co, ci = w.shape[0], w.shape[1]
        return jnp.transpose(w, (2, 3, 0, 1)).reshape(9, co, ci)

    def col(v, rows=None):
        v = v.reshape(-1, 1)
        if rows is not None and rows > v.shape[0]:
            v = jnp.pad(v, ((0, rows - v.shape[0]), (0, 0)))
        return v

    # conv0: K = 27 (t = (di*3+dj)*3 + ci), padded to 32; Cout 8 padded to 16.
    w0 = jnp.transpose(c0["w"], (0, 2, 3, 1)).reshape(8, 27)
    w0 = jnp.pad(w0, ((0, 8), (0, 5)))
    s0, b0 = col(c0["scale"], 16), col(c0["shift"], 16)
    # conv2: per-tap (16, 8) padded to (16, 16) (input rows 8..15 are zero).
    w2 = jnp.pad(taps(c2["w"]), ((0, 0), (0, 0), (0, 8)))
    s2, b2 = col(c2["scale"]), col(c2["shift"])
    w3 = c3["w"].reshape(16, 16)
    s3, b3 = col(c3["scale"]), col(c3["shift"])
    w5 = taps(c5["w"])
    s5, b5 = col(c5["scale"]), col(c5["shift"])
    w6 = jnp.pad(c6["w"].reshape(21, 16), ((0, 3), (0, 0)))     # Cout 21 -> 24
    b6 = col(c6["shift"], 24)
    w11u = taps(c11["w"][:, :16])          # channels from the upsample branch
    w11a = taps(c11["w"][:, 16:])          # channels from the shortcut output
    s11, b11 = col(c11["scale"]), col(c11["shift"])
    w12 = jnp.pad(c12["w"].reshape(21, 16), ((0, 3), (0, 0)))
    b12 = col(c12["shift"], 24)

    args = [w0, s0, b0, w2, s2, b2, w3, s3, b3, w5, s5, b5, w6, b6,
            w11u, w11a, s11, b11, w12, b12]
    return dict(args=args, anchors1=y7["anchors"], anchors2=y13["anchors"],
                img_dim=y7["img_dim"])


# ----------------------------------------------------------------------------
# The fused Pallas kernel
# ----------------------------------------------------------------------------
def make_darknet_kernel(n_batch, anchors1, anchors2, img_dim):
    M = n_batch * 16 * 16                  # lane index m = n*256 + y*16 + x
    f32, bf16 = jnp.float32, jnp.bfloat16
    stride1 = float(img_dim) / 8.0         # head 1 grid is 8x8
    stride2 = float(img_dim) / 16.0        # head 2 grid is 16x16

    def kernel(P_ref, w0_ref, s0_ref, b0_ref,
               w2_ref, s2_ref, b2_ref,
               w3_ref, s3_ref, b3_ref,
               w5_ref, s5_ref, b5_ref,
               w6_ref, b6_ref,
               w11u_ref, w11a_ref, s11_ref, b11_ref,
               w12_ref, b12_ref,
               h1_ref, h2_ref):
        lane = jax.lax.broadcasted_iota(jnp.int32, (1, M), 1)
        xx = lane & 15                     # x coordinate of the lane
        yy = (lane >> 4) & 15              # y coordinate of the lane

        def leaky(v):
            return jnp.where(v > 0, v, 0.1 * v)

        def mm(w, x):                      # bf16 MXU matmul, f32 accumulation
            return jnp.dot(w.astype(bf16), x.astype(bf16),
                           preferred_element_type=f32)

        def conv3x3(srcs, cout):
            """3x3 / stride-1 / pad-1 conv on the (C, M) 16x16 layout via
            9 per-tap matmuls; neighbours via lane rotation + border masks."""
            acc = jnp.zeros((cout, M), f32)
            for d in range(9):
                oy, ox = d // 3 - 1, d % 3 - 1
                off = oy * 16 + ox
                conds = []
                if ox == -1:
                    conds.append(xx >= 1)
                if ox == 1:
                    conds.append(xx <= 14)
                if oy == -1:
                    conds.append(yy >= 1)
                if oy == 1:
                    conds.append(yy <= 14)
                ok = None
                for c in conds:
                    ok = c if ok is None else (ok & c)
                for x_val, w_ref in srcs:
                    sh = pltpu.roll(x_val, shift=(-off) % M, axis=1) if off else x_val
                    if ok is not None:
                        sh = jnp.where(ok, sh, 0.0)
                    acc = acc + mm(w_ref[d], sh)
            return acc

        def yolo_decode(pred, gx_i, gy_i, stride, anchors):
            """Decode a (24, M) head (rows c = a*7 + attr) in place; one
            whole-block lane-dense result."""
            row = jax.lax.broadcasted_iota(jnp.int32, (24, 1), 0)
            a_idx = jnp.where(row < 7, 0, jnp.where(row < 14, 1, 2))
            attr = row - 7 * a_idx
            aw = jnp.where(a_idx == 0, anchors[0][0],
                 jnp.where(a_idx == 1, anchors[1][0], anchors[2][0])).astype(f32)
            ah = jnp.where(a_idx == 0, anchors[0][1],
                 jnp.where(a_idx == 1, anchors[1][1], anchors[2][1])).astype(f32)
            gx = gx_i.astype(f32)
            gy = gy_i.astype(f32)
            sig = jax.nn.sigmoid(pred)
            ex = jnp.exp(pred)
            return jnp.where(attr == 0, (sig + gx) * stride,
                   jnp.where(attr == 1, (sig + gy) * stride,
                   jnp.where(attr == 2, ex * aw,
                   jnp.where(attr == 3, ex * ah, sig))))

        # --- layer 0+1: conv 3->8 (3x3,p1) + BN + leaky fused with 2x2/2 maxpool.
        # Evaluated directly at pooled resolution from the 4 pre-gathered patch
        # matrices P[p] (one per pool sub-position).
        w0 = w0_ref[...]
        s0 = s0_ref[...]
        b0 = b0_ref[...]
        a1 = None
        for p in range(4):
            h = leaky(s0 * mm(w0, P_ref[p]) + b0)
            a1 = h if a1 is None else jnp.maximum(a1, h)     # (16, M), rows 8.. zero

        # --- layer 2: conv 8->16 (3x3,p1) + BN + leaky
        a2 = leaky(s2_ref[...] * conv3x3([(a1, w2_ref)], 16) + b2_ref[...])
        # --- layer 3: conv 16->16 (1x1) + BN + leaky
        a3 = leaky(s3_ref[...] * mm(w3_ref[...], a2) + b3_ref[...])
        # --- layer 4: shortcut from=-2 (linear)
        a4 = a2 + a3

        # --- layer 5: conv 16->16 (3x3, stride 2, p1) + BN + leaky.
        # Computed at stride-1 resolution; the true stride-2 output lives at
        # even-y / even-x lanes (the only lanes ever consumed downstream).
        a5 = leaky(s5_ref[...] * conv3x3([(a4, w5_ref)], 16) + b5_ref[...])

        # --- layers 6+7: detection head 1 (1x1 conv 16->21(+pad) + bias, YOLO nG=8)
        d1 = mm(w6_ref[...], a5) + b6_ref[...]
        h1_ref[...] = yolo_decode(d1, xx >> 1, yy >> 1, stride1, anchors1)

        # --- layers 8+9: route -3 (conv5 output) + nearest x2 upsample.
        # U[:, n, Y, X] = conv5out[:, n, Y//2, X//2]  == a5 at (Y&~1, X&~1),
        # realised with two masked lane rotations (exact, no gather matrices).
        x_odd = (xx & 1) == 1
        y_odd = (yy & 1) == 1
        u = jnp.where(x_odd, pltpu.roll(a5, shift=1, axis=1), a5)
        u = jnp.where(y_odd, pltpu.roll(u, shift=16, axis=1), u)

        # --- layers 10+11: route (-1,-6) channel concat + conv 32->16 (3x3,p1).
        # The concat is folded into the conv by splitting its weights.
        a11 = leaky(s11_ref[...] * conv3x3([(u, w11u_ref), (a4, w11a_ref)], 16)
                    + b11_ref[...])

        # --- layers 12+13: detection head 2 (1x1 conv 16->21(+pad) + bias, YOLO nG=16)
        d2 = mm(w12_ref[...], a11) + b12_ref[...]
        h2_ref[...] = yolo_decode(d2, xx, yy, stride2, anchors2)

    return kernel


def _full_spec(shape):
    zero = (0,) * len(shape)
    return pl.BlockSpec(shape, lambda i, _z=zero: _z)


# ----------------------------------------------------------------------------
# Darknet forward (inference path: targets=None)
# ----------------------------------------------------------------------------
def darknet_forward(packed, x_nchw):
    N, C, H, W = x_nchw.shape
    assert (C, H, W) == (3, 32, 32), (C, H, W)
    M = N * 16 * 16

    # The only XLA-side prep: gather the conv0 input patches for the four
    # 2x2-maxpool sub-positions from the (tiny) network input.
    x = jnp.transpose(x_nchw, (1, 0, 2, 3)).astype(jnp.float32)   # NCHW -> CNHW
    xpad = jnp.pad(x, ((0, 0), (0, 0), (1, 1), (1, 1)))
    pats = []
    for pi in range(2):
        for pj in range(2):
            taps = [xpad[:, :, pi + di:pi + di + 31:2, pj + dj:pj + dj + 31:2]
                    for di in range(3) for dj in range(3)]
            pp = jnp.stack(taps, 0).reshape(27, M)      # rows t = (di*3+dj)*3 + ci
            pats.append(jnp.pad(pp, ((0, 5), (0, 0))))
    P = jnp.stack(pats, 0)                              # (4, 32, M)

    kernel = make_darknet_kernel(N, packed["anchors1"], packed["anchors2"],
                                 packed["img_dim"])
    args = [P] + list(packed["args"])
    h1, h2 = pl.pallas_call(
        kernel,
        out_shape=(jax.ShapeDtypeStruct((24, M), jnp.float32),
                   jax.ShapeDtypeStruct((24, M), jnp.float32)),
        grid=(1,),
        in_specs=[_full_spec(a.shape) for a in args],
        out_specs=(_full_spec((24, M)), _full_spec((24, M))),
        compiler_params=pltpu.CompilerParams(dimension_semantics=("arbitrary",)),
    )(*args)

    # Tiny (<=48 KB) XLA re-layouts of the decoded heads to (N, boxes, 7).
    # Head 1 was decoded at full 16x16 lane resolution; its real 8x8 grid
    # cells live at even rows/cols.
    h1 = h1.reshape(24, N, 16, 16)[:, :, ::2, ::2]
    h1 = h1[:21].reshape(3, 7, N, 8, 8).transpose(2, 0, 3, 4, 1).reshape(N, 3 * 64, 7)
    h2 = h2[:21].reshape(3, 7, N, 16, 16).transpose(2, 0, 3, 4, 1).reshape(N, 3 * 256, 7)
    return jnp.concatenate([h1, h2], axis=1)


# ----------------------------------------------------------------------------
if __name__ == "__main__":
    blocks = parse_cfg_text(CFG_TEXT)
    key = jax.random.PRNGKey(0)
    kp, kx = jax.random.split(key)
    params = build_params(blocks, kp)
    packed = pack_fused(blocks, params)

    # PyTorch-style NCHW input: batch=2, channels=3, 32x32 (net height=32)
    x = jax.random.normal(kx, (2, 3, 32, 32), dtype=jnp.float32)

    fwd = jax.jit(lambda xin: darknet_forward(packed, xin))
    out = jax.block_until_ready(fwd(x))

    # two YOLO heads: 3 anchors * (8*8 + 16*16) = 960 boxes, 5+2 attrs each
    assert out.shape == (2, 960, 7), out.shape
    assert bool(jnp.all(jnp.isfinite(out)))
    print("KERNEL_OK")
</pallas_src>

<mosaic_0001>
module attributes {stable_mosaic.version = 11 : i64} {
  func.func @kernel(%arg0: i32, %arg1: memref<4x32x512xf32, #tpu.memory_space<vmem>>, %arg2: memref<16x32xf32, #tpu.memory_space<vmem>>, %arg3: memref<16x1xf32, #tpu.memory_space<vmem>>, %arg4: memref<16x1xf32, #tpu.memory_space<vmem>>, %arg5: memref<9x16x16xf32, #tpu.memory_space<vmem>>, %arg6: memref<16x1xf32, #tpu.memory_space<vmem>>, %arg7: memref<16x1xf32, #tpu.memory_space<vmem>>, %arg8: memref<16x16xf32, #tpu.memory_space<vmem>>, %arg9: memref<16x1xf32, #tpu.memory_space<vmem>>, %arg10: memref<16x1xf32, #tpu.memory_space<vmem>>, %arg11: memref<9x16x16xf32, #tpu.memory_space<vmem>>, %arg12: memref<16x1xf32, #tpu.memory_space<vmem>>, %arg13: memref<16x1xf32, #tpu.memory_space<vmem>>, %arg14: memref<24x16xf32, #tpu.memory_space<vmem>>, %arg15: memref<24x1xf32, #tpu.memory_space<vmem>>, %arg16: memref<9x16x16xf32, #tpu.memory_space<vmem>>, %arg17: memref<9x16x16xf32, #tpu.memory_space<vmem>>, %arg18: memref<16x1xf32, #tpu.memory_space<vmem>>, %arg19: memref<16x1xf32, #tpu.memory_space<vmem>>, %arg20: memref<24x16xf32, #tpu.memory_space<vmem>>, %arg21: memref<24x1xf32, #tpu.memory_space<vmem>>, %arg22: memref<24x512xf32, #tpu.memory_space<vmem>>, %arg23: memref<24x512xf32, #tpu.memory_space<vmem>>) attributes {dimension_semantics = [#tpu.dimension_semantics<arbitrary>], iteration_bounds = array<i64: 1>, scalar_prefetch = 0 : i64, scratch_operands = 0 : i64, tpu.core_type = #tpu.core_type<tc>, window_params = [{pipeline_mode = #tpu.pipeline_mode<synchronous>, transform_indices = @transform_0, window_bounds = array<i64: 4, 32, 512>}, {pipeline_mode = #tpu.pipeline_mode<synchronous>, transform_indices = @transform_1, window_bounds = array<i64: 16, 32>}, {pipeline_mode = #tpu.pipeline_mode<synchronous>, transform_indices = @transform_2, window_bounds = array<i64: 16, 1>}, {pipeline_mode = #tpu.pipeline_mode<synchronous>, transform_indices = @transform_3, window_bounds = array<i64: 16, 1>}, {pipeline_mode = #tpu.pipeline_mode<synchronous>, transform_indices = @transform_4, window_bounds = array<i64: 9, 16, 16>}, {pipeline_mode = #tpu.pipeline_mode<synchronous>, transform_indices = @transform_5, window_bounds = array<i64: 16, 1>}, {pipeline_mode = #tpu.pipeline_mode<synchronous>, transform_indices = @transform_6, window_bounds = array<i64: 16, 1>}, {pipeline_mode = #tpu.pipeline_mode<synchronous>, transform_indices = @transform_7, window_bounds = array<i64: 16, 16>}, {pipeline_mode = #tpu.pipeline_mode<synchronous>, transform_indices = @transform_8, window_bounds = array<i64: 16, 1>}, {pipeline_mode = #tpu.pipeline_mode<synchronous>, transform_indices = @transform_9, window_bounds = array<i64: 16, 1>}, {pipeline_mode = #tpu.pipeline_mode<synchronous>, transform_indices = @transform_10, window_bounds = array<i64: 9, 16, 16>}, {pipeline_mode = #tpu.pipeline_mode<synchronous>, transform_indices = @transform_11, window_bounds = array<i64: 16, 1>}, {pipeline_mode = #tpu.pipeline_mode<synchronous>, transform_indices = @transform_12, window_bounds = array<i64: 16, 1>}, {pipeline_mode = #tpu.pipeline_mode<synchronous>, transform_indices = @transform_13, window_bounds = array<i64: 24, 16>}, {pipeline_mode = #tpu.pipeline_mode<synchronous>, transform_indices = @transform_14, window_bounds = array<i64: 24, 1>}, {pipeline_mode = #tpu.pipeline_mode<synchronous>, transform_indices = @transform_15, window_bounds = array<i64: 9, 16, 16>}, {pipeline_mode = #tpu.pipeline_mode<synchronous>, transform_indices = @transform_16, window_bounds = array<i64: 9, 16, 16>}, {pipeline_mode = #tpu.pipeline_mode<synchronous>, transform_indices = @transform_17, window_bounds = array<i64: 16, 1>}, {pipeline_mode = #tpu.pipeline_mode<synchronous>, transform_indices = @transform_18, window_bounds = array<i64: 16, 1>}, {pipeline_mode = #tpu.pipeline_mode<synchronous>, transform_indices = @transform_19, window_bounds = array<i64: 24, 16>}, {pipeline_mode = #tpu.pipeline_mode<synchronous>, transform_indices = @transform_20, window_bounds = array<i64: 24, 1>}, {pipeline_mode = #tpu.pipeline_mode<synchronous>, transform_indices = @transform_21, window_bounds = array<i64: 24, 512>}, {pipeline_mode = #tpu.pipeline_mode<synchronous>, transform_indices = @transform_22, window_bounds = array<i64: 24, 512>}]} {
    %0 = tpu.iota {dimensions = array<i32: 1>} : vector<1x512xi32>
    %c15_i32 = arith.constant 15 : i32
    %1 = vector.broadcast %c15_i32 : i32 to vector<1x512xi32>
    %2 = arith.andi %0, %1 : vector<1x512xi32>
    %c4_i32 = arith.constant 4 : i32
    %3 = vector.broadcast %c4_i32 : i32 to vector<1x512xi32>
    %4 = arith.shrsi %0, %3 : vector<1x512xi32>
    %c15_i32_0 = arith.constant 15 : i32
    %5 = vector.broadcast %c15_i32_0 : i32 to vector<1x512xi32>
    %6 = arith.andi %4, %5 : vector<1x512xi32>
    %c0 = arith.constant 0 : index
    %c0_1 = arith.constant 0 : index
    %7 = vector.load %arg2[%c0, %c0_1] : memref<16x32xf32, #tpu.memory_space<vmem>>, vector<16x32xf32>
    %c0_2 = arith.constant 0 : index
    %c0_3 = arith.constant 0 : index
    %8 = vector.load %arg3[%c0_2, %c0_3] : memref<16x1xf32, #tpu.memory_space<vmem>>, vector<16x1xf32>
    %c0_4 = arith.constant 0 : index
    %c0_5 = arith.constant 0 : index
    %9 = vector.load %arg4[%c0_4, %c0_5] : memref<16x1xf32, #tpu.memory_space<vmem>>, vector<16x1xf32>
    %c0_6 = arith.constant 0 : index
    %c0_7 = arith.constant 0 : index
    %c0_8 = arith.constant 0 : index
    %10 = vector.load %arg1[%c0_6, %c0_7, %c0_8] : memref<4x32x512xf32, #tpu.memory_space<vmem>>, vector<1x32x512xf32>
    %11 = vector.shape_cast %10 : vector<1x32x512xf32> to vector<32x512xf32>
    %12 = arith.truncf %7 : vector<16x32xf32> to vector<16x32xbf16>
    %13 = arith.truncf %11 : vector<32x512xf32> to vector<32x512xbf16>
    %cst = arith.constant dense<0.000000e+00> : vector<16x512xf32>
    %14 = tpu.matmul %12, %13, %cst {dimension_numbers = #tpu.dot_dimension_numbers<[1], [0], [0], [1], [0, 0, 1, 1], [], []>} : vector<16x32xbf16>, vector<32x512xbf16>, vector<16x512xf32> -> vector<16x512xf32>
    %15 = vector.broadcast %8 : vector<16x1xf32> to vector<16x512xf32>
    %16 = arith.mulf %15, %14 : vector<16x512xf32>
    %17 = vector.broadcast %9 : vector<16x1xf32> to vector<16x512xf32>
    %18 = arith.addf %16, %17 : vector<16x512xf32>
    %cst_9 = arith.constant 0.000000e+00 : f32
    %19 = vector.broadcast %cst_9 : f32 to vector<16x512xf32>
    %20 = arith.cmpf ogt, %18, %19 : vector<16x512xf32>
    %cst_10 = arith.constant 1.000000e-01 : f32
    %21 = vector.broadcast %cst_10 : f32 to vector<16x512xf32>
    %22 = arith.mulf %21, %18 : vector<16x512xf32>
    %23 = arith.select %20, %18, %22 : vector<16x512xi1>, vector<16x512xf32>
    %c1 = arith.constant 1 : index
    %c0_11 = arith.constant 0 : index
    %c0_12 = arith.constant 0 : index
    %24 = vector.load %arg1[%c1, %c0_11, %c0_12] : memref<4x32x512xf32, #tpu.memory_space<vmem>>, vector<1x32x512xf32>
    %25 = vector.shape_cast %24 : vector<1x32x512xf32> to vector<32x512xf32>
    %26 = arith.truncf %7 : vector<16x32xf32> to vector<16x32xbf16>
    %27 = arith.truncf %25 : vector<32x512xf32> to vector<32x512xbf16>
    %cst_13 = arith.constant dense<0.000000e+00> : vector<16x512xf32>
    %28 = tpu.matmul %26, %27, %cst_13 {dimension_numbers = #tpu.dot_dimension_numbers<[1], [0], [0], [1], [0, 0, 1, 1], [], []>} : vector<16x32xbf16>, vector<32x512xbf16>, vector<16x512xf32> -> vector<16x512xf32>
    %29 = vector.broadcast %8 : vector<16x1xf32> to vector<16x512xf32>
    %30 = arith.mulf %29, %28 : vector<16x512xf32>
    %31 = vector.broadcast %9 : vector<16x1xf32> to vector<16x512xf32>
    %32 = arith.addf %30, %31 : vector<16x512xf32>
    %cst_14 = arith.constant 0.000000e+00 : f32
    %33 = vector.broadcast %cst_14 : f32 to vector<16x512xf32>
    %34 = arith.cmpf ogt, %32, %33 : vector<16x512xf32>
    %cst_15 = arith.constant 1.000000e-01 : f32
    %35 = vector.broadcast %cst_15 : f32 to vector<16x512xf32>
    %36 = arith.mulf %35, %32 : vector<16x512xf32>
    %37 = arith.select %34, %32, %36 : vector<16x512xi1>, vector<16x512xf32>
    %38 = arith.maximumf %23, %37 : vector<16x512xf32>
    %c2 = arith.constant 2 : index
    %c0_16 = arith.constant 0 : index
    %c0_17 = arith.constant 0 : index
    %39 = vector.load %arg1[%c2, %c0_16, %c0_17] : memref<4x32x512xf32, #tpu.memory_space<vmem>>, vector<1x32x512xf32>
    %40 = vector.shape_cast %39 : vector<1x32x512xf32> to vector<32x512xf32>
    %41 = arith.truncf %7 : vector<16x32xf32> to vector<16x32xbf16>
    %42 = arith.truncf %40 : vector<32x512xf32> to vector<32x512xbf16>
    %cst_18 = arith.constant dense<0.000000e+00> : vector<16x512xf32>
    %43 = tpu.matmul %41, %42, %cst_18 {dimension_numbers = #tpu.dot_dimension_numbers<[1], [0], [0], [1], [0, 0, 1, 1], [], []>} : vector<16x32xbf16>, vector<32x512xbf16>, vector<16x512xf32> -> vector<16x512xf32>
    %44 = vector.broadcast %8 : vector<16x1xf32> to vector<16x512xf32>
    %45 = arith.mulf %44, %43 : vector<16x512xf32>
    %46 = vector.broadcast %9 : vector<16x1xf32> to vector<16x512xf32>
    %47 = arith.addf %45, %46 : vector<16x512xf32>
    %cst_19 = arith.constant 0.000000e+00 : f32
    %48 = vector.broadcast %cst_19 : f32 to vector<16x512xf32>
    %49 = arith.cmpf ogt, %47, %48 : vector<16x512xf32>
    %cst_20 = arith.constant 1.000000e-01 : f32
    %50 = vector.broadcast %cst_20 : f32 to vector<16x512xf32>
    %51 = arith.mulf %50, %47 : vector<16x512xf32>
    %52 = arith.select %49, %47, %51 : vector<16x512xi1>, vector<16x512xf32>
    %53 = arith.maximumf %38, %52 : vector<16x512xf32>
    %c3 = arith.constant 3 : index
    %c0_21 = arith.constant 0 : index
    %c0_22 = arith.constant 0 : index
    %54 = vector.load %arg1[%c3, %c0_21, %c0_22] : memref<4x32x512xf32, #tpu.memory_space<vmem>>, vector<1x32x512xf32>
    %55 = vector.shape_cast %54 : vector<1x32x512xf32> to vector<32x512xf32>
    %56 = arith.truncf %7 : vector<16x32xf32> to vector<16x32xbf16>
    %57 = arith.truncf %55 : vector<32x512xf32> to vector<32x512xbf16>
    %cst_23 = arith.constant dense<0.000000e+00> : vector<16x512xf32>
    %58 = tpu.matmul %56, %57, %cst_23 {dimension_numbers = #tpu.dot_dimension_numbers<[1], [0], [0], [1], [0, 0, 1, 1], [], []>} : vector<16x32xbf16>, vector<32x512xbf16>, vector<16x512xf32> -> vector<16x512xf32>
    %59 = vector.broadcast %8 : vector<16x1xf32> to vector<16x512xf32>
    %60 = arith.mulf %59, %58 : vector<16x512xf32>
    %61 = vector.broadcast %9 : vector<16x1xf32> to vector<16x512xf32>
    %62 = arith.addf %60, %61 : vector<16x512xf32>
    %cst_24 = arith.constant 0.000000e+00 : f32
    %63 = vector.broadcast %cst_24 : f32 to vector<16x512xf32>
    %64 = arith.cmpf ogt, %62, %63 : vector<16x512xf32>
    %cst_25 = arith.constant 1.000000e-01 : f32
    %65 = vector.broadcast %cst_25 : f32 to vector<16x512xf32>
    %66 = arith.mulf %65, %62 : vector<16x512xf32>
    %67 = arith.select %64, %62, %66 : vector<16x512xi1>, vector<16x512xf32>
    %68 = arith.maximumf %53, %67 : vector<16x512xf32>
    %c0_26 = arith.constant 0 : index
    %c0_27 = arith.constant 0 : index
    %69 = vector.load %arg6[%c0_26, %c0_27] : memref<16x1xf32, #tpu.memory_space<vmem>>, vector<16x1xf32>
    %cst_28 = arith.constant 0.000000e+00 : f32
    %70 = vector.broadcast %cst_28 : f32 to vector<16x512xf32>
    %c1_i32 = arith.constant 1 : i32
    %71 = vector.broadcast %c1_i32 : i32 to vector<1x512xi32>
    %72 = arith.cmpi sge, %2, %71 : vector<1x512xi32>
    %c1_i32_29 = arith.constant 1 : i32
    %73 = vector.broadcast %c1_i32_29 : i32 to vector<1x512xi32>
    %74 = arith.cmpi sge, %6, %73 : vector<1x512xi32>
    %75 = arith.andi %72, %74 : vector<1x512xi1>
    %c17_i32 = arith.constant 17 : i32
    %76 = tpu.dynamic_rotate %68 by %c17_i32 dim 1 : vector<16x512xf32>, i32 -> vector<16x512xf32>
    %cst_30 = arith.constant 0.000000e+00 : f32
    %77 = vector.shape_cast %75 : vector<1x512xi1> to vector<1x512xi1>
    %78 = vector.broadcast %77 : vector<1x512xi1> to vector<16x512xi1>
    %79 = vector.broadcast %cst_30 : f32 to vector<16x512xf32>
    %80 = arith.select %78, %76, %79 : vector<16x512xi1>, vector<16x512xf32>
    %c0_31 = arith.constant 0 : index
    %c0_32 = arith.constant 0 : index
    %c0_33 = arith.constant 0 : index
    %81 = vector.load %arg5[%c0_31, %c0_32, %c0_33] : memref<9x16x16xf32, #tpu.memory_space<vmem>>, vector<1x16x16xf32>
    %82 = vector.shape_cast %81 : vector<1x16x16xf32> to vector<16x16xf32>
    %83 = arith.truncf %82 : vector<16x16xf32> to vector<16x16xbf16>
    %84 = arith.truncf %80 : vector<16x512xf32> to vector<16x512xbf16>
    %cst_34 = arith.constant dense<0.000000e+00> : vector<16x512xf32>
    %85 = tpu.matmul %83, %84, %cst_34 {dimension_numbers = #tpu.dot_dimension_numbers<[1], [0], [0], [1], [0, 0, 1, 1], [], []>} : vector<16x16xbf16>, vector<16x512xbf16>, vector<16x512xf32> -> vector<16x512xf32>
    %86 = arith.addf %70, %85 : vector<16x512xf32>
    %c1_i32_35 = arith.constant 1 : i32
    %87 = vector.broadcast %c1_i32_35 : i32 to vector<1x512xi32>
    %88 = arith.cmpi sge, %6, %87 : vector<1x512xi32>
    %c16_i32 = arith.constant 16 : i32
    %89 = tpu.dynamic_rotate %68 by %c16_i32 dim 1 : vector<16x512xf32>, i32 -> vector<16x512xf32>
    %cst_36 = arith.constant 0.000000e+00 : f32
    %90 = vector.shape_cast %88 : vector<1x512xi1> to vector<1x512xi1>
    %91 = vector.broadcast %90 : vector<1x512xi1> to vector<16x512xi1>
    %92 = vector.broadcast %cst_36 : f32 to vector<16x512xf32>
    %93 = arith.select %91, %89, %92 : vector<16x512xi1>, vector<16x512xf32>
    %c1_37 = arith.constant 1 : index
    %c0_38 = arith.constant 0 : index
    %c0_39 = arith.constant 0 : index
    %94 = vector.load %arg5[%c1_37, %c0_38, %c0_39] : memref<9x16x16xf32, #tpu.memory_space<vmem>>, vector<1x16x16xf32>
    %95 = vector.shape_cast %94 : vector<1x16x16xf32> to vector<16x16xf32>
    %96 = arith.truncf %95 : vector<16x16xf32> to vector<16x16xbf16>
    %97 = arith.truncf %93 : vector<16x512xf32> to vector<16x512xbf16>
    %cst_40 = arith.constant dense<0.000000e+00> : vector<16x512xf32>
    %98 = tpu.matmul %96, %97, %cst_40 {dimension_numbers = #tpu.dot_dimension_numbers<[1], [0], [0], [1], [0, 0, 1, 1], [], []>} : vector<16x16xbf16>, vector<16x512xbf16>, vector<16x512xf32> -> vector<16x512xf32>
    %99 = arith.addf %86, %98 : vector<16x512xf32>
    %c14_i32 = arith.constant 14 : i32
    %100 = vector.broadcast %c14_i32 : i32 to vector<1x512xi32>
    %101 = arith.cmpi sle, %2, %100 : vector<1x512xi32>
    %c1_i32_41 = arith.constant 1 : i32
    %102 = vector.broadcast %c1_i32_41 : i32 to vector<1x512xi32>
    %103 = arith.cmpi sge, %6, %102 : vector<1x512xi32>
    %104 = arith.andi %101, %103 : vector<1x512xi1>
    %c15_i32_42 = arith.constant 15 : i32
    %105 = tpu.dynamic_rotate %68 by %c15_i32_42 dim 1 : vector<16x512xf32>, i32 -> vector<16x512xf32>
    %cst_43 = arith.constant 0.000000e+00 : f32
    %106 = vector.shape_cast %104 : vector<1x512xi1> to vector<1x512xi1>
    %107 = vector.broadcast %106 : vector<1x512xi1> to vector<16x512xi1>
    %108 = vector.broadcast %cst_43 : f32 to vector<16x512xf32>
    %109 = arith.select %107, %105, %108 : vector<16x512xi1>, vector<16x512xf32>
    %c2_44 = arith.constant 2 : index
    %c0_45 = arith.constant 0 : index
    %c0_46 = arith.constant 0 : index
    %110 = vector.load %arg5[%c2_44, %c0_45, %c0_46] : memref<9x16x16xf32, #tpu.memory_space<vmem>>, vector<1x16x16xf32>
    %111 = vector.shape_cast %110 : vector<1x16x16xf32> to vector<16x16xf32>
    %112 = arith.truncf %111 : vector<16x16xf32> to vector<16x16xbf16>
    %113 = arith.truncf %109 : vector<16x512xf32> to vector<16x512xbf16>
    %cst_47 = arith.constant dense<0.000000e+00> : vector<16x512xf32>
    %114 = tpu.matmul %112, %113, %cst_47 {dimension_numbers = #tpu.dot_dimension_numbers<[1], [0], [0], [1], [0, 0, 1, 1], [], []>} : vector<16x16xbf16>, vector<16x512xbf16>, vector<16x512xf32> -> vector<16x512xf32>
    %115 = arith.addf %99, %114 : vector<16x512xf32>
    %c1_i32_48 = arith.constant 1 : i32
    %116 = vector.broadcast %c1_i32_48 : i32 to vector<1x512xi32>
    %117 = arith.cmpi sge, %2, %116 : vector<1x512xi32>
    %c1_i32_49 = arith.constant 1 : i32
    %118 = tpu.dynamic_rotate %68 by %c1_i32_49 dim 1 : vector<16x512xf32>, i32 -> vector<16x512xf32>
    %cst_50 = arith.constant 0.000000e+00 : f32
    %119 = vector.shape_cast %117 : vector<1x512xi1> to vector<1x512xi1>
    %120 = vector.broadcast %119 : vector<1x512xi1> to vector<16x512xi1>
    %121 = vector.broadcast %cst_50 : f32 to vector<16x512xf32>
    %122 = arith.select %120, %118, %121 : vector<16x512xi1>, vector<16x512xf32>
    %c3_51 = arith.constant 3 : index
    %c0_52 = arith.constant 0 : index
    %c0_53 = arith.constant 0 : index
    %123 = vector.load %arg5[%c3_51, %c0_52, %c0_53] : memref<9x16x16xf32, #tpu.memory_space<vmem>>, vector<1x16x16xf32>
    %124 = vector.shape_cast %123 : vector<1x16x16xf32> to vector<16x16xf32>
    %125 = arith.truncf %124 : vector<16x16xf32> to vector<16x16xbf16>
    %126 = arith.truncf %122 : vector<16x512xf32> to vector<16x512xbf16>
    %cst_54 = arith.constant dense<0.000000e+00> : vector<16x512xf32>
    %127 = tpu.matmul %125, %126, %cst_54 {dimension_numbers = #tpu.dot_dimension_numbers<[1], [0], [0], [1], [0, 0, 1, 1], [], []>} : vector<16x16xbf16>, vector<16x512xbf16>, vector<16x512xf32> -> vector<16x512xf32>
    %128 = arith.addf %115, %127 : vector<16x512xf32>
    %c4 = arith.constant 4 : index
    %c0_55 = arith.constant 0 : index
    %c0_56 = arith.constant 0 : index
    %129 = vector.load %arg5[%c4, %c0_55, %c0_56] : memref<9x16x16xf32, #tpu.memory_space<vmem>>, vector<1x16x16xf32>
    %130 = vector.shape_cast %129 : vector<1x16x16xf32> to vector<16x16xf32>
    %131 = arith.truncf %130 : vector<16x16xf32> to vector<16x16xbf16>
    %132 = arith.truncf %68 : vector<16x512xf32> to vector<16x512xbf16>
    %cst_57 = arith.constant dense<0.000000e+00> : vector<16x512xf32>
    %133 = tpu.matmul %131, %132, %cst_57 {dimension_numbers = #tpu.dot_dimension_numbers<[1], [0], [0], [1], [0, 0, 1, 1], [], []>} : vector<16x16xbf16>, vector<16x512xbf16>, vector<16x512xf32> -> vector<16x512xf32>
    %134 = arith.addf %128, %133 : vector<16x512xf32>
    %c14_i32_58 = arith.constant 14 : i32
    %135 = vector.broadcast %c14_i32_58 : i32 to vector<1x512xi32>
    %136 = arith.cmpi sle, %2, %135 : vector<1x512xi32>
    %c511_i32 = arith.constant 511 : i32
    %137 = tpu.dynamic_rotate %68 by %c511_i32 dim 1 : vector<16x512xf32>, i32 -> vector<16x512xf32>
    %cst_59 = arith.constant 0.000000e+00 : f32
    %138 = vector.shape_cast %136 : vector<1x512xi1> to vector<1x512xi1>
    %139 = vector.broadcast %138 : vector<1x512xi1> to vector<16x512xi1>
    %140 = vector.broadcast %cst_59 : f32 to vector<16x512xf32>
    %141 = arith.select %139, %137, %140 : vector<16x512xi1>, vector<16x512xf32>
    %c5 = arith.constant 5 : index
    %c0_60 = arith.constant 0 : index
    %c0_61 = arith.constant 0 : index
    %142 = vector.load %arg5[%c5, %c0_60, %c0_61] : memref<9x16x16xf32, #tpu.memory_space<vmem>>, vector<1x16x16xf32>
    %143 = vector.shape_cast %142 : vector<1x16x16xf32> to vector<16x16xf32>
    %144 = arith.truncf %143 : vector<16x16xf32> to vector<16x16xbf16>
    %145 = arith.truncf %141 : vector<16x512xf32> to vector<16x512xbf16>
    %cst_62 = arith.constant dense<0.000000e+00> : vector<16x512xf32>
    %146 = tpu.matmul %144, %145, %cst_62 {dimension_numbers = #tpu.dot_dimension_numbers<[1], [0], [0], [1], [0, 0, 1, 1], [], []>} : vector<16x16xbf16>, vector<16x512xbf16>, vector<16x512xf32> -> vector<16x512xf32>
    %147 = arith.addf %134, %146 : vector<16x512xf32>
    %c1_i32_63 = arith.constant 1 : i32
    %148 = vector.broadcast %c1_i32_63 : i32 to vector<1x512xi32>
    %149 = arith.cmpi sge, %2, %148 : vector<1x512xi32>
    %c14_i32_64 = arith.constant 14 : i32
    %150 = vector.broadcast %c14_i32_64 : i32 to vector<1x512xi32>
    %151 = arith.cmpi sle, %6, %150 : vector<1x512xi32>
    %152 = arith.andi %149, %151 : vector<1x512xi1>
    %c497_i32 = arith.constant 497 : i32
    %153 = tpu.dynamic_rotate %68 by %c497_i32 dim 1 : vector<16x512xf32>, i32 -> vector<16x512xf32>
    %cst_65 = arith.constant 0.000000e+00 : f32
    %154 = vector.shape_cast %152 : vector<1x512xi1> to vector<1x512xi1>
    %155 = vector.broadcast %154 : vector<1x512xi1> to vector<16x512xi1>
    %156 = vector.broadcast %cst_65 : f32 to vector<16x512xf32>
    %157 = arith.select %155, %153, %156 : vector<16x512xi1>, vector<16x512xf32>
    %c6 = arith.constant 6 : index
    %c0_66 = arith.constant 0 : index
    %c0_67 = arith.constant 0 : index
    %158 = vector.load %arg5[%c6, %c0_66, %c0_67] : memref<9x16x16xf32, #tpu.memory_space<vmem>>, vector<1x16x16xf32>
    %159 = vector.shape_cast %158 : vector<1x16x16xf32> to vector<16x16xf32>
    %160 = arith.truncf %159 : vector<16x16xf32> to vector<16x16xbf16>
    %161 = arith.truncf %157 : vector<16x512xf32> to vector<16x512xbf16>
    %cst_68 = arith.constant dense<0.000000e+00> : vector<16x512xf32>
    %162 = tpu.matmul %160, %161, %cst_68 {dimension_numbers = #tpu.dot_dimension_numbers<[1], [0], [0], [1], [0, 0, 1, 1], [], []>} : vector<16x16xbf16>, vector<16x512xbf16>, vector<16x512xf32> -> vector<16x512xf32>
    %163 = arith.addf %147, %162 : vector<16x512xf32>
    %c14_i32_69 = arith.constant 14 : i32
    %164 = vector.broadcast %c14_i32_69 : i32 to vector<1x512xi32>
    %165 = arith.cmpi sle, %6, %164 : vector<1x512xi32>
    %c496_i32 = arith.constant 496 : i32
    %166 = tpu.dynamic_rotate %68 by %c496_i32 dim 1 : vector<16x512xf32>, i32 -> vector<16x512xf32>
    %cst_70 = arith.constant 0.000000e+00 : f32
    %167 = vector.shape_cast %165 : vector<1x512xi1> to vector<1x512xi1>
    %168 = vector.broadcast %167 : vector<1x512xi1> to vector<16x512xi1>
    %169 = vector.broadcast %cst_70 : f32 to vector<16x512xf32>
    %170 = arith.select %168, %166, %169 : vector<16x512xi1>, vector<16x512xf32>
    %c7 = arith.constant 7 : index
    %c0_71 = arith.constant 0 : index
    %c0_72 = arith.constant 0 : index
    %171 = vector.load %arg5[%c7, %c0_71, %c0_72] : memref<9x16x16xf32, #tpu.memory_space<vmem>>, vector<1x16x16xf32>
    %172 = vector.shape_cast %171 : vector<1x16x16xf32> to vector<16x16xf32>
    %173 = arith.truncf %172 : vector<16x16xf32> to vector<16x16xbf16>
    %174 = arith.truncf %170 : vector<16x512xf32> to vector<16x512xbf16>
    %cst_73 = arith.constant dense<0.000000e+00> : vector<16x512xf32>
    %175 = tpu.matmul %173, %174, %cst_73 {dimension_numbers = #tpu.dot_dimension_numbers<[1], [0], [0], [1], [0, 0, 1, 1], [], []>} : vector<16x16xbf16>, vector<16x512xbf16>, vector<16x512xf32> -> vector<16x512xf32>
    %176 = arith.addf %163, %175 : vector<16x512xf32>
    %c14_i32_74 = arith.constant 14 : i32
    %177 = vector.broadcast %c14_i32_74 : i32 to vector<1x512xi32>
    %178 = arith.cmpi sle, %2, %177 : vector<1x512xi32>
    %c14_i32_75 = arith.constant 14 : i32
    %179 = vector.broadcast %c14_i32_75 : i32 to vector<1x512xi32>
    %180 = arith.cmpi sle, %6, %179 : vector<1x512xi32>
    %181 = arith.andi %178, %180 : vector<1x512xi1>
    %c495_i32 = arith.constant 495 : i32
    %182 = tpu.dynamic_rotate %68 by %c495_i32 dim 1 : vector<16x512xf32>, i32 -> vector<16x512xf32>
    %cst_76 = arith.constant 0.000000e+00 : f32
    %183 = vector.shape_cast %181 : vector<1x512xi1> to vector<1x512xi1>
    %184 = vector.broadcast %183 : vector<1x512xi1> to vector<16x512xi1>
    %185 = vector.broadcast %cst_76 : f32 to vector<16x512xf32>
    %186 = arith.select %184, %182, %185 : vector<16x512xi1>, vector<16x512xf32>
    %c8 = arith.constant 8 : index
    %c0_77 = arith.constant 0 : index
    %c0_78 = arith.constant 0 : index
    %187 = vector.load %arg5[%c8, %c0_77, %c0_78] : memref<9x16x16xf32, #tpu.memory_space<vmem>>, vector<1x16x16xf32>
    %188 = vector.shape_cast %187 : vector<1x16x16xf32> to vector<16x16xf32>
    %189 = arith.truncf %188 : vector<16x16xf32> to vector<16x16xbf16>
    %190 = arith.truncf %186 : vector<16x512xf32> to vector<16x512xbf16>
    %cst_79 = arith.constant dense<0.000000e+00> : vector<16x512xf32>
    %191 = tpu.matmul %189, %190, %cst_79 {dimension_numbers = #tpu.dot_dimension_numbers<[1], [0], [0], [1], [0, 0, 1, 1], [], []>} : vector<16x16xbf16>, vector<16x512xbf16>, vector<16x512xf32> -> vector<16x512xf32>
    %192 = arith.addf %176, %191 : vector<16x512xf32>
    %193 = vector.broadcast %69 : vector<16x1xf32> to vector<16x512xf32>
    %194 = arith.mulf %193, %192 : vector<16x512xf32>
    %c0_80 = arith.constant 0 : index
    %c0_81 = arith.constant 0 : index
    %195 = vector.load %arg7[%c0_80, %c0_81] : memref<16x1xf32, #tpu.memory_space<vmem>>, vector<16x1xf32>
    %196 = vector.broadcast %195 : vector<16x1xf32> to vector<16x512xf32>
    %197 = arith.addf %194, %196 : vector<16x512xf32>
    %cst_82 = arith.constant 0.000000e+00 : f32
    %198 = vector.broadcast %cst_82 : f32 to vector<16x512xf32>
    %199 = arith.cmpf ogt, %197, %198 : vector<16x512xf32>
    %cst_83 = arith.constant 1.000000e-01 : f32
    %200 = vector.broadcast %cst_83 : f32 to vector<16x512xf32>
    %201 = arith.mulf %200, %197 : vector<16x512xf32>
    %202 = arith.select %199, %197, %201 : vector<16x512xi1>, vector<16x512xf32>
    %c0_84 = arith.constant 0 : index
    %c0_85 = arith.constant 0 : index
    %203 = vector.load %arg9[%c0_84, %c0_85] : memref<16x1xf32, #tpu.memory_space<vmem>>, vector<16x1xf32>
    %c0_86 = arith.constant 0 : index
    %c0_87 = arith.constant 0 : index
    %204 = vector.load %arg8[%c0_86, %c0_87] : memref<16x16xf32, #tpu.memory_space<vmem>>, vector<16x16xf32>
    %205 = arith.truncf %204 : vector<16x16xf32> to vector<16x16xbf16>
    %206 = arith.truncf %202 : vector<16x512xf32> to vector<16x512xbf16>
    %cst_88 = arith.constant dense<0.000000e+00> : vector<16x512xf32>
    %207 = tpu.matmul %205, %206, %cst_88 {dimension_numbers = #tpu.dot_dimension_numbers<[1], [0], [0], [1], [0, 0, 1, 1], [], []>} : vector<16x16xbf16>, vector<16x512xbf16>, vector<16x512xf32> -> vector<16x512xf32>
    %208 = vector.broadcast %203 : vector<16x1xf32> to vector<16x512xf32>
    %209 = arith.mulf %208, %207 : vector<16x512xf32>
    %c0_89 = arith.constant 0 : index
    %c0_90 = arith.constant 0 : index
    %210 = vector.load %arg10[%c0_89, %c0_90] : memref<16x1xf32, #tpu.memory_space<vmem>>, vector<16x1xf32>
    %211 = vector.broadcast %210 : vector<16x1xf32> to vector<16x512xf32>
    %212 = arith.addf %209, %211 : vector<16x512xf32>
    %cst_91 = arith.constant 0.000000e+00 : f32
    %213 = vector.broadcast %cst_91 : f32 to vector<16x512xf32>
    %214 = arith.cmpf ogt, %212, %213 : vector<16x512xf32>
    %cst_92 = arith.constant 1.000000e-01 : f32
    %215 = vector.broadcast %cst_92 : f32 to vector<16x512xf32>
    %216 = arith.mulf %215, %212 : vector<16x512xf32>
    %217 = arith.select %214, %212, %216 : vector<16x512xi1>, vector<16x512xf32>
    %218 = arith.addf %202, %217 : vector<16x512xf32>
    %c0_93 = arith.constant 0 : index
    %c0_94 = arith.constant 0 : index
    %219 = vector.load %arg12[%c0_93, %c0_94] : memref<16x1xf32, #tpu.memory_space<vmem>>, vector<16x1xf32>
    %cst_95 = arith.constant 0.000000e+00 : f32
    %220 = vector.broadcast %cst_95 : f32 to vector<16x512xf32>
    %c1_i32_96 = arith.constant 1 : i32
    %221 = vector.broadcast %c1_i32_96 : i32 to vector<1x512xi32>
    %222 = arith.cmpi sge, %2, %221 : vector<1x512xi32>
    %c1_i32_97 = arith.constant 1 : i32
    %223 = vector.broadcast %c1_i32_97 : i32 to vector<1x512xi32>
    %224 = arith.cmpi sge, %6, %223 : vector<1x512xi32>
    %225 = arith.andi %222, %224 : vector<1x512xi1>
    %c17_i32_98 = arith.constant 17 : i32
    %226 = tpu.dynamic_rotate %218 by %c17_i32_98 dim 1 : vector<16x512xf32>, i32 -> vector<16x512xf32>
    %cst_99 = arith.constant 0.000000e+00 : f32
    %227 = vector.shape_cast %225 : vector<1x512xi1> to vector<1x512xi1>
    %228 = vector.broadcast %227 : vector<1x512xi1> to vector<16x512xi1>
    %229 = vector.broadcast %cst_99 : f32 to vector<16x512xf32>
    %230 = arith.select %228, %226, %229 : vector<16x512xi1>, vector<16x512xf32>
    %c0_100 = arith.constant 0 : index
    %c0_101 = arith.constant 0 : index
    %c0_102 = arith.constant 0 : index
    %231 = vector.load %arg11[%c0_100, %c0_101, %c0_102] : memref<9x16x16xf32, #tpu.memory_space<vmem>>, vector<1x16x16xf32>
    %232 = vector.shape_cast %231 : vector<1x16x16xf32> to vector<16x16xf32>
    %233 = arith.truncf %232 : vector<16x16xf32> to vector<16x16xbf16>
    %234 = arith.truncf %230 : vector<16x512xf32> to vector<16x512xbf16>
    %cst_103 = arith.constant dense<0.000000e+00> : vector<16x512xf32>
    %235 = tpu.matmul %233, %234, %cst_103 {dimension_numbers = #tpu.dot_dimension_numbers<[1], [0], [0], [1], [0, 0, 1, 1], [], []>} : vector<16x16xbf16>, vector<16x512xbf16>, vector<16x512xf32> -> vector<16x512xf32>
    %236 = arith.addf %220, %235 : vector<16x512xf32>
    %c1_i32_104 = arith.constant 1 : i32
    %237 = vector.broadcast %c1_i32_104 : i32 to vector<1x512xi32>
    %238 = arith.cmpi sge, %6, %237 : vector<1x512xi32>
    %c16_i32_105 = arith.constant 16 : i32
    %239 = tpu.dynamic_rotate %218 by %c16_i32_105 dim 1 : vector<16x512xf32>, i32 -> vector<16x512xf32>
    %cst_106 = arith.constant 0.000000e+00 : f32
    %240 = vector.shape_cast %238 : vector<1x512xi1> to vector<1x512xi1>
    %241 = vector.broadcast %240 : vector<1x512xi1> to vector<16x512xi1>
    %242 = vector.broadcast %cst_106 : f32 to vector<16x512xf32>
    %243 = arith.select %241, %239, %242 : vector<16x512xi1>, vector<16x512xf32>
    %c1_107 = arith.constant 1 : index
    %c0_108 = arith.constant 0 : index
    %c0_109 = arith.constant 0 : index
    %244 = vector.load %arg11[%c1_107, %c0_108, %c0_109] : memref<9x16x16xf32, #tpu.memory_space<vmem>>, vector<1x16x16xf32>
    %245 = vector.shape_cast %244 : vector<1x16x16xf32> to vector<16x16xf32>
    %246 = arith.truncf %245 : vector<16x16xf32> to vector<16x16xbf16>
    %247 = arith.truncf %243 : vector<16x512xf32> to vector<16x512xbf16>
    %cst_110 = arith.constant dense<0.000000e+00> : vector<16x512xf32>
    %248 = tpu.matmul %246, %247, %cst_110 {dimension_numbers = #tpu.dot_dimension_numbers<[1], [0], [0], [1], [0, 0, 1, 1], [], []>} : vector<16x16xbf16>, vector<16x512xbf16>, vector<16x512xf32> -> vector<16x512xf32>
    %249 = arith.addf %236, %248 : vector<16x512xf32>
    %c14_i32_111 = arith.constant 14 : i32
    %250 = vector.broadcast %c14_i32_111 : i32 to vector<1x512xi32>
    %251 = arith.cmpi sle, %2, %250 : vector<1x512xi32>
    %c1_i32_112 = arith.constant 1 : i32
    %252 = vector.broadcast %c1_i32_112 : i32 to vector<1x512xi32>
    %253 = arith.cmpi sge, %6, %252 : vector<1x512xi32>
    %254 = arith.andi %251, %253 : vector<1x512xi1>
    %c15_i32_113 = arith.constant 15 : i32
    %255 = tpu.dynamic_rotate %218 by %c15_i32_113 dim 1 : vector<16x512xf32>, i32 -> vector<16x512xf32>
    %cst_114 = arith.constant 0.000000e+00 : f32
    %256 = vector.shape_cast %254 : vector<1x512xi1> to vector<1x512xi1>
    %257 = vector.broadcast %256 : vector<1x512xi1> to vector<16x512xi1>
    %258 = vector.broadcast %cst_114 : f32 to vector<16x512xf32>
    %259 = arith.select %257, %255, %258 : vector<16x512xi1>, vector<16x512xf32>
    %c2_115 = arith.constant 2 : index
    %c0_116 = arith.constant 0 : index
    %c0_117 = arith.constant 0 : index
    %260 = vector.load %arg11[%c2_115, %c0_116, %c0_117] : memref<9x16x16xf32, #tpu.memory_space<vmem>>, vector<1x16x16xf32>
    %261 = vector.shape_cast %260 : vector<1x16x16xf32> to vector<16x16xf32>
    %262 = arith.truncf %261 : vector<16x16xf32> to vector<16x16xbf16>
    %263 = arith.truncf %259 : vector<16x512xf32> to vector<16x512xbf16>
    %cst_118 = arith.constant dense<0.000000e+00> : vector<16x512xf32>
    %264 = tpu.matmul %262, %263, %cst_118 {dimension_numbers = #tpu.dot_dimension_numbers<[1], [0], [0], [1], [0, 0, 1, 1], [], []>} : vector<16x16xbf16>, vector<16x512xbf16>, vector<16x512xf32> -> vector<16x512xf32>
    %265 = arith.addf %249, %264 : vector<16x512xf32>
    %c1_i32_119 = arith.constant 1 : i32
    %266 = vector.broadcast %c1_i32_119 : i32 to vector<1x512xi32>
    %267 = arith.cmpi sge, %2, %266 : vector<1x512xi32>
    %c1_i32_120 = arith.constant 1 : i32
    %268 = tpu.dynamic_rotate %218 by %c1_i32_120 dim 1 : vector<16x512xf32>, i32 -> vector<16x512xf32>
    %cst_121 = arith.constant 0.000000e+00 : f32
    %269 = vector.shape_cast %267 : vector<1x512xi1> to vector<1x512xi1>
    %270 = vector.broadcast %269 : vector<1x512xi1> to vector<16x512xi1>
    %271 = vector.broadcast %cst_121 : f32 to vector<16x512xf32>
    %272 = arith.select %270, %268, %271 : vector<16x512xi1>, vector<16x512xf32>
    %c3_122 = arith.constant 3 : index
    %c0_123 = arith.constant 0 : index
    %c0_124 = arith.constant 0 : index
    %273 = vector.load %arg11[%c3_122, %c0_123, %c0_124] : memref<9x16x16xf32, #tpu.memory_space<vmem>>, vector<1x16x16xf32>
    %274 = vector.shape_cast %273 : vector<1x16x16xf32> to vector<16x16xf32>
    %275 = arith.truncf %274 : vector<16x16xf32> to vector<16x16xbf16>
    %276 = arith.truncf %272 : vector<16x512xf32> to vector<16x512xbf16>
    %cst_125 = arith.constant dense<0.000000e+00> : vector<16x512xf32>
    %277 = tpu.matmul %275, %276, %cst_125 {dimension_numbers = #tpu.dot_dimension_numbers<[1], [0], [0], [1], [0, 0, 1, 1], [], []>} : vector<16x16xbf16>, vector<16x512xbf16>, vector<16x512xf32> -> vector<16x512xf32>
    %278 = arith.addf %265, %277 : vector<16x512xf32>
    %c4_126 = arith.constant 4 : index
    %c0_127 = arith.constant 0 : index
    %c0_128 = arith.constant 0 : index
    %279 = vector.load %arg11[%c4_126, %c0_127, %c0_128] : memref<9x16x16xf32, #tpu.memory_space<vmem>>, vector<1x16x16xf32>
    %280 = vector.shape_cast %279 : vector<1x16x16xf32> to vector<16x16xf32>
    %281 = arith.truncf %280 : vector<16x16xf32> to vector<16x16xbf16>
    %282 = arith.truncf %218 : vector<16x512xf32> to vector<16x512xbf16>
    %cst_129 = arith.constant dense<0.000000e+00> : vector<16x512xf32>
    %283 = tpu.matmul %281, %282, %cst_129 {dimension_numbers = #tpu.dot_dimension_numbers<[1], [0], [0], [1], [0, 0, 1, 1], [], []>} : vector<16x16xbf16>, vector<16x512xbf16>, vector<16x512xf32> -> vector<16x512xf32>
    %284 = arith.addf %278, %283 : vector<16x512xf32>
    %c14_i32_130 = arith.constant 14 : i32
    %285 = vector.broadcast %c14_i32_130 : i32 to vector<1x512xi32>
    %286 = arith.cmpi sle, %2, %285 : vector<1x512xi32>
    %c511_i32_131 = arith.constant 511 : i32
    %287 = tpu.dynamic_rotate %218 by %c511_i32_131 dim 1 : vector<16x512xf32>, i32 -> vector<16x512xf32>
    %cst_132 = arith.constant 0.000000e+00 : f32
    %288 = vector.shape_cast %286 : vector<1x512xi1> to vector<1x512xi1>
    %289 = vector.broadcast %288 : vector<1x512xi1> to vector<16x512xi1>
    %290 = vector.broadcast %cst_132 : f32 to vector<16x512xf32>
    %291 = arith.select %289, %287, %290 : vector<16x512xi1>, vector<16x512xf32>
    %c5_133 = arith.constant 5 : index
    %c0_134 = arith.constant 0 : index
    %c0_135 = arith.constant 0 : index
    %292 = vector.load %arg11[%c5_133, %c0_134, %c0_135] : memref<9x16x16xf32, #tpu.memory_space<vmem>>, vector<1x16x16xf32>
    %293 = vector.shape_cast %292 : vector<1x16x16xf32> to vector<16x16xf32>
    %294 = arith.truncf %293 : vector<16x16xf32> to vector<16x16xbf16>
    %295 = arith.truncf %291 : vector<16x512xf32> to vector<16x512xbf16>
    %cst_136 = arith.constant dense<0.000000e+00> : vector<16x512xf32>
    %296 = tpu.matmul %294, %295, %cst_136 {dimension_numbers = #tpu.dot_dimension_numbers<[1], [0], [0], [1], [0, 0, 1, 1], [], []>} : vector<16x16xbf16>, vector<16x512xbf16>, vector<16x512xf32> -> vector<16x512xf32>
    %297 = arith.addf %284, %296 : vector<16x512xf32>
    %c1_i32_137 = arith.constant 1 : i32
    %298 = vector.broadcast %c1_i32_137 : i32 to vector<1x512xi32>
    %299 = arith.cmpi sge, %2, %298 : vector<1x512xi32>
    %c14_i32_138 = arith.constant 14 : i32
    %300 = vector.broadcast %c14_i32_138 : i32 to vector<1x512xi32>
    %301 = arith.cmpi sle, %6, %300 : vector<1x512xi32>
    %302 = arith.andi %299, %301 : vector<1x512xi1>
    %c497_i32_139 = arith.constant 497 : i32
    %303 = tpu.dynamic_rotate %218 by %c497_i32_139 dim 1 : vector<16x512xf32>, i32 -> vector<16x512xf32>
    %cst_140 = arith.constant 0.000000e+00 : f32
    %304 = vector.shape_cast %302 : vector<1x512xi1> to vector<1x512xi1>
    %305 = vector.broadcast %304 : vector<1x512xi1> to vector<16x512xi1>
    %306 = vector.broadcast %cst_140 : f32 to vector<16x512xf32>
    %307 = arith.select %305, %303, %306 : vector<16x512xi1>, vector<16x512xf32>
    %c6_141 = arith.constant 6 : index
    %c0_142 = arith.constant 0 : index
    %c0_143 = arith.constant 0 : index
    %308 = vector.load %arg11[%c6_141, %c0_142, %c0_143] : memref<9x16x16xf32, #tpu.memory_space<vmem>>, vector<1x16x16xf32>
    %309 = vector.shape_cast %308 : vector<1x16x16xf32> to vector<16x16xf32>
    %310 = arith.truncf %309 : vector<16x16xf32> to vector<16x16xbf16>
    %311 = arith.truncf %307 : vector<16x512xf32> to vector<16x512xbf16>
    %cst_144 = arith.constant dense<0.000000e+00> : vector<16x512xf32>
    %312 = tpu.matmul %310, %311, %cst_144 {dimension_numbers = #tpu.dot_dimension_numbers<[1], [0], [0], [1], [0, 0, 1, 1], [], []>} : vector<16x16xbf16>, vector<16x512xbf16>, vector<16x512xf32> -> vector<16x512xf32>
    %313 = arith.addf %297, %312 : vector<16x512xf32>
    %c14_i32_145 = arith.constant 14 : i32
    %314 = vector.broadcast %c14_i32_145 : i32 to vector<1x512xi32>
    %315 = arith.cmpi sle, %6, %314 : vector<1x512xi32>
    %c496_i32_146 = arith.constant 496 : i32
    %316 = tpu.dynamic_rotate %218 by %c496_i32_146 dim 1 : vector<16x512xf32>, i32 -> vector<16x512xf32>
    %cst_147 = arith.constant 0.000000e+00 : f32
    %317 = vector.shape_cast %315 : vector<1x512xi1> to vector<1x512xi1>
    %318 = vector.broadcast %317 : vector<1x512xi1> to vector<16x512xi1>
    %319 = vector.broadcast %cst_147 : f32 to vector<16x512xf32>
    %320 = arith.select %318, %316, %319 : vector<16x512xi1>, vector<16x512xf32>
    %c7_148 = arith.constant 7 : index
    %c0_149 = arith.constant 0 : index
    %c0_150 = arith.constant 0 : index
    %321 = vector.load %arg11[%c7_148, %c0_149, %c0_150] : memref<9x16x16xf32, #tpu.memory_space<vmem>>, vector<1x16x16xf32>
    %322 = vector.shape_cast %321 : vector<1x16x16xf32> to vector<16x16xf32>
    %323 = arith.truncf %322 : vector<16x16xf32> to vector<16x16xbf16>
    %324 = arith.truncf %320 : vector<16x512xf32> to vector<16x512xbf16>
    %cst_151 = arith.constant dense<0.000000e+00> : vector<16x512xf32>
    %325 = tpu.matmul %323, %324, %cst_151 {dimension_numbers = #tpu.dot_dimension_numbers<[1], [0], [0], [1], [0, 0, 1, 1], [], []>} : vector<16x16xbf16>, vector<16x512xbf16>, vector<16x512xf32> -> vector<16x512xf32>
    %326 = arith.addf %313, %325 : vector<16x512xf32>
    %c14_i32_152 = arith.constant 14 : i32
    %327 = vector.broadcast %c14_i32_152 : i32 to vector<1x512xi32>
    %328 = arith.cmpi sle, %2, %327 : vector<1x512xi32>
    %c14_i32_153 = arith.constant 14 : i32
    %329 = vector.broadcast %c14_i32_153 : i32 to vector<1x512xi32>
    %330 = arith.cmpi sle, %6, %329 : vector<1x512xi32>
    %331 = arith.andi %328, %330 : vector<1x512xi1>
    %c495_i32_154 = arith.constant 495 : i32
    %332 = tpu.dynamic_rotate %218 by %c495_i32_154 dim 1 : vector<16x512xf32>, i32 -> vector<16x512xf32>
    %cst_155 = arith.constant 0.000000e+00 : f32
    %333 = vector.shape_cast %331 : vector<1x512xi1> to vector<1x512xi1>
    %334 = vector.broadcast %333 : vector<1x512xi1> to vector<16x512xi1>
    %335 = vector.broadcast %cst_155 : f32 to vector<16x512xf32>
    %336 = arith.select %334, %332, %335 : vector<16x512xi1>, vector<16x512xf32>
    %c8_156 = arith.constant 8 : index
    %c0_157 = arith.constant 0 : index
    %c0_158 = arith.constant 0 : index
    %337 = vector.load %arg11[%c8_156, %c0_157, %c0_158] : memref<9x16x16xf32, #tpu.memory_space<vmem>>, vector<1x16x16xf32>
    %338 = vector.shape_cast %337 : vector<1x16x16xf32> to vector<16x16xf32>
    %339 = arith.truncf %338 : vector<16x16xf32> to vector<16x16xbf16>
    %340 = arith.truncf %336 : vector<16x512xf32> to vector<16x512xbf16>
    %cst_159 = arith.constant dense<0.000000e+00> : vector<16x512xf32>
    %341 = tpu.matmul %339, %340, %cst_159 {dimension_numbers = #tpu.dot_dimension_numbers<[1], [0], [0], [1], [0, 0, 1, 1], [], []>} : vector<16x16xbf16>, vector<16x512xbf16>, vector<16x512xf32> -> vector<16x512xf32>
    %342 = arith.addf %326, %341 : vector<16x512xf32>
    %343 = vector.broadcast %219 : vector<16x1xf32> to vector<16x512xf32>
    %344 = arith.mulf %343, %342 : vector<16x512xf32>
    %c0_160 = arith.constant 0 : index
    %c0_161 = arith.constant 0 : index
    %345 = vector.load %arg13[%c0_160, %c0_161] : memref<16x1xf32, #tpu.memory_space<vmem>>, vector<16x1xf32>
    %346 = vector.broadcast %345 : vector<16x1xf32> to vector<16x512xf32>
    %347 = arith.addf %344, %346 : vector<16x512xf32>
    %cst_162 = arith.constant 0.000000e+00 : f32
    %348 = vector.broadcast %cst_162 : f32 to vector<16x512xf32>
    %349 = arith.cmpf ogt, %347, %348 : vector<16x512xf32>
    %cst_163 = arith.constant 1.000000e-01 : f32
    %350 = vector.broadcast %cst_163 : f32 to vector<16x512xf32>
    %351 = arith.mulf %350, %347 : vector<16x512xf32>
    %352 = arith.select %349, %347, %351 : vector<16x512xi1>, vector<16x512xf32>
    %c0_164 = arith.constant 0 : index
    %c0_165 = arith.constant 0 : index
    %353 = vector.load %arg14[%c0_164, %c0_165] : memref<24x16xf32, #tpu.memory_space<vmem>>, vector<24x16xf32>
    %354 = arith.truncf %353 : vector<24x16xf32> to vector<24x16xbf16>
    %355 = arith.truncf %352 : vector<16x512xf32> to vector<16x512xbf16>
    %cst_166 = arith.constant dense<0.000000e+00> : vector<24x512xf32>
    %356 = tpu.matmul %354, %355, %cst_166 {dimension_numbers = #tpu.dot_dimension_numbers<[1], [0], [0], [1], [0, 0, 1, 1], [], []>} : vector<24x16xbf16>, vector<16x512xbf16>, vector<24x512xf32> -> vector<24x512xf32>
    %c0_167 = arith.constant 0 : index
    %c0_168 = arith.constant 0 : index
    %357 = vector.load %arg15[%c0_167, %c0_168] : memref<24x1xf32, #tpu.memory_space<vmem>>, vector<24x1xf32>
    %358 = vector.broadcast %357 : vector<24x1xf32> to vector<24x512xf32>
    %359 = arith.addf %356, %358 : vector<24x512xf32>
    %c1_i32_169 = arith.constant 1 : i32
    %360 = vector.broadcast %c1_i32_169 : i32 to vector<1x512xi32>
    %361 = arith.shrsi %2, %360 : vector<1x512xi32>
    %c1_i32_170 = arith.constant 1 : i32
    %362 = vector.broadcast %c1_i32_170 : i32 to vector<1x512xi32>
    %363 = arith.shrsi %6, %362 : vector<1x512xi32>
    %364 = tpu.iota {dimensions = array<i32: 0>} : vector<24x1xi32>
    %c7_i32 = arith.constant 7 : i32
    %365 = vector.broadcast %c7_i32 : i32 to vector<24x1xi32>
    %366 = arith.cmpi slt, %364, %365 : vector<24x1xi32>
    %c14_i32_171 = arith.constant 14 : i32
    %367 = vector.broadcast %c14_i32_171 : i32 to vector<24x1xi32>
    %368 = arith.cmpi slt, %364, %367 : vector<24x1xi32>
    %c1_i32_172 = arith.constant 1 : i32
    %c2_i32 = arith.constant 2 : i32
    %369 = vector.broadcast %c1_i32_172 : i32 to vector<24x1xi32>
    %370 = vector.broadcast %c2_i32 : i32 to vector<24x1xi32>
    %371 = arith.select %368, %369, %370 : vector<24x1xi1>, vector<24x1xi32>
    %c0_i32 = arith.constant 0 : i32
    %372 = vector.broadcast %c0_i32 : i32 to vector<24x1xi32>
    %373 = arith.select %366, %372, %371 : vector<24x1xi1>, vector<24x1xi32>
    %c7_i32_173 = arith.constant 7 : i32
    %374 = vector.broadcast %c7_i32_173 : i32 to vector<24x1xi32>
    %375 = arith.muli %374, %373 : vector<24x1xi32>
    %376 = arith.subi %364, %375 : vector<24x1xi32>
    %c0_i32_174 = arith.constant 0 : i32
    %377 = vector.broadcast %c0_i32_174 : i32 to vector<24x1xi32>
    %378 = arith.cmpi eq, %373, %377 : vector<24x1xi32>
    %c1_i32_175 = arith.constant 1 : i32
    %379 = vector.broadcast %c1_i32_175 : i32 to vector<24x1xi32>
    %380 = arith.cmpi eq, %373, %379 : vector<24x1xi32>
    %cst_176 = arith.constant 2.300000e+01 : f32
    %cst_177 = arith.constant 3.700000e+01 : f32
    %381 = vector.broadcast %cst_176 : f32 to vector<24x1xf32>
    %382 = vector.broadcast %cst_177 : f32 to vector<24x1xf32>
    %383 = arith.select %380, %381, %382 : vector<24x1xi1>, vector<24x1xf32>
    %cst_178 = arith.constant 1.000000e+01 : f32
    %384 = vector.broadcast %cst_178 : f32 to vector<24x1xf32>
    %385 = arith.select %378, %384, %383 : vector<24x1xi1>, vector<24x1xf32>
    %c0_i32_179 = arith.constant 0 : i32
    %386 = vector.broadcast %c0_i32_179 : i32 to vector<24x1xi32>
    %387 = arith.cmpi eq, %373, %386 : vector<24x1xi32>
    %c1_i32_180 = arith.constant 1 : i32
    %388 = vector.broadcast %c1_i32_180 : i32 to vector<24x1xi32>
    %389 = arith.cmpi eq, %373, %388 : vector<24x1xi32>
    %cst_181 = arith.constant 2.700000e+01 : f32
    %cst_182 = arith.constant 5.800000e+01 : f32
    %390 = vector.broadcast %cst_181 : f32 to vector<24x1xf32>
    %391 = vector.broadcast %cst_182 : f32 to vector<24x1xf32>
    %392 = arith.select %389, %390, %391 : vector<24x1xi1>, vector<24x1xf32>
    %cst_183 = arith.constant 1.400000e+01 : f32
    %393 = vector.broadcast %cst_183 : f32 to vector<24x1xf32>
    %394 = arith.select %387, %393, %392 : vector<24x1xi1>, vector<24x1xf32>
    %395 = arith.sitofp %361 : vector<1x512xi32> to vector<1x512xf32>
    %396 = arith.sitofp %363 : vector<1x512xi32> to vector<1x512xf32>
    %397 = arith.negf %359 : vector<24x512xf32>
    %398 = math.exp %397 : vector<24x512xf32>
    %cst_184 = arith.constant 1.000000e+00 : f32
    %399 = vector.broadcast %cst_184 : f32 to vector<24x512xf32>
    %400 = arith.addf %399, %398 : vector<24x512xf32>
    %401 = arith.divf %399, %400 : vector<24x512xf32>
    %402 = math.exp %359 : vector<24x512xf32>
    %c0_i32_185 = arith.constant 0 : i32
    %403 = vector.broadcast %c0_i32_185 : i32 to vector<24x1xi32>
    %404 = arith.cmpi eq, %376, %403 : vector<24x1xi32>
    %405 = vector.broadcast %395 : vector<1x512xf32> to vector<24x512xf32>
    %406 = arith.addf %401, %405 : vector<24x512xf32>
    %cst_186 = arith.constant 4.000000e+00 : f32
    %407 = vector.broadcast %cst_186 : f32 to vector<24x512xf32>
    %408 = arith.mulf %406, %407 : vector<24x512xf32>
    %c1_i32_187 = arith.constant 1 : i32
    %409 = vector.broadcast %c1_i32_187 : i32 to vector<24x1xi32>
    %410 = arith.cmpi eq, %376, %409 : vector<24x1xi32>
    %411 = vector.broadcast %396 : vector<1x512xf32> to vector<24x512xf32>
    %412 = arith.addf %401, %411 : vector<24x512xf32>
    %cst_188 = arith.constant 4.000000e+00 : f32
    %413 = vector.broadcast %cst_188 : f32 to vector<24x512xf32>
    %414 = arith.mulf %412, %413 : vector<24x512xf32>
    %c2_i32_189 = arith.constant 2 : i32
    %415 = vector.broadcast %c2_i32_189 : i32 to vector<24x1xi32>
    %416 = arith.cmpi eq, %376, %415 : vector<24x1xi32>
    %417 = vector.broadcast %385 : vector<24x1xf32> to vector<24x512xf32>
    %418 = arith.mulf %402, %417 : vector<24x512xf32>
    %c3_i32 = arith.constant 3 : i32
    %419 = vector.broadcast %c3_i32 : i32 to vector<24x1xi32>
    %420 = arith.cmpi eq, %376, %419 : vector<24x1xi32>
    %421 = vector.broadcast %394 : vector<24x1xf32> to vector<24x512xf32>
    %422 = arith.mulf %402, %421 : vector<24x512xf32>
    %423 = vector.shape_cast %420 : vector<24x1xi1> to vector<24x1xi1>
    %424 = vector.broadcast %423 : vector<24x1xi1> to vector<24x512xi1>
    %425 = arith.select %424, %422, %401 : vector<24x512xi1>, vector<24x512xf32>
    %426 = vector.shape_cast %416 : vector<24x1xi1> to vector<24x1xi1>
    %427 = vector.broadcast %426 : vector<24x1xi1> to vector<24x512xi1>
    %428 = arith.select %427, %418, %425 : vector<24x512xi1>, vector<24x512xf32>
    %429 = vector.shape_cast %410 : vector<24x1xi1> to vector<24x1xi1>
    %430 = vector.broadcast %429 : vector<24x1xi1> to vector<24x512xi1>
    %431 = arith.select %430, %414, %428 : vector<24x512xi1>, vector<24x512xf32>
    %432 = vector.shape_cast %404 : vector<24x1xi1> to vector<24x1xi1>
    %433 = vector.broadcast %432 : vector<24x1xi1> to vector<24x512xi1>
    %434 = arith.select %433, %408, %431 : vector<24x512xi1>, vector<24x512xf32>
    %c0_190 = arith.constant 0 : index
    %c0_191 = arith.constant 0 : index
    %435 = vector.load %arg22[%c0_190, %c0_191] : memref<24x512xf32, #tpu.memory_space<vmem>>, vector<24x512xf32>
    tpu.vector_store %arg22[%c0_190, %c0_191], %434 {strides = array<i32>} : memref<24x512xf32, #tpu.memory_space<vmem>>, vector<24x512xf32>,
    %c1_i32_192 = arith.constant 1 : i32
    %436 = vector.broadcast %c1_i32_192 : i32 to vector<1x512xi32>
    %437 = arith.andi %2, %436 : vector<1x512xi32>
    %c1_i32_193 = arith.constant 1 : i32
    %438 = vector.broadcast %c1_i32_193 : i32 to vector<1x512xi32>
    %439 = arith.cmpi eq, %437, %438 : vector<1x512xi32>
    %c1_i32_194 = arith.constant 1 : i32
    %440 = vector.broadcast %c1_i32_194 : i32 to vector<1x512xi32>
    %441 = arith.andi %6, %440 : vector<1x512xi32>
    %c1_i32_195 = arith.constant 1 : i32
    %442 = vector.broadcast %c1_i32_195 : i32 to vector<1x512xi32>
    %443 = arith.cmpi eq, %441, %442 : vector<1x512xi32>
    %c1_i32_196 = arith.constant 1 : i32
    %444 = tpu.dynamic_rotate %352 by %c1_i32_196 dim 1 : vector<16x512xf32>, i32 -> vector<16x512xf32>
    %445 = vector.shape_cast %439 : vector<1x512xi1> to vector<1x512xi1>
    %446 = vector.broadcast %445 : vector<1x512xi1> to vector<16x512xi1>
    %447 = arith.select %446, %444, %352 : vector<16x512xi1>, vector<16x512xf32>
    %c16_i32_197 = arith.constant 16 : i32
    %448 = tpu.dynamic_rotate %447 by %c16_i32_197 dim 1 : vector<16x512xf32>, i32 -> vector<16x512xf32>
    %449 = vector.shape_cast %443 : vector<1x512xi1> to vector<1x512xi1>
    %450 = vector.broadcast %449 : vector<1x512xi1> to vector<16x512xi1>
    %451 = arith.select %450, %448, %447 : vector<16x512xi1>, vector<16x512xf32>
    %c0_198 = arith.constant 0 : index
    %c0_199 = arith.constant 0 : index
    %452 = vector.load %arg18[%c0_198, %c0_199] : memref<16x1xf32, #tpu.memory_space<vmem>>, vector<16x1xf32>
    %cst_200 = arith.constant 0.000000e+00 : f32
    %453 = vector.broadcast %cst_200 : f32 to vector<16x512xf32>
    %c1_i32_201 = arith.constant 1 : i32
    %454 = vector.broadcast %c1_i32_201 : i32 to vector<1x512xi32>
    %455 = arith.cmpi sge, %2, %454 : vector<1x512xi32>
    %c1_i32_202 = arith.constant 1 : i32
    %456 = vector.broadcast %c1_i32_202 : i32 to vector<1x512xi32>
    %457 = arith.cmpi sge, %6, %456 : vector<1x512xi32>
    %458 = arith.andi %455, %457 : vector<1x512xi1>
    %c17_i32_203 = arith.constant 17 : i32
    %459 = tpu.dynamic_rotate %451 by %c17_i32_203 dim 1 : vector<16x512xf32>, i32 -> vector<16x512xf32>
    %cst_204 = arith.constant 0.000000e+00 : f32
    %460 = vector.shape_cast %458 : vector<1x512xi1> to vector<1x512xi1>
    %461 = vector.broadcast %460 : vector<1x512xi1> to vector<16x512xi1>
    %462 = vector.broadcast %cst_204 : f32 to vector<16x512xf32>
    %463 = arith.select %461, %459, %462 : vector<16x512xi1>, vector<16x512xf32>
    %c0_205 = arith.constant 0 : index
    %c0_206 = arith.constant 0 : index
    %c0_207 = arith.constant 0 : index
    %464 = vector.load %arg16[%c0_205, %c0_206, %c0_207] : memref<9x16x16xf32, #tpu.memory_space<vmem>>, vector<1x16x16xf32>
    %465 = vector.shape_cast %464 : vector<1x16x16xf32> to vector<16x16xf32>
    %466 = arith.truncf %465 : vector<16x16xf32> to vector<16x16xbf16>
    %467 = arith.truncf %463 : vector<16x512xf32> to vector<16x512xbf16>
    %cst_208 = arith.constant dense<0.000000e+00> : vector<16x512xf32>
    %468 = tpu.matmul %466, %467, %cst_208 {dimension_numbers = #tpu.dot_dimension_numbers<[1], [0], [0], [1], [0, 0, 1, 1], [], []>} : vector<16x16xbf16>, vector<16x512xbf16>, vector<16x512xf32> -> vector<16x512xf32>
    %469 = arith.addf %453, %468 : vector<16x512xf32>
    %c17_i32_209 = arith.constant 17 : i32
    %470 = tpu.dynamic_rotate %218 by %c17_i32_209 dim 1 : vector<16x512xf32>, i32 -> vector<16x512xf32>
    %cst_210 = arith.constant 0.000000e+00 : f32
    %471 = vector.shape_cast %458 : vector<1x512xi1> to vector<1x512xi1>
    %472 = vector.broadcast %471 : vector<1x512xi1> to vector<16x512xi1>
    %473 = vector.broadcast %cst_210 : f32 to vector<16x512xf32>
    %474 = arith.select %472, %470, %473 : vector<16x512xi1>, vector<16x512xf32>
    %c0_211 = arith.constant 0 : index
    %c0_212 = arith.constant 0 : index
    %c0_213 = arith.constant 0 : index
    %475 = vector.load %arg17[%c0_211, %c0_212, %c0_213] : memref<9x16x16xf32, #tpu.memory_space<vmem>>, vector<1x16x16xf32>
    %476 = vector.shape_cast %475 : vector<1x16x16xf32> to vector<16x16xf32>
    %477 = arith.truncf %476 : vector<16x16xf32> to vector<16x16xbf16>
    %478 = arith.truncf %474 : vector<16x512xf32> to vector<16x512xbf16>
    %cst_214 = arith.constant dense<0.000000e+00> : vector<16x512xf32>
    %479 = tpu.matmul %477, %478, %cst_214 {dimension_numbers = #tpu.dot_dimension_numbers<[1], [0], [0], [1], [0, 0, 1, 1], [], []>} : vector<16x16xbf16>, vector<16x512xbf16>, vector<16x512xf32> -> vector<16x512xf32>
    %480 = arith.addf %469, %479 : vector<16x512xf32>
    %c1_i32_215 = arith.constant 1 : i32
    %481 = vector.broadcast %c1_i32_215 : i32 to vector<1x512xi32>
    %482 = arith.cmpi sge, %6, %481 : vector<1x512xi32>
    %c16_i32_216 = arith.constant 16 : i32
    %483 = tpu.dynamic_rotate %451 by %c16_i32_216 dim 1 : vector<16x512xf32>, i32 -> vector<16x512xf32>
    %cst_217 = arith.constant 0.000000e+00 : f32
    %484 = vector.shape_cast %482 : vector<1x512xi1> to vector<1x512xi1>
    %485 = vector.broadcast %484 : vector<1x512xi1> to vector<16x512xi1>
    %486 = vector.broadcast %cst_217 : f32 to vector<16x512xf32>
    %487 = arith.select %485, %483, %486 : vector<16x512xi1>, vector<16x512xf32>
    %c1_218 = arith.constant 1 : index
    %c0_219 = arith.constant 0 : index
    %c0_220 = arith.constant 0 : index
    %488 = vector.load %arg16[%c1_218, %c0_219, %c0_220] : memref<9x16x16xf32, #tpu.memory_space<vmem>>, vector<1x16x16xf32>
    %489 = vector.shape_cast %488 : vector<1x16x16xf32> to vector<16x16xf32>
    %490 = arith.truncf %489 : vector<16x16xf32> to vector<16x16xbf16>
    %491 = arith.truncf %487 : vector<16x512xf32> to vector<16x512xbf16>
    %cst_221 = arith.constant dense<0.000000e+00> : vector<16x512xf32>
    %492 = tpu.matmul %490, %491, %cst_221 {dimension_numbers = #tpu.dot_dimension_numbers<[1], [0], [0], [1], [0, 0, 1, 1], [], []>} : vector<16x16xbf16>, vector<16x512xbf16>, vector<16x512xf32> -> vector<16x512xf32>
    %493 = arith.addf %480, %492 : vector<16x512xf32>
    %c16_i32_222 = arith.constant 16 : i32
    %494 = tpu.dynamic_rotate %218 by %c16_i32_222 dim 1 : vector<16x512xf32>, i32 -> vector<16x512xf32>
    %cst_223 = arith.constant 0.000000e+00 : f32
    %495 = vector.shape_cast %482 : vector<1x512xi1> to vector<1x512xi1>
    %496 = vector.broadcast %495 : vector<1x512xi1> to vector<16x512xi1>
    %497 = vector.broadcast %cst_223 : f32 to vector<16x512xf32>
    %498 = arith.select %496, %494, %497 : vector<16x512xi1>, vector<16x512xf32>
    %c1_224 = arith.constant 1 : index
    %c0_225 = arith.constant 0 : index
    %c0_226 = arith.constant 0 : index
    %499 = vector.load %arg17[%c1_224, %c0_225, %c0_226] : memref<9x16x16xf32, #tpu.memory_space<vmem>>, vector<1x16x16xf32>
    %500 = vector.shape_cast %499 : vector<1x16x16xf32> to vector<16x16xf32>
    %501 = arith.truncf %500 : vector<16x16xf32> to vector<16x16xbf16>
    %502 = arith.truncf %498 : vector<16x512xf32> to vector<16x512xbf16>
    %cst_227 = arith.constant dense<0.000000e+00> : vector<16x512xf32>
    %503 = tpu.matmul %501, %502, %cst_227 {dimension_numbers = #tpu.dot_dimension_numbers<[1], [0], [0], [1], [0, 0, 1, 1], [], []>} : vector<16x16xbf16>, vector<16x512xbf16>, vector<16x512xf32> -> vector<16x512xf32>
    %504 = arith.addf %493, %503 : vector<16x512xf32>
    %c14_i32_228 = arith.constant 14 : i32
    %505 = vector.broadcast %c14_i32_228 : i32 to vector<1x512xi32>
    %506 = arith.cmpi sle, %2, %505 : vector<1x512xi32>
    %c1_i32_229 = arith.constant 1 : i32
    %507 = vector.broadcast %c1_i32_229 : i32 to vector<1x512xi32>
    %508 = arith.cmpi sge, %6, %507 : vector<1x512xi32>
    %509 = arith.andi %506, %508 : vector<1x512xi1>
    %c15_i32_230 = arith.constant 15 : i32
    %510 = tpu.dynamic_rotate %451 by %c15_i32_230 dim 1 : vector<16x512xf32>, i32 -> vector<16x512xf32>
    %cst_231 = arith.constant 0.000000e+00 : f32
    %511 = vector.shape_cast %509 : vector<1x512xi1> to vector<1x512xi1>
    %512 = vector.broadcast %511 : vector<1x512xi1> to vector<16x512xi1>
    %513 = vector.broadcast %cst_231 : f32 to vector<16x512xf32>
    %514 = arith.select %512, %510, %513 : vector<16x512xi1>, vector<16x512xf32>
    %c2_232 = arith.constant 2 : index
    %c0_233 = arith.constant 0 : index
    %c0_234 = arith.constant 0 : index
    %515 = vector.load %arg16[%c2_232, %c0_233, %c0_234] : memref<9x16x16xf32, #tpu.memory_space<vmem>>, vector<1x16x16xf32>
    %516 = vector.shape_cast %515 : vector<1x16x16xf32> to vector<16x16xf32>
    %517 = arith.truncf %516 : vector<16x16xf32> to vector<16x16xbf16>
    %518 = arith.truncf %514 : vector<16x512xf32> to vector<16x512xbf16>
    %cst_235 = arith.constant dense<0.000000e+00> : vector<16x512xf32>
    %519 = tpu.matmul %517, %518, %cst_235 {dimension_numbers = #tpu.dot_dimension_numbers<[1], [0], [0], [1], [0, 0, 1, 1], [], []>} : vector<16x16xbf16>, vector<16x512xbf16>, vector<16x512xf32> -> vector<16x512xf32>
    %520 = arith.addf %504, %519 : vector<16x512xf32>
    %c15_i32_236 = arith.constant 15 : i32
    %521 = tpu.dynamic_rotate %218 by %c15_i32_236 dim 1 : vector<16x512xf32>, i32 -> vector<16x512xf32>
    %cst_237 = arith.constant 0.000000e+00 : f32
    %522 = vector.shape_cast %509 : vector<1x512xi1> to vector<1x512xi1>
    %523 = vector.broadcast %522 : vector<1x512xi1> to vector<16x512xi1>
    %524 = vector.broadcast %cst_237 : f32 to vector<16x512xf32>
    %525 = arith.select %523, %521, %524 : vector<16x512xi1>, vector<16x512xf32>
    %c2_238 = arith.constant 2 : index
    %c0_239 = arith.constant 0 : index
    %c0_240 = arith.constant 0 : index
    %526 = vector.load %arg17[%c2_238, %c0_239, %c0_240] : memref<9x16x16xf32, #tpu.memory_space<vmem>>, vector<1x16x16xf32>
    %527 = vector.shape_cast %526 : vector<1x16x16xf32> to vector<16x16xf32>
    %528 = arith.truncf %527 : vector<16x16xf32> to vector<16x16xbf16>
    %529 = arith.truncf %525 : vector<16x512xf32> to vector<16x512xbf16>
    %cst_241 = arith.constant dense<0.000000e+00> : vector<16x512xf32>
    %530 = tpu.matmul %528, %529, %cst_241 {dimension_numbers = #tpu.dot_dimension_numbers<[1], [0], [0], [1], [0, 0, 1, 1], [], []>} : vector<16x16xbf16>, vector<16x512xbf16>, vector<16x512xf32> -> vector<16x512xf32>
    %531 = arith.addf %520, %530 : vector<16x512xf32>
    %c1_i32_242 = arith.constant 1 : i32
    %532 = vector.broadcast %c1_i32_242 : i32 to vector<1x512xi32>
    %533 = arith.cmpi sge, %2, %532 : vector<1x512xi32>
    %c1_i32_243 = arith.constant 1 : i32
    %534 = tpu.dynamic_rotate %451 by %c1_i32_243 dim 1 : vector<16x512xf32>, i32 -> vector<16x512xf32>
    %cst_244 = arith.constant 0.000000e+00 : f32
    %535 = vector.shape_cast %533 : vector<1x512xi1> to vector<1x512xi1>
    %536 = vector.broadcast %535 : vector<1x512xi1> to vector<16x512xi1>
    %537 = vector.broadcast %cst_244 : f32 to vector<16x512xf32>
    %538 = arith.select %536, %534, %537 : vector<16x512xi1>, vector<16x512xf32>
    %c3_245 = arith.constant 3 : index
    %c0_246 = arith.constant 0 : index
    %c0_247 = arith.constant 0 : index
    %539 = vector.load %arg16[%c3_245, %c0_246, %c0_247] : memref<9x16x16xf32, #tpu.memory_space<vmem>>, vector<1x16x16xf32>
    %540 = vector.shape_cast %539 : vector<1x16x16xf32> to vector<16x16xf32>
    %541 = arith.truncf %540 : vector<16x16xf32> to vector<16x16xbf16>
    %542 = arith.truncf %538 : vector<16x512xf32> to vector<16x512xbf16>
    %cst_248 = arith.constant dense<0.000000e+00> : vector<16x512xf32>
    %543 = tpu.matmul %541, %542, %cst_248 {dimension_numbers = #tpu.dot_dimension_numbers<[1], [0], [0], [1], [0, 0, 1, 1], [], []>} : vector<16x16xbf16>, vector<16x512xbf16>, vector<16x512xf32> -> vector<16x512xf32>
    %544 = arith.addf %531, %543 : vector<16x512xf32>
    %c1_i32_249 = arith.constant 1 : i32
    %545 = tpu.dynamic_rotate %218 by %c1_i32_249 dim 1 : vector<16x512xf32>, i32 -> vector<16x512xf32>
    %cst_250 = arith.constant 0.000000e+00 : f32
    %546 = vector.shape_cast %533 : vector<1x512xi1> to vector<1x512xi1>
    %547 = vector.broadcast %546 : vector<1x512xi1> to vector<16x512xi1>
    %548 = vector.broadcast %cst_250 : f32 to vector<16x512xf32>
    %549 = arith.select %547, %545, %548 : vector<16x512xi1>, vector<16x512xf32>
    %c3_251 = arith.constant 3 : index
    %c0_252 = arith.constant 0 : index
    %c0_253 = arith.constant 0 : index
    %550 = vector.load %arg17[%c3_251, %c0_252, %c0_253] : memref<9x16x16xf32, #tpu.memory_space<vmem>>, vector<1x16x16xf32>
    %551 = vector.shape_cast %550 : vector<1x16x16xf32> to vector<16x16xf32>
    %552 = arith.truncf %551 : vector<16x16xf32> to vector<16x16xbf16>
    %553 = arith.truncf %549 : vector<16x512xf32> to vector<16x512xbf16>
    %cst_254 = arith.constant dense<0.000000e+00> : vector<16x512xf32>
    %554 = tpu.matmul %552, %553, %cst_254 {dimension_numbers = #tpu.dot_dimension_numbers<[1], [0], [0], [1], [0, 0, 1, 1], [], []>} : vector<16x16xbf16>, vector<16x512xbf16>, vector<16x512xf32> -> vector<16x512xf32>
    %555 = arith.addf %544, %554 : vector<16x512xf32>
    %c4_255 = arith.constant 4 : index
    %c0_256 = arith.constant 0 : index
    %c0_257 = arith.constant 0 : index
    %556 = vector.load %arg16[%c4_255, %c0_256, %c0_257] : memref<9x16x16xf32, #tpu.memory_space<vmem>>, vector<1x16x16xf32>
    %557 = vector.shape_cast %556 : vector<1x16x16xf32> to vector<16x16xf32>
    %558 = arith.truncf %557 : vector<16x16xf32> to vector<16x16xbf16>
    %559 = arith.truncf %451 : vector<16x512xf32> to vector<16x512xbf16>
    %cst_258 = arith.constant dense<0.000000e+00> : vector<16x512xf32>
    %560 = tpu.matmul %558, %559, %cst_258 {dimension_numbers = #tpu.dot_dimension_numbers<[1], [0], [0], [1], [0, 0, 1, 1], [], []>} : vector<16x16xbf16>, vector<16x512xbf16>, vector<16x512xf32> -> vector<16x512xf32>
    %561 = arith.addf %555, %560 : vector<16x512xf32>
    %c4_259 = arith.constant 4 : index
    %c0_260 = arith.constant 0 : index
    %c0_261 = arith.constant 0 : index
    %562 = vector.load %arg17[%c4_259, %c0_260, %c0_261] : memref<9x16x16xf32, #tpu.memory_space<vmem>>, vector<1x16x16xf32>
    %563 = vector.shape_cast %562 : vector<1x16x16xf32> to vector<16x16xf32>
    %564 = arith.truncf %563 : vector<16x16xf32> to vector<16x16xbf16>
    %565 = arith.truncf %218 : vector<16x512xf32> to vector<16x512xbf16>
    %cst_262 = arith.constant dense<0.000000e+00> : vector<16x512xf32>
    %566 = tpu.matmul %564, %565, %cst_262 {dimension_numbers = #tpu.dot_dimension_numbers<[1], [0], [0], [1], [0, 0, 1, 1], [], []>} : vector<16x16xbf16>, vector<16x512xbf16>, vector<16x512xf32> -> vector<16x512xf32>
    %567 = arith.addf %561, %566 : vector<16x512xf32>
    %c14_i32_263 = arith.constant 14 : i32
    %568 = vector.broadcast %c14_i32_263 : i32 to vector<1x512xi32>
    %569 = arith.cmpi sle, %2, %568 : vector<1x512xi32>
    %c511_i32_264 = arith.constant 511 : i32
    %570 = tpu.dynamic_rotate %451 by %c511_i32_264 dim 1 : vector<16x512xf32>, i32 -> vector<16x512xf32>
    %cst_265 = arith.constant 0.000000e+00 : f32
    %571 = vector.shape_cast %569 : vector<1x512xi1> to vector<1x512xi1>
    %572 = vector.broadcast %571 : vector<1x512xi1> to vector<16x512xi1>
    %573 = vector.broadcast %cst_265 : f32 to vector<16x512xf32>
    %574 = arith.select %572, %570, %573 : vector<16x512xi1>, vector<16x512xf32>
    %c5_266 = arith.constant 5 : index
    %c0_267 = arith.constant 0 : index
    %c0_268 = arith.constant 0 : index
    %575 = vector.load %arg16[%c5_266, %c0_267, %c0_268] : memref<9x16x16xf32, #tpu.memory_space<vmem>>, vector<1x16x16xf32>
    %576 = vector.shape_cast %575 : vector<1x16x16xf32> to vector<16x16xf32>
    %577 = arith.truncf %576 : vector<16x16xf32> to vector<16x16xbf16>
    %578 = arith.truncf %574 : vector<16x512xf32> to vector<16x512xbf16>
    %cst_269 = arith.constant dense<0.000000e+00> : vector<16x512xf32>
    %579 = tpu.matmul %577, %578, %cst_269 {dimension_numbers = #tpu.dot_dimension_numbers<[1], [0], [0], [1], [0, 0, 1, 1], [], []>} : vector<16x16xbf16>, vector<16x512xbf16>, vector<16x512xf32> -> vector<16x512xf32>
    %580 = arith.addf %567, %579 : vector<16x512xf32>
    %c511_i32_270 = arith.constant 511 : i32
    %581 = tpu.dynamic_rotate %218 by %c511_i32_270 dim 1 : vector<16x512xf32>, i32 -> vector<16x512xf32>
    %cst_271 = arith.constant 0.000000e+00 : f32
    %582 = vector.shape_cast %569 : vector<1x512xi1> to vector<1x512xi1>
    %583 = vector.broadcast %582 : vector<1x512xi1> to vector<16x512xi1>
    %584 = vector.broadcast %cst_271 : f32 to vector<16x512xf32>
    %585 = arith.select %583, %581, %584 : vector<16x512xi1>, vector<16x512xf32>
    %c5_272 = arith.constant 5 : index
    %c0_273 = arith.constant 0 : index
    %c0_274 = arith.constant 0 : index
    %586 = vector.load %arg17[%c5_272, %c0_273, %c0_274] : memref<9x16x16xf32, #tpu.memory_space<vmem>>, vector<1x16x16xf32>
    %587 = vector.shape_cast %586 : vector<1x16x16xf32> to vector<16x16xf32>
    %588 = arith.truncf %587 : vector<16x16xf32> to vector<16x16xbf16>
    %589 = arith.truncf %585 : vector<16x512xf32> to vector<16x512xbf16>
    %cst_275 = arith.constant dense<0.000000e+00> : vector<16x512xf32>
    %590 = tpu.matmul %588, %589, %cst_275 {dimension_numbers = #tpu.dot_dimension_numbers<[1], [0], [0], [1], [0, 0, 1, 1], [], []>} : vector<16x16xbf16>, vector<16x512xbf16>, vector<16x512xf32> -> vector<16x512xf32>
    %591 = arith.addf %580, %590 : vector<16x512xf32>
    %c1_i32_276 = arith.constant 1 : i32
    %592 = vector.broadcast %c1_i32_276 : i32 to vector<1x512xi32>
    %593 = arith.cmpi sge, %2, %592 : vector<1x512xi32>
    %c14_i32_277 = arith.constant 14 : i32
    %594 = vector.broadcast %c14_i32_277 : i32 to vector<1x512xi32>
    %595 = arith.cmpi sle, %6, %594 : vector<1x512xi32>
    %596 = arith.andi %593, %595 : vector<1x512xi1>
    %c497_i32_278 = arith.constant 497 : i32
    %597 = tpu.dynamic_rotate %451 by %c497_i32_278 dim 1 : vector<16x512xf32>, i32 -> vector<16x512xf32>
    %cst_279 = arith.constant 0.000000e+00 : f32
    %598 = vector.shape_cast %596 : vector<1x512xi1> to vector<1x512xi1>
    %599 = vector.broadcast %598 : vector<1x512xi1> to vector<16x512xi1>
    %600 = vector.broadcast %cst_279 : f32 to vector<16x512xf32>
    %601 = arith.select %599, %597, %600 : vector<16x512xi1>, vector<16x512xf32>
    %c6_280 = arith.constant 6 : index
    %c0_281 = arith.constant 0 : index
    %c0_282 = arith.constant 0 : index
    %602 = vector.load %arg16[%c6_280, %c0_281, %c0_282] : memref<9x16x16xf32, #tpu.memory_space<vmem>>, vector<1x16x16xf32>
    %603 = vector.shape_cast %602 : vector<1x16x16xf32> to vector<16x16xf32>
    %604 = arith.truncf %603 : vector<16x16xf32> to vector<16x16xbf16>
    %605 = arith.truncf %601 : vector<16x512xf32> to vector<16x512xbf16>
    %cst_283 = arith.constant dense<0.000000e+00> : vector<16x512xf32>
    %606 = tpu.matmul %604, %605, %cst_283 {dimension_numbers = #tpu.dot_dimension_numbers<[1], [0], [0], [1], [0, 0, 1, 1], [], []>} : vector<16x16xbf16>, vector<16x512xbf16>, vector<16x512xf32> -> vector<16x512xf32>
    %607 = arith.addf %591, %606 : vector<16x512xf32>
    %c497_i32_284 = arith.constant 497 : i32
    %608 = tpu.dynamic_rotate %218 by %c497_i32_284 dim 1 : vector<16x512xf32>, i32 -> vector<16x512xf32>
    %cst_285 = arith.constant 0.000000e+00 : f32
    %609 = vector.shape_cast %596 : vector<1x512xi1> to vector<1x512xi1>
    %610 = vector.broadcast %609 : vector<1x512xi1> to vector<16x512xi1>
    %611 = vector.broadcast %cst_285 : f32 to vector<16x512xf32>
    %612 = arith.select %610, %608, %611 : vector<16x512xi1>, vector<16x512xf32>
    %c6_286 = arith.constant 6 : index
    %c0_287 = arith.constant 0 : index
    %c0_288 = arith.constant 0 : index
    %613 = vector.load %arg17[%c6_286, %c0_287, %c0_288] : memref<9x16x16xf32, #tpu.memory_space<vmem>>, vector<1x16x16xf32>
    %614 = vector.shape_cast %613 : vector<1x16x16xf32> to vector<16x16xf32>
    %615 = arith.truncf %614 : vector<16x16xf32> to vector<16x16xbf16>
    %616 = arith.truncf %612 : vector<16x512xf32> to vector<16x512xbf16>
    %cst_289 = arith.constant dense<0.000000e+00> : vector<16x512xf32>
    %617 = tpu.matmul %615, %616, %cst_289 {dimension_numbers = #tpu.dot_dimension_numbers<[1], [0], [0], [1], [0, 0, 1, 1], [], []>} : vector<16x16xbf16>, vector<16x512xbf16>, vector<16x512xf32> -> vector<16x512xf32>
    %618 = arith.addf %607, %617 : vector<16x512xf32>
    %c14_i32_290 = arith.constant 14 : i32
    %619 = vector.broadcast %c14_i32_290 : i32 to vector<1x512xi32>
    %620 = arith.cmpi sle, %6, %619 : vector<1x512xi32>
    %c496_i32_291 = arith.constant 496 : i32
    %621 = tpu.dynamic_rotate %451 by %c496_i32_291 dim 1 : vector<16x512xf32>, i32 -> vector<16x512xf32>
    %cst_292 = arith.constant 0.000000e+00 : f32
    %622 = vector.shape_cast %620 : vector<1x512xi1> to vector<1x512xi1>
    %623 = vector.broadcast %622 : vector<1x512xi1> to vector<16x512xi1>
    %624 = vector.broadcast %cst_292 : f32 to vector<16x512xf32>
    %625 = arith.select %623, %621, %624 : vector<16x512xi1>, vector<16x512xf32>
    %c7_293 = arith.constant 7 : index
    %c0_294 = arith.constant 0 : index
    %c0_295 = arith.constant 0 : index
    %626 = vector.load %arg16[%c7_293, %c0_294, %c0_295] : memref<9x16x16xf32, #tpu.memory_space<vmem>>, vector<1x16x16xf32>
    %627 = vector.shape_cast %626 : vector<1x16x16xf32> to vector<16x16xf32>
    %628 = arith.truncf %627 : vector<16x16xf32> to vector<16x16xbf16>
    %629 = arith.truncf %625 : vector<16x512xf32> to vector<16x512xbf16>
    %cst_296 = arith.constant dense<0.000000e+00> : vector<16x512xf32>
    %630 = tpu.matmul %628, %629, %cst_296 {dimension_numbers = #tpu.dot_dimension_numbers<[1], [0], [0], [1], [0, 0, 1, 1], [], []>} : vector<16x16xbf16>, vector<16x512xbf16>, vector<16x512xf32> -> vector<16x512xf32>
    %631 = arith.addf %618, %630 : vector<16x512xf32>
    %c496_i32_297 = arith.constant 496 : i32
    %632 = tpu.dynamic_rotate %218 by %c496_i32_297 dim 1 : vector<16x512xf32>, i32 -> vector<16x512xf32>
    %cst_298 = arith.constant 0.000000e+00 : f32
    %633 = vector.shape_cast %620 : vector<1x512xi1> to vector<1x512xi1>
    %634 = vector.broadcast %633 : vector<1x512xi1> to vector<16x512xi1>
    %635 = vector.broadcast %cst_298 : f32 to vector<16x512xf32>
    %636 = arith.select %634, %632, %635 : vector<16x512xi1>, vector<16x512xf32>
    %c7_299 = arith.constant 7 : index
    %c0_300 = arith.constant 0 : index
    %c0_301 = arith.constant 0 : index
    %637 = vector.load %arg17[%c7_299, %c0_300, %c0_301] : memref<9x16x16xf32, #tpu.memory_space<vmem>>, vector<1x16x16xf32>
    %638 = vector.shape_cast %637 : vector<1x16x16xf32> to vector<16x16xf32>
    %639 = arith.truncf %638 : vector<16x16xf32> to vector<16x16xbf16>
    %640 = arith.truncf %636 : vector<16x512xf32> to vector<16x512xbf16>
    %cst_302 = arith.constant dense<0.000000e+00> : vector<16x512xf32>
    %641 = tpu.matmul %639, %640, %cst_302 {dimension_numbers = #tpu.dot_dimension_numbers<[1], [0], [0], [1], [0, 0, 1, 1], [], []>} : vector<16x16xbf16>, vector<16x512xbf16>, vector<16x512xf32> -> vector<16x512xf32>
    %642 = arith.addf %631, %641 : vector<16x512xf32>
    %c14_i32_303 = arith.constant 14 : i32
    %643 = vector.broadcast %c14_i32_303 : i32 to vector<1x512xi32>
    %644 = arith.cmpi sle, %2, %643 : vector<1x512xi32>
    %c14_i32_304 = arith.constant 14 : i32
    %645 = vector.broadcast %c14_i32_304 : i32 to vector<1x512xi32>
    %646 = arith.cmpi sle, %6, %645 : vector<1x512xi32>
    %647 = arith.andi %644, %646 : vector<1x512xi1>
    %c495_i32_305 = arith.constant 495 : i32
    %648 = tpu.dynamic_rotate %451 by %c495_i32_305 dim 1 : vector<16x512xf32>, i32 -> vector<16x512xf32>
    %cst_306 = arith.constant 0.000000e+00 : f32
    %649 = vector.shape_cast %647 : vector<1x512xi1> to vector<1x512xi1>
    %650 = vector.broadcast %649 : vector<1x512xi1> to vector<16x512xi1>
    %651 = vector.broadcast %cst_306 : f32 to vector<16x512xf32>
    %652 = arith.select %650, %648, %651 : vector<16x512xi1>, vector<16x512xf32>
    %c8_307 = arith.constant 8 : index
    %c0_308 = arith.constant 0 : index
    %c0_309 = arith.constant 0 : index
    %653 = vector.load %arg16[%c8_307, %c0_308, %c0_309] : memref<9x16x16xf32, #tpu.memory_space<vmem>>, vector<1x16x16xf32>
    %654 = vector.shape_cast %653 : vector<1x16x16xf32> to vector<16x16xf32>
    %655 = arith.truncf %654 : vector<16x16xf32> to vector<16x16xbf16>
    %656 = arith.truncf %652 : vector<16x512xf32> to vector<16x512xbf16>
    %cst_310 = arith.constant dense<0.000000e+00> : vector<16x512xf32>
    %657 = tpu.matmul %655, %656, %cst_310 {dimension_numbers = #tpu.dot_dimension_numbers<[1], [0], [0], [1], [0, 0, 1, 1], [], []>} : vector<16x16xbf16>, vector<16x512xbf16>, vector<16x512xf32> -> vector<16x512xf32>
    %658 = arith.addf %642, %657 : vector<16x512xf32>
    %c495_i32_311 = arith.constant 495 : i32
    %659 = tpu.dynamic_rotate %218 by %c495_i32_311 dim 1 : vector<16x512xf32>, i32 -> vector<16x512xf32>
    %cst_312 = arith.constant 0.000000e+00 : f32
    %660 = vector.shape_cast %647 : vector<1x512xi1> to vector<1x512xi1>
    %661 = vector.broadcast %660 : vector<1x512xi1> to vector<16x512xi1>
    %662 = vector.broadcast %cst_312 : f32 to vector<16x512xf32>
    %663 = arith.select %661, %659, %662 : vector<16x512xi1>, vector<16x512xf32>
    %c8_313 = arith.constant 8 : index
    %c0_314 = arith.constant 0 : index
    %c0_315 = arith.constant 0 : index
    %664 = vector.load %arg17[%c8_313, %c0_314, %c0_315] : memref<9x16x16xf32, #tpu.memory_space<vmem>>, vector<1x16x16xf32>
    %665 = vector.shape_cast %664 : vector<1x16x16xf32> to vector<16x16xf32>
    %666 = arith.truncf %665 : vector<16x16xf32> to vector<16x16xbf16>
    %667 = arith.truncf %663 : vector<16x512xf32> to vector<16x512xbf16>
    %cst_316 = arith.constant dense<0.000000e+00> : vector<16x512xf32>
    %668 = tpu.matmul %666, %667, %cst_316 {dimension_numbers = #tpu.dot_dimension_numbers<[1], [0], [0], [1], [0, 0, 1, 1], [], []>} : vector<16x16xbf16>, vector<16x512xbf16>, vector<16x512xf32> -> vector<16x512xf32>
    %669 = arith.addf %658, %668 : vector<16x512xf32>
    %670 = vector.broadcast %452 : vector<16x1xf32> to vector<16x512xf32>
    %671 = arith.mulf %670, %669 : vector<16x512xf32>
    %c0_317 = arith.constant 0 : index
    %c0_318 = arith.constant 0 : index
    %672 = vector.load %arg19[%c0_317, %c0_318] : memref<16x1xf32, #tpu.memory_space<vmem>>, vector<16x1xf32>
    %673 = vector.broadcast %672 : vector<16x1xf32> to vector<16x512xf32>
    %674 = arith.addf %671, %673 : vector<16x512xf32>
    %cst_319 = arith.constant 0.000000e+00 : f32
    %675 = vector.broadcast %cst_319 : f32 to vector<16x512xf32>
    %676 = arith.cmpf ogt, %674, %675 : vector<16x512xf32>
    %cst_320 = arith.constant 1.000000e-01 : f32
    %677 = vector.broadcast %cst_320 : f32 to vector<16x512xf32>
    %678 = arith.mulf %677, %674 : vector<16x512xf32>
    %679 = arith.select %676, %674, %678 : vector<16x512xi1>, vector<16x512xf32>
    %c0_321 = arith.constant 0 : index
    %c0_322 = arith.constant 0 : index
    %680 = vector.load %arg20[%c0_321, %c0_322] : memref<24x16xf32, #tpu.memory_space<vmem>>, vector<24x16xf32>
    %681 = arith.truncf %680 : vector<24x16xf32> to vector<24x16xbf16>
    %682 = arith.truncf %679 : vector<16x512xf32> to vector<16x512xbf16>
    %cst_323 = arith.constant dense<0.000000e+00> : vector<24x512xf32>
    %683 = tpu.matmul %681, %682, %cst_323 {dimension_numbers = #tpu.dot_dimension_numbers<[1], [0], [0], [1], [0, 0, 1, 1], [], []>} : vector<24x16xbf16>, vector<16x512xbf16>, vector<24x512xf32> -> vector<24x512xf32>
    %c0_324 = arith.constant 0 : index
    %c0_325 = arith.constant 0 : index
    %684 = vector.load %arg21[%c0_324, %c0_325] : memref<24x1xf32, #tpu.memory_space<vmem>>, vector<24x1xf32>
    %685 = vector.broadcast %684 : vector<24x1xf32> to vector<24x512xf32>
    %686 = arith.addf %683, %685 : vector<24x512xf32>
    %687 = tpu.iota {dimensions = array<i32: 0>} : vector<24x1xi32>
    %c7_i32_326 = arith.constant 7 : i32
    %688 = vector.broadcast %c7_i32_326 : i32 to vector<24x1xi32>
    %689 = arith.cmpi slt, %687, %688 : vector<24x1xi32>
    %c14_i32_327 = arith.constant 14 : i32
    %690 = vector.broadcast %c14_i32_327 : i32 to vector<24x1xi32>
    %691 = arith.cmpi slt, %687, %690 : vector<24x1xi32>
    %c1_i32_328 = arith.constant 1 : i32
    %c2_i32_329 = arith.constant 2 : i32
    %692 = vector.broadcast %c1_i32_328 : i32 to vector<24x1xi32>
    %693 = vector.broadcast %c2_i32_329 : i32 to vector<24x1xi32>
    %694 = arith.select %691, %692, %693 : vector<24x1xi1>, vector<24x1xi32>
    %c0_i32_330 = arith.constant 0 : i32
    %695 = vector.broadcast %c0_i32_330 : i32 to vector<24x1xi32>
    %696 = arith.select %689, %695, %694 : vector<24x1xi1>, vector<24x1xi32>
    %c7_i32_331 = arith.constant 7 : i32
    %697 = vector.broadcast %c7_i32_331 : i32 to vector<24x1xi32>
    %698 = arith.muli %697, %696 : vector<24x1xi32>
    %699 = arith.subi %687, %698 : vector<24x1xi32>
    %c0_i32_332 = arith.constant 0 : i32
    %700 = vector.broadcast %c0_i32_332 : i32 to vector<24x1xi32>
    %701 = arith.cmpi eq, %696, %700 : vector<24x1xi32>
    %c1_i32_333 = arith.constant 1 : i32
    %702 = vector.broadcast %c1_i32_333 : i32 to vector<24x1xi32>
    %703 = arith.cmpi eq, %696, %702 : vector<24x1xi32>
    %cst_334 = arith.constant 1.350000e+02 : f32
    %cst_335 = arith.constant 3.440000e+02 : f32
    %704 = vector.broadcast %cst_334 : f32 to vector<24x1xf32>
    %705 = vector.broadcast %cst_335 : f32 to vector<24x1xf32>
    %706 = arith.select %703, %704, %705 : vector<24x1xi1>, vector<24x1xf32>
    %cst_336 = arith.constant 8.100000e+01 : f32
    %707 = vector.broadcast %cst_336 : f32 to vector<24x1xf32>
    %708 = arith.select %701, %707, %706 : vector<24x1xi1>, vector<24x1xf32>
    %c0_i32_337 = arith.constant 0 : i32
    %709 = vector.broadcast %c0_i32_337 : i32 to vector<24x1xi32>
    %710 = arith.cmpi eq, %696, %709 : vector<24x1xi32>
    %c1_i32_338 = arith.constant 1 : i32
    %711 = vector.broadcast %c1_i32_338 : i32 to vector<24x1xi32>
    %712 = arith.cmpi eq, %696, %711 : vector<24x1xi32>
    %cst_339 = arith.constant 1.690000e+02 : f32
    %cst_340 = arith.constant 3.190000e+02 : f32
    %713 = vector.broadcast %cst_339 : f32 to vector<24x1xf32>
    %714 = vector.broadcast %cst_340 : f32 to vector<24x1xf32>
    %715 = arith.select %712, %713, %714 : vector<24x1xi1>, vector<24x1xf32>
    %cst_341 = arith.constant 8.200000e+01 : f32
    %716 = vector.broadcast %cst_341 : f32 to vector<24x1xf32>
    %717 = arith.select %710, %716, %715 : vector<24x1xi1>, vector<24x1xf32>
    %718 = arith.sitofp %2 : vector<1x512xi32> to vector<1x512xf32>
    %719 = arith.sitofp %6 : vector<1x512xi32> to vector<1x512xf32>
    %720 = arith.negf %686 : vector<24x512xf32>
    %721 = math.exp %720 : vector<24x512xf32>
    %cst_342 = arith.constant 1.000000e+00 : f32
    %722 = vector.broadcast %cst_342 : f32 to vector<24x512xf32>
    %723 = arith.addf %722, %721 : vector<24x512xf32>
    %724 = arith.divf %722, %723 : vector<24x512xf32>
    %725 = math.exp %686 : vector<24x512xf32>
    %c0_i32_343 = arith.constant 0 : i32
    %726 = vector.broadcast %c0_i32_343 : i32 to vector<24x1xi32>
    %727 = arith.cmpi eq, %699, %726 : vector<24x1xi32>
    %728 = vector.broadcast %718 : vector<1x512xf32> to vector<24x512xf32>
    %729 = arith.addf %724, %728 : vector<24x512xf32>
    %cst_344 = arith.constant 2.000000e+00 : f32
    %730 = vector.broadcast %cst_344 : f32 to vector<24x512xf32>
    %731 = arith.mulf %729, %730 : vector<24x512xf32>
    %c1_i32_345 = arith.constant 1 : i32
    %732 = vector.broadcast %c1_i32_345 : i32 to vector<24x1xi32>
    %733 = arith.cmpi eq, %699, %732 : vector<24x1xi32>
    %734 = vector.broadcast %719 : vector<1x512xf32> to vector<24x512xf32>
    %735 = arith.addf %724, %734 : vector<24x512xf32>
    %cst_346 = arith.constant 2.000000e+00 : f32
    %736 = vector.broadcast %cst_346 : f32 to vector<24x512xf32>
    %737 = arith.mulf %735, %736 : vector<24x512xf32>
    %c2_i32_347 = arith.constant 2 : i32
    %738 = vector.broadcast %c2_i32_347 : i32 to vector<24x1xi32>
    %739 = arith.cmpi eq, %699, %738 : vector<24x1xi32>
    %740 = vector.broadcast %708 : vector<24x1xf32> to vector<24x512xf32>
    %741 = arith.mulf %725, %740 : vector<24x512xf32>
    %c3_i32_348 = arith.constant 3 : i32
    %742 = vector.broadcast %c3_i32_348 : i32 to vector<24x1xi32>
    %743 = arith.cmpi eq, %699, %742 : vector<24x1xi32>
    %744 = vector.broadcast %717 : vector<24x1xf32> to vector<24x512xf32>
    %745 = arith.mulf %725, %744 : vector<24x512xf32>
    %746 = vector.shape_cast %743 : vector<24x1xi1> to vector<24x1xi1>
    %747 = vector.broadcast %746 : vector<24x1xi1> to vector<24x512xi1>
    %748 = arith.select %747, %745, %724 : vector<24x512xi1>, vector<24x512xf32>
    %749 = vector.shape_cast %739 : vector<24x1xi1> to vector<24x1xi1>
    %750 = vector.broadcast %749 : vector<24x1xi1> to vector<24x512xi1>
    %751 = arith.select %750, %741, %748 : vector<24x512xi1>, vector<24x512xf32>
    %752 = vector.shape_cast %733 : vector<24x1xi1> to vector<24x1xi1>
    %753 = vector.broadcast %752 : vector<24x1xi1> to vector<24x512xi1>
    %754 = arith.select %753, %737, %751 : vector<24x512xi1>, vector<24x512xf32>
    %755 = vector.shape_cast %727 : vector<24x1xi1> to vector<24x1xi1>
    %756 = vector.broadcast %755 : vector<24x1xi1> to vector<24x512xi1>
    %757 = arith.select %756, %731, %754 : vector<24x512xi1>, vector<24x512xf32>
    %c0_349 = arith.constant 0 : index
    %c0_350 = arith.constant 0 : index
    %758 = vector.load %arg23[%c0_349, %c0_350] : memref<24x512xf32, #tpu.memory_space<vmem>>, vector<24x512xf32>
    tpu.vector_store %arg23[%c0_349, %c0_350], %757 {strides = array<i32>} : memref<24x512xf32, #tpu.memory_space<vmem>>, vector<24x512xf32>,
    return
  }
  func.func @transform_0(%arg0: i32) -> (i32, i32, i32) {
    %c0_i32 = arith.constant 0 : i32
    %c0_i32_0 = arith.constant 0 : i32
    %c0_i32_1 = arith.constant 0 : i32
    %c0_i32_2 = arith.constant 0 : i32
    return %c0_i32, %c0_i32_0, %c0_i32_1 : i32, i32, i32
  }
  func.func @transform_1(%arg0: i32) -> (i32, i32) {
    %c0_i32 = arith.constant 0 : i32
    %c0_i32_0 = arith.constant 0 : i32
    %c0_i32_1 = arith.constant 0 : i32
    return %c0_i32, %c0_i32_0 : i32, i32
  }
  func.func @transform_2(%arg0: i32) -> (i32, i32) {
    %c0_i32 = arith.constant 0 : i32
    %c0_i32_0 = arith.constant 0 : i32
    %c0_i32_1 = arith.constant 0 : i32
    return %c0_i32, %c0_i32_0 : i32, i32
  }
  func.func @transform_3(%arg0: i32) -> (i32, i32) {
    %c0_i32 = arith.constant 0 : i32
    %c0_i32_0 = arith.constant 0 : i32
    %c0_i32_1 = arith.constant 0 : i32
    return %c0_i32, %c0_i32_0 : i32, i32
  }
  func.func @transform_4(%arg0: i32) -> (i32, i32, i32) {
    %c0_i32 = arith.constant 0 : i32
    %c0_i32_0 = arith.constant 0 : i32
    %c0_i32_1 = arith.constant 0 : i32
    %c0_i32_2 = arith.constant 0 : i32
    return %c0_i32, %c0_i32_0, %c0_i32_1 : i32, i32, i32
  }
  func.func @transform_5(%arg0: i32) -> (i32, i32) {
    %c0_i32 = arith.constant 0 : i32
    %c0_i32_0 = arith.constant 0 : i32
    %c0_i32_1 = arith.constant 0 : i32
    return %c0_i32, %c0_i32_0 : i32, i32
  }
  func.func @transform_6(%arg0: i32) -> (i32, i32) {
    %c0_i32 = arith.constant 0 : i32
    %c0_i32_0 = arith.constant 0 : i32
    %c0_i32_1 = arith.constant 0 : i32
    return %c0_i32, %c0_i32_0 : i32, i32
  }
  func.func @transform_7(%arg0: i32) -> (i32, i32) {
    %c0_i32 = arith.constant 0 : i32
    %c0_i32_0 = arith.constant 0 : i32
    %c0_i32_1 = arith.constant 0 : i32
    return %c0_i32, %c0_i32_0 : i32, i32
  }
  func.func @transform_8(%arg0: i32) -> (i32, i32) {
    %c0_i32 = arith.constant 0 : i32
    %c0_i32_0 = arith.constant 0 : i32
    %c0_i32_1 = arith.constant 0 : i32
    return %c0_i32, %c0_i32_0 : i32, i32
  }
  func.func @transform_9(%arg0: i32) -> (i32, i32) {
    %c0_i32 = arith.constant 0 : i32
    %c0_i32_0 = arith.constant 0 : i32
    %c0_i32_1 = arith.constant 0 : i32
    return %c0_i32, %c0_i32_0 : i32, i32
  }
  func.func @transform_10(%arg0: i32) -> (i32, i32, i32) {
    %c0_i32 = arith.constant 0 : i32
    %c0_i32_0 = arith.constant 0 : i32
    %c0_i32_1 = arith.constant 0 : i32
    %c0_i32_2 = arith.constant 0 : i32
    return %c0_i32, %c0_i32_0, %c0_i32_1 : i32, i32, i32
  }
  func.func @transform_11(%arg0: i32) -> (i32, i32) {
    %c0_i32 = arith.constant 0 : i32
    %c0_i32_0 = arith.constant 0 : i32
    %c0_i32_1 = arith.constant 0 : i32
    return %c0_i32, %c0_i32_0 : i32, i32
  }
  func.func @transform_12(%arg0: i32) -> (i32, i32) {
    %c0_i32 = arith.constant 0 : i32
    %c0_i32_0 = arith.constant 0 : i32
    %c0_i32_1 = arith.constant 0 : i32
    return %c0_i32, %c0_i32_0 : i32, i32
  }
  func.func @transform_13(%arg0: i32) -> (i32, i32) {
    %c0_i32 = arith.constant 0 : i32
    %c0_i32_0 = arith.constant 0 : i32
    %c0_i32_1 = arith.constant 0 : i32
    return %c0_i32, %c0_i32_0 : i32, i32
  }
  func.func @transform_14(%arg0: i32) -> (i32, i32) {
    %c0_i32 = arith.constant 0 : i32
    %c0_i32_0 = arith.constant 0 : i32
    %c0_i32_1 = arith.constant 0 : i32
    return %c0_i32, %c0_i32_0 : i32, i32
  }
  func.func @transform_15(%arg0: i32) -> (i32, i32, i32) {
    %c0_i32 = arith.constant 0 : i32
    %c0_i32_0 = arith.constant 0 : i32
    %c0_i32_1 = arith.constant 0 : i32
    %c0_i32_2 = arith.constant 0 : i32
    return %c0_i32, %c0_i32_0, %c0_i32_1 : i32, i32, i32
  }
  func.func @transform_16(%arg0: i32) -> (i32, i32, i32) {
    %c0_i32 = arith.constant 0 : i32
    %c0_i32_0 = arith.constant 0 : i32
    %c0_i32_1 = arith.constant 0 : i32
    %c0_i32_2 = arith.constant 0 : i32
    return %c0_i32, %c0_i32_0, %c0_i32_1 : i32, i32, i32
  }
  func.func @transform_17(%arg0: i32) -> (i32, i32) {
    %c0_i32 = arith.constant 0 : i32
    %c0_i32_0 = arith.constant 0 : i32
    %c0_i32_1 = arith.constant 0 : i32
    return %c0_i32, %c0_i32_0 : i32, i32
  }
  func.func @transform_18(%arg0: i32) -> (i32, i32) {
    %c0_i32 = arith.constant 0 : i32
    %c0_i32_0 = arith.constant 0 : i32
    %c0_i32_1 = arith.constant 0 : i32
    return %c0_i32, %c0_i32_0 : i32, i32
  }
  func.func @transform_19(%arg0: i32) -> (i32, i32) {
    %c0_i32 = arith.constant 0 : i32
    %c0_i32_0 = arith.constant 0 : i32
    %c0_i32_1 = arith.constant 0 : i32
    return %c0_i32, %c0_i32_0 : i32, i32
  }
  func.func @transform_20(%arg0: i32) -> (i32, i32) {
    %c0_i32 = arith.constant 0 : i32
    %c0_i32_0 = arith.constant 0 : i32
    %c0_i32_1 = arith.constant 0 : i32
    return %c0_i32, %c0_i32_0 : i32, i32
  }
  func.func @transform_21(%arg0: i32) -> (i32, i32) {
    %c0_i32 = arith.constant 0 : i32
    %c0_i32_0 = arith.constant 0 : i32
    %c0_i32_1 = arith.constant 0 : i32
    return %c0_i32, %c0_i32_0 : i32, i32
  }
  func.func @transform_22(%arg0: i32) -> (i32, i32) {
    %c0_i32 = arith.constant 0 : i32
    %c0_i32_0 = arith.constant 0 : i32
    %c0_i32_1 = arith.constant 0 : i32
    return %c0_i32, %c0_i32_0 : i32, i32
  }
}

</mosaic_0001>

<llo_original>
// kernel: _lambda_.1
$region0: #{_lambda_.1}
  #allocation0 [shape = 'u32[]', space=smem, size = 0x4, offset = 0x4, fixed_abs, tag = 'smem constant byte address 0x4 - core index']
  #allocation1 [shape = 'u32[144,128]{1,0:T(1,128)}', space=vmem, size = 0x12000, scoped, tag = 'internal scratch']
  %s0 = inlined_call_operand.vmem [shape: f32[4,32,512], index: 0, kind: input, shape index: {}]
  %s1 = inlined_call_operand.vmem [shape: f32[16,32], index: 1, kind: input, shape index: {}]
  %s2 = inlined_call_operand.vmem [shape: f32[16,1], index: 2, kind: input, shape index: {}]
  %s3 = inlined_call_operand.vmem [shape: f32[16,1], index: 3, kind: input, shape index: {}]
  %s4 = inlined_call_operand.vmem [shape: f32[9,16,16], index: 4, kind: input, shape index: {}]
  %s5 = inlined_call_operand.vmem [shape: f32[16,1], index: 5, kind: input, shape index: {}]
  %s6 = inlined_call_operand.vmem [shape: f32[16,1], index: 6, kind: input, shape index: {}]
  %s7 = inlined_call_operand.vmem [shape: f32[16,16], index: 7, kind: input, shape index: {}]
  %s8 = inlined_call_operand.vmem [shape: f32[16,1], index: 8, kind: input, shape index: {}]
  %s9 = inlined_call_operand.vmem [shape: f32[16,1], index: 9, kind: input, shape index: {}]
  %s10 = inlined_call_operand.vmem [shape: f32[9,16,16], index: 10, kind: input, shape index: {}]
  %s11 = inlined_call_operand.vmem [shape: f32[16,1], index: 11, kind: input, shape index: {}]
  %s12 = inlined_call_operand.vmem [shape: f32[16,1], index: 12, kind: input, shape index: {}]
  %s13 = inlined_call_operand.vmem [shape: f32[24,16], index: 13, kind: input, shape index: {}]
  %s14 = inlined_call_operand.vmem [shape: f32[24,1], index: 14, kind: input, shape index: {}]
  %s15 = inlined_call_operand.vmem [shape: f32[9,16,16], index: 15, kind: input, shape index: {}]
  %s16 = inlined_call_operand.vmem [shape: f32[9,16,16], index: 16, kind: input, shape index: {}]
  %s17 = inlined_call_operand.vmem [shape: f32[16,1], index: 17, kind: input, shape index: {}]
  %s18 = inlined_call_operand.vmem [shape: f32[16,1], index: 18, kind: input, shape index: {}]
  %s19 = inlined_call_operand.vmem [shape: f32[24,16], index: 19, kind: input, shape index: {}]
  %s20 = inlined_call_operand.vmem [shape: f32[24,1], index: 20, kind: input, shape index: {}]
  %s21 = inlined_call_operand.vmem [shape: f32[24,512], index: 21, kind: output, shape index: {0}]
  %s22 = inlined_call_operand.vmem [shape: f32[24,512], index: 22, kind: output, shape index: {1}]
  %23 = xla_tuple %s21, %s22
  %s24 = sld [smem:[#allocation0]]
  $region102: #{_lambda_.1} parent=0
    _
  %s26 = ssub.s32 1, %s24
  %s27 = scalar_select 0, %s26, %s24
  // Predicated region
  $region2: #{_lambda_.1} parent=0 // pred_check
    _
  $region3: #{_lambda_.1} parent=0 // pred_check_branch
    %29 = sbr.rel (0) target = $region5
  $region4: #{_lambda_.1} parent=0 // pred_region
    _
  $region5: #{_lambda_.1} parent=0 // pred_fallthru
    _
  // Predicated region
  $region6: #{_lambda_.1} parent=0 // pred_check
    _
  $region7: #{_lambda_.1} parent=0 // pred_check_branch
    %31 = sbr.rel (0) target = $region9
  $region8: #{_lambda_.1} parent=0 // pred_region
    _
  $region9: #{_lambda_.1} parent=0 // pred_fallthru
    _
  // Predicated region
  $region10: #{_lambda_.1} parent=0 // pred_check
    _
  $region11: #{_lambda_.1} parent=0 // pred_check_branch
    %33 = sbr.rel (0) target = $region13
  $region12: #{_lambda_.1} parent=0 // pred_region
    _
  $region13: #{_lambda_.1} parent=0 // pred_fallthru
    _
  // Predicated region
  $region14: #{_lambda_.1} parent=0 // pred_check
    _
  $region15: #{_lambda_.1} parent=0 // pred_check_branch
    %35 = sbr.rel (0) target = $region17
  $region16: #{_lambda_.1} parent=0 // pred_region
    _
  $region17: #{_lambda_.1} parent=0 // pred_fallthru
    _
  // Predicated region
  $region18: #{_lambda_.1} parent=0 // pred_check
    _
  $region19: #{_lambda_.1} parent=0 // pred_check_branch
    %37 = sbr.rel (0) target = $region21
  $region20: #{_lambda_.1} parent=0 // pred_region
    _
  $region21: #{_lambda_.1} parent=0 // pred_fallthru
    _
  // Predicated region
  $region22: #{_lambda_.1} parent=0 // pred_check
    _
  $region23: #{_lambda_.1} parent=0 // pred_check_branch
    %39 = sbr.rel (0) target = $region25
  $region24: #{_lambda_.1} parent=0 // pred_region
    _
  $region25: #{_lambda_.1} parent=0 // pred_fallthru
    _
  // Predicated region
  $region26: #{_lambda_.1} parent=0 // pred_check
    _
  $region27: #{_lambda_.1} parent=0 // pred_check_branch
    %41 = sbr.rel (0) target = $region29
  $region28: #{_lambda_.1} parent=0 // pred_region
    _
  $region29: #{_lambda_.1} parent=0 // pred_fallthru
    _
  // Predicated region
  $region30: #{_lambda_.1} parent=0 // pred_check
    _
  $region31: #{_lambda_.1} parent=0 // pred_check_branch
    %43 = sbr.rel (0) target = $region33
  $region32: #{_lambda_.1} parent=0 // pred_region
    _
  $region33: #{_lambda_.1} parent=0 // pred_fallthru
    _
  // Predicated region
  $region34: #{_lambda_.1} parent=0 // pred_check
    _
  $region35: #{_lambda_.1} parent=0 // pred_check_branch
    %45 = sbr.rel (0) target = $region37
  $region36: #{_lambda_.1} parent=0 // pred_region
    _
  $region37: #{_lambda_.1} parent=0 // pred_fallthru
    _
  // Predicated region
  $region38: #{_lambda_.1} parent=0 // pred_check
    _
  $region39: #{_lambda_.1} parent=0 // pred_check_branch
    %47 = sbr.rel (0) target = $region41
  $region40: #{_lambda_.1} parent=0 // pred_region
    _
  $region41: #{_lambda_.1} parent=0 // pred_fallthru
    _
  // Predicated region
  $region42: #{_lambda_.1} parent=0 // pred_check
    _
  $region43: #{_lambda_.1} parent=0 // pred_check_branch
    %49 = sbr.rel (0) target = $region45
  $region44: #{_lambda_.1} parent=0 // pred_region
    _
  $region45: #{_lambda_.1} parent=0 // pred_fallthru
    _
  // Predicated region
  $region46: #{_lambda_.1} parent=0 // pred_check
    _
  $region47: #{_lambda_.1} parent=0 // pred_check_branch
    %51 = sbr.rel (0) target = $region49
  $region48: #{_lambda_.1} parent=0 // pred_region
    _
  $region49: #{_lambda_.1} parent=0 // pred_fallthru
    _
  // Predicated region
  $region50: #{_lambda_.1} parent=0 // pred_check
    _
  $region51: #{_lambda_.1} parent=0 // pred_check_branch
    %53 = sbr.rel (0) target = $region53
  $region52: #{_lambda_.1} parent=0 // pred_region
    _
  $region53: #{_lambda_.1} parent=0 // pred_fallthru
    _
  // Predicated region
  $region54: #{_lambda_.1} parent=0 // pred_check
    _
  $region55: #{_lambda_.1} parent=0 // pred_check_branch
    %55 = sbr.rel (0) target = $region57
  $region56: #{_lambda_.1} parent=0 // pred_region
    _
  $region57: #{_lambda_.1} parent=0 // pred_fallthru
    _
  // Predicated region
  $region58: #{_lambda_.1} parent=0 // pred_check
    _
  $region59: #{_lambda_.1} parent=0 // pred_check_branch
    %57 = sbr.rel (0) target = $region61
  $region60: #{_lambda_.1} parent=0 // pred_region
    _
  $region61: #{_lambda_.1} parent=0 // pred_fallthru
    _
  // Predicated region
  $region62: #{_lambda_.1} parent=0 // pred_check
    _
  $region63: #{_lambda_.1} parent=0 // pred_check_branch
    %59 = sbr.rel (0) target = $region65
  $region64: #{_lambda_.1} parent=0 // pred_region
    _
  $region65: #{_lambda_.1} parent=0 // pred_fallthru
    _
  // Predicated region
  $region66: #{_lambda_.1} parent=0 // pred_check
    _
  $region67: #{_lambda_.1} parent=0 // pred_check_branch
    %61 = sbr.rel (0) target = $region69
  $region68: #{_lambda_.1} parent=0 // pred_region
    _
  $region69: #{_lambda_.1} parent=0 // pred_fallthru
    _
  // Predicated region
  $region70: #{_lambda_.1} parent=0 // pred_check
    _
  $region71: #{_lambda_.1} parent=0 // pred_check_branch
    %63 = sbr.rel (0) target = $region73
  $region72: #{_lambda_.1} parent=0 // pred_region
    _
  $region73: #{_lambda_.1} parent=0 // pred_fallthru
    _
  // Predicated region
  $region74: #{_lambda_.1} parent=0 // pred_check
    _
  $region75: #{_lambda_.1} parent=0 // pred_check_branch
    %65 = sbr.rel (0) target = $region77
  $region76: #{_lambda_.1} parent=0 // pred_region
    _
  $region77: #{_lambda_.1} parent=0 // pred_fallthru
    _
  // Predicated region
  $region78: #{_lambda_.1} parent=0 // pred_check
    _
  $region79: #{_lambda_.1} parent=0 // pred_check_branch
    %67 = sbr.rel (0) target = $region81
  $region80: #{_lambda_.1} parent=0 // pred_region
    _
  $region81: #{_lambda_.1} parent=0 // pred_fallthru
    _
  // Predicated region
  $region82: #{_lambda_.1} parent=0 // pred_check
    _
  $region83: #{_lambda_.1} parent=0 // pred_check_branch
    %69 = sbr.rel (0) target = $region85
  $region84: #{_lambda_.1} parent=0 // pred_region
    _
  $region85: #{_lambda_.1} parent=0 // pred_fallthru
    _
  %v71 = vlaneseq
  %v72 = vand.u32 %v71, 127
  %v73 = vadd.s32 %v72, 128
  %v74 = vadd.s32 %v72, 256
  %v75 = vadd.s32 %v72, 384
  %v76 = vand.u32 %v72, 15
  %v77 = vand.u32 %v73, 15
  %v78 = vand.u32 %v74, 15
  %v79 = vand.u32 %v75, 15
  %v80 = vshra.s32 %v72, 4
  %v81 = vshra.s32 %v73, 4
  %v82 = vshra.s32 %v74, 4
  %v83 = vshra.s32 %v75, 4
  %v84 = vand.u32 %v80, 15
  %v85 = vand.u32 %v81, 15
  %v86 = vand.u32 %v82, 15
  %v87 = vand.u32 %v83, 15
  %v88 = vld [vmem:[%s1] sm:$0xff]
  %v89 = vld [vmem:[%s1 + $0x8] sm:$0xff]
  %v90 = vld [vmem:[%s2] sm:$0xff]
  %v91 = vld [vmem:[%s2 + $0x8] sm:$0xff]
  %v92 = vld [vmem:[%s3] sm:$0xff]
  %v93 = vld [vmem:[%s3 + $0x8] sm:$0xff]
  %v94 = vld [vmem:[%s0] sm:$0xff]
  %v95 = vld [vmem:[%s0 + $0x8] sm:$0xff]
  %v96 = vld [vmem:[%s0 + $0x10] sm:$0xff]
  %v97 = vld [vmem:[%s0 + $0x18] sm:$0xff]
  %v98 = vld [vmem:[%s0 + $0x20] sm:$0xff]
  %v99 = vld [vmem:[%s0 + $0x28] sm:$0xff]
  %v100 = vld [vmem:[%s0 + $0x30] sm:$0xff]
  %v101 = vld [vmem:[%s0 + $0x38] sm:$0xff]
  %v102 = vld [vmem:[%s0 + $0x40] sm:$0xff]
  %v103 = vld [vmem:[%s0 + $0x48] sm:$0xff]
  %v104 = vld [vmem:[%s0 + $0x50] sm:$0xff]
  %v105 = vld [vmem:[%s0 + $0x58] sm:$0xff]
  %v106 = vld [vmem:[%s0 + $0x60] sm:$0xff]
  %v107 = vld [vmem:[%s0 + $0x68] sm:$0xff]
  %v108 = vld [vmem:[%s0 + $0x70] sm:$0xff]
  %v109 = vld [vmem:[%s0 + $0x78] sm:$0xff]
  %v110 = vpack.c.bf16 %v89, %v88
  %v111 = vpack.c.bf16 %v98, %v94
  %v112 = vpack.c.bf16 %v99, %v95
  %v113 = vpack.c.bf16 %v100, %v96
  %v114 = vpack.c.bf16 %v101, %v97
  %v115 = vpack.c.bf16 %v106, %v102
  %v116 = vpack.c.bf16 %v107, %v103
  %v117 = vpack.c.bf16 %v108, %v104
  %v118 = vpack.c.bf16 %v109, %v105
  %vm119 = vcmask 261120
  %v121 = vsel %vm119, %v110, 0
  %123 = vmatprep.subr.bf16.mxu0 %v112
  %124 = vmatpush1.bf16.msra.mxu0 %v111
  %125 = vmatprep.subr.bf16.mxu0 %v116
  %126 = vmatpush1.bf16.msra.mxu0 %v115
  %127 = vmatprep.subr.bf16.mxu0 0
  %128 = vmatpush1.bf16.msra.mxu0 0
  %129 = vmatprep.subr.bf16.mxu0 0
  %130 = vmatpush1.bf16.msra.mxu0 0
  %131 = vmatprep.subr.bf16.mxu0 0
  %132 = vmatpush1.bf16.msra.mxu0 0
  %133 = vmatprep.subr.bf16.mxu0 0
  %134 = vmatpush1.bf16.msra.mxu0 0
  %135 = vmatprep.subr.bf16.mxu0 0
  %136 = vmatpush1.bf16.msra.mxu0 0
  %137 = vmatprep.subr.bf16.mxu0 0
  %138 = vmatpush1.bf16.msra.mxu0 0
  %139 = vmatprep.subr.bf16.mxu0 0
  %140 = vmatpush1.bf16.msra.mxu0 0
  %141 = vmatprep.subr.bf16.mxu0 0
  %142 = vmatpush1.bf16.msra.mxu0 0
  %143 = vmatprep.subr.bf16.mxu0 0
  %144 = vmatpush1.bf16.msra.mxu0 0
  %145 = vmatprep.subr.bf16.mxu0 0
  %146 = vmatpush1.bf16.msra.mxu0 0
  %147 = vmatprep.subr.bf16.mxu0 0
  %148 = vmatpush1.bf16.msra.mxu0 0
  %149 = vmatprep.subr.bf16.mxu0 0
  %150 = vmatpush1.bf16.msra.mxu0 0
  %151 = vmatprep.subr.bf16.mxu0 0
  %152 = vmatpush1.bf16.msra.mxu0 0
  %153 = vmatprep.subr.bf16.mxu0 0
  %154 = vmatpush1.bf16.msra.mxu0 0
  %155 = vmatprep.mubr.bf16.mxu0 0
  %156 = vmatmul.mubr.bf16.gmra.mrb[0].mxu0 %v121
  %v157 = vpop.f32.mrb[0].mxu0
  %v158 = vadd.f32 0.0, %v157
  %v159 = vpop.f32.mrb[0].mxu0
  %v160 = vadd.f32 0.0, %v159
  %v161 = vpop.f32.mrb[0].mxu0
  %v162 = vadd.f32 0.0, %v161
  %v163 = vpop.f32.mrb[0].mxu0
  %v164 = vadd.f32 0.0, %v163
  %165 = vdwg.mxu0
  %166 = vmatprep.subr.bf16.mxu0 %v114
  %167 = vmatpush1.bf16.msra.mxu0 %v113
  %168 = vmatprep.subr.bf16.mxu0 %v118
  %169 = vmatpush1.bf16.msra.mxu0 %v117
  %170 = vmatprep.subr.bf16.mxu0 0
  %171 = vmatpush1.bf16.msra.mxu0 0
  %172 = vmatprep.subr.bf16.mxu0 0
  %173 = vmatpush1.bf16.msra.mxu0 0
  %174 = vmatprep.subr.bf16.mxu0 0
  %175 = vmatpush1.bf16.msra.mxu0 0
  %176 = vmatprep.subr.bf16.mxu0 0
  %177 = vmatpush1.bf16.msra.mxu0 0
  %178 = vmatprep.subr.bf16.mxu0 0
  %179 = vmatpush1.bf16.msra.mxu0 0
  %180 = vmatprep.subr.bf16.mxu0 0
  %181 = vmatpush1.bf16.msra.mxu0 0
  %182 = vmatprep.subr.bf16.mxu0 0
  %183 = vmatpush1.bf16.msra.mxu0 0
  %184 = vmatprep.subr.bf16.mxu0 0
  %185 = vmatpush1.bf16.msra.mxu0 0
  %186 = vmatprep.subr.bf16.mxu0 0
  %187 = vmatpush1.bf16.msra.mxu0 0
  %188 = vmatprep.subr.bf16.mxu0 0
  %189 = vmatpush1.bf16.msra.mxu0 0
  %190 = vmatprep.subr.bf16.mxu0 0
  %191 = vmatpush1.bf16.msra.mxu0 0
  %192 = vmatprep.subr.bf16.mxu0 0
  %193 = vmatpush1.bf16.msra.mxu0 0
  %194 = vmatprep.subr.bf16.mxu0 0
  %195 = vmatpush1.bf16.msra.mxu0 0
  %196 = vmatprep.subr.bf16.mxu0 0
  %197 = vmatpush1.bf16.msra.mxu0 0
  %198 = vmatprep.mubr.bf16.mxu0 0
  %199 = vmatmul.mubr.bf16.gmra.mrb[0].mxu0 %v121
  %v200 = vpop.f32.mrb[0].mxu0
  %v201 = vadd.f32 0.0, %v200
  %v202 = vpop.f32.mrb[0].mxu0
  %v203 = vadd.f32 0.0, %v202
  %v204 = vpop.f32.mrb[0].mxu0
  %v205 = vadd.f32 0.0, %v204
  %v206 = vpop.f32.mrb[0].mxu0
  %v207 = vadd.f32 0.0, %v206
  %208 = vdwg.mxu0
  %210 = vset.pattern.permute.xlu0 0
  %211 = vperm.xlu0 %210, %v90
  %v212 = vpop.permute.xlu0 %211
  %215 = vset.pattern.permute.xlu0 0
  %216 = vperm.xlu0 %215, %v91
  %v217 = vpop.permute.xlu0 %216
  %v219 = vmul.f32 %v212, %v158
  %v220 = vmul.f32 %v212, %v160
  %v221 = vmul.f32 %v212, %v201
  %v222 = vmul.f32 %v212, %v203
  %v223 = vmul.f32 %v217, %v162
  %v224 = vmul.f32 %v217, %v164
  %v225 = vmul.f32 %v217, %v205
  %v226 = vmul.f32 %v217, %v207
  %228 = vset.pattern.permute.xlu0 0
  %229 = vperm.xlu0 %228, %v92
  %v230 = vpop.permute.xlu0 %229
  %233 = vset.pattern.permute.xlu0 0
  %234 = vperm.xlu0 %233, %v93
  %v235 = vpop.permute.xlu0 %234
  %v237 = vadd.f32 %v219, %v230
  %v238 = vadd.f32 %v220, %v230
  %v239 = vadd.f32 %v221, %v230
  %v240 = vadd.f32 %v222, %v230
  %v241 = vadd.f32 %v223, %v235
  %v242 = vadd.f32 %v224, %v235
  %v243 = vadd.f32 %v225, %v235
  %v244 = vadd.f32 %v226, %v235
  %vm245 = vcmp.gt.f32.partialorder %v237, 0.0
  %vm246 = vcmp.gt.f32.partialorder %v238, 0.0
  %vm247 = vcmp.gt.f32.partialorder %v239, 0.0
  %vm248 = vcmp.gt.f32.partialorder %v240, 0.0
  %vm249 = vcmp.gt.f32.partialorder %v241, 0.0
  %vm250 = vcmp.gt.f32.partialorder %v242, 0.0
  %vm251 = vcmp.gt.f32.partialorder %v243, 0.0
  %vm252 = vcmp.gt.f32.partialorder %v244, 0.0
  %v253 = vmul.f32 %v237, 0.1
  %v254 = vmul.f32 %v238, 0.1
  %v255 = vmul.f32 %v239, 0.1
  %v256 = vmul.f32 %v240, 0.1
  %v257 = vmul.f32 %v241, 0.1
  %v258 = vmul.f32 %v242, 0.1
  %v259 = vmul.f32 %v243, 0.1
  %v260 = vmul.f32 %v244, 0.1
  %v261 = vsel %vm245, %v237, %v253
  %v262 = vsel %vm246, %v238, %v254
  %v263 = vsel %vm247, %v239, %v255
  %v264 = vsel %vm248, %v240, %v256
  %v265 = vsel %vm249, %v241, %v257
  %v266 = vsel %vm250, %v242, %v258
  %v267 = vsel %vm251, %v243, %v259
  %v268 = vsel %vm252, %v244, %v260
  %s269 = scalar_lea.vmem %s0, 128
  %v270 = vld [vmem:[%s269] sm:$0xff]
  %v271 = vld [vmem:[%s269 + $0x8] sm:$0xff]
  %v272 = vld [vmem:[%s269 + $0x10] sm:$0xff]
  %v273 = vld [vmem:[%s269 + $0x18] sm:$0xff]
  %v274 = vld [vmem:[%s269 + $0x20] sm:$0xff]
  %v275 = vld [vmem:[%s269 + $0x28] sm:$0xff]
  %v276 = vld [vmem:[%s269 + $0x30] sm:$0xff]
  %v277 = vld [vmem:[%s269 + $0x38] sm:$0xff]
  %v278 = vld [vmem:[%s269 + $0x40] sm:$0xff]
  %v279 = vld [vmem:[%s269 + $0x48] sm:$0xff]
  %v280 = vld [vmem:[%s269 + $0x50] sm:$0xff]
  %v281 = vld [vmem:[%s269 + $0x58] sm:$0xff]
  %v282 = vld [vmem:[%s269 + $0x60] sm:$0xff]
  %v283 = vld [vmem:[%s269 + $0x68] sm:$0xff]
  %v284 = vld [vmem:[%s269 + $0x70] sm:$0xff]
  %v285 = vld [vmem:[%s269 + $0x78] sm:$0xff]
  %v286 = vpack.c.bf16 %v274, %v270
  %v287 = vpack.c.bf16 %v275, %v271
  %v288 = vpack.c.bf16 %v276, %v272
  %v289 = vpack.c.bf16 %v277, %v273
  %v290 = vpack.c.bf16 %v282, %v278
  %v291 = vpack.c.bf16 %v283, %v279
  %v292 = vpack.c.bf16 %v284, %v280
  %v293 = vpack.c.bf16 %v285, %v281
  %294 = vmatprep.subr.bf16.mxu0 %v287
  %295 = vmatpush1.bf16.msra.mxu0 %v286
  %296 = vmatprep.subr.bf16.mxu0 %v291
  %297 = vmatpush1.bf16.msra.mxu0 %v290
  %298 = vmatprep.subr.bf16.mxu0 0
  %299 = vmatpush1.bf16.msra.mxu0 0
  %300 = vmatprep.subr.bf16.mxu0 0
  %301 = vmatpush1.bf16.msra.mxu0 0
  %302 = vmatprep.subr.bf16.mxu0 0
  %303 = vmatpush1.bf16.msra.mxu0 0
  %304 = vmatprep.subr.bf16.mxu0 0
  %305 = vmatpush1.bf16.msra.mxu0 0
  %306 = vmatprep.subr.bf16.mxu0 0
  %307 = vmatpush1.bf16.msra.mxu0 0
  %308 = vmatprep.subr.bf16.mxu0 0
  %309 = vmatpush1.bf16.msra.mxu0 0
  %310 = vmatprep.subr.bf16.mxu0 0
  %311 = vmatpush1.bf16.msra.mxu0 0
  %312 = vmatprep.subr.bf16.mxu0 0
  %313 = vmatpush1.bf16.msra.mxu0 0
  %314 = vmatprep.subr.bf16.mxu0 0
  %315 = vmatpush1.bf16.msra.mxu0 0
  %316 = vmatprep.subr.bf16.mxu0 0
  %317 = vmatpush1.bf16.msra.mxu0 0
  %318 = vmatprep.subr.bf16.mxu0 0
  %319 = vmatpush1.bf16.msra.mxu0 0
  %320 = vmatprep.subr.bf16.mxu0 0
  %321 = vmatpush1.bf16.msra.mxu0 0
  %322 = vmatprep.subr.bf16.mxu0 0
  %323 = vmatpush1.bf16.msra.mxu0 0
  %324 = vmatprep.subr.bf16.mxu0 0
  %325 = vmatpush1.bf16.msra.mxu0 0
  %326 = vmatprep.mubr.bf16.mxu0 0
  %327 = vmatmul.mubr.bf16.gmra.mrb[0].mxu0 %v121
  %v328 = vpop.f32.mrb[0].mxu0
  %v329 = vadd.f32 0.0, %v328
  %v330 = vpop.f32.mrb[0].mxu0
  %v331 = vadd.f32 0.0, %v330
  %v332 = vpop.f32.mrb[0].mxu0
  %v333 = vadd.f32 0.0, %v332
  %v334 = vpop.f32.mrb[0].mxu0
  %v335 = vadd.f32 0.0, %v334
  %336 = vdwg.mxu0
  %337 = vmatprep.subr.bf16.mxu0 %v289
  %338 = vmatpush1.bf16.msra.mxu0 %v288
  %339 = vmatprep.subr.bf16.mxu0 %v293
  %340 = vmatpush1.bf16.msra.mxu0 %v292
  %341 = vmatprep.subr.bf16.mxu0 0
  %342 = vmatpush1.bf16.msra.mxu0 0
  %343 = vmatprep.subr.bf16.mxu0 0
  %344 = vmatpush1.bf16.msra.mxu0 0
  %345 = vmatprep.subr.bf16.mxu0 0
  %346 = vmatpush1.bf16.msra.mxu0 0
  %347 = vmatprep.subr.bf16.mxu0 0
  %348 = vmatpush1.bf16.msra.mxu0 0
  %349 = vmatprep.subr.bf16.mxu0 0
  %350 = vmatpush1.bf16.msra.mxu0 0
  %351 = vmatprep.subr.bf16.mxu0 0
  %352 = vmatpush1.bf16.msra.mxu0 0
  %353 = vmatprep.subr.bf16.mxu0 0
  %354 = vmatpush1.bf16.msra.mxu0 0
  %355 = vmatprep.subr.bf16.mxu0 0
  %356 = vmatpush1.bf16.msra.mxu0 0
  %357 = vmatprep.subr.bf16.mxu0 0
  %358 = vmatpush1.bf16.msra.mxu0 0
  %359 = vmatprep.subr.bf16.mxu0 0
  %360 = vmatpush1.bf16.msra.mxu0 0
  %361 = vmatprep.subr.bf16.mxu0 0
  %362 = vmatpush1.bf16.msra.mxu0 0
  %363 = vmatprep.subr.bf16.mxu0 0
  %364 = vmatpush1.bf16.msra.mxu0 0
  %365 = vmatprep.subr.bf16.mxu0 0
  %366 = vmatpush1.bf16.msra.mxu0 0
  %367 = vmatprep.subr.bf16.mxu0 0
  %368 = vmatpush1.bf16.msra.mxu0 0
  %369 = vmatprep.mubr.bf16.mxu0 0
  %370 = vmatmul.mubr.bf16.gmra.mrb[0].mxu0 %v121
  %v371 = vpop.f32.mrb[0].mxu0
  %v372 = vadd.f32 0.0, %v371
  %v373 = vpop.f32.mrb[0].mxu0
  %v374 = vadd.f32 0.0, %v373
  %v375 = vpop.f32.mrb[0].mxu0
  %v376 = vadd.f32 0.0, %v375
  %v377 = vpop.f32.mrb[0].mxu0
  %v378 = vadd.f32 0.0, %v377
  %379 = vdwg.mxu0
  %v380 = vmul.f32 %v212, %v329
  %v381 = vmul.f32 %v212, %v331
  %v382 = vmul.f32 %v212, %v372
  %v383 = vmul.f32 %v212, %v374
  %v384 = vmul.f32 %v217, %v333
  %v385 = vmul.f32 %v217, %v335
  %v386 = vmul.f32 %v217, %v376
  %v387 = vmul.f32 %v217, %v378
  %v388 = vadd.f32 %v380, %v230
  %v389 = vadd.f32 %v381, %v230
  %v390 = vadd.f32 %v382, %v230
  %v391 = vadd.f32 %v383, %v230
  %v392 = vadd.f32 %v384, %v235
  %v393 = vadd.f32 %v385, %v235
  %v394 = vadd.f32 %v386, %v235
  %v395 = vadd.f32 %v387, %v235
  %vm396 = vcmp.gt.f32.partialorder %v388, 0.0
  %vm397 = vcmp.gt.f32.partialorder %v389, 0.0
  %vm398 = vcmp.gt.f32.partialorder %v390, 0.0
  %vm399 = vcmp.gt.f32.partialorder %v391, 0.0
  %vm400 = vcmp.gt.f32.partialorder %v392, 0.0
  %vm401 = vcmp.gt.f32.partialorder %v393, 0.0
  %vm402 = vcmp.gt.f32.partialorder %v394, 0.0
  %vm403 = vcmp.gt.f32.partialorder %v395, 0.0
  %v404 = vmul.f32 %v388, 0.1
  %v405 = vmul.f32 %v389, 0.1
  %v406 = vmul.f32 %v390, 0.1
  %v407 = vmul.f32 %v391, 0.1
  %v408 = vmul.f32 %v392, 0.1
  %v409 = vmul.f32 %v393, 0.1
  %v410 = vmul.f32 %v394, 0.1
  %v411 = vmul.f32 %v395, 0.1
  %v412 = vsel %vm396, %v388, %v404
  %v413 = vsel %vm397, %v389, %v405
  %v414 = vsel %vm398, %v390, %v406
  %v415 = vsel %vm399, %v391, %v407
  %v416 = vsel %vm400, %v392, %v408
  %v417 = vsel %vm401, %v393, %v409
  %v418 = vsel %vm402, %v394, %v410
  %v419 = vsel %vm403, %v395, %v411
  %v420 = vmax.f32 %v261, %v412
  %v421 = vmax.f32 %v262, %v413
  %v422 = vmax.f32 %v263, %v414
  %v423 = vmax.f32 %v264, %v415
  %v424 = vmax.f32 %v265, %v416
  %v425 = vmax.f32 %v266, %v417
  %v426 = vmax.f32 %v267, %v418
  %v427 = vmax.f32 %v268, %v419
  %s428 = scalar_lea.vmem %s0, 256
  %v429 = vld [vmem:[%s428] sm:$0xff]
  %v430 = vld [vmem:[%s428 + $0x8] sm:$0xff]
  %v431 = vld [vmem:[%s428 + $0x10] sm:$0xff]
  %v432 = vld [vmem:[%s428 + $0x18] sm:$0xff]
  %v433 = vld [vmem:[%s428 + $0x20] sm:$0xff]
  %v434 = vld [vmem:[%s428 + $0x28] sm:$0xff]
  %v435 = vld [vmem:[%s428 + $0x30] sm:$0xff]
  %v436 = vld [vmem:[%s428 + $0x38] sm:$0xff]
  %v437 = vld [vmem:[%s428 + $0x40] sm:$0xff]
  %v438 = vld [vmem:[%s428 + $0x48] sm:$0xff]
  %v439 = vld [vmem:[%s428 + $0x50] sm:$0xff]
  %v440 = vld [vmem:[%s428 + $0x58] sm:$0xff]
  %v441 = vld [vmem:[%s428 + $0x60] sm:$0xff]
  %v442 = vld [vmem:[%s428 + $0x68] sm:$0xff]
  %v443 = vld [vmem:[%s428 + $0x70] sm:$0xff]
  %v444 = vld [vmem:[%s428 + $0x78] sm:$0xff]
  %v445 = vpack.c.bf16 %v433, %v429
  %v446 = vpack.c.bf16 %v434, %v430
  %v447 = vpack.c.bf16 %v435, %v431
  %v448 = vpack.c.bf16 %v436, %v432
  %v449 = vpack.c.bf16 %v441, %v437
  %v450 = vpack.c.bf16 %v442, %v438
  %v451 = vpack.c.bf16 %v443, %v439
  %v452 = vpack.c.bf16 %v444, %v440
  %453 = vmatprep.subr.bf16.mxu0 %v446
  %454 = vmatpush1.bf16.msra.mxu0 %v445
  %455 = vmatprep.subr.bf16.mxu0 %v450
  %456 = vmatpush1.bf16.msra.mxu0 %v449
  %457 = vmatprep.subr.bf16.mxu0 0
  %458 = vmatpush1.bf16.msra.mxu0 0
  %459 = vmatprep.subr.bf16.mxu0 0
  %460 = vmatpush1.bf16.msra.mxu0 0
  %461 = vmatprep.subr.bf16.mxu0 0
  %462 = vmatpush1.bf16.msra.mxu0 0
  %463 = vmatprep.subr.bf16.mxu0 0
  %464 = vmatpush1.bf16.msra.mxu0 0
  %465 = vmatprep.subr.bf16.mxu0 0
  %466 = vmatpush1.bf16.msra.mxu0 0
  %467 = vmatprep.subr.bf16.mxu0 0
  %468 = vmatpush1.bf16.msra.mxu0 0
  %469 = vmatprep.subr.bf16.mxu0 0
  %470 = vmatpush1.bf16.msra.mxu0 0
  %471 = vmatprep.subr.bf16.mxu0 0
  %472 = vmatpush1.bf16.msra.mxu0 0
  %473 = vmatprep.subr.bf16.mxu0 0
  %474 = vmatpush1.bf16.msra.mxu0 0
  %475 = vmatprep.subr.bf16.mxu0 0
  %476 = vmatpush1.bf16.msra.mxu0 0
  %477 = vmatprep.subr.bf16.mxu0 0
  %478 = vmatpush1.bf16.msra.mxu0 0
  %479 = vmatprep.subr.bf16.mxu0 0
  %480 = vmatpush1.bf16.msra.mxu0 0
  %481 = vmatprep.subr.bf16.mxu0 0
  %482 = vmatpush1.bf16.msra.mxu0 0
  %483 = vmatprep.subr.bf16.mxu0 0
  %484 = vmatpush1.bf16.msra.mxu0 0
  %485 = vmatprep.mubr.bf16.mxu0 0
  %486 = vmatmul.mubr.bf16.gmra.mrb[0].mxu0 %v121
  %v487 = vpop.f32.mrb[0].mxu0
  %v488 = vadd.f32 0.0, %v487
  %v489 = vpop.f32.mrb[0].mxu0
  %v490 = vadd.f32 0.0, %v489
  %v491 = vpop.f32.mrb[0].mxu0
  %v492 = vadd.f32 0.0, %v491
  %v493 = vpop.f32.mrb[0].mxu0
  %v494 = vadd.f32 0.0, %v493
  %495 = vdwg.mxu0
  %496 = vmatprep.subr.bf16.mxu0 %v448
  %497 = vmatpush1.bf16.msra.mxu0 %v447
  %498 = vmatprep.subr.bf16.mxu0 %v452
  %499 = vmatpush1.bf16.msra.mxu0 %v451
  %500 = vmatprep.subr.bf16.mxu0 0
  %501 = vmatpush1.bf16.msra.mxu0 0
  %502 = vmatprep.subr.bf16.mxu0 0
  %503 = vmatpush1.bf16.msra.mxu0 0
  %504 = vmatprep.subr.bf16.mxu0 0
  %505 = vmatpush1.bf16.msra.mxu0 0
  %506 = vmatprep.subr.bf16.mxu0 0
  %507 = vmatpush1.bf16.msra.mxu0 0
  %508 = vmatprep.subr.bf16.mxu0 0
  %509 = vmatpush1.bf16.msra.mxu0 0
  %510 = vmatprep.subr.bf16.mxu0 0
  %511 = vmatpush1.bf16.msra.mxu0 0
  %512 = vmatprep.subr.bf16.mxu0 0
  %513 = vmatpush1.bf16.msra.mxu0 0
  %514 = vmatprep.subr.bf16.mxu0 0
  %515 = vmatpush1.bf16.msra.mxu0 0
  %516 = vmatprep.subr.bf16.mxu0 0
  %517 = vmatpush1.bf16.msra.mxu0 0
  %518 = vmatprep.subr.bf16.mxu0 0
  %519 = vmatpush1.bf16.msra.mxu0 0
  %520 = vmatprep.subr.bf16.mxu0 0
  %521 = vmatpush1.bf16.msra.mxu0 0
  %522 = vmatprep.subr.bf16.mxu0 0
  %523 = vmatpush1.bf16.msra.mxu0 0
  %524 = vmatprep.subr.bf16.mxu0 0
  %525 = vmatpush1.bf16.msra.mxu0 0
  %526 = vmatprep.subr.bf16.mxu0 0
  %527 = vmatpush1.bf16.msra.mxu0 0
  %528 = vmatprep.mubr.bf16.mxu0 0
  %529 = vmatmul.mubr.bf16.gmra.mrb[0].mxu0 %v121
  %v530 = vpop.f32.mrb[0].mxu0
  %v531 = vadd.f32 0.0, %v530
  %v532 = vpop.f32.mrb[0].mxu0
  %v533 = vadd.f32 0.0, %v532
  %v534 = vpop.f32.mrb[0].mxu0
  %v535 = vadd.f32 0.0, %v534
  %v536 = vpop.f32.mrb[0].mxu0
  %v537 = vadd.f32 0.0, %v536
  %538 = vdwg.mxu0
  %v539 = vmul.f32 %v212, %v488
  %v540 = vmul.f32 %v212, %v490
  %v541 = vmul.f32 %v212, %v531
  %v542 = vmul.f32 %v212, %v533
  %v543 = vmul.f32 %v217, %v492
  %v544 = vmul.f32 %v217, %v494
  %v545 = vmul.f32 %v217, %v535
  %v546 = vmul.f32 %v217, %v537
  %v547 = vadd.f32 %v539, %v230
  %v548 = vadd.f32 %v540, %v230
  %v549 = vadd.f32 %v541, %v230
  %v550 = vadd.f32 %v542, %v230
  %v551 = vadd.f32 %v543, %v235
  %v552 = vadd.f32 %v544, %v235
  %v553 = vadd.f32 %v545, %v235
  %v554 = vadd.f32 %v546, %v235
  %vm555 = vcmp.gt.f32.partialorder %v547, 0.0
  %vm556 = vcmp.gt.f32.partialorder %v548, 0.0
  %vm557 = vcmp.gt.f32.partialorder %v549, 0.0
  %vm558 = vcmp.gt.f32.partialorder %v550, 0.0
  %vm559 = vcmp.gt.f32.partialorder %v551, 0.0
  %vm560 = vcmp.gt.f32.partialorder %v552, 0.0
  %vm561 = vcmp.gt.f32.partialorder %v553, 0.0
  %vm562 = vcmp.gt.f32.partialorder %v554, 0.0
  %v563 = vmul.f32 %v547, 0.1
  %v564 = vmul.f32 %v548, 0.1
  %v565 = vmul.f32 %v549, 0.1
  %v566 = vmul.f32 %v550, 0.1
  %v567 = vmul.f32 %v551, 0.1
  %v568 = vmul.f32 %v552, 0.1
  %v569 = vmul.f32 %v553, 0.1
  %v570 = vmul.f32 %v554, 0.1
  %v571 = vsel %vm555, %v547, %v563
  %v572 = vsel %vm556, %v548, %v564
  %v573 = vsel %vm557, %v549, %v565
  %v574 = vsel %vm558, %v550, %v566
  %v575 = vsel %vm559, %v551, %v567
  %v576 = vsel %vm560, %v552, %v568
  %v577 = vsel %vm561, %v553, %v569
  %v578 = vsel %vm562, %v554, %v570
  %v579 = vmax.f32 %v420, %v571
  %v580 = vmax.f32 %v421, %v572
  %v581 = vmax.f32 %v422, %v573
  %v582 = vmax.f32 %v423, %v574
  %v583 = vmax.f32 %v424, %v575
  %v584 = vmax.f32 %v425, %v576
  %v585 = vmax.f32 %v426, %v577
  %v586 = vmax.f32 %v427, %v578
  %s587 = scalar_lea.vmem %s0, 384
  %v588 = vld [vmem:[%s587] sm:$0xff]
  %v589 = vld [vmem:[%s587 + $0x8] sm:$0xff]
  %v590 = vld [vmem:[%s587 + $0x10] sm:$0xff]
  %v591 = vld [vmem:[%s587 + $0x18] sm:$0xff]
  %v592 = vld [vmem:[%s587 + $0x20] sm:$0xff]
  %v593 = vld [vmem:[%s587 + $0x28] sm:$0xff]
  %v594 = vld [vmem:[%s587 + $0x30] sm:$0xff]
  %v595 = vld [vmem:[%s587 + $0x38] sm:$0xff]
  %v596 = vld [vmem:[%s587 + $0x40] sm:$0xff]
  %v597 = vld [vmem:[%s587 + $0x48] sm:$0xff]
  %v598 = vld [vmem:[%s587 + $0x50] sm:$0xff]
  %v599 = vld [vmem:[%s587 + $0x58] sm:$0xff]
  %v600 = vld [vmem:[%s587 + $0x60] sm:$0xff]
  %v601 = vld [vmem:[%s587 + $0x68] sm:$0xff]
  %v602 = vld [vmem:[%s587 + $0x70] sm:$0xff]
  %v603 = vld [vmem:[%s587 + $0x78] sm:$0xff]
  %v604 = vpack.c.bf16 %v592, %v588
  %v605 = vpack.c.bf16 %v593, %v589
  %v606 = vpack.c.bf16 %v594, %v590
  %v607 = vpack.c.bf16 %v595, %v591
  %v608 = vpack.c.bf16 %v600, %v596
  %v609 = vpack.c.bf16 %v601, %v597
  %v610 = vpack.c.bf16 %v602, %v598
  %v611 = vpack.c.bf16 %v603, %v599
  %612 = vmatprep.subr.bf16.mxu0 %v605
  %613 = vmatpush1.bf16.msra.mxu0 %v604
  %614 = vmatprep.subr.bf16.mxu0 %v609
  %615 = vmatpush1.bf16.msra.mxu0 %v608
  %616 = vmatprep.subr.bf16.mxu0 0
  %617 = vmatpush1.bf16.msra.mxu0 0
  %618 = vmatprep.subr.bf16.mxu0 0
  %619 = vmatpush1.bf16.msra.mxu0 0
  %620 = vmatprep.subr.bf16.mxu0 0
  %621 = vmatpush1.bf16.msra.mxu0 0
  %622 = vmatprep.subr.bf16.mxu0 0
  %623 = vmatpush1.bf16.msra.mxu0 0
  %624 = vmatprep.subr.bf16.mxu0 0
  %625 = vmatpush1.bf16.msra.mxu0 0
  %626 = vmatprep.subr.bf16.mxu0 0
  %627 = vmatpush1.bf16.msra.mxu0 0
  %628 = vmatprep.subr.bf16.mxu0 0
  %629 = vmatpush1.bf16.msra.mxu0 0
  %630 = vmatprep.subr.bf16.mxu0 0
  %631 = vmatpush1.bf16.msra.mxu0 0
  %632 = vmatprep.subr.bf16.mxu0 0
  %633 = vmatpush1.bf16.msra.mxu0 0
  %634 = vmatprep.subr.bf16.mxu0 0
  %635 = vmatpush1.bf16.msra.mxu0 0
  %636 = vmatprep.subr.bf16.mxu0 0
  %637 = vmatpush1.bf16.msra.mxu0 0
  %638 = vmatprep.subr.bf16.mxu0 0
  %639 = vmatpush1.bf16.msra.mxu0 0
  %640 = vmatprep.subr.bf16.mxu0 0
  %641 = vmatpush1.bf16.msra.mxu0 0
  %642 = vmatprep.subr.bf16.mxu0 0
  %643 = vmatpush1.bf16.msra.mxu0 0
  %644 = vmatprep.mubr.bf16.mxu0 0
  %645 = vmatmul.mubr.bf16.gmra.mrb[0].mxu0 %v121
  %v646 = vpop.f32.mrb[0].mxu0
  %v647 = vadd.f32 0.0, %v646
  %v648 = vpop.f32.mrb[0].mxu0
  %v649 = vadd.f32 0.0, %v648
  %v650 = vpop.f32.mrb[0].mxu0
  %v651 = vadd.f32 0.0, %v650
  %v652 = vpop.f32.mrb[0].mxu0
  %v653 = vadd.f32 0.0, %v652
  %654 = vdwg.mxu0
  %655 = vmatprep.subr.bf16.mxu0 %v607
  %656 = vmatpush1.bf16.msra.mxu0 %v606
  %657 = vmatprep.subr.bf16.mxu0 %v611
  %658 = vmatpush1.bf16.msra.mxu0 %v610
  %659 = vmatprep.subr.bf16.mxu0 0
  %660 = vmatpush1.bf16.msra.mxu0 0
  %661 = vmatprep.subr.bf16.mxu0 0
  %662 = vmatpush1.bf16.msra.mxu0 0
  %663 = vmatprep.subr.bf16.mxu0 0
  %664 = vmatpush1.bf16.msra.mxu0 0
  %665 = vmatprep.subr.bf16.mxu0 0
  %666 = vmatpush1.bf16.msra.mxu0 0
  %667 = vmatprep.subr.bf16.mxu0 0
  %668 = vmatpush1.bf16.msra.mxu0 0
  %669 = vmatprep.subr.bf16.mxu0 0
  %670 = vmatpush1.bf16.msra.mxu0 0
  %671 = vmatprep.subr.bf16.mxu0 0
  %672 = vmatpush1.bf16.msra.mxu0 0
  %673 = vmatprep.subr.bf16.mxu0 0
  %674 = vmatpush1.bf16.msra.mxu0 0
  %675 = vmatprep.subr.bf16.mxu0 0
  %676 = vmatpush1.bf16.msra.mxu0 0
  %677 = vmatprep.subr.bf16.mxu0 0
  %678 = vmatpush1.bf16.msra.mxu0 0
  %679 = vmatprep.subr.bf16.mxu0 0
  %680 = vmatpush1.bf16.msra.mxu0 0
  %681 = vmatprep.subr.bf16.mxu0 0
  %682 = vmatpush1.bf16.msra.mxu0 0
  %683 = vmatprep.subr.bf16.mxu0 0
  %684 = vmatpush1.bf16.msra.mxu0 0
  %685 = vmatprep.subr.bf16.mxu0 0
  %686 = vmatpush1.bf16.msra.mxu0 0
  %687 = vmatprep.mubr.bf16.mxu0 0
  %688 = vmatmul.mubr.bf16.gmra.mrb[0].mxu0 %v121
  %v689 = vpop.f32.mrb[0].mxu0
  %v690 = vadd.f32 0.0, %v689
  %v691 = vpop.f32.mrb[0].mxu0
  %v692 = vadd.f32 0.0, %v691
  %v693 = vpop.f32.mrb[0].mxu0
  %v694 = vadd.f32 0.0, %v693
  %v695 = vpop.f32.mrb[0].mxu0
  %v696 = vadd.f32 0.0, %v695
  %697 = vdwg.mxu0
  %v698 = vmul.f32 %v212, %v647
  %v699 = vmul.f32 %v212, %v649
  %v700 = vmul.f32 %v212, %v690
  %v701 = vmul.f32 %v212, %v692
  %v702 = vmul.f32 %v217, %v651
  %v703 = vmul.f32 %v217, %v653
  %v704 = vmul.f32 %v217, %v694
  %v705 = vmul.f32 %v217, %v696
  %v706 = vadd.f32 %v698, %v230
  %v707 = vadd.f32 %v699, %v230
  %v708 = vadd.f32 %v700, %v230
  %v709 = vadd.f32 %v701, %v230
  %v710 = vadd.f32 %v702, %v235
  %v711 = vadd.f32 %v703, %v235
  %v712 = vadd.f32 %v704, %v235
  %v713 = vadd.f32 %v705, %v235
  %vm714 = vcmp.gt.f32.partialorder %v706, 0.0
  %vm715 = vcmp.gt.f32.partialorder %v707, 0.0
  %vm716 = vcmp.gt.f32.partialorder %v708, 0.0
  %vm717 = vcmp.gt.f32.partialorder %v709, 0.0
  %vm718 = vcmp.gt.f32.partialorder %v710, 0.0
  %vm719 = vcmp.gt.f32.partialorder %v711, 0.0
  %vm720 = vcmp.gt.f32.partialorder %v712, 0.0
  %vm721 = vcmp.gt.f32.partialorder %v713, 0.0
  %v722 = vmul.f32 %v706, 0.1
  %v723 = vmul.f32 %v707, 0.1
  %v724 = vmul.f32 %v708, 0.1
  %v725 = vmul.f32 %v709, 0.1
  %v726 = vmul.f32 %v710, 0.1
  %v727 = vmul.f32 %v711, 0.1
  %v728 = vmul.f32 %v712, 0.1
  %v729 = vmul.f32 %v713, 0.1
  %v730 = vsel %vm714, %v706, %v722
  %v731 = vsel %vm715, %v707, %v723
  %v732 = vsel %vm716, %v708, %v724
  %v733 = vsel %vm717, %v709, %v725
  %v734 = vsel %vm718, %v710, %v726
  %v735 = vsel %vm719, %v711, %v727
  %v736 = vsel %vm720, %v712, %v728
  %v737 = vsel %vm721, %v713, %v729
  %v738 = vmax.f32 %v579, %v730
  %v739 = vmax.f32 %v580, %v731
  %v740 = vmax.f32 %v581, %v732
  %v741 = vmax.f32 %v582, %v733
  %v742 = vmax.f32 %v583, %v734
  %v743 = vmax.f32 %v584, %v735
  %v744 = vmax.f32 %v585, %v736
  %v745 = vmax.f32 %v586, %v737
  %v746 = vld [vmem:[%s5] sm:$0xff]
  %v747 = vld [vmem:[%s5 + $0x8] sm:$0xff]
  %vm748 = vcmp.ge.s32.totalorder %v76, 1
  %vm749 = vcmp.ge.s32.totalorder %v77, 1
  %vm750 = vcmp.ge.s32.totalorder %v78, 1
  %vm751 = vcmp.ge.s32.totalorder %v79, 1
  %vm752 = vcmp.ge.s32.totalorder %v84, 1
  %vm753 = vcmp.ge.s32.totalorder %v85, 1
  %vm754 = vcmp.ge.s32.totalorder %v86, 1
  %vm755 = vcmp.ge.s32.totalorder %v87, 1
  %vm756 = vmand %vm748, %vm752
  %vm757 = vmand %vm749, %vm753
  %vm758 = vmand %vm750, %vm754
  %vm759 = vmand %vm751, %vm755
  %760 = vrot.lane.b32.xlu0 %v738, 17
  %v761 = vpop.permute.xlu0 %760
  %762 = vrot.lane.b32.xlu0 %v742, 17
  %v763 = vpop.permute.xlu0 %762
  %764 = vrot.lane.b32.xlu0 %v739, 17
  %v765 = vpop.permute.xlu0 %764
  %766 = vrot.lane.b32.xlu0 %v743, 17
  %v767 = vpop.permute.xlu0 %766
  %768 = vrot.lane.b32.xlu0 %v740, 17
  %v769 = vpop.permute.xlu0 %768
  %770 = vrot.lane.b32.xlu0 %v744, 17
  %v771 = vpop.permute.xlu0 %770
  %772 = vrot.lane.b32.xlu0 %v741, 17
  %v773 = vpop.permute.xlu0 %772
  %774 = vrot.lane.b32.xlu0 %v745, 17
  %v775 = vpop.permute.xlu0 %774
  %vm776 = vcmp.lt.s32.totalorder %v72, 17
  %v777 = vsel %vm776, %v769, %v773
  %v778 = vsel %vm776, %v771, %v775
  %v779 = vsel %vm776, %v765, %v769
  %v780 = vsel %vm776, %v767, %v771
  %v781 = vsel %vm776, %v761, %v765
  %v782 = vsel %vm776, %v763, %v767
  %v783 = vsel %vm776, %v773, %v761
  %v784 = vsel %vm776, %v775, %v763
  %v785 = vsel %vm756, 1, 0
  %v786 = vsel %vm757, 1, 0
  %v787 = vsel %vm758, 1, 0
  %v788 = vsel %vm759, 1, 0
  %vm789 = vcmp.eq.s32.totalorder %v785, 1
  %vm790 = vcmp.eq.s32.totalorder %v786, 1
  %vm791 = vcmp.eq.s32.totalorder %v787, 1
  %vm792 = vcmp.eq.s32.totalorder %v788, 1
  %v793 = vsel %vm789, %v783, 0.0
  %v794 = vsel %vm790, %v781, 0.0
  %v795 = vsel %vm791, %v779, 0.0
  %v796 = vsel %vm792, %v777, 0.0
  %v797 = vsel %vm789, %v784, 0.0
  %v798 = vsel %vm790, %v782, 0.0
  %v799 = vsel %vm791, %v780, 0.0
  %v800 = vsel %vm792, %v778, 0.0
  %v801 = vld [vmem:[%s4] sm:$0xff]
  %v802 = vld [vmem:[%s4 + $0x8] sm:$0xff]
  %v803 = vpack.c.bf16 %v802, %v801
  %v804 = vpack.c.bf16 %v797, %v793
  %v805 = vpack.c.bf16 %v798, %v794
  %v806 = vpack.c.bf16 %v799, %v795
  %v807 = vpack.c.bf16 %v800, %v796
  %808 = vrot.lane.b32.xlu0 %v738, 16
  %v809 = vpop.permute.xlu0 %808
  %810 = vrot.lane.b32.xlu0 %v742, 16
  %v811 = vpop.permute.xlu0 %810
  %812 = vrot.lane.b32.xlu0 %v739, 16
  %v813 = vpop.permute.xlu0 %812
  %814 = vrot.lane.b32.xlu0 %v743, 16
  %v815 = vpop.permute.xlu0 %814
  %816 = vrot.lane.b32.xlu0 %v740, 16
  %v817 = vpop.permute.xlu0 %816
  %818 = vrot.lane.b32.xlu0 %v744, 16
  %v819 = vpop.permute.xlu0 %818
  %820 = vrot.lane.b32.xlu0 %v741, 16
  %v821 = vpop.permute.xlu0 %820
  %822 = vrot.lane.b32.xlu0 %v745, 16
  %v823 = vpop.permute.xlu0 %822
  %vm824 = vcmp.lt.s32.totalorder %v72, 16
  %v825 = vsel %vm824, %v817, %v821
  %v826 = vsel %vm824, %v819, %v823
  %v827 = vsel %vm824, %v813, %v817
  %v828 = vsel %vm824, %v815, %v819
  %v829 = vsel %vm824, %v809, %v813
  %v830 = vsel %vm824, %v811, %v815
  %v831 = vsel %vm824, %v821, %v809
  %v832 = vsel %vm824, %v823, %v811
  %v833 = vsel %vm752, 1, 0
  %v834 = vsel %vm753, 1, 0
  %v835 = vsel %vm754, 1, 0
  %v836 = vsel %vm755, 1, 0
  %vm837 = vcmp.eq.s32.totalorder %v833, 1
  %vm838 = vcmp.eq.s32.totalorder %v834, 1
  %vm839 = vcmp.eq.s32.totalorder %v835, 1
  %vm840 = vcmp.eq.s32.totalorder %v836, 1
  %v841 = vsel %vm837, %v831, 0.0
  %v842 = vsel %vm838, %v829, 0.0
  %v843 = vsel %vm839, %v827, 0.0
  %v844 = vsel %vm840, %v825, 0.0
  %v845 = vsel %vm837, %v832, 0.0
  %v846 = vsel %vm838, %v830, 0.0
  %v847 = vsel %vm839, %v828, 0.0
  %v848 = vsel %vm840, %v826, 0.0
  %s849 = scalar_lea.vmem %s4, 16
  %v850 = vld [vmem:[%s849] sm:$0xff]
  %v851 = vld [vmem:[%s849 + $0x8] sm:$0xff]
  %v852 = vpack.c.bf16 %v851, %v850
  %v853 = vpack.c.bf16 %v845, %v841
  %v854 = vpack.c.bf16 %v846, %v842
  %v855 = vpack.c.bf16 %v847, %v843
  %v856 = vpack.c.bf16 %v848, %v844
  %vm857 = vcmask 130048
  %v859 = vsel %vm857, %v852, 0
  %861 = vmatprep.subr.bf16.mxu0 %v854
  %862 = vmatpush1.bf16.msra.mxu0 %v853
  %863 = vmatprep.subr.bf16.mxu0 0
  %864 = vmatpush1.bf16.msra.mxu0 0
  %865 = vmatprep.subr.bf16.mxu0 0
  %866 = vmatpush1.bf16.msra.mxu0 0
  %867 = vmatprep.subr.bf16.mxu0 0
  %868 = vmatpush1.bf16.msra.mxu0 0
  %869 = vmatprep.subr.bf16.mxu0 0
  %870 = vmatpush1.bf16.msra.mxu0 0
  %871 = vmatprep.subr.bf16.mxu0 0
  %872 = vmatpush1.bf16.msra.mxu0 0
  %873 = vmatprep.subr.bf16.mxu0 0
  %874 = vmatpush1.bf16.msra.mxu0 0
  %875 = vmatprep.subr.bf16.mxu0 0
  %876 = vmatpush1.bf16.msra.mxu0 0
  %877 = vmatprep.subr.bf16.mxu0 0
  %878 = vmatpush1.bf16.msra.mxu0 0
  %879 = vmatprep.subr.bf16.mxu0 0
  %880 = vmatpush1.bf16.msra.mxu0 0
  %881 = vmatprep.subr.bf16.mxu0 0
  %882 = vmatpush1.bf16.msra.mxu0 0
  %883 = vmatprep.subr.bf16.mxu0 0
  %884 = vmatpush1.bf16.msra.mxu0 0
  %885 = vmatprep.subr.bf16.mxu0 0
  %886 = vmatpush1.bf16.msra.mxu0 0
  %887 = vmatprep.subr.bf16.mxu0 0
  %888 = vmatpush1.bf16.msra.mxu0 0
  %889 = vmatprep.subr.bf16.mxu0 0
  %890 = vmatpush1.bf16.msra.mxu0 0
  %891 = vmatprep.subr.bf16.mxu0 0
  %892 = vmatpush1.bf16.msra.mxu0 0
  %893 = vmatprep.mubr.bf16.mxu0 0
  %894 = vmatmul.mubr.bf16.gmra.mrb[0].mxu0 %v859
  %v895 = vpop.f32.mrb[0].mxu0
  %v896 = vadd.f32 0.0, %v895
  %v897 = vpop.f32.mrb[0].mxu0
  %v898 = vadd.f32 0.0, %v897
  %v899 = vpop.f32.mrb[0].mxu0
  %v900 = vadd.f32 0.0, %v899
  %v901 = vpop.f32.mrb[0].mxu0
  %v902 = vadd.f32 0.0, %v901
  %903 = vdwg.mxu0
  %904 = vmatprep.subr.bf16.mxu0 %v856
  %905 = vmatpush1.bf16.msra.mxu0 %v855
  %906 = vmatprep.subr.bf16.mxu0 0
  %907 = vmatpush1.bf16.msra.mxu0 0
  %908 = vmatprep.subr.bf16.mxu0 0
  %909 = vmatpush1.bf16.msra.mxu0 0
  %910 = vmatprep.subr.bf16.mxu0 0
  %911 = vmatpush1.bf16.msra.mxu0 0
  %912 = vmatprep.subr.bf16.mxu0 0
  %913 = vmatpush1.bf16.msra.mxu0 0
  %914 = vmatprep.subr.bf16.mxu0 0
  %915 = vmatpush1.bf16.msra.mxu0 0
  %916 = vmatprep.subr.bf16.mxu0 0
  %917 = vmatpush1.bf16.msra.mxu0 0
  %918 = vmatprep.subr.bf16.mxu0 0
  %919 = vmatpush1.bf16.msra.mxu0 0
  %920 = vmatprep.subr.bf16.mxu0 0
  %921 = vmatpush1.bf16.msra.mxu0 0
  %922 = vmatprep.subr.bf16.mxu0 0
  %923 = vmatpush1.bf16.msra.mxu0 0
  %924 = vmatprep.subr.bf16.mxu0 0
  %925 = vmatpush1.bf16.msra.mxu0 0
  %926 = vmatprep.subr.bf16.mxu0 0
  %927 = vmatpush1.bf16.msra.mxu0 0
  %928 = vmatprep.subr.bf16.mxu0 0
  %929 = vmatpush1.bf16.msra.mxu0 0
  %930 = vmatprep.subr.bf16.mxu0 0
  %931 = vmatpush1.bf16.msra.mxu0 0
  %932 = vmatprep.subr.bf16.mxu0 0
  %933 = vmatpush1.bf16.msra.mxu0 0
  %934 = vmatprep.subr.bf16.mxu0 0
  %935 = vmatpush1.bf16.msra.mxu0 0
  %936 = vmatprep.mubr.bf16.mxu0 0
  %937 = vmatmul.mubr.bf16.gmra.mrb[0].mxu0 %v859
  %v938 = vpop.f32.mrb[0].mxu0
  %v939 = vadd.f32 0.0, %v938
  %v940 = vpop.f32.mrb[0].mxu0
  %v941 = vadd.f32 0.0, %v940
  %v942 = vpop.f32.mrb[0].mxu0
  %v943 = vadd.f32 0.0, %v942
  %v944 = vpop.f32.mrb[0].mxu0
  %v945 = vadd.f32 0.0, %v944
  %946 = vdwg.mxu0
  %v948 = vsel %vm857, %v803, 0
  %950 = vmatprep.subr.bf16.mxu0 %v805
  %951 = vmatpush1.bf16.msra.mxu0 %v804
  %952 = vmatprep.subr.bf16.mxu0 0
  %953 = vmatpush1.bf16.msra.mxu0 0
  %954 = vmatprep.subr.bf16.mxu0 0
  %955 = vmatpush1.bf16.msra.mxu0 0
  %956 = vmatprep.subr.bf16.mxu0 0
  %957 = vmatpush1.bf16.msra.mxu0 0
  %958 = vmatprep.subr.bf16.mxu0 0
  %959 = vmatpush1.bf16.msra.mxu0 0
  %960 = vmatprep.subr.bf16.mxu0 0
  %961 = vmatpush1.bf16.msra.mxu0 0
  %962 = vmatprep.subr.bf16.mxu0 0
  %963 = vmatpush1.bf16.msra.mxu0 0
  %964 = vmatprep.subr.bf16.mxu0 0
  %965 = vmatpush1.bf16.msra.mxu0 0
  %966 = vmatprep.subr.bf16.mxu0 0
  %967 = vmatpush1.bf16.msra.mxu0 0
  %968 = vmatprep.subr.bf16.mxu0 0
  %969 = vmatpush1.bf16.msra.mxu0 0
  %970 = vmatprep.subr.bf16.mxu0 0
  %971 = vmatpush1.bf16.msra.mxu0 0
  %972 = vmatprep.subr.bf16.mxu0 0
  %973 = vmatpush1.bf16.msra.mxu0 0
  %974 = vmatprep.subr.bf16.mxu0 0
  %975 = vmatpush1.bf16.msra.mxu0 0
  %976 = vmatprep.subr.bf16.mxu0 0
  %977 = vmatpush1.bf16.msra.mxu0 0
  %978 = vmatprep.subr.bf16.mxu0 0
  %979 = vmatpush1.bf16.msra.mxu0 0
  %980 = vmatprep.subr.bf16.mxu0 0
  %981 = vmatpush1.bf16.msra.mxu0 0
  %982 = vmatprep.mubr.bf16.mxu0 0
  %983 = vmatmul.mubr.bf16.gmra.mrb[0].mxu0 %v948
  %v984 = vpop.f32.mrb[0].mxu0
  %v985 = vadd.f32 %v896, %v984
  %v986 = vpop.f32.mrb[0].mxu0
  %v987 = vadd.f32 %v898, %v986
  %v988 = vpop.f32.mrb[0].mxu0
  %v989 = vadd.f32 %v900, %v988
  %v990 = vpop.f32.mrb[0].mxu0
  %v991 = vadd.f32 %v902, %v990
  %992 = vdwg.mxu0
  %993 = vmatprep.subr.bf16.mxu0 %v807
  %994 = vmatpush1.bf16.msra.mxu0 %v806
  %995 = vmatprep.subr.bf16.mxu0 0
  %996 = vmatpush1.bf16.msra.mxu0 0
  %997 = vmatprep.subr.bf16.mxu0 0
  %998 = vmatpush1.bf16.msra.mxu0 0
  %999 = vmatprep.subr.bf16.mxu0 0
  %1000 = vmatpush1.bf16.msra.mxu0 0
  %1001 = vmatprep.subr.bf16.mxu0 0
  %1002 = vmatpush1.bf16.msra.mxu0 0
  %1003 = vmatprep.subr.bf16.mxu0 0
  %1004 = vmatpush1.bf16.msra.mxu0 0
  %1005 = vmatprep.subr.bf16.mxu0 0
  %1006 = vmatpush1.bf16.msra.mxu0 0
  %1007 = vmatprep.subr.bf16.mxu0 0
  %1008 = vmatpush1.bf16.msra.mxu0 0
  %1009 = vmatprep.subr.bf16.mxu0 0
  %1010 = vmatpush1.bf16.msra.mxu0 0
  %1011 = vmatprep.subr.bf16.mxu0 0
  %1012 = vmatpush1.bf16.msra.mxu0 0
  %1013 = vmatprep.subr.bf16.mxu0 0
  %1014 = vmatpush1.bf16.msra.mxu0 0
  %1015 = vmatprep.subr.bf16.mxu0 0
  %1016 = vmatpush1.bf16.msra.mxu0 0
  %1017 = vmatprep.subr.bf16.mxu0 0
  %1018 = vmatpush1.bf16.msra.mxu0 0
  %1019 = vmatprep.subr.bf16.mxu0 0
  %1020 = vmatpush1.bf16.msra.mxu0 0
  %1021 = vmatprep.subr.bf16.mxu0 0
  %1022 = vmatpush1.bf16.msra.mxu0 0
  %1023 = vmatprep.subr.bf16.mxu0 0
  %1024 = vmatpush1.bf16.msra.mxu0 0
  %1025 = vmatprep.mubr.bf16.mxu0 0
  %1026 = vmatmul.mubr.bf16.gmra.mrb[0].mxu0 %v948
  %v1027 = vpop.f32.mrb[0].mxu0
  %v1028 = vadd.f32 %v939, %v1027
  %v1029 = vpop.f32.mrb[0].mxu0
  %v1030 = vadd.f32 %v941, %v1029
  %v1031 = vpop.f32.mrb[0].mxu0
  %v1032 = vadd.f32 %v943, %v1031
  %v1033 = vpop.f32.mrb[0].mxu0
  %v1034 = vadd.f32 %v945, %v1033
  %1035 = vdwg.mxu0
  %vm1036 = vcmp.le.s32.totalorder %v76, 14
  %vm1037 = vcmp.le.s32.totalorder %v77, 14
  %vm1038 = vcmp.le.s32.totalorder %v78, 14
  %vm1039 = vcmp.le.s32.totalorder %v79, 14
  %vm1040 = vmand %vm1036, %vm752
  %vm1041 = vmand %vm1037, %vm753
  %vm1042 = vmand %vm1038, %vm754
  %vm1043 = vmand %vm1039, %vm755
  %1044 = vrot.lane.b32.xlu0 %v738, 15
  %v1045 = vpop.permute.xlu0 %1044
  %1046 = vrot.lane.b32.xlu0 %v742, 15
  %v1047 = vpop.permute.xlu0 %1046
  %1048 = vrot.lane.b32.xlu0 %v739, 15
  %v1049 = vpop.permute.xlu0 %1048
  %1050 = vrot.lane.b32.xlu0 %v743, 15
  %v1051 = vpop.permute.xlu0 %1050
  %1052 = vrot.lane.b32.xlu0 %v740, 15
  %v1053 = vpop.permute.xlu0 %1052
  %1054 = vrot.lane.b32.xlu0 %v744, 15
  %v1055 = vpop.permute.xlu0 %1054
  %1056 = vrot.lane.b32.xlu0 %v741, 15
  %v1057 = vpop.permute.xlu0 %1056
  %1058 = vrot.lane.b32.xlu0 %v745, 15
  %v1059 = vpop.permute.xlu0 %1058
  %vm1060 = vcmp.lt.s32.totalorder %v72, 15
  %v1061 = vsel %vm1060, %v1053, %v1057
  %v1062 = vsel %vm1060, %v1055, %v1059
  %v1063 = vsel %vm1060, %v1049, %v1053
  %v1064 = vsel %vm1060, %v1051, %v1055
  %v1065 = vsel %vm1060, %v1045, %v1049
  %v1066 = vsel %vm1060, %v1047, %v1051
  %v1067 = vsel %vm1060, %v1057, %v1045
  %v1068 = vsel %vm1060, %v1059, %v1047
  %v1069 = vsel %vm1040, 1, 0
  %v1070 = vsel %vm1041, 1, 0
  %v1071 = vsel %vm1042, 1, 0
  %v1072 = vsel %vm1043, 1, 0
  %vm1073 = vcmp.eq.s32.totalorder %v1069, 1
  %vm1074 = vcmp.eq.s32.totalorder %v1070, 1
  %vm1075 = vcmp.eq.s32.totalorder %v1071, 1
  %vm1076 = vcmp.eq.s32.totalorder %v1072, 1
  %v1077 = vsel %vm1073, %v1067, 0.0
  %v1078 = vsel %vm1074, %v1065, 0.0
  %v1079 = vsel %vm1075, %v1063, 0.0
  %v1080 = vsel %vm1076, %v1061, 0.0
  %v1081 = vsel %vm1073, %v1068, 0.0
  %v1082 = vsel %vm1074, %v1066, 0.0
  %v1083 = vsel %vm1075, %v1064, 0.0
  %v1084 = vsel %vm1076, %v1062, 0.0
  %s1085 = scalar_lea.vmem %s4, 32
  %v1086 = vld [vmem:[%s1085] sm:$0xff]
  %v1087 = vld [vmem:[%s1085 + $0x8] sm:$0xff]
  %v1088 = vpack.c.bf16 %v1087, %v1086
  %v1089 = vpack.c.bf16 %v1081, %v1077
  %v1090 = vpack.c.bf16 %v1082, %v1078
  %v1091 = vpack.c.bf16 %v1083, %v1079
  %v1092 = vpack.c.bf16 %v1084, %v1080
  %v1094 = vsel %vm857, %v1088, 0
  %1096 = vmatprep.subr.bf16.mxu0 %v1090
  %1097 = vmatpush1.bf16.msra.mxu0 %v1089
  %1098 = vmatprep.subr.bf16.mxu0 0
  %1099 = vmatpush1.bf16.msra.mxu0 0
  %1100 = vmatprep.subr.bf16.mxu0 0
  %1101 = vmatpush1.bf16.msra.mxu0 0
  %1102 = vmatprep.subr.bf16.mxu0 0
  %1103 = vmatpush1.bf16.msra.mxu0 0
  %1104 = vmatprep.subr.bf16.mxu0 0
  %1105 = vmatpush1.bf16.msra.mxu0 0
  %1106 = vmatprep.subr.bf16.mxu0 0
  %1107 = vmatpush1.bf16.msra.mxu0 0
  %1108 = vmatprep.subr.bf16.mxu0 0
  %1109 = vmatpush1.bf16.msra.mxu0 0
  %1110 = vmatprep.subr.bf16.mxu0 0
  %1111 = vmatpush1.bf16.msra.mxu0 0
  %1112 = vmatprep.subr.bf16.mxu0 0
  %1113 = vmatpush1.bf16.msra.mxu0 0
  %1114 = vmatprep.subr.bf16.mxu0 0
  %1115 = vmatpush1.bf16.msra.mxu0 0
  %1116 = vmatprep.subr.bf16.mxu0 0
  %1117 = vmatpush1.bf16.msra.mxu0 0
  %1118 = vmatprep.subr.bf16.mxu0 0
  %1119 = vmatpush1.bf16.msra.mxu0 0
  %1120 = vmatprep.subr.bf16.mxu0 0
  %1121 = vmatpush1.bf16.msra.mxu0 0
  %1122 = vmatprep.subr.bf16.mxu0 0
  %1123 = vmatpush1.bf16.msra.mxu0 0
  %1124 = vmatprep.subr.bf16.mxu0 0
  %1125 = vmatpush1.bf16.msra.mxu0 0
  %1126 = vmatprep.subr.bf16.mxu0 0
  %1127 = vmatpush1.bf16.msra.mxu0 0
  %1128 = vmatprep.mubr.bf16.mxu0 0
  %1129 = vmatmul.mubr.bf16.gmra.mrb[0].mxu0 %v1094
  %v1130 = vpop.f32.mrb[0].mxu0
  %v1131 = vadd.f32 0.0, %v1130
  %v1132 = vpop.f32.mrb[0].mxu0
  %v1133 = vadd.f32 0.0, %v1132
  %v1134 = vpop.f32.mrb[0].mxu0
  %v1135 = vadd.f32 0.0, %v1134
  %v1136 = vpop.f32.mrb[0].mxu0
  %v1137 = vadd.f32 0.0, %v1136
  %1138 = vdwg.mxu0
  %1139 = vmatprep.subr.bf16.mxu0 %v1092
  %1140 = vmatpush1.bf16.msra.mxu0 %v1091
  %1141 = vmatprep.subr.bf16.mxu0 0
  %1142 = vmatpush1.bf16.msra.mxu0 0
  %1143 = vmatprep.subr.bf16.mxu0 0
  %1144 = vmatpush1.bf16.msra.mxu0 0
  %1145 = vmatprep.subr.bf16.mxu0 0
  %1146 = vmatpush1.bf16.msra.mxu0 0
  %1147 = vmatprep.subr.bf16.mxu0 0
  %1148 = vmatpush1.bf16.msra.mxu0 0
  %1149 = vmatprep.subr.bf16.mxu0 0
  %1150 = vmatpush1.bf16.msra.mxu0 0
  %1151 = vmatprep.subr.bf16.mxu0 0
  %1152 = vmatpush1.bf16.msra.mxu0 0
  %1153 = vmatprep.subr.bf16.mxu0 0
  %1154 = vmatpush1.bf16.msra.mxu0 0
  %1155 = vmatprep.subr.bf16.mxu0 0
  %1156 = vmatpush1.bf16.msra.mxu0 0
  %1157 = vmatprep.subr.bf16.mxu0 0
  %1158 = vmatpush1.bf16.msra.mxu0 0
  %1159 = vmatprep.subr.bf16.mxu0 0
  %1160 = vmatpush1.bf16.msra.mxu0 0
  %1161 = vmatprep.subr.bf16.mxu0 0
  %1162 = vmatpush1.bf16.msra.mxu0 0
  %1163 = vmatprep.subr.bf16.mxu0 0
  %1164 = vmatpush1.bf16.msra.mxu0 0
  %1165 = vmatprep.subr.bf16.mxu0 0
  %1166 = vmatpush1.bf16.msra.mxu0 0
  %1167 = vmatprep.subr.bf16.mxu0 0
  %1168 = vmatpush1.bf16.msra.mxu0 0
  %1169 = vmatprep.subr.bf16.mxu0 0
  %1170 = vmatpush1.bf16.msra.mxu0 0
  %1171 = vmatprep.mubr.bf16.mxu0 0
  %1172 = vmatmul.mubr.bf16.gmra.mrb[0].mxu0 %v1094
  %v1173 = vpop.f32.mrb[0].mxu0
  %v1174 = vadd.f32 0.0, %v1173
  %v1175 = vpop.f32.mrb[0].mxu0
  %v1176 = vadd.f32 0.0, %v1175
  %v1177 = vpop.f32.mrb[0].mxu0
  %v1178 = vadd.f32 0.0, %v1177
  %v1179 = vpop.f32.mrb[0].mxu0
  %v1180 = vadd.f32 0.0, %v1179
  %1181 = vdwg.mxu0
  %v1182 = vadd.f32 %v985, %v1131
  %v1183 = vadd.f32 %v987, %v1133
  %v1184 = vadd.f32 %v1028, %v1174
  %v1185 = vadd.f32 %v1030, %v1176
  %v1186 = vadd.f32 %v989, %v1135
  %v1187 = vadd.f32 %v991, %v1137
  %v1188 = vadd.f32 %v1032, %v1178
  %v1189 = vadd.f32 %v1034, %v1180
  %1190 = vrot.lane.b32.xlu0 %v738, 1
  %v1191 = vpop.permute.xlu0 %1190
  %1192 = vrot.lane.b32.xlu0 %v742, 1
  %v1193 = vpop.permute.xlu0 %1192
  %1194 = vrot.lane.b32.xlu0 %v739, 1
  %v1195 = vpop.permute.xlu0 %1194
  %1196 = vrot.lane.b32.xlu0 %v743, 1
  %v1197 = vpop.permute.xlu0 %1196
  %1198 = vrot.lane.b32.xlu0 %v740, 1
  %v1199 = vpop.permute.xlu0 %1198
  %1200 = vrot.lane.b32.xlu0 %v744, 1
  %v1201 = vpop.permute.xlu0 %1200
  %1202 = vrot.lane.b32.xlu0 %v741, 1
  %v1203 = vpop.permute.xlu0 %1202
  %1204 = vrot.lane.b32.xlu0 %v745, 1
  %v1205 = vpop.permute.xlu0 %1204
  %vm1206 = vcmp.lt.s32.totalorder %v72, 1
  %v1207 = vsel %vm1206, %v1199, %v1203
  %v1208 = vsel %vm1206, %v1201, %v1205
  %v1209 = vsel %vm1206, %v1195, %v1199
  %v1210 = vsel %vm1206, %v1197, %v1201
  %v1211 = vsel %vm1206, %v1191, %v1195
  %v1212 = vsel %vm1206, %v1193, %v1197
  %v1213 = vsel %vm1206, %v1203, %v1191
  %v1214 = vsel %vm1206, %v1205, %v1193
  %v1215 = vsel %vm748, 1, 0
  %v1216 = vsel %vm749, 1, 0
  %v1217 = vsel %vm750, 1, 0
  %v1218 = vsel %vm751, 1, 0
  %vm1219 = vcmp.eq.s32.totalorder %v1215, 1
  %vm1220 = vcmp.eq.s32.totalorder %v1216, 1
  %vm1221 = vcmp.eq.s32.totalorder %v1217, 1
  %vm1222 = vcmp.eq.s32.totalorder %v1218, 1
  %v1223 = vsel %vm1219, %v1213, 0.0
  %v1224 = vsel %vm1220, %v1211, 0.0
  %v1225 = vsel %vm1221, %v1209, 0.0
  %v1226 = vsel %vm1222, %v1207, 0.0
  %v1227 = vsel %vm1219, %v1214, 0.0
  %v1228 = vsel %vm1220, %v1212, 0.0
  %v1229 = vsel %vm1221, %v1210, 0.0
  %v1230 = vsel %vm1222, %v1208, 0.0
  %s1231 = scalar_lea.vmem %s4, 48
  %v1232 = vld [vmem:[%s1231] sm:$0xff]
  %v1233 = vld [vmem:[%s1231 + $0x8] sm:$0xff]
  %v1234 = vpack.c.bf16 %v1233, %v1232
  %v1235 = vpack.c.bf16 %v1227, %v1223
  %v1236 = vpack.c.bf16 %v1228, %v1224
  %v1237 = vpack.c.bf16 %v1229, %v1225
  %v1238 = vpack.c.bf16 %v1230, %v1226
  %v1240 = vsel %vm857, %v1234, 0
  %1242 = vmatprep.subr.bf16.mxu0 %v1236
  %1243 = vmatpush1.bf16.msra.mxu0 %v1235
  %1244 = vmatprep.subr.bf16.mxu0 0
  %1245 = vmatpush1.bf16.msra.mxu0 0
  %1246 = vmatprep.subr.bf16.mxu0 0
  %1247 = vmatpush1.bf16.msra.mxu0 0
  %1248 = vmatprep.subr.bf16.mxu0 0
  %1249 = vmatpush1.bf16.msra.mxu0 0
  %1250 = vmatprep.subr.bf16.mxu0 0
  %1251 = vmatpush1.bf16.msra.mxu0 0
  %1252 = vmatprep.subr.bf16.mxu0 0
  %1253 = vmatpush1.bf16.msra.mxu0 0
  %1254 = vmatprep.subr.bf16.mxu0 0
  %1255 = vmatpush1.bf16.msra.mxu0 0
  %1256 = vmatprep.subr.bf16.mxu0 0
  %1257 = vmatpush1.bf16.msra.mxu0 0
  %1258 = vmatprep.subr.bf16.mxu0 0
  %1259 = vmatpush1.bf16.msra.mxu0 0
  %1260 = vmatprep.subr.bf16.mxu0 0
  %1261 = vmatpush1.bf16.msra.mxu0 0
  %1262 = vmatprep.subr.bf16.mxu0 0
  %1263 = vmatpush1.bf16.msra.mxu0 0
  %1264 = vmatprep.subr.bf16.mxu0 0
  %1265 = vmatpush1.bf16.msra.mxu0 0
  %1266 = vmatprep.subr.bf16.mxu0 0
  %1267 = vmatpush1.bf16.msra.mxu0 0
  %1268 = vmatprep.subr.bf16.mxu0 0
  %1269 = vmatpush1.bf16.msra.mxu0 0
  %1270 = vmatprep.subr.bf16.mxu0 0
  %1271 = vmatpush1.bf16.msra.mxu0 0
  %1272 = vmatprep.subr.bf16.mxu0 0
  %1273 = vmatpush1.bf16.msra.mxu0 0
  %1274 = vmatprep.mubr.bf16.mxu0 0
  %1275 = vmatmul.mubr.bf16.gmra.mrb[0].mxu0 %v1240
  %v1276 = vpop.f32.mrb[0].mxu0
  %v1277 = vadd.f32 0.0, %v1276
  %v1278 = vpop.f32.mrb[0].mxu0
  %v1279 = vadd.f32 0.0, %v1278
  %v1280 = vpop.f32.mrb[0].mxu0
  %v1281 = vadd.f32 0.0, %v1280
  %v1282 = vpop.f32.mrb[0].mxu0
  %v1283 = vadd.f32 0.0, %v1282
  %1284 = vdwg.mxu0
  %1285 = vmatprep.subr.bf16.mxu0 %v1238
  %1286 = vmatpush1.bf16.msra.mxu0 %v1237
  %1287 = vmatprep.subr.bf16.mxu0 0
  %1288 = vmatpush1.bf16.msra.mxu0 0
  %1289 = vmatprep.subr.bf16.mxu0 0
  %1290 = vmatpush1.bf16.msra.mxu0 0
  %1291 = vmatprep.subr.bf16.mxu0 0
  %1292 = vmatpush1.bf16.msra.mxu0 0
  %1293 = vmatprep.subr.bf16.mxu0 0
  %1294 = vmatpush1.bf16.msra.mxu0 0
  %1295 = vmatprep.subr.bf16.mxu0 0
  %1296 = vmatpush1.bf16.msra.mxu0 0
  %1297 = vmatprep.subr.bf16.mxu0 0
  %1298 = vmatpush1.bf16.msra.mxu0 0
  %1299 = vmatprep.subr.bf16.mxu0 0
  %1300 = vmatpush1.bf16.msra.mxu0 0
  %1301 = vmatprep.subr.bf16.mxu0 0
  %1302 = vmatpush1.bf16.msra.mxu0 0
  %1303 = vmatprep.subr.bf16.mxu0 0
  %1304 = vmatpush1.bf16.msra.mxu0 0
  %1305 = vmatprep.subr.bf16.mxu0 0
  %1306 = vmatpush1.bf16.msra.mxu0 0
  %1307 = vmatprep.subr.bf16.mxu0 0
  %1308 = vmatpush1.bf16.msra.mxu0 0
  %1309 = vmatprep.subr.bf16.mxu0 0
  %1310 = vmatpush1.bf16.msra.mxu0 0
  %1311 = vmatprep.subr.bf16.mxu0 0
  %1312 = vmatpush1.bf16.msra.mxu0 0
  %1313 = vmatprep.subr.bf16.mxu0 0
  %1314 = vmatpush1.bf16.msra.mxu0 0
  %1315 = vmatprep.subr.bf16.mxu0 0
  %1316 = vmatpush1.bf16.msra.mxu0 0
  %1317 = vmatprep.mubr.bf16.mxu0 0
  %1318 = vmatmul.mubr.bf16.gmra.mrb[0].mxu0 %v1240
  %v1319 = vpop.f32.mrb[0].mxu0
  %v1320 = vadd.f32 0.0, %v1319
  %v1321 = vpop.f32.mrb[0].mxu0
  %v1322 = vadd.f32 0.0, %v1321
  %v1323 = vpop.f32.mrb[0].mxu0
  %v1324 = vadd.f32 0.0, %v1323
  %v1325 = vpop.f32.mrb[0].mxu0
  %v1326 = vadd.f32 0.0, %v1325
  %1327 = vdwg.mxu0
  %v1328 = vadd.f32 %v1182, %v1277
  %v1329 = vadd.f32 %v1183, %v1279
  %v1330 = vadd.f32 %v1184, %v1320
  %v1331 = vadd.f32 %v1185, %v1322
  %v1332 = vadd.f32 %v1186, %v1281
  %v1333 = vadd.f32 %v1187, %v1283
  %v1334 = vadd.f32 %v1188, %v1324
  %v1335 = vadd.f32 %v1189, %v1326
  %s1336 = scalar_lea.vmem %s4, 64
  %v1337 = vld [vmem:[%s1336] sm:$0xff]
  %v1338 = vld [vmem:[%s1336 + $0x8] sm:$0xff]
  %v1339 = vpack.c.bf16 %v1338, %v1337
  %v1340 = vpack.c.bf16 %v742, %v738
  %v1341 = vpack.c.bf16 %v743, %v739
  %v1342 = vpack.c.bf16 %v744, %v740
  %v1343 = vpack.c.bf16 %v745, %v741
  %v1345 = vsel %vm857, %v1339, 0
  %1347 = vmatprep.subr.bf16.mxu0 %v1341
  %1348 = vmatpush1.bf16.msra.mxu0 %v1340
  %1349 = vmatprep.subr.bf16.mxu0 0
  %1350 = vmatpush1.bf16.msra.mxu0 0
  %1351 = vmatprep.subr.bf16.mxu0 0
  %1352 = vmatpush1.bf16.msra.mxu0 0
  %1353 = vmatprep.subr.bf16.mxu0 0
  %1354 = vmatpush1.bf16.msra.mxu0 0
  %1355 = vmatprep.subr.bf16.mxu0 0
  %1356 = vmatpush1.bf16.msra.mxu0 0
  %1357 = vmatprep.subr.bf16.mxu0 0
  %1358 = vmatpush1.bf16.msra.mxu0 0
  %1359 = vmatprep.subr.bf16.mxu0 0
  %1360 = vmatpush1.bf16.msra.mxu0 0
  %1361 = vmatprep.subr.bf16.mxu0 0
  %1362 = vmatpush1.bf16.msra.mxu0 0
  %1363 = vmatprep.subr.bf16.mxu0 0
  %1364 = vmatpush1.bf16.msra.mxu0 0
  %1365 = vmatprep.subr.bf16.mxu0 0
  %1366 = vmatpush1.bf16.msra.mxu0 0
  %1367 = vmatprep.subr.bf16.mxu0 0
  %1368 = vmatpush1.bf16.msra.mxu0 0
  %1369 = vmatprep.subr.bf16.mxu0 0
  %1370 = vmatpush1.bf16.msra.mxu0 0
  %1371 = vmatprep.subr.bf16.mxu0 0
  %1372 = vmatpush1.bf16.msra.mxu0 0
  %1373 = vmatprep.subr.bf16.mxu0 0
  %1374 = vmatpush1.bf16.msra.mxu0 0
  %1375 = vmatprep.subr.bf16.mxu0 0
  %1376 = vmatpush1.bf16.msra.mxu0 0
  %1377 = vmatprep.subr.bf16.mxu0 0
  %1378 = vmatpush1.bf16.msra.mxu0 0
  %1379 = vmatprep.mubr.bf16.mxu0 0
  %1380 = vmatmul.mubr.bf16.gmra.mrb[0].mxu0 %v1345
  %v1381 = vpop.f32.mrb[0].mxu0
  %v1382 = vadd.f32 0.0, %v1381
  %v1383 = vpop.f32.mrb[0].mxu0
  %v1384 = vadd.f32 0.0, %v1383
  %v1385 = vpop.f32.mrb[0].mxu0
  %v1386 = vadd.f32 0.0, %v1385
  %v1387 = vpop.f32.mrb[0].mxu0
  %v1388 = vadd.f32 0.0, %v1387
  %1389 = vdwg.mxu0
  %1390 = vmatprep.subr.bf16.mxu0 %v1343
  %1391 = vmatpush1.bf16.msra.mxu0 %v1342
  %1392 = vmatprep.subr.bf16.mxu0 0
  %1393 = vmatpush1.bf16.msra.mxu0 0
  %1394 = vmatprep.subr.bf16.mxu0 0
  %1395 = vmatpush1.bf16.msra.mxu0 0
  %1396 = vmatprep.subr.bf16.mxu0 0
  %1397 = vmatpush1.bf16.msra.mxu0 0
  %1398 = vmatprep.subr.bf16.mxu0 0
  %1399 = vmatpush1.bf16.msra.mxu0 0
  %1400 = vmatprep.subr.bf16.mxu0 0
  %1401 = vmatpush1.bf16.msra.mxu0 0
  %1402 = vmatprep.subr.bf16.mxu0 0
  %1403 = vmatpush1.bf16.msra.mxu0 0
  %1404 = vmatprep.subr.bf16.mxu0 0
  %1405 = vmatpush1.bf16.msra.mxu0 0
  %1406 = vmatprep.subr.bf16.mxu0 0
  %1407 = vmatpush1.bf16.msra.mxu0 0
  %1408 = vmatprep.subr.bf16.mxu0 0
  %1409 = vmatpush1.bf16.msra.mxu0 0
  %1410 = vmatprep.subr.bf16.mxu0 0
  %1411 = vmatpush1.bf16.msra.mxu0 0
  %1412 = vmatprep.subr.bf16.mxu0 0
  %1413 = vmatpush1.bf16.msra.mxu0 0
  %1414 = vmatprep.subr.bf16.mxu0 0
  %1415 = vmatpush1.bf16.msra.mxu0 0
  %1416 = vmatprep.subr.bf16.mxu0 0
  %1417 = vmatpush1.bf16.msra.mxu0 0
  %1418 = vmatprep.subr.bf16.mxu0 0
  %1419 = vmatpush1.bf16.msra.mxu0 0
  %1420 = vmatprep.subr.bf16.mxu0 0
  %1421 = vmatpush1.bf16.msra.mxu0 0
  %1422 = vmatprep.mubr.bf16.mxu0 0
  %1423 = vmatmul.mubr.bf16.gmra.mrb[0].mxu0 %v1345
  %v1424 = vpop.f32.mrb[0].mxu0
  %v1425 = vadd.f32 0.0, %v1424
  %v1426 = vpop.f32.mrb[0].mxu0
  %v1427 = vadd.f32 0.0, %v1426
  %v1428 = vpop.f32.mrb[0].mxu0
  %v1429 = vadd.f32 0.0, %v1428
  %v1430 = vpop.f32.mrb[0].mxu0
  %v1431 = vadd.f32 0.0, %v1430
  %1432 = vdwg.mxu0
  %v1433 = vadd.f32 %v1328, %v1382
  %v1434 = vadd.f32 %v1329, %v1384
  %v1435 = vadd.f32 %v1330, %v1425
  %v1436 = vadd.f32 %v1331, %v1427
  %v1437 = vadd.f32 %v1332, %v1386
  %v1438 = vadd.f32 %v1333, %v1388
  %v1439 = vadd.f32 %v1334, %v1429
  %v1440 = vadd.f32 %v1335, %v1431
  %1441 = vrot.lane.b32.xlu0 %v738, 127
  %v1442 = vpop.permute.xlu0 %1441
  %1443 = vrot.lane.b32.xlu0 %v742, 127
  %v1444 = vpop.permute.xlu0 %1443
  %1445 = vrot.lane.b32.xlu0 %v739, 127
  %v1446 = vpop.permute.xlu0 %1445
  %1447 = vrot.lane.b32.xlu0 %v743, 127
  %v1448 = vpop.permute.xlu0 %1447
  %1449 = vrot.lane.b32.xlu0 %v740, 127
  %v1450 = vpop.permute.xlu0 %1449
  %1451 = vrot.lane.b32.xlu0 %v744, 127
  %v1452 = vpop.permute.xlu0 %1451
  %1453 = vrot.lane.b32.xlu0 %v741, 127
  %v1454 = vpop.permute.xlu0 %1453
  %1455 = vrot.lane.b32.xlu0 %v745, 127
  %v1456 = vpop.permute.xlu0 %1455
  %vm1457 = vcmp.lt.s32.totalorder %v72, 127
  %v1458 = vsel %vm1457, %v1450, %v1454
  %v1459 = vsel %vm1457, %v1452, %v1456
  %v1460 = vsel %vm1457, %v1446, %v1450
  %v1461 = vsel %vm1457, %v1448, %v1452
  %v1462 = vsel %vm1457, %v1442, %v1446
  %v1463 = vsel %vm1457, %v1444, %v1448
  %v1464 = vsel %vm1457, %v1454, %v1442
  %v1465 = vsel %vm1457, %v1456, %v1444
  %v1466 = vsel %vm1036, 1, 0
  %v1467 = vsel %vm1037, 1, 0
  %v1468 = vsel %vm1038, 1, 0
  %v1469 = vsel %vm1039, 1, 0
  %vm1470 = vcmp.eq.s32.totalorder %v1466, 1
  %vm1471 = vcmp.eq.s32.totalorder %v1467, 1
  %vm1472 = vcmp.eq.s32.totalorder %v1468, 1
  %vm1473 = vcmp.eq.s32.totalorder %v1469, 1
  %v1474 = vsel %vm1470, %v1462, 0.0
  %v1475 = vsel %vm1471, %v1460, 0.0
  %v1476 = vsel %vm1472, %v1458, 0.0
  %v1477 = vsel %vm1473, %v1464, 0.0
  %v1478 = vsel %vm1470, %v1463, 0.0
  %v1479 = vsel %vm1471, %v1461, 0.0
  %v1480 = vsel %vm1472, %v1459, 0.0
  %v1481 = vsel %vm1473, %v1465, 0.0
  %s1482 = scalar_lea.vmem %s4, 80
  %v1483 = vld [vmem:[%s1482] sm:$0xff]
  %v1484 = vld [vmem:[%s1482 + $0x8] sm:$0xff]
  %v1485 = vpack.c.bf16 %v1484, %v1483
  %v1486 = vpack.c.bf16 %v1478, %v1474
  %v1487 = vpack.c.bf16 %v1479, %v1475
  %v1488 = vpack.c.bf16 %v1480, %v1476
  %v1489 = vpack.c.bf16 %v1481, %v1477
  %v1491 = vsel %vm857, %v1485, 0
  %1493 = vmatprep.subr.bf16.mxu0 %v1487
  %1494 = vmatpush1.bf16.msra.mxu0 %v1486
  %1495 = vmatprep.subr.bf16.mxu0 0
  %1496 = vmatpush1.bf16.msra.mxu0 0
  %1497 = vmatprep.subr.bf16.mxu0 0
  %1498 = vmatpush1.bf16.msra.mxu0 0
  %1499 = vmatprep.subr.bf16.mxu0 0
  %1500 = vmatpush1.bf16.msra.mxu0 0
  %1501 = vmatprep.subr.bf16.mxu0 0
  %1502 = vmatpush1.bf16.msra.mxu0 0
  %1503 = vmatprep.subr.bf16.mxu0 0
  %1504 = vmatpush1.bf16.msra.mxu0 0
  %1505 = vmatprep.subr.bf16.mxu0 0
  %1506 = vmatpush1.bf16.msra.mxu0 0
  %1507 = vmatprep.subr.bf16.mxu0 0
  %1508 = vmatpush1.bf16.msra.mxu0 0
  %1509 = vmatprep.subr.bf16.mxu0 0
  %1510 = vmatpush1.bf16.msra.mxu0 0
  %1511 = vmatprep.subr.bf16.mxu0 0
  %1512 = vmatpush1.bf16.msra.mxu0 0
  %1513 = vmatprep.subr.bf16.mxu0 0
  %1514 = vmatpush1.bf16.msra.mxu0 0
  %1515 = vmatprep.subr.bf16.mxu0 0
  %1516 = vmatpush1.bf16.msra.mxu0 0
  %1517 = vmatprep.subr.bf16.mxu0 0
  %1518 = vmatpush1.bf16.msra.mxu0 0
  %1519 = vmatprep.subr.bf16.mxu0 0
  %1520 = vmatpush1.bf16.msra.mxu0 0
  %1521 = vmatprep.subr.bf16.mxu0 0
  %1522 = vmatpush1.bf16.msra.mxu0 0
  %1523 = vmatprep.subr.bf16.mxu0 0
  %1524 = vmatpush1.bf16.msra.mxu0 0
  %1525 = vmatprep.mubr.bf16.mxu0 0
  %1526 = vmatmul.mubr.bf16.gmra.mrb[0].mxu0 %v1491
  %v1527 = vpop.f32.mrb[0].mxu0
  %v1528 = vadd.f32 0.0, %v1527
  %v1529 = vpop.f32.mrb[0].mxu0
  %v1530 = vadd.f32 0.0, %v1529
  %v1531 = vpop.f32.mrb[0].mxu0
  %v1532 = vadd.f32 0.0, %v1531
  %v1533 = vpop.f32.mrb[0].mxu0
  %v1534 = vadd.f32 0.0, %v1533
  %1535 = vdwg.mxu0
  %1536 = vmatprep.subr.bf16.mxu0 %v1489
  %1537 = vmatpush1.bf16.msra.mxu0 %v1488
  %1538 = vmatprep.subr.bf16.mxu0 0
  %1539 = vmatpush1.bf16.msra.mxu0 0
  %1540 = vmatprep.subr.bf16.mxu0 0
  %1541 = vmatpush1.bf16.msra.mxu0 0
  %1542 = vmatprep.subr.bf16.mxu0 0
  %1543 = vmatpush1.bf16.msra.mxu0 0
  %1544 = vmatprep.subr.bf16.mxu0 0
  %1545 = vmatpush1.bf16.msra.mxu0 0
  %1546 = vmatprep.subr.bf16.mxu0 0
  %1547 = vmatpush1.bf16.msra.mxu0 0
  %1548 = vmatprep.subr.bf16.mxu0 0
  %1549 = vmatpush1.bf16.msra.mxu0 0
  %1550 = vmatprep.subr.bf16.mxu0 0
  %1551 = vmatpush1.bf16.msra.mxu0 0
  %1552 = vmatprep.subr.bf16.mxu0 0
  %1553 = vmatpush1.bf16.msra.mxu0 0
  %1554 = vmatprep.subr.bf16.mxu0 0
  %1555 = vmatpush1.bf16.msra.mxu0 0
  %1556 = vmatprep.subr.bf16.mxu0 0
  %1557 = vmatpush1.bf16.msra.mxu0 0
  %1558 = vmatprep.subr.bf16.mxu0 0
  %1559 = vmatpush1.bf16.msra.mxu0 0
  %1560 = vmatprep.subr.bf16.mxu0 0
  %1561 = vmatpush1.bf16.msra.mxu0 0
  %1562 = vmatprep.subr.bf16.mxu0 0
  %1563 = vmatpush1.bf16.msra.mxu0 0
  %1564 = vmatprep.subr.bf16.mxu0 0
  %1565 = vmatpush1.bf16.msra.mxu0 0
  %1566 = vmatprep.subr.bf16.mxu0 0
  %1567 = vmatpush1.bf16.msra.mxu0 0
  %1568 = vmatprep.mubr.bf16.mxu0 0
  %1569 = vmatmul.mubr.bf16.gmra.mrb[0].mxu0 %v1491
  %v1570 = vpop.f32.mrb[0].mxu0
  %v1571 = vadd.f32 0.0, %v1570
  %v1572 = vpop.f32.mrb[0].mxu0
  %v1573 = vadd.f32 0.0, %v1572
  %v1574 = vpop.f32.mrb[0].mxu0
  %v1575 = vadd.f32 0.0, %v1574
  %v1576 = vpop.f32.mrb[0].mxu0
  %v1577 = vadd.f32 0.0, %v1576
  %1578 = vdwg.mxu0
  %v1579 = vadd.f32 %v1433, %v1528
  %v1580 = vadd.f32 %v1434, %v1530
  %v1581 = vadd.f32 %v1435, %v1571
  %v1582 = vadd.f32 %v1436, %v1573
  %v1583 = vadd.f32 %v1437, %v1532
  %v1584 = vadd.f32 %v1438, %v1534
  %v1585 = vadd.f32 %v1439, %v1575
  %v1586 = vadd.f32 %v1440, %v1577
  %vm1587 = vcmp.le.s32.totalorder %v84, 14
  %vm1588 = vcmp.le.s32.totalorder %v85, 14
  %vm1589 = vcmp.le.s32.totalorder %v86, 14
  %vm1590 = vcmp.le.s32.totalorder %v87, 14
  %vm1591 = vmand %vm748, %vm1587
  %vm1592 = vmand %vm749, %vm1588
  %vm1593 = vmand %vm750, %vm1589
  %vm1594 = vmand %vm751, %vm1590
  %1595 = vrot.lane.b32.xlu0 %v738, 113
  %v1596 = vpop.permute.xlu0 %1595
  %1597 = vrot.lane.b32.xlu0 %v742, 113
  %v1598 = vpop.permute.xlu0 %1597
  %1599 = vrot.lane.b32.xlu0 %v739, 113
  %v1600 = vpop.permute.xlu0 %1599
  %1601 = vrot.lane.b32.xlu0 %v743, 113
  %v1602 = vpop.permute.xlu0 %1601
  %1603 = vrot.lane.b32.xlu0 %v740, 113
  %v1604 = vpop.permute.xlu0 %1603
  %1605 = vrot.lane.b32.xlu0 %v744, 113
  %v1606 = vpop.permute.xlu0 %1605
  %1607 = vrot.lane.b32.xlu0 %v741, 113
  %v1608 = vpop.permute.xlu0 %1607
  %1609 = vrot.lane.b32.xlu0 %v745, 113
  %v1610 = vpop.permute.xlu0 %1609
  %vm1611 = vcmp.lt.s32.totalorder %v72, 113
  %v1612 = vsel %vm1611, %v1604, %v1608
  %v1613 = vsel %vm1611, %v1606, %v1610
  %v1614 = vsel %vm1611, %v1600, %v1604
  %v1615 = vsel %vm1611, %v1602, %v1606
  %v1616 = vsel %vm1611, %v1596, %v1600
  %v1617 = vsel %vm1611, %v1598, %v1602
  %v1618 = vsel %vm1611, %v1608, %v1596
  %v1619 = vsel %vm1611, %v1610, %v1598
  %v1620 = vsel %vm1591, 1, 0
  %v1621 = vsel %vm1592, 1, 0
  %v1622 = vsel %vm1593, 1, 0
  %v1623 = vsel %vm1594, 1, 0
  %vm1624 = vcmp.eq.s32.totalorder %v1620, 1
  %vm1625 = vcmp.eq.s32.totalorder %v1621, 1
  %vm1626 = vcmp.eq.s32.totalorder %v1622, 1
  %vm1627 = vcmp.eq.s32.totalorder %v1623, 1
  %v1628 = vsel %vm1624, %v1616, 0.0
  %v1629 = vsel %vm1625, %v1614, 0.0
  %v1630 = vsel %vm1626, %v1612, 0.0
  %v1631 = vsel %vm1627, %v1618, 0.0
  %v1632 = vsel %vm1624, %v1617, 0.0
  %v1633 = vsel %vm1625, %v1615, 0.0
  %v1634 = vsel %vm1626, %v1613, 0.0
  %v1635 = vsel %vm1627, %v1619, 0.0
  %s1636 = scalar_lea.vmem %s4, 96
  %v1637 = vld [vmem:[%s1636] sm:$0xff]
  %v1638 = vld [vmem:[%s1636 + $0x8] sm:$0xff]
  %v1639 = vpack.c.bf16 %v1638, %v1637
  %v1640 = vpack.c.bf16 %v1632, %v1628
  %v1641 = vpack.c.bf16 %v1633, %v1629
  %v1642 = vpack.c.bf16 %v1634, %v1630
  %v1643 = vpack.c.bf16 %v1635, %v1631
  %v1645 = vsel %vm857, %v1639, 0
  %1647 = vmatprep.subr.bf16.mxu0 %v1641
  %1648 = vmatpush1.bf16.msra.mxu0 %v1640
  %1649 = vmatprep.subr.bf16.mxu0 0
  %1650 = vmatpush1.bf16.msra.mxu0 0
  %1651 = vmatprep.subr.bf16.mxu0 0
  %1652 = vmatpush1.bf16.msra.mxu0 0
  %1653 = vmatprep.subr.bf16.mxu0 0
  %1654 = vmatpush1.bf16.msra.mxu0 0
  %1655 = vmatprep.subr.bf16.mxu0 0
  %1656 = vmatpush1.bf16.msra.mxu0 0
  %1657 = vmatprep.subr.bf16.mxu0 0
  %1658 = vmatpush1.bf16.msra.mxu0 0
  %1659 = vmatprep.subr.bf16.mxu0 0
  %1660 = vmatpush1.bf16.msra.mxu0 0
  %1661 = vmatprep.subr.bf16.mxu0 0
  %1662 = vmatpush1.bf16.msra.mxu0 0
  %1663 = vmatprep.subr.bf16.mxu0 0
  %1664 = vmatpush1.bf16.msra.mxu0 0
  %1665 = vmatprep.subr.bf16.mxu0 0
  %1666 = vmatpush1.bf16.msra.mxu0 0
  %1667 = vmatprep.subr.bf16.mxu0 0
  %1668 = vmatpush1.bf16.msra.mxu0 0
  %1669 = vmatprep.subr.bf16.mxu0 0
  %1670 = vmatpush1.bf16.msra.mxu0 0
  %1671 = vmatprep.subr.bf16.mxu0 0
  %1672 = vmatpush1.bf16.msra.mxu0 0
  %1673 = vmatprep.subr.bf16.mxu0 0
  %1674 = vmatpush1.bf16.msra.mxu0 0
  %1675 = vmatprep.subr.bf16.mxu0 0
  %1676 = vmatpush1.bf16.msra.mxu0 0
  %1677 = vmatprep.subr.bf16.mxu0 0
  %1678 = vmatpush1.bf16.msra.mxu0 0
  %1679 = vmatprep.mubr.bf16.mxu0 0
  %1680 = vmatmul.mubr.bf16.gmra.mrb[0].mxu0 %v1645
  %v1681 = vpop.f32.mrb[0].mxu0
  %v1682 = vadd.f32 0.0, %v1681
  %v1683 = vpop.f32.mrb[0].mxu0
  %v1684 = vadd.f32 0.0, %v1683
  %v1685 = vpop.f32.mrb[0].mxu0
  %v1686 = vadd.f32 0.0, %v1685
  %v1687 = vpop.f32.mrb[0].mxu0
  %v1688 = vadd.f32 0.0, %v1687
  %1689 = vdwg.mxu0
  %1690 = vmatprep.subr.bf16.mxu0 %v1643
  %1691 = vmatpush1.bf16.msra.mxu0 %v1642
  %1692 = vmatprep.subr.bf16.mxu0 0
  %1693 = vmatpush1.bf16.msra.mxu0 0
  %1694 = vmatprep.subr.bf16.mxu0 0
  %1695 = vmatpush1.bf16.msra.mxu0 0
  %1696 = vmatprep.subr.bf16.mxu0 0
  %1697 = vmatpush1.bf16.msra.mxu0 0
  %1698 = vmatprep.subr.bf16.mxu0 0
  %1699 = vmatpush1.bf16.msra.mxu0 0
  %1700 = vmatprep.subr.bf16.mxu0 0
  %1701 = vmatpush1.bf16.msra.mxu0 0
  %1702 = vmatprep.subr.bf16.mxu0 0
  %1703 = vmatpush1.bf16.msra.mxu0 0
  %1704 = vmatprep.subr.bf16.mxu0 0
  %1705 = vmatpush1.bf16.msra.mxu0 0
  %1706 = vmatprep.subr.bf16.mxu0 0
  %1707 = vmatpush1.bf16.msra.mxu0 0
  %1708 = vmatprep.subr.bf16.mxu0 0
  %1709 = vmatpush1.bf16.msra.mxu0 0
  %1710 = vmatprep.subr.bf16.mxu0 0
  %1711 = vmatpush1.bf16.msra.mxu0 0
  %1712 = vmatprep.subr.bf16.mxu0 0
  %1713 = vmatpush1.bf16.msra.mxu0 0
  %1714 = vmatprep.subr.bf16.mxu0 0
  %1715 = vmatpush1.bf16.msra.mxu0 0
  %1716 = vmatprep.subr.bf16.mxu0 0
  %1717 = vmatpush1.bf16.msra.mxu0 0
  %1718 = vmatprep.subr.bf16.mxu0 0
  %1719 = vmatpush1.bf16.msra.mxu0 0
  %1720 = vmatprep.subr.bf16.mxu0 0
  %1721 = vmatpush1.bf16.msra.mxu0 0
  %1722 = vmatprep.mubr.bf16.mxu0 0
  %1723 = vmatmul.mubr.bf16.gmra.mrb[0].mxu0 %v1645
  %v1724 = vpop.f32.mrb[0].mxu0
  %v1725 = vadd.f32 0.0, %v1724
  %v1726 = vpop.f32.mrb[0].mxu0
  %v1727 = vadd.f32 0.0, %v1726
  %v1728 = vpop.f32.mrb[0].mxu0
  %v1729 = vadd.f32 0.0, %v1728
  %v1730 = vpop.f32.mrb[0].mxu0
  %v1731 = vadd.f32 0.0, %v1730
  %1732 = vdwg.mxu0
  %v1733 = vadd.f32 %v1579, %v1682
  %v1734 = vadd.f32 %v1580, %v1684
  %v1735 = vadd.f32 %v1581, %v1725
  %v1736 = vadd.f32 %v1582, %v1727
  %v1737 = vadd.f32 %v1583, %v1686
  %v1738 = vadd.f32 %v1584, %v1688
  %v1739 = vadd.f32 %v1585, %v1729
  %v1740 = vadd.f32 %v1586, %v1731
  %1741 = vrot.lane.b32.xlu0 %v738, 112
  %v1742 = vpop.permute.xlu0 %1741
  %1743 = vrot.lane.b32.xlu0 %v742, 112
  %v1744 = vpop.permute.xlu0 %1743
  %1745 = vrot.lane.b32.xlu0 %v739, 112
  %v1746 = vpop.permute.xlu0 %1745
  %1747 = vrot.lane.b32.xlu0 %v743, 112
  %v1748 = vpop.permute.xlu0 %1747
  %1749 = vrot.lane.b32.xlu0 %v740, 112
  %v1750 = vpop.permute.xlu0 %1749
  %1751 = vrot.lane.b32.xlu0 %v744, 112
  %v1752 = vpop.permute.xlu0 %1751
  %1753 = vrot.lane.b32.xlu0 %v741, 112
  %v1754 = vpop.permute.xlu0 %1753
  %1755 = vrot.lane.b32.xlu0 %v745, 112
  %v1756 = vpop.permute.xlu0 %1755
  %vm1757 = vcmp.lt.s32.totalorder %v72, 112
  %v1758 = vsel %vm1757, %v1750, %v1754
  %v1759 = vsel %vm1757, %v1752, %v1756
  %v1760 = vsel %vm1757, %v1746, %v1750
  %v1761 = vsel %vm1757, %v1748, %v1752
  %v1762 = vsel %vm1757, %v1742, %v1746
  %v1763 = vsel %vm1757, %v1744, %v1748
  %v1764 = vsel %vm1757, %v1754, %v1742
  %v1765 = vsel %vm1757, %v1756, %v1744
  %v1766 = vsel %vm1587, 1, 0
  %v1767 = vsel %vm1588, 1, 0
  %v1768 = vsel %vm1589, 1, 0
  %v1769 = vsel %vm1590, 1, 0
  %vm1770 = vcmp.eq.s32.totalorder %v1766, 1
  %vm1771 = vcmp.eq.s32.totalorder %v1767, 1
  %vm1772 = vcmp.eq.s32.totalorder %v1768, 1
  %vm1773 = vcmp.eq.s32.totalorder %v1769, 1
  %v1774 = vsel %vm1770, %v1762, 0.0
  %v1775 = vsel %vm1771, %v1760, 0.0
  %v1776 = vsel %vm1772, %v1758, 0.0
  %v1777 = vsel %vm1773, %v1764, 0.0
  %v1778 = vsel %vm1770, %v1763, 0.0
  %v1779 = vsel %vm1771, %v1761, 0.0
  %v1780 = vsel %vm1772, %v1759, 0.0
  %v1781 = vsel %vm1773, %v1765, 0.0
  %s1782 = scalar_lea.vmem %s4, 112
  %v1783 = vld [vmem:[%s1782] sm:$0xff]
  %v1784 = vld [vmem:[%s1782 + $0x8] sm:$0xff]
  %v1785 = vpack.c.bf16 %v1784, %v1783
  %v1786 = vpack.c.bf16 %v1778, %v1774
  %v1787 = vpack.c.bf16 %v1779, %v1775
  %v1788 = vpack.c.bf16 %v1780, %v1776
  %v1789 = vpack.c.bf16 %v1781, %v1777
  %v1791 = vsel %vm857, %v1785, 0
  %1793 = vmatprep.subr.bf16.mxu0 %v1787
  %1794 = vmatpush1.bf16.msra.mxu0 %v1786
  %1795 = vmatprep.subr.bf16.mxu0 0
  %1796 = vmatpush1.bf16.msra.mxu0 0
  %1797 = vmatprep.subr.bf16.mxu0 0
  %1798 = vmatpush1.bf16.msra.mxu0 0
  %1799 = vmatprep.subr.bf16.mxu0 0
  %1800 = vmatpush1.bf16.msra.mxu0 0
  %1801 = vmatprep.subr.bf16.mxu0 0
  %1802 = vmatpush1.bf16.msra.mxu0 0
  %1803 = vmatprep.subr.bf16.mxu0 0
  %1804 = vmatpush1.bf16.msra.mxu0 0
  %1805 = vmatprep.subr.bf16.mxu0 0
  %1806 = vmatpush1.bf16.msra.mxu0 0
  %1807 = vmatprep.subr.bf16.mxu0 0
  %1808 = vmatpush1.bf16.msra.mxu0 0
  %1809 = vmatprep.subr.bf16.mxu0 0
  %1810 = vmatpush1.bf16.msra.mxu0 0
  %1811 = vmatprep.subr.bf16.mxu0 0
  %1812 = vmatpush1.bf16.msra.mxu0 0
  %1813 = vmatprep.subr.bf16.mxu0 0
  %1814 = vmatpush1.bf16.msra.mxu0 0
  %1815 = vmatprep.subr.bf16.mxu0 0
  %1816 = vmatpush1.bf16.msra.mxu0 0
  %1817 = vmatprep.subr.bf16.mxu0 0
  %1818 = vmatpush1.bf16.msra.mxu0 0
  %1819 = vmatprep.subr.bf16.mxu0 0
  %1820 = vmatpush1.bf16.msra.mxu0 0
  %1821 = vmatprep.subr.bf16.mxu0 0
  %1822 = vmatpush1.bf16.msra.mxu0 0
  %1823 = vmatprep.subr.bf16.mxu0 0
  %1824 = vmatpush1.bf16.msra.mxu0 0
  %1825 = vmatprep.mubr.bf16.mxu0 0
  %1826 = vmatmul.mubr.bf16.gmra.mrb[0].mxu0 %v1791
  %v1827 = vpop.f32.mrb[0].mxu0
  %v1828 = vadd.f32 0.0, %v1827
  %v1829 = vpop.f32.mrb[0].mxu0
  %v1830 = vadd.f32 0.0, %v1829
  %v1831 = vpop.f32.mrb[0].mxu0
  %v1832 = vadd.f32 0.0, %v1831
  %v1833 = vpop.f32.mrb[0].mxu0
  %v1834 = vadd.f32 0.0, %v1833
  %1835 = vdwg.mxu0
  %1836 = vmatprep.subr.bf16.mxu0 %v1789
  %1837 = vmatpush1.bf16.msra.mxu0 %v1788
  %1838 = vmatprep.subr.bf16.mxu0 0
  %1839 = vmatpush1.bf16.msra.mxu0 0
  %1840 = vmatprep.subr.bf16.mxu0 0
  %1841 = vmatpush1.bf16.msra.mxu0 0
  %1842 = vmatprep.subr.bf16.mxu0 0
  %1843 = vmatpush1.bf16.msra.mxu0 0
  %1844 = vmatprep.subr.bf16.mxu0 0
  %1845 = vmatpush1.bf16.msra.mxu0 0
  %1846 = vmatprep.subr.bf16.mxu0 0
  %1847 = vmatpush1.bf16.msra.mxu0 0
  %1848 = vmatprep.subr.bf16.mxu0 0
  %1849 = vmatpush1.bf16.msra.mxu0 0
  %1850 = vmatprep.subr.bf16.mxu0 0
  %1851 = vmatpush1.bf16.msra.mxu0 0
  %1852 = vmatprep.subr.bf16.mxu0 0
  %1853 = vmatpush1.bf16.msra.mxu0 0
  %1854 = vmatprep.subr.bf16.mxu0 0
  %1855 = vmatpush1.bf16.msra.mxu0 0
  %1856 = vmatprep.subr.bf16.mxu0 0
  %1857 = vmatpush1.bf16.msra.mxu0 0
  %1858 = vmatprep.subr.bf16.mxu0 0
  %1859 = vmatpush1.bf16.msra.mxu0 0
  %1860 = vmatprep.subr.bf16.mxu0 0
  %1861 = vmatpush1.bf16.msra.mxu0 0
  %1862 = vmatprep.subr.bf16.mxu0 0
  %1863 = vmatpush1.bf16.msra.mxu0 0
  %1864 = vmatprep.subr.bf16.mxu0 0
  %1865 = vmatpush1.bf16.msra.mxu0 0
  %1866 = vmatprep.subr.bf16.mxu0 0
  %1867 = vmatpush1.bf16.msra.mxu0 0
  %1868 = vmatprep.mubr.bf16.mxu0 0
  %1869 = vmatmul.mubr.bf16.gmra.mrb[0].mxu0 %v1791
  %v1870 = vpop.f32.mrb[0].mxu0
  %v1871 = vadd.f32 0.0, %v1870
  %v1872 = vpop.f32.mrb[0].mxu0
  %v1873 = vadd.f32 0.0, %v1872
  %v1874 = vpop.f32.mrb[0].mxu0
  %v1875 = vadd.f32 0.0, %v1874
  %v1876 = vpop.f32.mrb[0].mxu0
  %v1877 = vadd.f32 0.0, %v1876
  %1878 = vdwg.mxu0
  %v1879 = vadd.f32 %v1733, %v1828
  %v1880 = vadd.f32 %v1734, %v1830
  %v1881 = vadd.f32 %v1735, %v1871
  %v1882 = vadd.f32 %v1736, %v1873
  %v1883 = vadd.f32 %v1737, %v1832
  %v1884 = vadd.f32 %v1738, %v1834
  %v1885 = vadd.f32 %v1739, %v1875
  %v1886 = vadd.f32 %v1740, %v1877
  %vm1887 = vmand %vm1036, %vm1587
  %vm1888 = vmand %vm1037, %vm1588
  %vm1889 = vmand %vm1038, %vm1589
  %vm1890 = vmand %vm1039, %vm1590
  %1891 = vrot.lane.b32.xlu0 %v738, 111
  %v1892 = vpop.permute.xlu0 %1891
  %1893 = vrot.lane.b32.xlu0 %v742, 111
  %v1894 = vpop.permute.xlu0 %1893
  %1895 = vrot.lane.b32.xlu0 %v739, 111
  %v1896 = vpop.permute.xlu0 %1895
  %1897 = vrot.lane.b32.xlu0 %v743, 111
  %v1898 = vpop.permute.xlu0 %1897
  %1899 = vrot.lane.b32.xlu0 %v740, 111
  %v1900 = vpop.permute.xlu0 %1899
  %1901 = vrot.lane.b32.xlu0 %v744, 111
  %v1902 = vpop.permute.xlu0 %1901
  %1903 = vrot.lane.b32.xlu0 %v741, 111
  %v1904 = vpop.permute.xlu0 %1903
  %1905 = vrot.lane.b32.xlu0 %v745, 111
  %v1906 = vpop.permute.xlu0 %1905
  %vm1907 = vcmp.lt.s32.totalorder %v72, 111
  %v1908 = vsel %vm1907, %v1900, %v1904
  %v1909 = vsel %vm1907, %v1902, %v1906
  %v1910 = vsel %vm1907, %v1896, %v1900
  %v1911 = vsel %vm1907, %v1898, %v1902
  %v1912 = vsel %vm1907, %v1892, %v1896
  %v1913 = vsel %vm1907, %v1894, %v1898
  %v1914 = vsel %vm1907, %v1904, %v1892
  %v1915 = vsel %vm1907, %v1906, %v1894
  %v1916 = vsel %vm1887, 1, 0
  %v1917 = vsel %vm1888, 1, 0
  %v1918 = vsel %vm1889, 1, 0
  %v1919 = vsel %vm1890, 1, 0
  %vm1920 = vcmp.eq.s32.totalorder %v1916, 1
  %vm1921 = vcmp.eq.s32.totalorder %v1917, 1
  %vm1922 = vcmp.eq.s32.totalorder %v1918, 1
  %vm1923 = vcmp.eq.s32.totalorder %v1919, 1
  %v1924 = vsel %vm1920, %v1912, 0.0
  %v1925 = vsel %vm1921, %v1910, 0.0
  %v1926 = vsel %vm1922, %v1908, 0.0
  %v1927 = vsel %vm1923, %v1914, 0.0
  %v1928 = vsel %vm1920, %v1913, 0.0
  %v1929 = vsel %vm1921, %v1911, 0.0
  %v1930 = vsel %vm1922, %v1909, 0.0
  %v1931 = vsel %vm1923, %v1915, 0.0
  %s1932 = scalar_lea.vmem %s4, 128
  %v1933 = vld [vmem:[%s1932] sm:$0xff]
  %v1934 = vld [vmem:[%s1932 + $0x8] sm:$0xff]
  %v1935 = vpack.c.bf16 %v1934, %v1933
  %v1936 = vpack.c.bf16 %v1928, %v1924
  %v1937 = vpack.c.bf16 %v1929, %v1925
  %v1938 = vpack.c.bf16 %v1930, %v1926
  %v1939 = vpack.c.bf16 %v1931, %v1927
  %v1941 = vsel %vm857, %v1935, 0
  %1943 = vmatprep.subr.bf16.mxu0 %v1937
  %1944 = vmatpush1.bf16.msra.mxu0 %v1936
  %1945 = vmatprep.subr.bf16.mxu0 0
  %1946 = vmatpush1.bf16.msra.mxu0 0
  %1947 = vmatprep.subr.bf16.mxu0 0
  %1948 = vmatpush1.bf16.msra.mxu0 0
  %1949 = vmatprep.subr.bf16.mxu0 0
  %1950 = vmatpush1.bf16.msra.mxu0 0
  %1951 = vmatprep.subr.bf16.mxu0 0
  %1952 = vmatpush1.bf16.msra.mxu0 0
  %1953 = vmatprep.subr.bf16.mxu0 0
  %1954 = vmatpush1.bf16.msra.mxu0 0
  %1955 = vmatprep.subr.bf16.mxu0 0
  %1956 = vmatpush1.bf16.msra.mxu0 0
  %1957 = vmatprep.subr.bf16.mxu0 0
  %1958 = vmatpush1.bf16.msra.mxu0 0
  %1959 = vmatprep.subr.bf16.mxu0 0
  %1960 = vmatpush1.bf16.msra.mxu0 0
  %1961 = vmatprep.subr.bf16.mxu0 0
  %1962 = vmatpush1.bf16.msra.mxu0 0
  %1963 = vmatprep.subr.bf16.mxu0 0
  %1964 = vmatpush1.bf16.msra.mxu0 0
  %1965 = vmatprep.subr.bf16.mxu0 0
  %1966 = vmatpush1.bf16.msra.mxu0 0
  %1967 = vmatprep.subr.bf16.mxu0 0
  %1968 = vmatpush1.bf16.msra.mxu0 0
  %1969 = vmatprep.subr.bf16.mxu0 0
  %1970 = vmatpush1.bf16.msra.mxu0 0
  %1971 = vmatprep.subr.bf16.mxu0 0
  %1972 = vmatpush1.bf16.msra.mxu0 0
  %1973 = vmatprep.subr.bf16.mxu0 0
  %1974 = vmatpush1.bf16.msra.mxu0 0
  %1975 = vmatprep.mubr.bf16.mxu0 0
  %1976 = vmatmul.mubr.bf16.gmra.mrb[0].mxu0 %v1941
  %v1977 = vpop.f32.mrb[0].mxu0
  %v1978 = vadd.f32 0.0, %v1977
  %v1979 = vpop.f32.mrb[0].mxu0
  %v1980 = vadd.f32 0.0, %v1979
  %v1981 = vpop.f32.mrb[0].mxu0
  %v1982 = vadd.f32 0.0, %v1981
  %v1983 = vpop.f32.mrb[0].mxu0
  %v1984 = vadd.f32 0.0, %v1983
  %1985 = vdwg.mxu0
  %1986 = vmatprep.subr.bf16.mxu0 %v1939
  %1987 = vmatpush1.bf16.msra.mxu0 %v1938
  %1988 = vmatprep.subr.bf16.mxu0 0
  %1989 = vmatpush1.bf16.msra.mxu0 0
  %1990 = vmatprep.subr.bf16.mxu0 0
  %1991 = vmatpush1.bf16.msra.mxu0 0
  %1992 = vmatprep.subr.bf16.mxu0 0
  %1993 = vmatpush1.bf16.msra.mxu0 0
  %1994 = vmatprep.subr.bf16.mxu0 0
  %1995 = vmatpush1.bf16.msra.mxu0 0
  %1996 = vmatprep.subr.bf16.mxu0 0
  %1997 = vmatpush1.bf16.msra.mxu0 0
  %1998 = vmatprep.subr.bf16.mxu0 0
  %1999 = vmatpush1.bf16.msra.mxu0 0
  %2000 = vmatprep.subr.bf16.mxu0 0
  %2001 = vmatpush1.bf16.msra.mxu0 0
  %2002 = vmatprep.subr.bf16.mxu0 0
  %2003 = vmatpush1.bf16.msra.mxu0 0
  %2004 = vmatprep.subr.bf16.mxu0 0
  %2005 = vmatpush1.bf16.msra.mxu0 0
  %2006 = vmatprep.subr.bf16.mxu0 0
  %2007 = vmatpush1.bf16.msra.mxu0 0
  %2008 = vmatprep.subr.bf16.mxu0 0
  %2009 = vmatpush1.bf16.msra.mxu0 0
  %2010 = vmatprep.subr.bf16.mxu0 0
  %2011 = vmatpush1.bf16.msra.mxu0 0
  %2012 = vmatprep.subr.bf16.mxu0 0
  %2013 = vmatpush1.bf16.msra.mxu0 0
  %2014 = vmatprep.subr.bf16.mxu0 0
  %2015 = vmatpush1.bf16.msra.mxu0 0
  %2016 = vmatprep.subr.bf16.mxu0 0
  %2017 = vmatpush1.bf16.msra.mxu0 0
  %2018 = vmatprep.mubr.bf16.mxu0 0
  %2019 = vmatmul.mubr.bf16.gmra.mrb[0].mxu0 %v1941
  %v2020 = vpop.f32.mrb[0].mxu0
  %v2021 = vadd.f32 0.0, %v2020
  %v2022 = vpop.f32.mrb[0].mxu0
  %v2023 = vadd.f32 0.0, %v2022
  %v2024 = vpop.f32.mrb[0].mxu0
  %v2025 = vadd.f32 0.0, %v2024
  %v2026 = vpop.f32.mrb[0].mxu0
  %v2027 = vadd.f32 0.0, %v2026
  %2028 = vdwg.mxu0
  %v2029 = vadd.f32 %v1879, %v1978
  %v2030 = vadd.f32 %v1880, %v1980
  %v2031 = vadd.f32 %v1881, %v2021
  %v2032 = vadd.f32 %v1882, %v2023
  %v2033 = vadd.f32 %v1883, %v1982
  %v2034 = vadd.f32 %v1884, %v1984
  %v2035 = vadd.f32 %v1885, %v2025
  %v2036 = vadd.f32 %v1886, %v2027
  %2038 = vset.pattern.permute.xlu0 0
  %2039 = vperm.xlu0 %2038, %v746
  %v2040 = vpop.permute.xlu0 %2039
  %2043 = vset.pattern.permute.xlu0 0
  %2044 = vperm.xlu0 %2043, %v747
  %v2045 = vpop.permute.xlu0 %2044
  %v2047 = vmul.f32 %v2040, %v2029
  %v2048 = vmul.f32 %v2040, %v2030
  %v2049 = vmul.f32 %v2040, %v2031
  %v2050 = vmul.f32 %v2040, %v2032
  %v2051 = vmul.f32 %v2045, %v2033
  %v2052 = vmul.f32 %v2045, %v2034
  %v2053 = vmul.f32 %v2045, %v2035
  %v2054 = vmul.f32 %v2045, %v2036
  %v2055 = vld [vmem:[%s6] sm:$0xff]
  %v2056 = vld [vmem:[%s6 + $0x8] sm:$0xff]
  %2058 = vset.pattern.permute.xlu0 0
  %2059 = vperm.xlu0 %2058, %v2055
  %v2060 = vpop.permute.xlu0 %2059
  %2063 = vset.pattern.permute.xlu0 0
  %2064 = vperm.xlu0 %2063, %v2056
  %v2065 = vpop.permute.xlu0 %2064
  %v2067 = vadd.f32 %v2047, %v2060
  %v2068 = vadd.f32 %v2048, %v2060
  %v2069 = vadd.f32 %v2049, %v2060
  %v2070 = vadd.f32 %v2050, %v2060
  %v2071 = vadd.f32 %v2051, %v2065
  %v2072 = vadd.f32 %v2052, %v2065
  %v2073 = vadd.f32 %v2053, %v2065
  %v2074 = vadd.f32 %v2054, %v2065
  %vm2075 = vcmp.gt.f32.partialorder %v2067, 0.0
  %vm2076 = vcmp.gt.f32.partialorder %v2068, 0.0
  %vm2077 = vcmp.gt.f32.partialorder %v2069, 0.0
  %vm2078 = vcmp.gt.f32.partialorder %v2070, 0.0
  %vm2079 = vcmp.gt.f32.partialorder %v2071, 0.0
  %vm2080 = vcmp.gt.f32.partialorder %v2072, 0.0
  %vm2081 = vcmp.gt.f32.partialorder %v2073, 0.0
  %vm2082 = vcmp.gt.f32.partialorder %v2074, 0.0
  %v2083 = vmul.f32 %v2067, 0.1
  %v2084 = vmul.f32 %v2068, 0.1
  %v2085 = vmul.f32 %v2069, 0.1
  %v2086 = vmul.f32 %v2070, 0.1
  %v2087 = vmul.f32 %v2071, 0.1
  %v2088 = vmul.f32 %v2072, 0.1
  %v2089 = vmul.f32 %v2073, 0.1
  %v2090 = vmul.f32 %v2074, 0.1
  %v2091 = vsel %vm2075, %v2067, %v2083
  %v2092 = vsel %vm2076, %v2068, %v2084
  %v2093 = vsel %vm2077, %v2069, %v2085
  %v2094 = vsel %vm2078, %v2070, %v2086
  %v2095 = vsel %vm2079, %v2071, %v2087
  %v2096 = vsel %vm2080, %v2072, %v2088
  %v2097 = vsel %vm2081, %v2073, %v2089
  %v2098 = vsel %vm2082, %v2074, %v2090
  %v2099 = vld [vmem:[%s8] sm:$0xff]
  %v2100 = vld [vmem:[%s8 + $0x8] sm:$0xff]
  %v2101 = vld [vmem:[%s7] sm:$0xff]
  %v2102 = vld [vmem:[%s7 + $0x8] sm:$0xff]
  %v2103 = vpack.c.bf16 %v2102, %v2101
  %v2104 = vpack.c.bf16 %v2095, %v2091
  %v2105 = vpack.c.bf16 %v2096, %v2092
  %v2106 = vpack.c.bf16 %v2097, %v2093
  %v2107 = vpack.c.bf16 %v2098, %v2094
  %v2109 = vsel %vm857, %v2103, 0
  %2111 = vmatprep.subr.bf16.mxu0 %v2105
  %2112 = vmatpush1.bf16.msra.mxu0 %v2104
  %2113 = vmatprep.subr.bf16.mxu0 0
  %2114 = vmatpush1.bf16.msra.mxu0 0
  %2115 = vmatprep.subr.bf16.mxu0 0
  %2116 = vmatpush1.bf16.msra.mxu0 0
  %2117 = vmatprep.subr.bf16.mxu0 0
  %2118 = vmatpush1.bf16.msra.mxu0 0
  %2119 = vmatprep.subr.bf16.mxu0 0
  %2120 = vmatpush1.bf16.msra.mxu0 0
  %2121 = vmatprep.subr.bf16.mxu0 0
  %2122 = vmatpush1.bf16.msra.mxu0 0
  %2123 = vmatprep.subr.bf16.mxu0 0
  %2124 = vmatpush1.bf16.msra.mxu0 0
  %2125 = vmatprep.subr.bf16.mxu0 0
  %2126 = vmatpush1.bf16.msra.mxu0 0
  %2127 = vmatprep.subr.bf16.mxu0 0
  %2128 = vmatpush1.bf16.msra.mxu0 0
  %2129 = vmatprep.subr.bf16.mxu0 0
  %2130 = vmatpush1.bf16.msra.mxu0 0
  %2131 = vmatprep.subr.bf16.mxu0 0
  %2132 = vmatpush1.bf16.msra.mxu0 0
  %2133 = vmatprep.subr.bf16.mxu0 0
  %2134 = vmatpush1.bf16.msra.mxu0 0
  %2135 = vmatprep.subr.bf16.mxu0 0
  %2136 = vmatpush1.bf16.msra.mxu0 0
  %2137 = vmatprep.subr.bf16.mxu0 0
  %2138 = vmatpush1.bf16.msra.mxu0 0
  %2139 = vmatprep.subr.bf16.mxu0 0
  %2140 = vmatpush1.bf16.msra.mxu0 0
  %2141 = vmatprep.subr.bf16.mxu0 0
  %2142 = vmatpush1.bf16.msra.mxu0 0
  %2143 = vmatprep.mubr.bf16.mxu0 0
  %2144 = vmatmul.mubr.bf16.gmra.mrb[0].mxu0 %v2109
  %v2145 = vpop.f32.mrb[0].mxu0
  %v2146 = vadd.f32 0.0, %v2145
  %v2147 = vpop.f32.mrb[0].mxu0
  %v2148 = vadd.f32 0.0, %v2147
  %v2149 = vpop.f32.mrb[0].mxu0
  %v2150 = vadd.f32 0.0, %v2149
  %v2151 = vpop.f32.mrb[0].mxu0
  %v2152 = vadd.f32 0.0, %v2151
  %2153 = vdwg.mxu0
  %2154 = vmatprep.subr.bf16.mxu0 %v2107
  %2155 = vmatpush1.bf16.msra.mxu0 %v2106
  %2156 = vmatprep.subr.bf16.mxu0 0
  %2157 = vmatpush1.bf16.msra.mxu0 0
  %2158 = vmatprep.subr.bf16.mxu0 0
  %2159 = vmatpush1.bf16.msra.mxu0 0
  %2160 = vmatprep.subr.bf16.mxu0 0
  %2161 = vmatpush1.bf16.msra.mxu0 0
  %2162 = vmatprep.subr.bf16.mxu0 0
  %2163 = vmatpush1.bf16.msra.mxu0 0
  %2164 = vmatprep.subr.bf16.mxu0 0
  %2165 = vmatpush1.bf16.msra.mxu0 0
  %2166 = vmatprep.subr.bf16.mxu0 0
  %2167 = vmatpush1.bf16.msra.mxu0 0
  %2168 = vmatprep.subr.bf16.mxu0 0
  %2169 = vmatpush1.bf16.msra.mxu0 0
  %2170 = vmatprep.subr.bf16.mxu0 0
  %2171 = vmatpush1.bf16.msra.mxu0 0
  %2172 = vmatprep.subr.bf16.mxu0 0
  %2173 = vmatpush1.bf16.msra.mxu0 0
  %2174 = vmatprep.subr.bf16.mxu0 0
  %2175 = vmatpush1.bf16.msra.mxu0 0
  %2176 = vmatprep.subr.bf16.mxu0 0
  %2177 = vmatpush1.bf16.msra.mxu0 0
  %2178 = vmatprep.subr.bf16.mxu0 0
  %2179 = vmatpush1.bf16.msra.mxu0 0
  %2180 = vmatprep.subr.bf16.mxu0 0
  %2181 = vmatpush1.bf16.msra.mxu0 0
  %2182 = vmatprep.subr.bf16.mxu0 0
  %2183 = vmatpush1.bf16.msra.mxu0 0
  %2184 = vmatprep.subr.bf16.mxu0 0
  %2185 = vmatpush1.bf16.msra.mxu0 0
  %2186 = vmatprep.mubr.bf16.mxu0 0
  %2187 = vmatmul.mubr.bf16.gmra.mrb[0].mxu0 %v2109
  %v2188 = vpop.f32.mrb[0].mxu0
  %v2189 = vadd.f32 0.0, %v2188
  %v2190 = vpop.f32.mrb[0].mxu0
  %v2191 = vadd.f32 0.0, %v2190
  %v2192 = vpop.f32.mrb[0].mxu0
  %v2193 = vadd.f32 0.0, %v2192
  %v2194 = vpop.f32.mrb[0].mxu0
  %v2195 = vadd.f32 0.0, %v2194
  %2196 = vdwg.mxu0
  %2198 = vset.pattern.permute.xlu0 0
  %2199 = vperm.xlu0 %2198, %v2099
  %v2200 = vpop.permute.xlu0 %2199
  %2203 = vset.pattern.permute.xlu0 0
  %2204 = vperm.xlu0 %2203, %v2100
  %v2205 = vpop.permute.xlu0 %2204
  %v2207 = vmul.f32 %v2200, %v2146
  %v2208 = vmul.f32 %v2200, %v2148
  %v2209 = vmul.f32 %v2200, %v2189
  %v2210 = vmul.f32 %v2200, %v2191
  %v2211 = vmul.f32 %v2205, %v2150
  %v2212 = vmul.f32 %v2205, %v2152
  %v2213 = vmul.f32 %v2205, %v2193
  %v2214 = vmul.f32 %v2205, %v2195
  %v2215 = vld [vmem:[%s9] sm:$0xff]
  %v2216 = vld [vmem:[%s9 + $0x8] sm:$0xff]
  %2218 = vset.pattern.permute.xlu0 0
  %2219 = vperm.xlu0 %2218, %v2215
  %v2220 = vpop.permute.xlu0 %2219
  %2223 = vset.pattern.permute.xlu0 0
  %2224 = vperm.xlu0 %2223, %v2216
  %v2225 = vpop.permute.xlu0 %2224
  %v2227 = vadd.f32 %v2207, %v2220
  %v2228 = vadd.f32 %v2208, %v2220
  %v2229 = vadd.f32 %v2209, %v2220
  %v2230 = vadd.f32 %v2210, %v2220
  %v2231 = vadd.f32 %v2211, %v2225
  %v2232 = vadd.f32 %v2212, %v2225
  %v2233 = vadd.f32 %v2213, %v2225
  %v2234 = vadd.f32 %v2214, %v2225
  %vm2235 = vcmp.gt.f32.partialorder %v2227, 0.0
  %vm2236 = vcmp.gt.f32.partialorder %v2228, 0.0
  %vm2237 = vcmp.gt.f32.partialorder %v2229, 0.0
  %vm2238 = vcmp.gt.f32.partialorder %v2230, 0.0
  %vm2239 = vcmp.gt.f32.partialorder %v2231, 0.0
  %vm2240 = vcmp.gt.f32.partialorder %v2232, 0.0
  %vm2241 = vcmp.gt.f32.partialorder %v2233, 0.0
  %vm2242 = vcmp.gt.f32.partialorder %v2234, 0.0
  %v2243 = vmul.f32 %v2227, 0.1
  %v2244 = vmul.f32 %v2228, 0.1
  %v2245 = vmul.f32 %v2229, 0.1
  %v2246 = vmul.f32 %v2230, 0.1
  %v2247 = vmul.f32 %v2231, 0.1
  %v2248 = vmul.f32 %v2232, 0.1
  %v2249 = vmul.f32 %v2233, 0.1
  %v2250 = vmul.f32 %v2234, 0.1
  %v2251 = vsel %vm2235, %v2227, %v2243
  %v2252 = vsel %vm2236, %v2228, %v2244
  %v2253 = vsel %vm2237, %v2229, %v2245
  %v2254 = vsel %vm2238, %v2230, %v2246
  %v2255 = vsel %vm2239, %v2231, %v2247
  %v2256 = vsel %vm2240, %v2232, %v2248
  %v2257 = vsel %vm2241, %v2233, %v2249
  %v2258 = vsel %vm2242, %v2234, %v2250
  %v2259 = vadd.f32 %v2091, %v2251
  %v2260 = vadd.f32 %v2092, %v2252
  %v2261 = vadd.f32 %v2093, %v2253
  %v2262 = vadd.f32 %v2094, %v2254
  %v2263 = vadd.f32 %v2095, %v2255
  %v2264 = vadd.f32 %v2096, %v2256
  %v2265 = vadd.f32 %v2097, %v2257
  %v2266 = vadd.f32 %v2098, %v2258
  %v2267 = vld [vmem:[%s11] sm:$0xff]
  %v2268 = vld [vmem:[%s11 + $0x8] sm:$0xff]
  %2269 = vrot.lane.b32.xlu0 %v2259, 17
  %v2270 = vpop.permute.xlu0 %2269
  %2271 = vrot.lane.b32.xlu0 %v2263, 17
  %v2272 = vpop.permute.xlu0 %2271
  %2273 = vrot.lane.b32.xlu0 %v2260, 17
  %v2274 = vpop.permute.xlu0 %2273
  %2275 = vrot.lane.b32.xlu0 %v2264, 17
  %v2276 = vpop.permute.xlu0 %2275
  %2277 = vrot.lane.b32.xlu0 %v2261, 17
  %v2278 = vpop.permute.xlu0 %2277
  %2279 = vrot.lane.b32.xlu0 %v2265, 17
  %v2280 = vpop.permute.xlu0 %2279
  %2281 = vrot.lane.b32.xlu0 %v2262, 17
  %v2282 = vpop.permute.xlu0 %2281
  %2283 = vrot.lane.b32.xlu0 %v2266, 17
  %v2284 = vpop.permute.xlu0 %2283
  %v2285 = vsel %vm776, %v2278, %v2282
  %v2286 = vsel %vm776, %v2280, %v2284
  %v2287 = vsel %vm776, %v2274, %v2278
  %v2288 = vsel %vm776, %v2276, %v2280
  %v2289 = vsel %vm776, %v2270, %v2274
  %v2290 = vsel %vm776, %v2272, %v2276
  %v2291 = vsel %vm776, %v2282, %v2270
  %v2292 = vsel %vm776, %v2284, %v2272
  %v2293 = vsel %vm789, %v2291, 0.0
  %v2294 = vsel %vm790, %v2289, 0.0
  %v2295 = vsel %vm791, %v2287, 0.0
  %v2296 = vsel %vm792, %v2285, 0.0
  %v2297 = vsel %vm789, %v2292, 0.0
  %v2298 = vsel %vm790, %v2290, 0.0
  %v2299 = vsel %vm791, %v2288, 0.0
  %v2300 = vsel %vm792, %v2286, 0.0
  %v2301 = vld [vmem:[%s10] sm:$0xff]
  %v2302 = vld [vmem:[%s10 + $0x8] sm:$0xff]
  %v2303 = vpack.c.bf16 %v2302, %v2301
  %v2304 = vpack.c.bf16 %v2297, %v2293
  %v2305 = vpack.c.bf16 %v2298, %v2294
  %v2306 = vpack.c.bf16 %v2299, %v2295
  %v2307 = vpack.c.bf16 %v2300, %v2296
  %2308 = vrot.lane.b32.xlu0 %v2259, 16
  %v2309 = vpop.permute.xlu0 %2308
  %2310 = vrot.lane.b32.xlu0 %v2263, 16
  %v2311 = vpop.permute.xlu0 %2310
  %2312 = vrot.lane.b32.xlu0 %v2260, 16
  %v2313 = vpop.permute.xlu0 %2312
  %2314 = vrot.lane.b32.xlu0 %v2264, 16
  %v2315 = vpop.permute.xlu0 %2314
  %2316 = vrot.lane.b32.xlu0 %v2261, 16
  %v2317 = vpop.permute.xlu0 %2316
  %2318 = vrot.lane.b32.xlu0 %v2265, 16
  %v2319 = vpop.permute.xlu0 %2318
  %2320 = vrot.lane.b32.xlu0 %v2262, 16
  %v2321 = vpop.permute.xlu0 %2320
  %2322 = vrot.lane.b32.xlu0 %v2266, 16
  %v2323 = vpop.permute.xlu0 %2322
  %v2324 = vsel %vm824, %v2317, %v2321
  %v2325 = vsel %vm824, %v2319, %v2323
  %v2326 = vsel %vm824, %v2313, %v2317
  %v2327 = vsel %vm824, %v2315, %v2319
  %v2328 = vsel %vm824, %v2309, %v2313
  %v2329 = vsel %vm824, %v2311, %v2315
  %v2330 = vsel %vm824, %v2321, %v2309
  %v2331 = vsel %vm824, %v2323, %v2311
  %v2332 = vsel %vm837, %v2330, 0.0
  %v2333 = vsel %vm838, %v2328, 0.0
  %v2334 = vsel %vm839, %v2326, 0.0
  %v2335 = vsel %vm840, %v2324, 0.0
  %v2336 = vsel %vm837, %v2331, 0.0
  %v2337 = vsel %vm838, %v2329, 0.0
  %v2338 = vsel %vm839, %v2327, 0.0
  %v2339 = vsel %vm840, %v2325, 0.0
  %s2340 = scalar_lea.vmem %s10, 16
  %v2341 = vld [vmem:[%s2340] sm:$0xff]
  %v2342 = vld [vmem:[%s2340 + $0x8] sm:$0xff]
  %v2343 = vpack.c.bf16 %v2342, %v2341
  %v2344 = vpack.c.bf16 %v2336, %v2332
  %v2345 = vpack.c.bf16 %v2337, %v2333
  %v2346 = vpack.c.bf16 %v2338, %v2334
  %v2347 = vpack.c.bf16 %v2339, %v2335
  %v2349 = vsel %vm857, %v2343, 0
  %2351 = vmatprep.subr.bf16.mxu0 %v2345
  %2352 = vmatpush1.bf16.msra.mxu0 %v2344
  %2353 = vmatprep.subr.bf16.mxu0 0
  %2354 = vmatpush1.bf16.msra.mxu0 0
  %2355 = vmatprep.subr.bf16.mxu0 0
  %2356 = vmatpush1.bf16.msra.mxu0 0
  %2357 = vmatprep.subr.bf16.mxu0 0
  %2358 = vmatpush1.bf16.msra.mxu0 0
  %2359 = vmatprep.subr.bf16.mxu0 0
  %2360 = vmatpush1.bf16.msra.mxu0 0
  %2361 = vmatprep.subr.bf16.mxu0 0
  %2362 = vmatpush1.bf16.msra.mxu0 0
  %2363 = vmatprep.subr.bf16.mxu0 0
  %2364 = vmatpush1.bf16.msra.mxu0 0
  %2365 = vmatprep.subr.bf16.mxu0 0
  %2366 = vmatpush1.bf16.msra.mxu0 0
  %2367 = vmatprep.subr.bf16.mxu0 0
  %2368 = vmatpush1.bf16.msra.mxu0 0
  %2369 = vmatprep.subr.bf16.mxu0 0
  %2370 = vmatpush1.bf16.msra.mxu0 0
  %2371 = vmatprep.subr.bf16.mxu0 0
  %2372 = vmatpush1.bf16.msra.mxu0 0
  %2373 = vmatprep.subr.bf16.mxu0 0
  %2374 = vmatpush1.bf16.msra.mxu0 0
  %2375 = vmatprep.subr.bf16.mxu0 0
  %2376 = vmatpush1.bf16.msra.mxu0 0
  %2377 = vmatprep.subr.bf16.mxu0 0
  %2378 = vmatpush1.bf16.msra.mxu0 0
  %2379 = vmatprep.subr.bf16.mxu0 0
  %2380 = vmatpush1.bf16.msra.mxu0 0
  %2381 = vmatprep.subr.bf16.mxu0 0
  %2382 = vmatpush1.bf16.msra.mxu0 0
  %2383 = vmatprep.mubr.bf16.mxu0 0
  %2384 = vmatmul.mubr.bf16.gmra.mrb[0].mxu0 %v2349
  %v2385 = vpop.f32.mrb[0].mxu0
  %v2386 = vadd.f32 0.0, %v2385
  %v2387 = vpop.f32.mrb[0].mxu0
  %v2388 = vadd.f32 0.0, %v2387
  %v2389 = vpop.f32.mrb[0].mxu0
  %v2390 = vadd.f32 0.0, %v2389
  %v2391 = vpop.f32.mrb[0].mxu0
  %v2392 = vadd.f32 0.0, %v2391
  %2393 = vdwg.mxu0
  %2394 = vmatprep.subr.bf16.mxu0 %v2347
  %2395 = vmatpush1.bf16.msra.mxu0 %v2346
  %2396 = vmatprep.subr.bf16.mxu0 0
  %2397 = vmatpush1.bf16.msra.mxu0 0
  %2398 = vmatprep.subr.bf16.mxu0 0
  %2399 = vmatpush1.bf16.msra.mxu0 0
  %2400 = vmatprep.subr.bf16.mxu0 0
  %2401 = vmatpush1.bf16.msra.mxu0 0
  %2402 = vmatprep.subr.bf16.mxu0 0
  %2403 = vmatpush1.bf16.msra.mxu0 0
  %2404 = vmatprep.subr.bf16.mxu0 0
  %2405 = vmatpush1.bf16.msra.mxu0 0
  %2406 = vmatprep.subr.bf16.mxu0 0
  %2407 = vmatpush1.bf16.msra.mxu0 0
  %2408 = vmatprep.subr.bf16.mxu0 0
  %2409 = vmatpush1.bf16.msra.mxu0 0
  %2410 = vmatprep.subr.bf16.mxu0 0
  %2411 = vmatpush1.bf16.msra.mxu0 0
  %2412 = vmatprep.subr.bf16.mxu0 0
  %2413 = vmatpush1.bf16.msra.mxu0 0
  %2414 = vmatprep.subr.bf16.mxu0 0
  %2415 = vmatpush1.bf16.msra.mxu0 0
  %2416 = vmatprep.subr.bf16.mxu0 0
  %2417 = vmatpush1.bf16.msra.mxu0 0
  %2418 = vmatprep.subr.bf16.mxu0 0
  %2419 = vmatpush1.bf16.msra.mxu0 0
  %2420 = vmatprep.subr.bf16.mxu0 0
  %2421 = vmatpush1.bf16.msra.mxu0 0
  %2422 = vmatprep.subr.bf16.mxu0 0
  %2423 = vmatpush1.bf16.msra.mxu0 0
  %2424 = vmatprep.subr.bf16.mxu0 0
  %2425 = vmatpush1.bf16.msra.mxu0 0
  %2426 = vmatprep.mubr.bf16.mxu0 0
  %2427 = vmatmul.mubr.bf16.gmra.mrb[0].mxu0 %v2349
  %v2428 = vpop.f32.mrb[0].mxu0
  %v2429 = vadd.f32 0.0, %v2428
  %v2430 = vpop.f32.mrb[0].mxu0
  %v2431 = vadd.f32 0.0, %v2430
  %v2432 = vpop.f32.mrb[0].mxu0
  %v2433 = vadd.f32 0.0, %v2432
  %v2434 = vpop.f32.mrb[0].mxu0
  %v2435 = vadd.f32 0.0, %v2434
  %2436 = vdwg.mxu0
  %v2438 = vsel %vm857, %v2303, 0
  %2440 = vmatprep.subr.bf16.mxu0 %v2305
  %2441 = vmatpush1.bf16.msra.mxu0 %v2304
  %2442 = vmatprep.subr.bf16.mxu0 0
  %2443 = vmatpush1.bf16.msra.mxu0 0
  %2444 = vmatprep.subr.bf16.mxu0 0
  %2445 = vmatpush1.bf16.msra.mxu0 0
  %2446 = vmatprep.subr.bf16.mxu0 0
  %2447 = vmatpush1.bf16.msra.mxu0 0
  %2448 = vmatprep.subr.bf16.mxu0 0
  %2449 = vmatpush1.bf16.msra.mxu0 0
  %2450 = vmatprep.subr.bf16.mxu0 0
  %2451 = vmatpush1.bf16.msra.mxu0 0
  %2452 = vmatprep.subr.bf16.mxu0 0
  %2453 = vmatpush1.bf16.msra.mxu0 0
  %2454 = vmatprep.subr.bf16.mxu0 0
  %2455 = vmatpush1.bf16.msra.mxu0 0
  %2456 = vmatprep.subr.bf16.mxu0 0
  %2457 = vmatpush1.bf16.msra.mxu0 0
  %2458 = vmatprep.subr.bf16.mxu0 0
  %2459 = vmatpush1.bf16.msra.mxu0 0
  %2460 = vmatprep.subr.bf16.mxu0 0
  %2461 = vmatpush1.bf16.msra.mxu0 0
  %2462 = vmatprep.subr.bf16.mxu0 0
  %2463 = vmatpush1.bf16.msra.mxu0 0
  %2464 = vmatprep.subr.bf16.mxu0 0
  %2465 = vmatpush1.bf16.msra.mxu0 0
  %2466 = vmatprep.subr.bf16.mxu0 0
  %2467 = vmatpush1.bf16.msra.mxu0 0
  %2468 = vmatprep.subr.bf16.mxu0 0
  %2469 = vmatpush1.bf16.msra.mxu0 0
  %2470 = vmatprep.subr.bf16.mxu0 0
  %2471 = vmatpush1.bf16.msra.mxu0 0
  %2472 = vmatprep.mubr.bf16.mxu0 0
  %2473 = vmatmul.mubr.bf16.gmra.mrb[0].mxu0 %v2438
  %v2474 = vpop.f32.mrb[0].mxu0
  %v2475 = vadd.f32 %v2386, %v2474
  %v2476 = vpop.f32.mrb[0].mxu0
  %v2477 = vadd.f32 %v2388, %v2476
  %v2478 = vpop.f32.mrb[0].mxu0
  %v2479 = vadd.f32 %v2390, %v2478
  %v2480 = vpop.f32.mrb[0].mxu0
  %v2481 = vadd.f32 %v2392, %v2480
  %2482 = vdwg.mxu0
  %2483 = vmatprep.subr.bf16.mxu0 %v2307
  %2484 = vmatpush1.bf16.msra.mxu0 %v2306
  %2485 = vmatprep.subr.bf16.mxu0 0
  %2486 = vmatpush1.bf16.msra.mxu0 0
  %2487 = vmatprep.subr.bf16.mxu0 0
  %2488 = vmatpush1.bf16.msra.mxu0 0
  %2489 = vmatprep.subr.bf16.mxu0 0
  %2490 = vmatpush1.bf16.msra.mxu0 0
  %2491 = vmatprep.subr.bf16.mxu0 0
  %2492 = vmatpush1.bf16.msra.mxu0 0
  %2493 = vmatprep.subr.bf16.mxu0 0
  %2494 = vmatpush1.bf16.msra.mxu0 0
  %2495 = vmatprep.subr.bf16.mxu0 0
  %2496 = vmatpush1.bf16.msra.mxu0 0
  %2497 = vmatprep.subr.bf16.mxu0 0
  %2498 = vmatpush1.bf16.msra.mxu0 0
  %2499 = vmatprep.subr.bf16.mxu0 0
  %2500 = vmatpush1.bf16.msra.mxu0 0
  %2501 = vmatprep.subr.bf16.mxu0 0
  %2502 = vmatpush1.bf16.msra.mxu0 0
  %2503 = vmatprep.subr.bf16.mxu0 0
  %2504 = vmatpush1.bf16.msra.mxu0 0
  %2505 = vmatprep.subr.bf16.mxu0 0
  %2506 = vmatpush1.bf16.msra.mxu0 0
  %2507 = vmatprep.subr.bf16.mxu0 0
  %2508 = vmatpush1.bf16.msra.mxu0 0
  %2509 = vmatprep.subr.bf16.mxu0 0
  %2510 = vmatpush1.bf16.msra.mxu0 0
  %2511 = vmatprep.subr.bf16.mxu0 0
  %2512 = vmatpush1.bf16.msra.mxu0 0
  %2513 = vmatprep.subr.bf16.mxu0 0
  %2514 = vmatpush1.bf16.msra.mxu0 0
  %2515 = vmatprep.mubr.bf16.mxu0 0
  %2516 = vmatmul.mubr.bf16.gmra.mrb[0].mxu0 %v2438
  %v2517 = vpop.f32.mrb[0].mxu0
  %v2518 = vadd.f32 %v2429, %v2517
  %v2519 = vpop.f32.mrb[0].mxu0
  %v2520 = vadd.f32 %v2431, %v2519
  %v2521 = vpop.f32.mrb[0].mxu0
  %v2522 = vadd.f32 %v2433, %v2521
  %v2523 = vpop.f32.mrb[0].mxu0
  %v2524 = vadd.f32 %v2435, %v2523
  %2525 = vdwg.mxu0
  %2526 = vrot.lane.b32.xlu0 %v2259, 15
  %v2527 = vpop.permute.xlu0 %2526
  %2528 = vrot.lane.b32.xlu0 %v2263, 15
  %v2529 = vpop.permute.xlu0 %2528
  %2530 = vrot.lane.b32.xlu0 %v2260, 15
  %v2531 = vpop.permute.xlu0 %2530
  %2532 = vrot.lane.b32.xlu0 %v2264, 15
  %v2533 = vpop.permute.xlu0 %2532
  %2534 = vrot.lane.b32.xlu0 %v2261, 15
  %v2535 = vpop.permute.xlu0 %2534
  %2536 = vrot.lane.b32.xlu0 %v2265, 15
  %v2537 = vpop.permute.xlu0 %2536
  %2538 = vrot.lane.b32.xlu0 %v2262, 15
  %v2539 = vpop.permute.xlu0 %2538
  %2540 = vrot.lane.b32.xlu0 %v2266, 15
  %v2541 = vpop.permute.xlu0 %2540
  %v2542 = vsel %vm1060, %v2535, %v2539
  %v2543 = vsel %vm1060, %v2537, %v2541
  %v2544 = vsel %vm1060, %v2531, %v2535
  %v2545 = vsel %vm1060, %v2533, %v2537
  %v2546 = vsel %vm1060, %v2527, %v2531
  %v2547 = vsel %vm1060, %v2529, %v2533
  %v2548 = vsel %vm1060, %v2539, %v2527
  %v2549 = vsel %vm1060, %v2541, %v2529
  %v2550 = vsel %vm1073, %v2548, 0.0
  %v2551 = vsel %vm1074, %v2546, 0.0
  %v2552 = vsel %vm1075, %v2544, 0.0
  %v2553 = vsel %vm1076, %v2542, 0.0
  %v2554 = vsel %vm1073, %v2549, 0.0
  %v2555 = vsel %vm1074, %v2547, 0.0
  %v2556 = vsel %vm1075, %v2545, 0.0
  %v2557 = vsel %vm1076, %v2543, 0.0
  %s2558 = scalar_lea.vmem %s10, 32
  %v2559 = vld [vmem:[%s2558] sm:$0xff]
  %v2560 = vld [vmem:[%s2558 + $0x8] sm:$0xff]
  %v2561 = vpack.c.bf16 %v2560, %v2559
  %v2562 = vpack.c.bf16 %v2554, %v2550
  %v2563 = vpack.c.bf16 %v2555, %v2551
  %v2564 = vpack.c.bf16 %v2556, %v2552
  %v2565 = vpack.c.bf16 %v2557, %v2553
  %v2567 = vsel %vm857, %v2561, 0
  %2569 = vmatprep.subr.bf16.mxu0 %v2563
  %2570 = vmatpush1.bf16.msra.mxu0 %v2562
  %2571 = vmatprep.subr.bf16.mxu0 0
  %2572 = vmatpush1.bf16.msra.mxu0 0
  %2573 = vmatprep.subr.bf16.mxu0 0
  %2574 = vmatpush1.bf16.msra.mxu0 0
  %2575 = vmatprep.subr.bf16.mxu0 0
  %2576 = vmatpush1.bf16.msra.mxu0 0
  %2577 = vmatprep.subr.bf16.mxu0 0
  %2578 = vmatpush1.bf16.msra.mxu0 0
  %2579 = vmatprep.subr.bf16.mxu0 0
  %2580 = vmatpush1.bf16.msra.mxu0 0
  %2581 = vmatprep.subr.bf16.mxu0 0
  %2582 = vmatpush1.bf16.msra.mxu0 0
  %2583 = vmatprep.subr.bf16.mxu0 0
  %2584 = vmatpush1.bf16.msra.mxu0 0
  %2585 = vmatprep.subr.bf16.mxu0 0
  %2586 = vmatpush1.bf16.msra.mxu0 0
  %2587 = vmatprep.subr.bf16.mxu0 0
  %2588 = vmatpush1.bf16.msra.mxu0 0
  %2589 = vmatprep.subr.bf16.mxu0 0
  %2590 = vmatpush1.bf16.msra.mxu0 0
  %2591 = vmatprep.subr.bf16.mxu0 0
  %2592 = vmatpush1.bf16.msra.mxu0 0
  %2593 = vmatprep.subr.bf16.mxu0 0
  %2594 = vmatpush1.bf16.msra.mxu0 0
  %2595 = vmatprep.subr.bf16.mxu0 0
  %2596 = vmatpush1.bf16.msra.mxu0 0
  %2597 = vmatprep.subr.bf16.mxu0 0
  %2598 = vmatpush1.bf16.msra.mxu0 0
  %2599 = vmatprep.subr.bf16.mxu0 0
  %2600 = vmatpush1.bf16.msra.mxu0 0
  %2601 = vmatprep.mubr.bf16.mxu0 0
  %2602 = vmatmul.mubr.bf16.gmra.mrb[0].mxu0 %v2567
  %v2603 = vpop.f32.mrb[0].mxu0
  %v2604 = vadd.f32 0.0, %v2603
  %v2605 = vpop.f32.mrb[0].mxu0
  %v2606 = vadd.f32 0.0, %v2605
  %v2607 = vpop.f32.mrb[0].mxu0
  %v2608 = vadd.f32 0.0, %v2607
  %v2609 = vpop.f32.mrb[0].mxu0
  %v2610 = vadd.f32 0.0, %v2609
  %2611 = vdwg.mxu0
  %2612 = vmatprep.subr.bf16.mxu0 %v2565
  %2613 = vmatpush1.bf16.msra.mxu0 %v2564
  %2614 = vmatprep.subr.bf16.mxu0 0
  %2615 = vmatpush1.bf16.msra.mxu0 0
  %2616 = vmatprep.subr.bf16.mxu0 0
  %2617 = vmatpush1.bf16.msra.mxu0 0
  %2618 = vmatprep.subr.bf16.mxu0 0
  %2619 = vmatpush1.bf16.msra.mxu0 0
  %2620 = vmatprep.subr.bf16.mxu0 0
  %2621 = vmatpush1.bf16.msra.mxu0 0
  %2622 = vmatprep.subr.bf16.mxu0 0
  %2623 = vmatpush1.bf16.msra.mxu0 0
  %2624 = vmatprep.subr.bf16.mxu0 0
  %2625 = vmatpush1.bf16.msra.mxu0 0
  %2626 = vmatprep.subr.bf16.mxu0 0
  %2627 = vmatpush1.bf16.msra.mxu0 0
  %2628 = vmatprep.subr.bf16.mxu0 0
  %2629 = vmatpush1.bf16.msra.mxu0 0
  %2630 = vmatprep.subr.bf16.mxu0 0
  %2631 = vmatpush1.bf16.msra.mxu0 0
  %2632 = vmatprep.subr.bf16.mxu0 0
  %2633 = vmatpush1.bf16.msra.mxu0 0
  %2634 = vmatprep.subr.bf16.mxu0 0
  %2635 = vmatpush1.bf16.msra.mxu0 0
  %2636 = vmatprep.subr.bf16.mxu0 0
  %2637 = vmatpush1.bf16.msra.mxu0 0
  %2638 = vmatprep.subr.bf16.mxu0 0
  %2639 = vmatpush1.bf16.msra.mxu0 0
  %2640 = vmatprep.subr.bf16.mxu0 0
  %2641 = vmatpush1.bf16.msra.mxu0 0
  %2642 = vmatprep.subr.bf16.mxu0 0
  %2643 = vmatpush1.bf16.msra.mxu0 0
  %2644 = vmatprep.mubr.bf16.mxu0 0
  %2645 = vmatmul.mubr.bf16.gmra.mrb[0].mxu0 %v2567
  %v2646 = vpop.f32.mrb[0].mxu0
  %v2647 = vadd.f32 0.0, %v2646
  %v2648 = vpop.f32.mrb[0].mxu0
  %v2649 = vadd.f32 0.0, %v2648
  %v2650 = vpop.f32.mrb[0].mxu0
  %v2651 = vadd.f32 0.0, %v2650
  %v2652 = vpop.f32.mrb[0].mxu0
  %v2653 = vadd.f32 0.0, %v2652
  %2654 = vdwg.mxu0
  %v2655 = vadd.f32 %v2475, %v2604
  %v2656 = vadd.f32 %v2477, %v2606
  %v2657 = vadd.f32 %v2518, %v2647
  %v2658 = vadd.f32 %v2520, %v2649
  %v2659 = vadd.f32 %v2479, %v2608
  %v2660 = vadd.f32 %v2481, %v2610
  %v2661 = vadd.f32 %v2522, %v2651
  %v2662 = vadd.f32 %v2524, %v2653
  %2663 = vrot.lane.b32.xlu0 %v2259, 1
  %v2664 = vpop.permute.xlu0 %2663
  %2665 = vrot.lane.b32.xlu0 %v2263, 1
  %v2666 = vpop.permute.xlu0 %2665
  %2667 = vrot.lane.b32.xlu0 %v2260, 1
  %v2668 = vpop.permute.xlu0 %2667
  %2669 = vrot.lane.b32.xlu0 %v2264, 1
  %v2670 = vpop.permute.xlu0 %2669
  %2671 = vrot.lane.b32.xlu0 %v2261, 1
  %v2672 = vpop.permute.xlu0 %2671
  %2673 = vrot.lane.b32.xlu0 %v2265, 1
  %v2674 = vpop.permute.xlu0 %2673
  %2675 = vrot.lane.b32.xlu0 %v2262, 1
  %v2676 = vpop.permute.xlu0 %2675
  %2677 = vrot.lane.b32.xlu0 %v2266, 1
  %v2678 = vpop.permute.xlu0 %2677
  %v2679 = vsel %vm1206, %v2672, %v2676
  %v2680 = vsel %vm1206, %v2674, %v2678
  %v2681 = vsel %vm1206, %v2668, %v2672
  %v2682 = vsel %vm1206, %v2670, %v2674
  %v2683 = vsel %vm1206, %v2664, %v2668
  %v2684 = vsel %vm1206, %v2666, %v2670
  %v2685 = vsel %vm1206, %v2676, %v2664
  %v2686 = vsel %vm1206, %v2678, %v2666
  %v2687 = vsel %vm1219, %v2685, 0.0
  %v2688 = vsel %vm1220, %v2683, 0.0
  %v2689 = vsel %vm1221, %v2681, 0.0
  %v2690 = vsel %vm1222, %v2679, 0.0
  %v2691 = vsel %vm1219, %v2686, 0.0
  %v2692 = vsel %vm1220, %v2684, 0.0
  %v2693 = vsel %vm1221, %v2682, 0.0
  %v2694 = vsel %vm1222, %v2680, 0.0
  %s2695 = scalar_lea.vmem %s10, 48
  %v2696 = vld [vmem:[%s2695] sm:$0xff]
  %v2697 = vld [vmem:[%s2695 + $0x8] sm:$0xff]
  %v2698 = vpack.c.bf16 %v2697, %v2696
  %v2699 = vpack.c.bf16 %v2691, %v2687
  %v2700 = vpack.c.bf16 %v2692, %v2688
  %v2701 = vpack.c.bf16 %v2693, %v2689
  %v2702 = vpack.c.bf16 %v2694, %v2690
  %v2704 = vsel %vm857, %v2698, 0
  %2706 = vmatprep.subr.bf16.mxu0 %v2700
  %2707 = vmatpush1.bf16.msra.mxu0 %v2699
  %2708 = vmatprep.subr.bf16.mxu0 0
  %2709 = vmatpush1.bf16.msra.mxu0 0
  %2710 = vmatprep.subr.bf16.mxu0 0
  %2711 = vmatpush1.bf16.msra.mxu0 0
  %2712 = vmatprep.subr.bf16.mxu0 0
  %2713 = vmatpush1.bf16.msra.mxu0 0
  %2714 = vmatprep.subr.bf16.mxu0 0
  %2715 = vmatpush1.bf16.msra.mxu0 0
  %2716 = vmatprep.subr.bf16.mxu0 0
  %2717 = vmatpush1.bf16.msra.mxu0 0
  %2718 = vmatprep.subr.bf16.mxu0 0
  %2719 = vmatpush1.bf16.msra.mxu0 0
  %2720 = vmatprep.subr.bf16.mxu0 0
  %2721 = vmatpush1.bf16.msra.mxu0 0
  %2722 = vmatprep.subr.bf16.mxu0 0
  %2723 = vmatpush1.bf16.msra.mxu0 0
  %2724 = vmatprep.subr.bf16.mxu0 0
  %2725 = vmatpush1.bf16.msra.mxu0 0
  %2726 = vmatprep.subr.bf16.mxu0 0
  %2727 = vmatpush1.bf16.msra.mxu0 0
  %2728 = vmatprep.subr.bf16.mxu0 0
  %2729 = vmatpush1.bf16.msra.mxu0 0
  %2730 = vmatprep.subr.bf16.mxu0 0
  %2731 = vmatpush1.bf16.msra.mxu0 0
  %2732 = vmatprep.subr.bf16.mxu0 0
  %2733 = vmatpush1.bf16.msra.mxu0 0
  %2734 = vmatprep.subr.bf16.mxu0 0
  %2735 = vmatpush1.bf16.msra.mxu0 0
  %2736 = vmatprep.subr.bf16.mxu0 0
  %2737 = vmatpush1.bf16.msra.mxu0 0
  %2738 = vmatprep.mubr.bf16.mxu0 0
  %2739 = vmatmul.mubr.bf16.gmra.mrb[0].mxu0 %v2704
  %v2740 = vpop.f32.mrb[0].mxu0
  %v2741 = vadd.f32 0.0, %v2740
  %v2742 = vpop.f32.mrb[0].mxu0
  %v2743 = vadd.f32 0.0, %v2742
  %v2744 = vpop.f32.mrb[0].mxu0
  %v2745 = vadd.f32 0.0, %v2744
  %v2746 = vpop.f32.mrb[0].mxu0
  %v2747 = vadd.f32 0.0, %v2746
  %2748 = vdwg.mxu0
  %2749 = vmatprep.subr.bf16.mxu0 %v2702
  %2750 = vmatpush1.bf16.msra.mxu0 %v2701
  %2751 = vmatprep.subr.bf16.mxu0 0
  %2752 = vmatpush1.bf16.msra.mxu0 0
  %2753 = vmatprep.subr.bf16.mxu0 0
  %2754 = vmatpush1.bf16.msra.mxu0 0
  %2755 = vmatprep.subr.bf16.mxu0 0
  %2756 = vmatpush1.bf16.msra.mxu0 0
  %2757 = vmatprep.subr.bf16.mxu0 0
  %2758 = vmatpush1.bf16.msra.mxu0 0
  %2759 = vmatprep.subr.bf16.mxu0 0
  %2760 = vmatpush1.bf16.msra.mxu0 0
  %2761 = vmatprep.subr.bf16.mxu0 0
  %2762 = vmatpush1.bf16.msra.mxu0 0
  %2763 = vmatprep.subr.bf16.mxu0 0
  %2764 = vmatpush1.bf16.msra.mxu0 0
  %2765 = vmatprep.subr.bf16.mxu0 0
  %2766 = vmatpush1.bf16.msra.mxu0 0
  %2767 = vmatprep.subr.bf16.mxu0 0
  %2768 = vmatpush1.bf16.msra.mxu0 0
  %2769 = vmatprep.subr.bf16.mxu0 0
  %2770 = vmatpush1.bf16.msra.mxu0 0
  %2771 = vmatprep.subr.bf16.mxu0 0
  %2772 = vmatpush1.bf16.msra.mxu0 0
  %2773 = vmatprep.subr.bf16.mxu0 0
  %2774 = vmatpush1.bf16.msra.mxu0 0
  %2775 = vmatprep.subr.bf16.mxu0 0
  %2776 = vmatpush1.bf16.msra.mxu0 0
  %2777 = vmatprep.subr.bf16.mxu0 0
  %2778 = vmatpush1.bf16.msra.mxu0 0
  %2779 = vmatprep.subr.bf16.mxu0 0
  %2780 = vmatpush1.bf16.msra.mxu0 0
  %2781 = vmatprep.mubr.bf16.mxu0 0
  %2782 = vmatmul.mubr.bf16.gmra.mrb[0].mxu0 %v2704
  %v2783 = vpop.f32.mrb[0].mxu0
  %v2784 = vadd.f32 0.0, %v2783
  %v2785 = vpop.f32.mrb[0].mxu0
  %v2786 = vadd.f32 0.0, %v2785
  %v2787 = vpop.f32.mrb[0].mxu0
  %v2788 = vadd.f32 0.0, %v2787
  %v2789 = vpop.f32.mrb[0].mxu0
  %v2790 = vadd.f32 0.0, %v2789
  %2791 = vdwg.mxu0
  %v2792 = vadd.f32 %v2655, %v2741
  %v2793 = vadd.f32 %v2656, %v2743
  %v2794 = vadd.f32 %v2657, %v2784
  %v2795 = vadd.f32 %v2658, %v2786
  %v2796 = vadd.f32 %v2659, %v2745
  %v2797 = vadd.f32 %v2660, %v2747
  %v2798 = vadd.f32 %v2661, %v2788
  %v2799 = vadd.f32 %v2662, %v2790
  %s2800 = scalar_lea.vmem %s10, 64
  %v2801 = vld [vmem:[%s2800] sm:$0xff]
  %v2802 = vld [vmem:[%s2800 + $0x8] sm:$0xff]
  %v2803 = vpack.c.bf16 %v2802, %v2801
  %v2804 = vpack.c.bf16 %v2263, %v2259
  %v2805 = vpack.c.bf16 %v2264, %v2260
  %v2806 = vpack.c.bf16 %v2265, %v2261
  %v2807 = vpack.c.bf16 %v2266, %v2262
  %v2809 = vsel %vm857, %v2803, 0
  %2811 = vmatprep.subr.bf16.mxu0 %v2805
  %2812 = vmatpush1.bf16.msra.mxu0 %v2804
  %2813 = vmatprep.subr.bf16.mxu0 0
  %2814 = vmatpush1.bf16.msra.mxu0 0
  %2815 = vmatprep.subr.bf16.mxu0 0
  %2816 = vmatpush1.bf16.msra.mxu0 0
  %2817 = vmatprep.subr.bf16.mxu0 0
  %2818 = vmatpush1.bf16.msra.mxu0 0
  %2819 = vmatprep.subr.bf16.mxu0 0
  %2820 = vmatpush1.bf16.msra.mxu0 0
  %2821 = vmatprep.subr.bf16.mxu0 0
  %2822 = vmatpush1.bf16.msra.mxu0 0
  %2823 = vmatprep.subr.bf16.mxu0 0
  %2824 = vmatpush1.bf16.msra.mxu0 0
  %2825 = vmatprep.subr.bf16.mxu0 0
  %2826 = vmatpush1.bf16.msra.mxu0 0
  %2827 = vmatprep.subr.bf16.mxu0 0
  %2828 = vmatpush1.bf16.msra.mxu0 0
  %2829 = vmatprep.subr.bf16.mxu0 0
  %2830 = vmatpush1.bf16.msra.mxu0 0
  %2831 = vmatprep.subr.bf16.mxu0 0
  %2832 = vmatpush1.bf16.msra.mxu0 0
  %2833 = vmatprep.subr.bf16.mxu0 0
  %2834 = vmatpush1.bf16.msra.mxu0 0
  %2835 = vmatprep.subr.bf16.mxu0 0
  %2836 = vmatpush1.bf16.msra.mxu0 0
  %2837 = vmatprep.subr.bf16.mxu0 0
  %2838 = vmatpush1.bf16.msra.mxu0 0
  %2839 = vmatprep.subr.bf16.mxu0 0
  %2840 = vmatpush1.bf16.msra.mxu0 0
  %2841 = vmatprep.subr.bf16.mxu0 0
  %2842 = vmatpush1.bf16.msra.mxu0 0
  %2843 = vmatprep.mubr.bf16.mxu0 0
  %2844 = vmatmul.mubr.bf16.gmra.mrb[0].mxu0 %v2809
  %v2845 = vpop.f32.mrb[0].mxu0
  %v2846 = vadd.f32 0.0, %v2845
  %v2847 = vpop.f32.mrb[0].mxu0
  %v2848 = vadd.f32 0.0, %v2847
  %v2849 = vpop.f32.mrb[0].mxu0
  %v2850 = vadd.f32 0.0, %v2849
  %v2851 = vpop.f32.mrb[0].mxu0
  %v2852 = vadd.f32 0.0, %v2851
  %2853 = vdwg.mxu0
  %2854 = vmatprep.subr.bf16.mxu0 %v2807
  %2855 = vmatpush1.bf16.msra.mxu0 %v2806
  %2856 = vmatprep.subr.bf16.mxu0 0
  %2857 = vmatpush1.bf16.msra.mxu0 0
  %2858 = vmatprep.subr.bf16.mxu0 0
  %2859 = vmatpush1.bf16.msra.mxu0 0
  %2860 = vmatprep.subr.bf16.mxu0 0
  %2861 = vmatpush1.bf16.msra.mxu0 0
  %2862 = vmatprep.subr.bf16.mxu0 0
  %2863 = vmatpush1.bf16.msra.mxu0 0
  %2864 = vmatprep.subr.bf16.mxu0 0
  %2865 = vmatpush1.bf16.msra.mxu0 0
  %2866 = vmatprep.subr.bf16.mxu0 0
  %2867 = vmatpush1.bf16.msra.mxu0 0
  %2868 = vmatprep.subr.bf16.mxu0 0
  %2869 = vmatpush1.bf16.msra.mxu0 0
  %2870 = vmatprep.subr.bf16.mxu0 0
  %2871 = vmatpush1.bf16.msra.mxu0 0
  %2872 = vmatprep.subr.bf16.mxu0 0
  %2873 = vmatpush1.bf16.msra.mxu0 0
  %2874 = vmatprep.subr.bf16.mxu0 0
  %2875 = vmatpush1.bf16.msra.mxu0 0
  %2876 = vmatprep.subr.bf16.mxu0 0
  %2877 = vmatpush1.bf16.msra.mxu0 0
  %2878 = vmatprep.subr.bf16.mxu0 0
  %2879 = vmatpush1.bf16.msra.mxu0 0
  %2880 = vmatprep.subr.bf16.mxu0 0
  %2881 = vmatpush1.bf16.msra.mxu0 0
  %2882 = vmatprep.subr.bf16.mxu0 0
  %2883 = vmatpush1.bf16.msra.mxu0 0
  %2884 = vmatprep.subr.bf16.mxu0 0
  %2885 = vmatpush1.bf16.msra.mxu0 0
  %2886 = vmatprep.mubr.bf16.mxu0 0
  %2887 = vmatmul.mubr.bf16.gmra.mrb[0].mxu0 %v2809
  %v2888 = vpop.f32.mrb[0].mxu0
  %v2889 = vadd.f32 0.0, %v2888
  %v2890 = vpop.f32.mrb[0].mxu0
  %v2891 = vadd.f32 0.0, %v2890
  %v2892 = vpop.f32.mrb[0].mxu0
  %v2893 = vadd.f32 0.0, %v2892
  %v2894 = vpop.f32.mrb[0].mxu0
  %v2895 = vadd.f32 0.0, %v2894
  %2896 = vdwg.mxu0
  %v2897 = vadd.f32 %v2792, %v2846
  %v2898 = vadd.f32 %v2793, %v2848
  %v2899 = vadd.f32 %v2794, %v2889
  %v2900 = vadd.f32 %v2795, %v2891
  %v2901 = vadd.f32 %v2796, %v2850
  %v2902 = vadd.f32 %v2797, %v2852
  %v2903 = vadd.f32 %v2798, %v2893
  %v2904 = vadd.f32 %v2799, %v2895
  %2905 = vrot.lane.b32.xlu0 %v2259, 127
  %v2906 = vpop.permute.xlu0 %2905
  %2907 = vrot.lane.b32.xlu0 %v2263, 127
  %v2908 = vpop.permute.xlu0 %2907
  %2909 = vrot.lane.b32.xlu0 %v2260, 127
  %v2910 = vpop.permute.xlu0 %2909
  %2911 = vrot.lane.b32.xlu0 %v2264, 127
  %v2912 = vpop.permute.xlu0 %2911
  %2913 = vrot.lane.b32.xlu0 %v2261, 127
  %v2914 = vpop.permute.xlu0 %2913
  %2915 = vrot.lane.b32.xlu0 %v2265, 127
  %v2916 = vpop.permute.xlu0 %2915
  %2917 = vrot.lane.b32.xlu0 %v2262, 127
  %v2918 = vpop.permute.xlu0 %2917
  %2919 = vrot.lane.b32.xlu0 %v2266, 127
  %v2920 = vpop.permute.xlu0 %2919
  %v2921 = vsel %vm1457, %v2914, %v2918
  %v2922 = vsel %vm1457, %v2916, %v2920
  %v2923 = vsel %vm1457, %v2910, %v2914
  %v2924 = vsel %vm1457, %v2912, %v2916
  %v2925 = vsel %vm1457, %v2906, %v2910
  %v2926 = vsel %vm1457, %v2908, %v2912
  %v2927 = vsel %vm1457, %v2918, %v2906
  %v2928 = vsel %vm1457, %v2920, %v2908
  %v2929 = vsel %vm1470, %v2925, 0.0
  %v2930 = vsel %vm1471, %v2923, 0.0
  %v2931 = vsel %vm1472, %v2921, 0.0
  %v2932 = vsel %vm1473, %v2927, 0.0
  %v2933 = vsel %vm1470, %v2926, 0.0
  %v2934 = vsel %vm1471, %v2924, 0.0
  %v2935 = vsel %vm1472, %v2922, 0.0
  %v2936 = vsel %vm1473, %v2928, 0.0
  %s2937 = scalar_lea.vmem %s10, 80
  %v2938 = vld [vmem:[%s2937] sm:$0xff]
  %v2939 = vld [vmem:[%s2937 + $0x8] sm:$0xff]
  %v2940 = vpack.c.bf16 %v2939, %v2938
  %v2941 = vpack.c.bf16 %v2933, %v2929
  %v2942 = vpack.c.bf16 %v2934, %v2930
  %v2943 = vpack.c.bf16 %v2935, %v2931
  %v2944 = vpack.c.bf16 %v2936, %v2932
  %v2946 = vsel %vm857, %v2940, 0
  %2948 = vmatprep.subr.bf16.mxu0 %v2942
  %2949 = vmatpush1.bf16.msra.mxu0 %v2941
  %2950 = vmatprep.subr.bf16.mxu0 0
  %2951 = vmatpush1.bf16.msra.mxu0 0
  %2952 = vmatprep.subr.bf16.mxu0 0
  %2953 = vmatpush1.bf16.msra.mxu0 0
  %2954 = vmatprep.subr.bf16.mxu0 0
  %2955 = vmatpush1.bf16.msra.mxu0 0
  %2956 = vmatprep.subr.bf16.mxu0 0
  %2957 = vmatpush1.bf16.msra.mxu0 0
  %2958 = vmatprep.subr.bf16.mxu0 0
  %2959 = vmatpush1.bf16.msra.mxu0 0
  %2960 = vmatprep.subr.bf16.mxu0 0
  %2961 = vmatpush1.bf16.msra.mxu0 0
  %2962 = vmatprep.subr.bf16.mxu0 0
  %2963 = vmatpush1.bf16.msra.mxu0 0
  %2964 = vmatprep.subr.bf16.mxu0 0
  %2965 = vmatpush1.bf16.msra.mxu0 0
  %2966 = vmatprep.subr.bf16.mxu0 0
  %2967 = vmatpush1.bf16.msra.mxu0 0
  %2968 = vmatprep.subr.bf16.mxu0 0
  %2969 = vmatpush1.bf16.msra.mxu0 0
  %2970 = vmatprep.subr.bf16.mxu0 0
  %2971 = vmatpush1.bf16.msra.mxu0 0
  %2972 = vmatprep.subr.bf16.mxu0 0
  %2973 = vmatpush1.bf16.msra.mxu0 0
  %2974 = vmatprep.subr.bf16.mxu0 0
  %2975 = vmatpush1.bf16.msra.mxu0 0
  %2976 = vmatprep.subr.bf16.mxu0 0
  %2977 = vmatpush1.bf16.msra.mxu0 0
  %2978 = vmatprep.subr.bf16.mxu0 0
  %2979 = vmatpush1.bf16.msra.mxu0 0
  %2980 = vmatprep.mubr.bf16.mxu0 0
  %2981 = vmatmul.mubr.bf16.gmra.mrb[0].mxu0 %v2946
  %v2982 = vpop.f32.mrb[0].mxu0
  %v2983 = vadd.f32 0.0, %v2982
  %v2984 = vpop.f32.mrb[0].mxu0
  %v2985 = vadd.f32 0.0, %v2984
  %v2986 = vpop.f32.mrb[0].mxu0
  %v2987 = vadd.f32 0.0, %v2986
  %v2988 = vpop.f32.mrb[0].mxu0
  %v2989 = vadd.f32 0.0, %v2988
  %2990 = vdwg.mxu0
  %2991 = vmatprep.subr.bf16.mxu0 %v2944
  %2992 = vmatpush1.bf16.msra.mxu0 %v2943
  %2993 = vmatprep.subr.bf16.mxu0 0
  %2994 = vmatpush1.bf16.msra.mxu0 0
  %2995 = vmatprep.subr.bf16.mxu0 0
  %2996 = vmatpush1.bf16.msra.mxu0 0
  %2997 = vmatprep.subr.bf16.mxu0 0
  %2998 = vmatpush1.bf16.msra.mxu0 0
  %2999 = vmatprep.subr.bf16.mxu0 0
  %3000 = vmatpush1.bf16.msra.mxu0 0
  %3001 = vmatprep.subr.bf16.mxu0 0
  %3002 = vmatpush1.bf16.msra.mxu0 0
  %3003 = vmatprep.subr.bf16.mxu0 0
  %3004 = vmatpush1.bf16.msra.mxu0 0
  %3005 = vmatprep.subr.bf16.mxu0 0
  %3006 = vmatpush1.bf16.msra.mxu0 0
  %3007 = vmatprep.subr.bf16.mxu0 0
  %3008 = vmatpush1.bf16.msra.mxu0 0
  %3009 = vmatprep.subr.bf16.mxu0 0
  %3010 = vmatpush1.bf16.msra.mxu0 0
  %3011 = vmatprep.subr.bf16.mxu0 0
  %3012 = vmatpush1.bf16.msra.mxu0 0
  %3013 = vmatprep.subr.bf16.mxu0 0
  %3014 = vmatpush1.bf16.msra.mxu0 0
  %3015 = vmatprep.subr.bf16.mxu0 0
  %3016 = vmatpush1.bf16.msra.mxu0 0
  %3017 = vmatprep.subr.bf16.mxu0 0
  %3018 = vmatpush1.bf16.msra.mxu0 0
  %3019 = vmatprep.subr.bf16.mxu0 0
  %3020 = vmatpush1.bf16.msra.mxu0 0
  %3021 = vmatprep.subr.bf16.mxu0 0
  %3022 = vmatpush1.bf16.msra.mxu0 0
  %3023 = vmatprep.mubr.bf16.mxu0 0
  %3024 = vmatmul.mubr.bf16.gmra.mrb[0].mxu0 %v2946
  %v3025 = vpop.f32.mrb[0].mxu0
  %v3026 = vadd.f32 0.0, %v3025
  %v3027 = vpop.f32.mrb[0].mxu0
  %v3028 = vadd.f32 0.0, %v3027
  %v3029 = vpop.f32.mrb[0].mxu0
  %v3030 = vadd.f32 0.0, %v3029
  %v3031 = vpop.f32.mrb[0].mxu0
  %v3032 = vadd.f32 0.0, %v3031
  %3033 = vdwg.mxu0
  %v3034 = vadd.f32 %v2897, %v2983
  %v3035 = vadd.f32 %v2898, %v2985
  %v3036 = vadd.f32 %v2899, %v3026
  %v3037 = vadd.f32 %v2900, %v3028
  %v3038 = vadd.f32 %v2901, %v2987
  %v3039 = vadd.f32 %v2902, %v2989
  %v3040 = vadd.f32 %v2903, %v3030
  %v3041 = vadd.f32 %v2904, %v3032
  %3042 = vrot.lane.b32.xlu0 %v2259, 113
  %v3043 = vpop.permute.xlu0 %3042
  %3044 = vrot.lane.b32.xlu0 %v2263, 113
  %v3045 = vpop.permute.xlu0 %3044
  %3046 = vrot.lane.b32.xlu0 %v2260, 113
  %v3047 = vpop.permute.xlu0 %3046
  %3048 = vrot.lane.b32.xlu0 %v2264, 113
  %v3049 = vpop.permute.xlu0 %3048
  %3050 = vrot.lane.b32.xlu0 %v2261, 113
  %v3051 = vpop.permute.xlu0 %3050
  %3052 = vrot.lane.b32.xlu0 %v2265, 113
  %v3053 = vpop.permute.xlu0 %3052
  %3054 = vrot.lane.b32.xlu0 %v2262, 113
  %v3055 = vpop.permute.xlu0 %3054
  %3056 = vrot.lane.b32.xlu0 %v2266, 113
  %v3057 = vpop.permute.xlu0 %3056
  %v3058 = vsel %vm1611, %v3051, %v3055
  %v3059 = vsel %vm1611, %v3053, %v3057
  %v3060 = vsel %vm1611, %v3047, %v3051
  %v3061 = vsel %vm1611, %v3049, %v3053
  %v3062 = vsel %vm1611, %v3043, %v3047
  %v3063 = vsel %vm1611, %v3045, %v3049
  %v3064 = vsel %vm1611, %v3055, %v3043
  %v3065 = vsel %vm1611, %v3057, %v3045
  %v3066 = vsel %vm1624, %v3062, 0.0
  %v3067 = vsel %vm1625, %v3060, 0.0
  %v3068 = vsel %vm1626, %v3058, 0.0
  %v3069 = vsel %vm1627, %v3064, 0.0
  %v3070 = vsel %vm1624, %v3063, 0.0
  %v3071 = vsel %vm1625, %v3061, 0.0
  %v3072 = vsel %vm1626, %v3059, 0.0
  %v3073 = vsel %vm1627, %v3065, 0.0
  %s3074 = scalar_lea.vmem %s10, 96
  %v3075 = vld [vmem:[%s3074] sm:$0xff]
  %v3076 = vld [vmem:[%s3074 + $0x8] sm:$0xff]
  %v3077 = vpack.c.bf16 %v3076, %v3075
  %v3078 = vpack.c.bf16 %v3070, %v3066
  %v3079 = vpack.c.bf16 %v3071, %v3067
  %v3080 = vpack.c.bf16 %v3072, %v3068
  %v3081 = vpack.c.bf16 %v3073, %v3069
  %v3083 = vsel %vm857, %v3077, 0
  %3085 = vmatprep.subr.bf16.mxu0 %v3079
  %3086 = vmatpush1.bf16.msra.mxu0 %v3078
  %3087 = vmatprep.subr.bf16.mxu0 0
  %3088 = vmatpush1.bf16.msra.mxu0 0
  %3089 = vmatprep.subr.bf16.mxu0 0
  %3090 = vmatpush1.bf16.msra.mxu0 0
  %3091 = vmatprep.subr.bf16.mxu0 0
  %3092 = vmatpush1.bf16.msra.mxu0 0
  %3093 = vmatprep.subr.bf16.mxu0 0
  %3094 = vmatpush1.bf16.msra.mxu0 0
  %3095 = vmatprep.subr.bf16.mxu0 0
  %3096 = vmatpush1.bf16.msra.mxu0 0
  %3097 = vmatprep.subr.bf16.mxu0 0
  %3098 = vmatpush1.bf16.msra.mxu0 0
  %3099 = vmatprep.subr.bf16.mxu0 0
  %3100 = vmatpush1.bf16.msra.mxu0 0
  %3101 = vmatprep.subr.bf16.mxu0 0
  %3102 = vmatpush1.bf16.msra.mxu0 0
  %3103 = vmatprep.subr.bf16.mxu0 0
  %3104 = vmatpush1.bf16.msra.mxu0 0
  %3105 = vmatprep.subr.bf16.mxu0 0
  %3106 = vmatpush1.bf16.msra.mxu0 0
  %3107 = vmatprep.subr.bf16.mxu0 0
  %3108 = vmatpush1.bf16.msra.mxu0 0
  %3109 = vmatprep.subr.bf16.mxu0 0
  %3110 = vmatpush1.bf16.msra.mxu0 0
  %3111 = vmatprep.subr.bf16.mxu0 0
  %3112 = vmatpush1.bf16.msra.mxu0 0
  %3113 = vmatprep.subr.bf16.mxu0 0
  %3114 = vmatpush1.bf16.msra.mxu0 0
  %3115 = vmatprep.subr.bf16.mxu0 0
  %3116 = vmatpush1.bf16.msra.mxu0 0
  %3117 = vmatprep.mubr.bf16.mxu0 0
  %3118 = vmatmul.mubr.bf16.gmra.mrb[0].mxu0 %v3083
  %v3119 = vpop.f32.mrb[0].mxu0
  %v3120 = vadd.f32 0.0, %v3119
  %v3121 = vpop.f32.mrb[0].mxu0
  %v3122 = vadd.f32 0.0, %v3121
  %v3123 = vpop.f32.mrb[0].mxu0
  %v3124 = vadd.f32 0.0, %v3123
  %v3125 = vpop.f32.mrb[0].mxu0
  %v3126 = vadd.f32 0.0, %v3125
  %3127 = vdwg.mxu0
  %3128 = vmatprep.subr.bf16.mxu0 %v3081
  %3129 = vmatpush1.bf16.msra.mxu0 %v3080
  %3130 = vmatprep.subr.bf16.mxu0 0
  %3131 = vmatpush1.bf16.msra.mxu0 0
  %3132 = vmatprep.subr.bf16.mxu0 0
  %3133 = vmatpush1.bf16.msra.mxu0 0
  %3134 = vmatprep.subr.bf16.mxu0 0
  %3135 = vmatpush1.bf16.msra.mxu0 0
  %3136 = vmatprep.subr.bf16.mxu0 0
  %3137 = vmatpush1.bf16.msra.mxu0 0
  %3138 = vmatprep.subr.bf16.mxu0 0
  %3139 = vmatpush1.bf16.msra.mxu0 0
  %3140 = vmatprep.subr.bf16.mxu0 0
  %3141 = vmatpush1.bf16.msra.mxu0 0
  %3142 = vmatprep.subr.bf16.mxu0 0
  %3143 = vmatpush1.bf16.msra.mxu0 0
  %3144 = vmatprep.subr.bf16.mxu0 0
  %3145 = vmatpush1.bf16.msra.mxu0 0
  %3146 = vmatprep.subr.bf16.mxu0 0
  %3147 = vmatpush1.bf16.msra.mxu0 0
  %3148 = vmatprep.subr.bf16.mxu0 0
  %3149 = vmatpush1.bf16.msra.mxu0 0
  %3150 = vmatprep.subr.bf16.mxu0 0
  %3151 = vmatpush1.bf16.msra.mxu0 0
  %3152 = vmatprep.subr.bf16.mxu0 0
  %3153 = vmatpush1.bf16.msra.mxu0 0
  %3154 = vmatprep.subr.bf16.mxu0 0
  %3155 = vmatpush1.bf16.msra.mxu0 0
  %3156 = vmatprep.subr.bf16.mxu0 0
  %3157 = vmatpush1.bf16.msra.mxu0 0
  %3158 = vmatprep.subr.bf16.mxu0 0
  %3159 = vmatpush1.bf16.msra.mxu0 0
  %3160 = vmatprep.mubr.bf16.mxu0 0
  %3161 = vmatmul.mubr.bf16.gmra.mrb[0].mxu0 %v3083
  %v3162 = vpop.f32.mrb[0].mxu0
  %v3163 = vadd.f32 0.0, %v3162
  %v3164 = vpop.f32.mrb[0].mxu0
  %v3165 = vadd.f32 0.0, %v3164
  %v3166 = vpop.f32.mrb[0].mxu0
  %v3167 = vadd.f32 0.0, %v3166
  %v3168 = vpop.f32.mrb[0].mxu0
  %v3169 = vadd.f32 0.0, %v3168
  %3170 = vdwg.mxu0
  %v3171 = vadd.f32 %v3034, %v3120
  %v3172 = vadd.f32 %v3035, %v3122
  %v3173 = vadd.f32 %v3036, %v3163
  %v3174 = vadd.f32 %v3037, %v3165
  %v3175 = vadd.f32 %v3038, %v3124
  %v3176 = vadd.f32 %v3039, %v3126
  %v3177 = vadd.f32 %v3040, %v3167
  %v3178 = vadd.f32 %v3041, %v3169
  %3179 = vrot.lane.b32.xlu0 %v2259, 112
  %v3180 = vpop.permute.xlu0 %3179
  %3181 = vrot.lane.b32.xlu0 %v2263, 112
  %v3182 = vpop.permute.xlu0 %3181
  %3183 = vrot.lane.b32.xlu0 %v2260, 112
  %v3184 = vpop.permute.xlu0 %3183
  %3185 = vrot.lane.b32.xlu0 %v2264, 112
  %v3186 = vpop.permute.xlu0 %3185
  %3187 = vrot.lane.b32.xlu0 %v2261, 112
  %v3188 = vpop.permute.xlu0 %3187
  %3189 = vrot.lane.b32.xlu0 %v2265, 112
  %v3190 = vpop.permute.xlu0 %3189
  %3191 = vrot.lane.b32.xlu0 %v2262, 112
  %v3192 = vpop.permute.xlu0 %3191
  %3193 = vrot.lane.b32.xlu0 %v2266, 112
  %v3194 = vpop.permute.xlu0 %3193
  %v3195 = vsel %vm1757, %v3188, %v3192
  %v3196 = vsel %vm1757, %v3190, %v3194
  %v3197 = vsel %vm1757, %v3184, %v3188
  %v3198 = vsel %vm1757, %v3186, %v3190
  %v3199 = vsel %vm1757, %v3180, %v3184
  %v3200 = vsel %vm1757, %v3182, %v3186
  %v3201 = vsel %vm1757, %v3192, %v3180
  %v3202 = vsel %vm1757, %v3194, %v3182
  %v3203 = vsel %vm1770, %v3199, 0.0
  %v3204 = vsel %vm1771, %v3197, 0.0
  %v3205 = vsel %vm1772, %v3195, 0.0
  %v3206 = vsel %vm1773, %v3201, 0.0
  %v3207 = vsel %vm1770, %v3200, 0.0
  %v3208 = vsel %vm1771, %v3198, 0.0
  %v3209 = vsel %vm1772, %v3196, 0.0
  %v3210 = vsel %vm1773, %v3202, 0.0
  %s3211 = scalar_lea.vmem %s10, 112
  %v3212 = vld [vmem:[%s3211] sm:$0xff]
  %v3213 = vld [vmem:[%s3211 + $0x8] sm:$0xff]
  %v3214 = vpack.c.bf16 %v3213, %v3212
  %v3215 = vpack.c.bf16 %v3207, %v3203
  %v3216 = vpack.c.bf16 %v3208, %v3204
  %v3217 = vpack.c.bf16 %v3209, %v3205
  %v3218 = vpack.c.bf16 %v3210, %v3206
  %v3220 = vsel %vm857, %v3214, 0
  %3222 = vmatprep.subr.bf16.mxu0 %v3216
  %3223 = vmatpush1.bf16.msra.mxu0 %v3215
  %3224 = vmatprep.subr.bf16.mxu0 0
  %3225 = vmatpush1.bf16.msra.mxu0 0
  %3226 = vmatprep.subr.bf16.mxu0 0
  %3227 = vmatpush1.bf16.msra.mxu0 0
  %3228 = vmatprep.subr.bf16.mxu0 0
  %3229 = vmatpush1.bf16.msra.mxu0 0
  %3230 = vmatprep.subr.bf16.mxu0 0
  %3231 = vmatpush1.bf16.msra.mxu0 0
  %3232 = vmatprep.subr.bf16.mxu0 0
  %3233 = vmatpush1.bf16.msra.mxu0 0
  %3234 = vmatprep.subr.bf16.mxu0 0
  %3235 = vmatpush1.bf16.msra.mxu0 0
  %3236 = vmatprep.subr.bf16.mxu0 0
  %3237 = vmatpush1.bf16.msra.mxu0 0
  %3238 = vmatprep.subr.bf16.mxu0 0
  %3239 = vmatpush1.bf16.msra.mxu0 0
  %3240 = vmatprep.subr.bf16.mxu0 0
  %3241 = vmatpush1.bf16.msra.mxu0 0
  %3242 = vmatprep.subr.bf16.mxu0 0
  %3243 = vmatpush1.bf16.msra.mxu0 0
  %3244 = vmatprep.subr.bf16.mxu0 0
  %3245 = vmatpush1.bf16.msra.mxu0 0
  %3246 = vmatprep.subr.bf16.mxu0 0
  %3247 = vmatpush1.bf16.msra.mxu0 0
  %3248 = vmatprep.subr.bf16.mxu0 0
  %3249 = vmatpush1.bf16.msra.mxu0 0
  %3250 = vmatprep.subr.bf16.mxu0 0
  %3251 = vmatpush1.bf16.msra.mxu0 0
  %3252 = vmatprep.subr.bf16.mxu0 0
  %3253 = vmatpush1.bf16.msra.mxu0 0
  %3254 = vmatprep.mubr.bf16.mxu0 0
  %3255 = vmatmul.mubr.bf16.gmra.mrb[0].mxu0 %v3220
  %v3256 = vpop.f32.mrb[0].mxu0
  %v3257 = vadd.f32 0.0, %v3256
  %v3258 = vpop.f32.mrb[0].mxu0
  %v3259 = vadd.f32 0.0, %v3258
  %v3260 = vpop.f32.mrb[0].mxu0
  %v3261 = vadd.f32 0.0, %v3260
  %v3262 = vpop.f32.mrb[0].mxu0
  %v3263 = vadd.f32 0.0, %v3262
  %3264 = vdwg.mxu0
  %3265 = vmatprep.subr.bf16.mxu0 %v3218
  %3266 = vmatpush1.bf16.msra.mxu0 %v3217
  %3267 = vmatprep.subr.bf16.mxu0 0
  %3268 = vmatpush1.bf16.msra.mxu0 0
  %3269 = vmatprep.subr.bf16.mxu0 0
  %3270 = vmatpush1.bf16.msra.mxu0 0
  %3271 = vmatprep.subr.bf16.mxu0 0
  %3272 = vmatpush1.bf16.msra.mxu0 0
  %3273 = vmatprep.subr.bf16.mxu0 0
  %3274 = vmatpush1.bf16.msra.mxu0 0
  %3275 = vmatprep.subr.bf16.mxu0 0
  %3276 = vmatpush1.bf16.msra.mxu0 0
  %3277 = vmatprep.subr.bf16.mxu0 0
  %3278 = vmatpush1.bf16.msra.mxu0 0
  %3279 = vmatprep.subr.bf16.mxu0 0
  %3280 = vmatpush1.bf16.msra.mxu0 0
  %3281 = vmatprep.subr.bf16.mxu0 0
  %3282 = vmatpush1.bf16.msra.mxu0 0
  %3283 = vmatprep.subr.bf16.mxu0 0
  %3284 = vmatpush1.bf16.msra.mxu0 0
  %3285 = vmatprep.subr.bf16.mxu0 0
  %3286 = vmatpush1.bf16.msra.mxu0 0
  %3287 = vmatprep.subr.bf16.mxu0 0
  %3288 = vmatpush1.bf16.msra.mxu0 0
  %3289 = vmatprep.subr.bf16.mxu0 0
  %3290 = vmatpush1.bf16.msra.mxu0 0
  %3291 = vmatprep.subr.bf16.mxu0 0
  %3292 = vmatpush1.bf16.msra.mxu0 0
  %3293 = vmatprep.subr.bf16.mxu0 0
  %3294 = vmatpush1.bf16.msra.mxu0 0
  %3295 = vmatprep.subr.bf16.mxu0 0
  %3296 = vmatpush1.bf16.msra.mxu0 0
  %3297 = vmatprep.mubr.bf16.mxu0 0
  %3298 = vmatmul.mubr.bf16.gmra.mrb[0].mxu0 %v3220
  %v3299 = vpop.f32.mrb[0].mxu0
  %v3300 = vadd.f32 0.0, %v3299
  %v3301 = vpop.f32.mrb[0].mxu0
  %v3302 = vadd.f32 0.0, %v3301
  %v3303 = vpop.f32.mrb[0].mxu0
  %v3304 = vadd.f32 0.0, %v3303
  %v3305 = vpop.f32.mrb[0].mxu0
  %v3306 = vadd.f32 0.0, %v3305
  %3307 = vdwg.mxu0
  %v3308 = vadd.f32 %v3171, %v3257
  %v3309 = vadd.f32 %v3172, %v3259
  %v3310 = vadd.f32 %v3173, %v3300
  %v3311 = vadd.f32 %v3174, %v3302
  %v3312 = vadd.f32 %v3175, %v3261
  %v3313 = vadd.f32 %v3176, %v3263
  %v3314 = vadd.f32 %v3177, %v3304
  %v3315 = vadd.f32 %v3178, %v3306
  %3316 = vrot.lane.b32.xlu0 %v2259, 111
  %v3317 = vpop.permute.xlu0 %3316
  %3318 = vrot.lane.b32.xlu0 %v2263, 111
  %v3319 = vpop.permute.xlu0 %3318
  %3320 = vrot.lane.b32.xlu0 %v2260, 111
  %v3321 = vpop.permute.xlu0 %3320
  %3322 = vrot.lane.b32.xlu0 %v2264, 111
  %v3323 = vpop.permute.xlu0 %3322
  %3324 = vrot.lane.b32.xlu0 %v2261, 111
  %v3325 = vpop.permute.xlu0 %3324
  %3326 = vrot.lane.b32.xlu0 %v2265, 111
  %v3327 = vpop.permute.xlu0 %3326
  %3328 = vrot.lane.b32.xlu0 %v2262, 111
  %v3329 = vpop.permute.xlu0 %3328
  %3330 = vrot.lane.b32.xlu0 %v2266, 111
  %v3331 = vpop.permute.xlu0 %3330
  %v3332 = vsel %vm1907, %v3325, %v3329
  %v3333 = vsel %vm1907, %v3327, %v3331
  %v3334 = vsel %vm1907, %v3321, %v3325
  %v3335 = vsel %vm1907, %v3323, %v3327
  %v3336 = vsel %vm1907, %v3317, %v3321
  %v3337 = vsel %vm1907, %v3319, %v3323
  %v3338 = vsel %vm1907, %v3329, %v3317
  %v3339 = vsel %vm1907, %v3331, %v3319
  %v3340 = vsel %vm1920, %v3336, 0.0
  %v3341 = vsel %vm1921, %v3334, 0.0
  %v3342 = vsel %vm1922, %v3332, 0.0
  %v3343 = vsel %vm1923, %v3338, 0.0
  %v3344 = vsel %vm1920, %v3337, 0.0
  %v3345 = vsel %vm1921, %v3335, 0.0
  %v3346 = vsel %vm1922, %v3333, 0.0
  %v3347 = vsel %vm1923, %v3339, 0.0
  %s3348 = scalar_lea.vmem %s10, 128
  %v3349 = vld [vmem:[%s3348] sm:$0xff]
  %v3350 = vld [vmem:[%s3348 + $0x8] sm:$0xff]
  %v3351 = vpack.c.bf16 %v3350, %v3349
  %v3352 = vpack.c.bf16 %v3344, %v3340
  %v3353 = vpack.c.bf16 %v3345, %v3341
  %v3354 = vpack.c.bf16 %v3346, %v3342
  %v3355 = vpack.c.bf16 %v3347, %v3343
  %v3357 = vsel %vm857, %v3351, 0
  %3359 = vmatprep.subr.bf16.mxu0 %v3353
  %3360 = vmatpush1.bf16.msra.mxu0 %v3352
  %3361 = vmatprep.subr.bf16.mxu0 0
  %3362 = vmatpush1.bf16.msra.mxu0 0
  %3363 = vmatprep.subr.bf16.mxu0 0
  %3364 = vmatpush1.bf16.msra.mxu0 0
  %3365 = vmatprep.subr.bf16.mxu0 0
  %3366 = vmatpush1.bf16.msra.mxu0 0
  %3367 = vmatprep.subr.bf16.mxu0 0
  %3368 = vmatpush1.bf16.msra.mxu0 0
  %3369 = vmatprep.subr.bf16.mxu0 0
  %3370 = vmatpush1.bf16.msra.mxu0 0
  %3371 = vmatprep.subr.bf16.mxu0 0
  %3372 = vmatpush1.bf16.msra.mxu0 0
  %3373 = vmatprep.subr.bf16.mxu0 0
  %3374 = vmatpush1.bf16.msra.mxu0 0
  %3375 = vmatprep.subr.bf16.mxu0 0
  %3376 = vmatpush1.bf16.msra.mxu0 0
  %3377 = vmatprep.subr.bf16.mxu0 0
  %3378 = vmatpush1.bf16.msra.mxu0 0
  %3379 = vmatprep.subr.bf16.mxu0 0
  %3380 = vmatpush1.bf16.msra.mxu0 0
  %3381 = vmatprep.subr.bf16.mxu0 0
  %3382 = vmatpush1.bf16.msra.mxu0 0
  %3383 = vmatprep.subr.bf16.mxu0 0
  %3384 = vmatpush1.bf16.msra.mxu0 0
  %3385 = vmatprep.subr.bf16.mxu0 0
  %3386 = vmatpush1.bf16.msra.mxu0 0
  %3387 = vmatprep.subr.bf16.mxu0 0
  %3388 = vmatpush1.bf16.msra.mxu0 0
  %3389 = vmatprep.subr.bf16.mxu0 0
  %3390 = vmatpush1.bf16.msra.mxu0 0
  %3391 = vmatprep.mubr.bf16.mxu0 0
  %3392 = vmatmul.mubr.bf16.gmra.mrb[0].mxu0 %v3357
  %v3393 = vpop.f32.mrb[0].mxu0
  %v3394 = vadd.f32 0.0, %v3393
  %v3395 = vpop.f32.mrb[0].mxu0
  %v3396 = vadd.f32 0.0, %v3395
  %v3397 = vpop.f32.mrb[0].mxu0
  %v3398 = vadd.f32 0.0, %v3397
  %v3399 = vpop.f32.mrb[0].mxu0
  %v3400 = vadd.f32 0.0, %v3399
  %3401 = vdwg.mxu0
  %3402 = vmatprep.subr.bf16.mxu0 %v3355
  %3403 = vmatpush1.bf16.msra.mxu0 %v3354
  %3404 = vmatprep.subr.bf16.mxu0 0
  %3405 = vmatpush1.bf16.msra.mxu0 0
  %3406 = vmatprep.subr.bf16.mxu0 0
  %3407 = vmatpush1.bf16.msra.mxu0 0
  %3408 = vmatprep.subr.bf16.mxu0 0
  %3409 = vmatpush1.bf16.msra.mxu0 0
  %3410 = vmatprep.subr.bf16.mxu0 0
  %3411 = vmatpush1.bf16.msra.mxu0 0
  %3412 = vmatprep.subr.bf16.mxu0 0
  %3413 = vmatpush1.bf16.msra.mxu0 0
  %3414 = vmatprep.subr.bf16.mxu0 0
  %3415 = vmatpush1.bf16.msra.mxu0 0
  %3416 = vmatprep.subr.bf16.mxu0 0
  %3417 = vmatpush1.bf16.msra.mxu0 0
  %3418 = vmatprep.subr.bf16.mxu0 0
  %3419 = vmatpush1.bf16.msra.mxu0 0
  %3420 = vmatprep.subr.bf16.mxu0 0
  %3421 = vmatpush1.bf16.msra.mxu0 0
  %3422 = vmatprep.subr.bf16.mxu0 0
  %3423 = vmatpush1.bf16.msra.mxu0 0
  %3424 = vmatprep.subr.bf16.mxu0 0
  %3425 = vmatpush1.bf16.msra.mxu0 0
  %3426 = vmatprep.subr.bf16.mxu0 0
  %3427 = vmatpush1.bf16.msra.mxu0 0
  %3428 = vmatprep.subr.bf16.mxu0 0
  %3429 = vmatpush1.bf16.msra.mxu0 0
  %3430 = vmatprep.subr.bf16.mxu0 0
  %3431 = vmatpush1.bf16.msra.mxu0 0
  %3432 = vmatprep.subr.bf16.mxu0 0
  %3433 = vmatpush1.bf16.msra.mxu0 0
  %3434 = vmatprep.mubr.bf16.mxu0 0
  %3435 = vmatmul.mubr.bf16.gmra.mrb[0].mxu0 %v3357
  %v3436 = vpop.f32.mrb[0].mxu0
  %v3437 = vadd.f32 0.0, %v3436
  %v3438 = vpop.f32.mrb[0].mxu0
  %v3439 = vadd.f32 0.0, %v3438
  %v3440 = vpop.f32.mrb[0].mxu0
  %v3441 = vadd.f32 0.0, %v3440
  %v3442 = vpop.f32.mrb[0].mxu0
  %v3443 = vadd.f32 0.0, %v3442
  %3444 = vdwg.mxu0
  %v3445 = vadd.f32 %v3308, %v3394
  %v3446 = vadd.f32 %v3309, %v3396
  %v3447 = vadd.f32 %v3310, %v3437
  %v3448 = vadd.f32 %v3311, %v3439
  %v3449 = vadd.f32 %v3312, %v3398
  %v3450 = vadd.f32 %v3313, %v3400
  %v3451 = vadd.f32 %v3314, %v3441
  %v3452 = vadd.f32 %v3315, %v3443
  %3454 = vset.pattern.permute.xlu0 0
  %3455 = vperm.xlu0 %3454, %v2267
  %v3456 = vpop.permute.xlu0 %3455
  %3459 = vset.pattern.permute.xlu0 0
  %3460 = vperm.xlu0 %3459, %v2268
  %v3461 = vpop.permute.xlu0 %3460
  %v3463 = vmul.f32 %v3456, %v3445
  %v3464 = vmul.f32 %v3456, %v3446
  %v3465 = vmul.f32 %v3456, %v3447
  %v3466 = vmul.f32 %v3456, %v3448
  %v3467 = vmul.f32 %v3461, %v3449
  %v3468 = vmul.f32 %v3461, %v3450
  %v3469 = vmul.f32 %v3461, %v3451
  %v3470 = vmul.f32 %v3461, %v3452
  %v3471 = vld [vmem:[%s12] sm:$0xff]
  %v3472 = vld [vmem:[%s12 + $0x8] sm:$0xff]
  %3474 = vset.pattern.permute.xlu0 0
  %3475 = vperm.xlu0 %3474, %v3471
  %v3476 = vpop.permute.xlu0 %3475
  %3479 = vset.pattern.permute.xlu0 0
  %3480 = vperm.xlu0 %3479, %v3472
  %v3481 = vpop.permute.xlu0 %3480
  %v3483 = vadd.f32 %v3463, %v3476
  %v3484 = vadd.f32 %v3464, %v3476
  %v3485 = vadd.f32 %v3465, %v3476
  %v3486 = vadd.f32 %v3466, %v3476
  %v3487 = vadd.f32 %v3467, %v3481
  %v3488 = vadd.f32 %v3468, %v3481
  %v3489 = vadd.f32 %v3469, %v3481
  %v3490 = vadd.f32 %v3470, %v3481
  %vm3491 = vcmp.gt.f32.partialorder %v3483, 0.0
  %vm3492 = vcmp.gt.f32.partialorder %v3484, 0.0
  %vm3493 = vcmp.gt.f32.partialorder %v3485, 0.0
  %vm3494 = vcmp.gt.f32.partialorder %v3486, 0.0
  %vm3495 = vcmp.gt.f32.partialorder %v3487, 0.0
  %vm3496 = vcmp.gt.f32.partialorder %v3488, 0.0
  %vm3497 = vcmp.gt.f32.partialorder %v3489, 0.0
  %vm3498 = vcmp.gt.f32.partialorder %v3490, 0.0
  %v3499 = vmul.f32 %v3483, 0.1
  %v3500 = vmul.f32 %v3484, 0.1
  %v3501 = vmul.f32 %v3485, 0.1
  %v3502 = vmul.f32 %v3486, 0.1
  %v3503 = vmul.f32 %v3487, 0.1
  %v3504 = vmul.f32 %v3488, 0.1
  %v3505 = vmul.f32 %v3489, 0.1
  %v3506 = vmul.f32 %v3490, 0.1
  %v3507 = vsel %vm3491, %v3483, %v3499
  %v3508 = vsel %vm3492, %v3484, %v3500
  %v3509 = vsel %vm3493, %v3485, %v3501
  %v3510 = vsel %vm3494, %v3486, %v3502
  %v3511 = vsel %vm3495, %v3487, %v3503
  %v3512 = vsel %vm3496, %v3488, %v3504
  %v3513 = vsel %vm3497, %v3489, %v3505
  %v3514 = vsel %vm3498, %v3490, %v3506
  %v3515 = vld [vmem:[%s13] sm:$0xff]
  %v3516 = vld [vmem:[%s13 + $0x8] sm:$0xff]
  %v3517 = vld [vmem:[%s13 + $0x10] sm:$0xff]
  %v3518 = vpack.c.bf16 %v3516, %v3515
  %v3519 = vpack.c.bf16 %v3517, %v3517
  %v3520 = vpack.c.bf16 %v3511, %v3507
  %v3521 = vpack.c.bf16 %v3512, %v3508
  %v3522 = vpack.c.bf16 %v3513, %v3509
  %v3523 = vpack.c.bf16 %v3514, %v3510
  %v3524 = vld [vmem:[%s14] sm:$0xff]
  %v3525 = vld [vmem:[%s14 + $0x8] sm:$0xff]
  %v3526 = vld [vmem:[%s14 + $0x10] sm:$0xff]
  %3528 = vset.pattern.permute.xlu0 0
  %3529 = vperm.xlu0 %3528, %v3524
  %v3530 = vpop.permute.xlu0 %3529
  %3533 = vset.pattern.permute.xlu0 0
  %3534 = vperm.xlu0 %3533, %v3525
  %v3535 = vpop.permute.xlu0 %3534
  %3538 = vset.pattern.permute.xlu0 0
  %3539 = vperm.xlu0 %3538, %v3526
  %v3540 = vpop.permute.xlu0 %3539
  %v3543 = vsel %vm857, %v3518, 0
  %v3546 = vsel %vm857, %v3519, 0
  %3548 = vmatprep.subr.bf16.mxu0 %v3521
  %3549 = vmatpush1.bf16.msra.mxu0 %v3520
  %3550 = vmatprep.subr.bf16.mxu0 0
  %3551 = vmatpush1.bf16.msra.mxu0 0
  %3552 = vmatprep.subr.bf16.mxu0 0
  %3553 = vmatpush1.bf16.msra.mxu0 0
  %3554 = vmatprep.subr.bf16.mxu0 0
  %3555 = vmatpush1.bf16.msra.mxu0 0
  %3556 = vmatprep.subr.bf16.mxu0 0
  %3557 = vmatpush1.bf16.msra.mxu0 0
  %3558 = vmatprep.subr.bf16.mxu0 0
  %3559 = vmatpush1.bf16.msra.mxu0 0
  %3560 = vmatprep.subr.bf16.mxu0 0
  %3561 = vmatpush1.bf16.msra.mxu0 0
  %3562 = vmatprep.subr.bf16.mxu0 0
  %3563 = vmatpush1.bf16.msra.mxu0 0
  %3564 = vmatprep.subr.bf16.mxu0 0
  %3565 = vmatpush1.bf16.msra.mxu0 0
  %3566 = vmatprep.subr.bf16.mxu0 0
  %3567 = vmatpush1.bf16.msra.mxu0 0
  %3568 = vmatprep.subr.bf16.mxu0 0
  %3569 = vmatpush1.bf16.msra.mxu0 0
  %3570 = vmatprep.subr.bf16.mxu0 0
  %3571 = vmatpush1.bf16.msra.mxu0 0
  %3572 = vmatprep.subr.bf16.mxu0 0
  %3573 = vmatpush1.bf16.msra.mxu0 0
  %3574 = vmatprep.subr.bf16.mxu0 0
  %3575 = vmatpush1.bf16.msra.mxu0 0
  %3576 = vmatprep.subr.bf16.mxu0 0
  %3577 = vmatpush1.bf16.msra.mxu0 0
  %3578 = vmatprep.subr.bf16.mxu0 0
  %3579 = vmatpush1.bf16.msra.mxu0 0
  %3580 = vmatprep.mubr.bf16.mxu0 0
  %3581 = vmatmul.mubr.bf16.gmra.mrb[0].mxu0 %v3543
  %v3582 = vpop.f32.mrb[0].mxu0
  %v3583 = vadd.f32 %v3530, %v3582
  %v3584 = vpop.f32.mrb[0].mxu0
  %v3585 = vadd.f32 %v3530, %v3584
  %v3586 = vpop.f32.mrb[0].mxu0
  %v3587 = vadd.f32 %v3535, %v3586
  %v3588 = vpop.f32.mrb[0].mxu0
  %v3589 = vadd.f32 %v3535, %v3588
  %3590 = vmatprep.mubr.bf16.mxu0 0
  %3591 = vmatmul.mubr.bf16.gmra.mrb[0].mxu0 %v3546
  %v3592 = vpop.f32.mrb[0].mxu0
  %v3593 = vadd.f32 %v3540, %v3592
  %v3594 = vpop.f32.mrb[0].mxu0
  %v3595 = vadd.f32 %v3540, %v3594
  %v3596 = vpop.f32.mrb[0].mxu0
  %v3597 = vpop.f32.mrb[0].mxu0
  %3598 = vdwg.mxu0
  %3599 = vmatprep.subr.bf16.mxu0 %v3523
  %3600 = vmatpush1.bf16.msra.mxu0 %v3522
  %3601 = vmatprep.subr.bf16.mxu0 0
  %3602 = vmatpush1.bf16.msra.mxu0 0
  %3603 = vmatprep.subr.bf16.mxu0 0
  %3604 = vmatpush1.bf16.msra.mxu0 0
  %3605 = vmatprep.subr.bf16.mxu0 0
  %3606 = vmatpush1.bf16.msra.mxu0 0
  %3607 = vmatprep.subr.bf16.mxu0 0
  %3608 = vmatpush1.bf16.msra.mxu0 0
  %3609 = vmatprep.subr.bf16.mxu0 0
  %3610 = vmatpush1.bf16.msra.mxu0 0
  %3611 = vmatprep.subr.bf16.mxu0 0
  %3612 = vmatpush1.bf16.msra.mxu0 0
  %3613 = vmatprep.subr.bf16.mxu0 0
  %3614 = vmatpush1.bf16.msra.mxu0 0
  %3615 = vmatprep.subr.bf16.mxu0 0
  %3616 = vmatpush1.bf16.msra.mxu0 0
  %3617 = vmatprep.subr.bf16.mxu0 0
  %3618 = vmatpush1.bf16.msra.mxu0 0
  %3619 = vmatprep.subr.bf16.mxu0 0
  %3620 = vmatpush1.bf16.msra.mxu0 0
  %3621 = vmatprep.subr.bf16.mxu0 0
  %3622 = vmatpush1.bf16.msra.mxu0 0
  %3623 = vmatprep.subr.bf16.mxu0 0
  %3624 = vmatpush1.bf16.msra.mxu0 0
  %3625 = vmatprep.subr.bf16.mxu0 0
  %3626 = vmatpush1.bf16.msra.mxu0 0
  %3627 = vmatprep.subr.bf16.mxu0 0
  %3628 = vmatpush1.bf16.msra.mxu0 0
  %3629 = vmatprep.subr.bf16.mxu0 0
  %3630 = vmatpush1.bf16.msra.mxu0 0
  %3631 = vmatprep.mubr.bf16.mxu0 0
  %3632 = vmatmul.mubr.bf16.gmra.mrb[0].mxu0 %v3543
  %v3633 = vpop.f32.mrb[0].mxu0
  %v3634 = vadd.f32 %v3530, %v3633
  %v3635 = vpop.f32.mrb[0].mxu0
  %v3636 = vadd.f32 %v3530, %v3635
  %v3637 = vpop.f32.mrb[0].mxu0
  %v3638 = vadd.f32 %v3535, %v3637
  %v3639 = vpop.f32.mrb[0].mxu0
  %v3640 = vadd.f32 %v3535, %v3639
  %3641 = vmatprep.mubr.bf16.mxu0 0
  %3642 = vmatmul.mubr.bf16.gmra.mrb[0].mxu0 %v3546
  %v3643 = vpop.f32.mrb[0].mxu0
  %v3644 = vadd.f32 %v3540, %v3643
  %v3645 = vpop.f32.mrb[0].mxu0
  %v3646 = vadd.f32 %v3540, %v3645
  %v3647 = vpop.f32.mrb[0].mxu0
  %v3648 = vpop.f32.mrb[0].mxu0
  %3649 = vdwg.mxu0
  %v3650 = vshra.s32 %v76, 1
  %v3651 = vshra.s32 %v77, 1
  %v3652 = vshra.s32 %v78, 1
  %v3653 = vshra.s32 %v79, 1
  %v3654 = vshra.s32 %v84, 1
  %v3655 = vshra.s32 %v85, 1
  %v3656 = vshra.s32 %v86, 1
  %v3657 = vshra.s32 %v87, 1
  %v3658 = vlaneseq
  %v3659 = vshrl.u32 %v3658, 7
  %v3660 = vadd.s32 %v3659, 8
  %v3661 = vadd.s32 %v3659, 16
  %vm3662 = vcmp.lt.s32.totalorder %v3659, 7
  %vm3663 = vcmp.lt.s32.totalorder %v3660, 7
  %vm3664 = vcmp.lt.s32.totalorder %v3661, 7
  %vm3665 = vcmp.lt.s32.totalorder %v3659, 14
  %vm3666 = vcmp.lt.s32.totalorder %v3660, 14
  %vm3667 = vcmp.lt.s32.totalorder %v3661, 14
  %v3668 = vsel %vm3665, 1, 2
  %v3669 = vsel %vm3666, 1, 2
  %v3670 = vsel %vm3667, 1, 2
  %v3671 = vsel %vm3662, 0, %v3668
  %v3672 = vsel %vm3663, 0, %v3669
  %v3673 = vsel %vm3664, 0, %v3670
  %v3674 = vmul.u32 %v3671, 7
  %v3675 = vmul.u32 %v3672, 7
  %v3676 = vmul.u32 %v3673, 7
  %v3677 = vsub.s32 %v3659, %v3674
  %v3678 = vsub.s32 %v3660, %v3675
  %v3679 = vsub.s32 %v3661, %v3676
  %vm3680 = vcmp.eq.s32.totalorder %v3671, 0
  %vm3681 = vcmp.eq.s32.totalorder %v3672, 0
  %vm3682 = vcmp.eq.s32.totalorder %v3673, 0
  %vm3683 = vcmp.eq.s32.totalorder %v3671, 1
  %vm3684 = vcmp.eq.s32.totalorder %v3672, 1
  %vm3685 = vcmp.eq.s32.totalorder %v3673, 1
  %v3686 = vsel %vm3683, 23.0, 37.0
  %v3687 = vsel %vm3684, 23.0, 37.0
  %v3688 = vsel %vm3685, 23.0, 37.0
  %v3689 = vsel %vm3680, 10.0, %v3686
  %v3690 = vsel %vm3681, 10.0, %v3687
  %v3691 = vsel %vm3682, 10.0, %v3688
  %v3692 = vsel %vm3683, 27.0, 58.0
  %v3693 = vsel %vm3684, 27.0, 58.0
  %v3694 = vsel %vm3685, 27.0, 58.0
  %v3695 = vsel %vm3680, 14.0, %v3692
  %v3696 = vsel %vm3681, 14.0, %v3693
  %v3697 = vsel %vm3682, 14.0, %v3694
  %v3698 = vcvt.s32.f32 %v3650
  %v3699 = vcvt.s32.f32 %v3651
  %v3700 = vcvt.s32.f32 %v3652
  %v3701 = vcvt.s32.f32 %v3653
  %v3702 = vcvt.s32.f32 %v3654
  %v3703 = vcvt.s32.f32 %v3655
  %v3704 = vcvt.s32.f32 %v3656
  %v3705 = vcvt.s32.f32 %v3657
  %v3706 = vxor.u32 %v3583, 2147483648
  %v3707 = vxor.u32 %v3585, 2147483648
  %v3708 = vxor.u32 %v3634, 2147483648
  %v3709 = vxor.u32 %v3636, 2147483648
  %v3710 = vxor.u32 %v3587, 2147483648
  %v3711 = vxor.u32 %v3589, 2147483648
  %v3712 = vxor.u32 %v3638, 2147483648
  %v3713 = vxor.u32 %v3640, 2147483648
  %v3714 = vxor.u32 %v3593, 2147483648
  %v3715 = vxor.u32 %v3595, 2147483648
  %v3716 = vxor.u32 %v3644, 2147483648
  %v3717 = vxor.u32 %v3646, 2147483648
  %v3718 = vmul.f32 %v3706, 1.442695
  %v3719 = vpow.pop %v3718
  %v3720 = vmul.f32 %v3707, 1.442695
  %v3721 = vpow.pop %v3720
  %v3722 = vmul.f32 %v3708, 1.442695
  %v3723 = vpow.pop %v3722
  %v3724 = vmul.f32 %v3709, 1.442695
  %v3725 = vpow.pop %v3724
  %v3726 = vmul.f32 %v3710, 1.442695
  %v3727 = vpow.pop %v3726
  %v3728 = vmul.f32 %v3711, 1.442695
  %v3729 = vpow.pop %v3728
  %v3730 = vmul.f32 %v3712, 1.442695
  %v3731 = vpow.pop %v3730
  %v3732 = vmul.f32 %v3713, 1.442695
  %v3733 = vpow.pop %v3732
  %v3734 = vmul.f32 %v3714, 1.442695
  %v3735 = vpow.pop %v3734
  %v3736 = vmul.f32 %v3715, 1.442695
  %v3737 = vpow.pop %v3736
  %v3738 = vmul.f32 %v3716, 1.442695
  %v3739 = vpow.pop %v3738
  %v3740 = vmul.f32 %v3717, 1.442695
  %v3741 = vpow.pop %v3740
  %v3742 = vadd.f32 %v3719, 1.0
  %v3743 = vadd.f32 %v3721, 1.0
  %v3744 = vadd.f32 %v3723, 1.0
  %v3745 = vadd.f32 %v3725, 1.0
  %v3746 = vadd.f32 %v3727, 1.0
  %v3747 = vadd.f32 %v3729, 1.0
  %v3748 = vadd.f32 %v3731, 1.0
  %v3749 = vadd.f32 %v3733, 1.0
  %v3750 = vadd.f32 %v3735, 1.0
  %v3751 = vadd.f32 %v3737, 1.0
  %v3752 = vadd.f32 %v3739, 1.0
  %v3753 = vadd.f32 %v3741, 1.0
  %v3754 = vrcp.pop %v3742
  %v3755 = vmul.f32 1.0, %v3754
  %v3756 = vrcp.pop %v3743
  %v3757 = vmul.f32 1.0, %v3756
  %v3758 = vrcp.pop %v3744
  %v3759 = vmul.f32 1.0, %v3758
  %v3760 = vrcp.pop %v3745
  %v3761 = vmul.f32 1.0, %v3760
  %v3762 = vrcp.pop %v3746
  %v3763 = vmul.f32 1.0, %v3762
  %v3764 = vrcp.pop %v3747
  %v3765 = vmul.f32 1.0, %v3764
  %v3766 = vrcp.pop %v3748
  %v3767 = vmul.f32 1.0, %v3766
  %v3768 = vrcp.pop %v3749
  %v3769 = vmul.f32 1.0, %v3768
  %v3770 = vrcp.pop %v3750
  %v3771 = vmul.f32 1.0, %v3770
  %v3772 = vrcp.pop %v3751
  %v3773 = vmul.f32 1.0, %v3772
  %v3774 = vrcp.pop %v3752
  %v3775 = vmul.f32 1.0, %v3774
  %v3776 = vrcp.pop %v3753
  %v3777 = vmul.f32 1.0, %v3776
  %v3778 = vmul.f32 %v3583, 1.442695
  %v3779 = vpow.pop %v3778
  %v3780 = vmul.f32 %v3585, 1.442695
  %v3781 = vpow.pop %v3780
  %v3782 = vmul.f32 %v3634, 1.442695
  %v3783 = vpow.pop %v3782
  %v3784 = vmul.f32 %v3636, 1.442695
  %v3785 = vpow.pop %v3784
  %v3786 = vmul.f32 %v3587, 1.442695
  %v3787 = vpow.pop %v3786
  %v3788 = vmul.f32 %v3589, 1.442695
  %v3789 = vpow.pop %v3788
  %v3790 = vmul.f32 %v3638, 1.442695
  %v3791 = vpow.pop %v3790
  %v3792 = vmul.f32 %v3640, 1.442695
  %v3793 = vpow.pop %v3792
  %v3794 = vmul.f32 %v3593, 1.442695
  %v3795 = vpow.pop %v3794
  %v3796 = vmul.f32 %v3595, 1.442695
  %v3797 = vpow.pop %v3796
  %v3798 = vmul.f32 %v3644, 1.442695
  %v3799 = vpow.pop %v3798
  %v3800 = vmul.f32 %v3646, 1.442695
  %v3801 = vpow.pop %v3800
  %vm3802 = vcmp.eq.s32.totalorder %v3677, 0
  %vm3803 = vcmp.eq.s32.totalorder %v3678, 0
  %vm3804 = vcmp.eq.s32.totalorder %v3679, 0
  %v3805 = vadd.f32 %v3755, %v3698
  %v3806 = vadd.f32 %v3757, %v3699
  %v3807 = vadd.f32 %v3759, %v3700
  %v3808 = vadd.f32 %v3761, %v3701
  %v3809 = vadd.f32 %v3763, %v3698
  %v3810 = vadd.f32 %v3765, %v3699
  %v3811 = vadd.f32 %v3767, %v3700
  %v3812 = vadd.f32 %v3769, %v3701
  %v3813 = vadd.f32 %v3771, %v3698
  %v3814 = vadd.f32 %v3773, %v3699
  %v3815 = vadd.f32 %v3775, %v3700
  %v3816 = vadd.f32 %v3777, %v3701
  %v3817 = vmul.f32 %v3805, 4.0
  %v3818 = vmul.f32 %v3806, 4.0
  %v3819 = vmul.f32 %v3807, 4.0
  %v3820 = vmul.f32 %v3808, 4.0
  %v3821 = vmul.f32 %v3809, 4.0
  %v3822 = vmul.f32 %v3810, 4.0
  %v3823 = vmul.f32 %v3811, 4.0
  %v3824 = vmul.f32 %v3812, 4.0
  %v3825 = vmul.f32 %v3813, 4.0
  %v3826 = vmul.f32 %v3814, 4.0
  %v3827 = vmul.f32 %v3815, 4.0
  %v3828 = vmul.f32 %v3816, 4.0
  %vm3829 = vcmp.eq.s32.totalorder %v3677, 1
  %vm3830 = vcmp.eq.s32.totalorder %v3678, 1
  %vm3831 = vcmp.eq.s32.totalorder %v3679, 1
  %v3832 = vadd.f32 %v3755, %v3702
  %v3833 = vadd.f32 %v3757, %v3703
  %v3834 = vadd.f32 %v3759, %v3704
  %v3835 = vadd.f32 %v3761, %v3705
  %v3836 = vadd.f32 %v3763, %v3702
  %v3837 = vadd.f32 %v3765, %v3703
  %v3838 = vadd.f32 %v3767, %v3704
  %v3839 = vadd.f32 %v3769, %v3705
  %v3840 = vadd.f32 %v3771, %v3702
  %v3841 = vadd.f32 %v3773, %v3703
  %v3842 = vadd.f32 %v3775, %v3704
  %v3843 = vadd.f32 %v3777, %v3705
  %v3844 = vmul.f32 %v3832, 4.0
  %v3845 = vmul.f32 %v3833, 4.0
  %v3846 = vmul.f32 %v3834, 4.0
  %v3847 = vmul.f32 %v3835, 4.0
  %v3848 = vmul.f32 %v3836, 4.0
  %v3849 = vmul.f32 %v3837, 4.0
  %v3850 = vmul.f32 %v3838, 4.0
  %v3851 = vmul.f32 %v3839, 4.0
  %v3852 = vmul.f32 %v3840, 4.0
  %v3853 = vmul.f32 %v3841, 4.0
  %v3854 = vmul.f32 %v3842, 4.0
  %v3855 = vmul.f32 %v3843, 4.0
  %vm3856 = vcmp.eq.s32.totalorder %v3677, 2
  %vm3857 = vcmp.eq.s32.totalorder %v3678, 2
  %vm3858 = vcmp.eq.s32.totalorder %v3679, 2
  %v3859 = vmul.f32 %v3779, %v3689
  %v3860 = vmul.f32 %v3781, %v3689
  %v3861 = vmul.f32 %v3783, %v3689
  %v3862 = vmul.f32 %v3785, %v3689
  %v3863 = vmul.f32 %v3787, %v3690
  %v3864 = vmul.f32 %v3789, %v3690
  %v3865 = vmul.f32 %v3791, %v3690
  %v3866 = vmul.f32 %v3793, %v3690
  %v3867 = vmul.f32 %v3795, %v3691
  %v3868 = vmul.f32 %v3797, %v3691
  %v3869 = vmul.f32 %v3799, %v3691
  %v3870 = vmul.f32 %v3801, %v3691
  %vm3871 = vcmp.eq.s32.totalorder %v3677, 3
  %vm3872 = vcmp.eq.s32.totalorder %v3678, 3
  %vm3873 = vcmp.eq.s32.totalorder %v3679, 3
  %v3874 = vmul.f32 %v3779, %v3695
  %v3875 = vmul.f32 %v3781, %v3695
  %v3876 = vmul.f32 %v3783, %v3695
  %v3877 = vmul.f32 %v3785, %v3695
  %v3878 = vmul.f32 %v3787, %v3696
  %v3879 = vmul.f32 %v3789, %v3696
  %v3880 = vmul.f32 %v3791, %v3696
  %v3881 = vmul.f32 %v3793, %v3696
  %v3882 = vmul.f32 %v3795, %v3697
  %v3883 = vmul.f32 %v3797, %v3697
  %v3884 = vmul.f32 %v3799, %v3697
  %v3885 = vmul.f32 %v3801, %v3697
  %v3886 = vsel %vm3871, 1, 0
  %v3887 = vsel %vm3872, 1, 0
  %v3888 = vsel %vm3873, 1, 0
  %vm3889 = vcmp.eq.s32.totalorder %v3886, 1
  %vm3890 = vcmp.eq.s32.totalorder %v3887, 1
  %vm3891 = vcmp.eq.s32.totalorder %v3888, 1
  %v3892 = vsel %vm3889, %v3874, %v3755
  %v3893 = vsel %vm3889, %v3875, %v3757
  %v3894 = vsel %vm3889, %v3876, %v3759
  %v3895 = vsel %vm3889, %v3877, %v3761
  %v3896 = vsel %vm3890, %v3878, %v3763
  %v3897 = vsel %vm3890, %v3879, %v3765
  %v3898 = vsel %vm3890, %v3880, %v3767
  %v3899 = vsel %vm3890, %v3881, %v3769
  %v3900 = vsel %vm3891, %v3882, %v3771
  %v3901 = vsel %vm3891, %v3883, %v3773
  %v3902 = vsel %vm3891, %v3884, %v3775
  %v3903 = vsel %vm3891, %v3885, %v3777
  %v3904 = vsel %vm3856, 1, 0
  %v3905 = vsel %vm3857, 1, 0
  %v3906 = vsel %vm3858, 1, 0
  %vm3907 = vcmp.eq.s32.totalorder %v3904, 1
  %vm3908 = vcmp.eq.s32.totalorder %v3905, 1
  %vm3909 = vcmp.eq.s32.totalorder %v3906, 1
  %v3910 = vsel %vm3907, %v3859, %v3892
  %v3911 = vsel %vm3907, %v3860, %v3893
  %v3912 = vsel %vm3907, %v3861, %v3894
  %v3913 = vsel %vm3907, %v3862, %v3895
  %v3914 = vsel %vm3908, %v3863, %v3896
  %v3915 = vsel %vm3908, %v3864, %v3897
  %v3916 = vsel %vm3908, %v3865, %v3898
  %v3917 = vsel %vm3908, %v3866, %v3899
  %v3918 = vsel %vm3909, %v3867, %v3900
  %v3919 = vsel %vm3909, %v3868, %v3901
  %v3920 = vsel %vm3909, %v3869, %v3902
  %v3921 = vsel %vm3909, %v3870, %v3903
  %v3922 = vsel %vm3829, 1, 0
  %v3923 = vsel %vm3830, 1, 0
  %v3924 = vsel %vm3831, 1, 0
  %vm3925 = vcmp.eq.s32.totalorder %v3922, 1
  %vm3926 = vcmp.eq.s32.totalorder %v3923, 1
  %vm3927 = vcmp.eq.s32.totalorder %v3924, 1
  %v3928 = vsel %vm3925, %v3844, %v3910
  %v3929 = vsel %vm3925, %v3845, %v3911
  %v3930 = vsel %vm3925, %v3846, %v3912
  %v3931 = vsel %vm3925, %v3847, %v3913
  %v3932 = vsel %vm3926, %v3848, %v3914
  %v3933 = vsel %vm3926, %v3849, %v3915
  %v3934 = vsel %vm3926, %v3850, %v3916
  %v3935 = vsel %vm3926, %v3851, %v3917
  %v3936 = vsel %vm3927, %v3852, %v3918
  %v3937 = vsel %vm3927, %v3853, %v3919
  %v3938 = vsel %vm3927, %v3854, %v3920
  %v3939 = vsel %vm3927, %v3855, %v3921
  %v3940 = vsel %vm3802, 1, 0
  %v3941 = vsel %vm3803, 1, 0
  %v3942 = vsel %vm3804, 1, 0
  %vm3943 = vcmp.eq.s32.totalorder %v3940, 1
  %vm3944 = vcmp.eq.s32.totalorder %v3941, 1
  %vm3945 = vcmp.eq.s32.totalorder %v3942, 1
  %v3946 = vsel %vm3943, %v3817, %v3928
  %v3947 = vsel %vm3943, %v3818, %v3929
  %v3948 = vsel %vm3943, %v3819, %v3930
  %v3949 = vsel %vm3943, %v3820, %v3931
  %v3950 = vsel %vm3944, %v3821, %v3932
  %v3951 = vsel %vm3944, %v3822, %v3933
  %v3952 = vsel %vm3944, %v3823, %v3934
  %v3953 = vsel %vm3944, %v3824, %v3935
  %v3954 = vsel %vm3945, %v3825, %v3936
  %v3955 = vsel %vm3945, %v3826, %v3937
  %v3956 = vsel %vm3945, %v3827, %v3938
  %v3957 = vsel %vm3945, %v3828, %v3939
  %3958 = vst [vmem:[%s21] sm:$0xff] %v3946
  %3959 = vst [vmem:[%s21 + $0x8] sm:$0xff] %v3947
  %3960 = vst [vmem:[%s21 + $0x10] sm:$0xff] %v3948
  %3961 = vst [vmem:[%s21 + $0x18] sm:$0xff] %v3949
  %3962 = vst [vmem:[%s21 + $0x20] sm:$0xff] %v3950
  %3963 = vst [vmem:[%s21 + $0x28] sm:$0xff] %v3951
  %3964 = vst [vmem:[%s21 + $0x30] sm:$0xff] %v3952
  %3965 = vst [vmem:[%s21 + $0x38] sm:$0xff] %v3953
  %3966 = vst [vmem:[%s21 + $0x40] sm:$0xff] %v3954
  %3967 = vst [vmem:[%s21 + $0x48] sm:$0xff] %v3955
  %3968 = vst [vmem:[%s21 + $0x50] sm:$0xff] %v3956
  %3969 = vst [vmem:[%s21 + $0x58] sm:$0xff] %v3957
  %v3970 = vand.u32 %v76, 1
  %v3971 = vand.u32 %v77, 1
  %v3972 = vand.u32 %v78, 1
  %v3973 = vand.u32 %v79, 1
  %vm3974 = vcmp.eq.s32.totalorder %v3970, 1
  %vm3975 = vcmp.eq.s32.totalorder %v3971, 1
  %vm3976 = vcmp.eq.s32.totalorder %v3972, 1
  %vm3977 = vcmp.eq.s32.totalorder %v3973, 1
  %v3978 = vand.u32 %v84, 1
  %v3979 = vand.u32 %v85, 1
  %v3980 = vand.u32 %v86, 1
  %v3981 = vand.u32 %v87, 1
  %vm3982 = vcmp.eq.s32.totalorder %v3978, 1
  %vm3983 = vcmp.eq.s32.totalorder %v3979, 1
  %vm3984 = vcmp.eq.s32.totalorder %v3980, 1
  %vm3985 = vcmp.eq.s32.totalorder %v3981, 1
  %3986 = vrot.lane.b32.xlu0 %v3507, 1
  %v3987 = vpop.permute.xlu0 %3986
  %3988 = vrot.lane.b32.xlu0 %v3511, 1
  %v3989 = vpop.permute.xlu0 %3988
  %3990 = vrot.lane.b32.xlu0 %v3508, 1
  %v3991 = vpop.permute.xlu0 %3990
  %3992 = vrot.lane.b32.xlu0 %v3512, 1
  %v3993 = vpop.permute.xlu0 %3992
  %3994 = vrot.lane.b32.xlu0 %v3509, 1
  %v3995 = vpop.permute.xlu0 %3994
  %3996 = vrot.lane.b32.xlu0 %v3513, 1
  %v3997 = vpop.permute.xlu0 %3996
  %3998 = vrot.lane.b32.xlu0 %v3510, 1
  %v3999 = vpop.permute.xlu0 %3998
  %4000 = vrot.lane.b32.xlu0 %v3514, 1
  %v4001 = vpop.permute.xlu0 %4000
  %v4002 = vsel %vm1206, %v3995, %v3999
  %v4003 = vsel %vm1206, %v3997, %v4001
  %v4004 = vsel %vm1206, %v3991, %v3995
  %v4005 = vsel %vm1206, %v3993, %v3997
  %v4006 = vsel %vm1206, %v3987, %v3991
  %v4007 = vsel %vm1206, %v3989, %v3993
  %v4008 = vsel %vm1206, %v3999, %v3987
  %v4009 = vsel %vm1206, %v4001, %v3989
  %v4010 = vsel %vm3974, 1, 0
  %v4011 = vsel %vm3975, 1, 0
  %v4012 = vsel %vm3976, 1, 0
  %v4013 = vsel %vm3977, 1, 0
  %vm4014 = vcmp.eq.s32.totalorder %v4010, 1
  %vm4015 = vcmp.eq.s32.totalorder %v4011, 1
  %vm4016 = vcmp.eq.s32.totalorder %v4012, 1
  %vm4017 = vcmp.eq.s32.totalorder %v4013, 1
  %v4018 = vsel %vm4014, %v4008, %v3507
  %v4019 = vsel %vm4015, %v4006, %v3508
  %v4020 = vsel %vm4016, %v4004, %v3509
  %v4021 = vsel %vm4017, %v4002, %v3510
  %v4022 = vsel %vm4014, %v4009, %v3511
  %v4023 = vsel %vm4015, %v4007, %v3512
  %v4024 = vsel %vm4016, %v4005, %v3513
  %v4025 = vsel %vm4017, %v4003, %v3514
  %4026 = vrot.lane.b32.xlu0 %v4018, 16
  %v4027 = vpop.permute.xlu0 %4026
  %4028 = vrot.lane.b32.xlu0 %v4022, 16
  %v4029 = vpop.permute.xlu0 %4028
  %4030 = vrot.lane.b32.xlu0 %v4019, 16
  %v4031 = vpop.permute.xlu0 %4030
  %4032 = vrot.lane.b32.xlu0 %v4023, 16
  %v4033 = vpop.permute.xlu0 %4032
  %4034 = vrot.lane.b32.xlu0 %v4020, 16
  %v4035 = vpop.permute.xlu0 %4034
  %4036 = vrot.lane.b32.xlu0 %v4024, 16
  %v4037 = vpop.permute.xlu0 %4036
  %4038 = vrot.lane.b32.xlu0 %v4021, 16
  %v4039 = vpop.permute.xlu0 %4038
  %4040 = vrot.lane.b32.xlu0 %v4025, 16
  %v4041 = vpop.permute.xlu0 %4040
  %v4042 = vsel %vm824, %v4035, %v4039
  %v4043 = vsel %vm824, %v4037, %v4041
  %v4044 = vsel %vm824, %v4031, %v4035
  %v4045 = vsel %vm824, %v4033, %v4037
  %v4046 = vsel %vm824, %v4027, %v4031
  %v4047 = vsel %vm824, %v4029, %v4033
  %v4048 = vsel %vm824, %v4039, %v4027
  %v4049 = vsel %vm824, %v4041, %v4029
  %v4050 = vsel %vm3982, 1, 0
  %v4051 = vsel %vm3983, 1, 0
  %v4052 = vsel %vm3984, 1, 0
  %v4053 = vsel %vm3985, 1, 0
  %vm4054 = vcmp.eq.s32.totalorder %v4050, 1
  %vm4055 = vcmp.eq.s32.totalorder %v4051, 1
  %vm4056 = vcmp.eq.s32.totalorder %v4052, 1
  %vm4057 = vcmp.eq.s32.totalorder %v4053, 1
  %v4058 = vsel %vm4054, %v4048, %v4018
  %v4059 = vsel %vm4055, %v4046, %v4019
  %v4060 = vsel %vm4056, %v4044, %v4020
  %v4061 = vsel %vm4057, %v4042, %v4021
  %v4062 = vsel %vm4054, %v4049, %v4022
  %v4063 = vsel %vm4055, %v4047, %v4023
  %v4064 = vsel %vm4056, %v4045, %v4024
  %v4065 = vsel %vm4057, %v4043, %v4025
  %v4066 = vld [vmem:[%s17] sm:$0xff]
  %v4067 = vld [vmem:[%s17 + $0x8] sm:$0xff]
  %4068 = vrot.lane.b32.xlu0 %v4058, 17
  %v4069 = vpop.permute.xlu0 %4068
  %4070 = vrot.lane.b32.xlu0 %v4062, 17
  %v4071 = vpop.permute.xlu0 %4070
  %4072 = vrot.lane.b32.xlu0 %v4059, 17
  %v4073 = vpop.permute.xlu0 %4072
  %4074 = vrot.lane.b32.xlu0 %v4063, 17
  %v4075 = vpop.permute.xlu0 %4074
  %4076 = vrot.lane.b32.xlu0 %v4060, 17
  %v4077 = vpop.permute.xlu0 %4076
  %4078 = vrot.lane.b32.xlu0 %v4064, 17
  %v4079 = vpop.permute.xlu0 %4078
  %4080 = vrot.lane.b32.xlu0 %v4061, 17
  %v4081 = vpop.permute.xlu0 %4080
  %4082 = vrot.lane.b32.xlu0 %v4065, 17
  %v4083 = vpop.permute.xlu0 %4082
  %v4084 = vsel %vm776, %v4077, %v4081
  %v4085 = vsel %vm776, %v4079, %v4083
  %v4086 = vsel %vm776, %v4073, %v4077
  %v4087 = vsel %vm776, %v4075, %v4079
  %v4088 = vsel %vm776, %v4069, %v4073
  %v4089 = vsel %vm776, %v4071, %v4075
  %v4090 = vsel %vm776, %v4081, %v4069
  %v4091 = vsel %vm776, %v4083, %v4071
  %v4092 = vsel %vm789, %v4090, 0.0
  %v4093 = vsel %vm790, %v4088, 0.0
  %v4094 = vsel %vm791, %v4086, 0.0
  %v4095 = vsel %vm792, %v4084, 0.0
  %v4096 = vsel %vm789, %v4091, 0.0
  %v4097 = vsel %vm790, %v4089, 0.0
  %v4098 = vsel %vm791, %v4087, 0.0
  %v4099 = vsel %vm792, %v4085, 0.0
  %v4100 = vld [vmem:[%s15] sm:$0xff]
  %v4101 = vld [vmem:[%s15 + $0x8] sm:$0xff]
  %v4102 = vpack.c.bf16 %v4101, %v4100
  %v4103 = vpack.c.bf16 %v4096, %v4092
  %v4104 = vpack.c.bf16 %v4097, %v4093
  %v4105 = vpack.c.bf16 %v4098, %v4094
  %v4106 = vpack.c.bf16 %v4099, %v4095
  %v4107 = vld [vmem:[%s16] sm:$0xff]
  %v4108 = vld [vmem:[%s16 + $0x8] sm:$0xff]
  %v4109 = vpack.c.bf16 %v4108, %v4107
  %v4111 = vsel %vm857, %v4109, 0
  %4113 = vmatprep.subr.bf16.mxu0 %v2305
  %4114 = vmatpush1.bf16.msra.mxu0 %v2304
  %4115 = vmatprep.subr.bf16.mxu0 0
  %4116 = vmatpush1.bf16.msra.mxu0 0
  %4117 = vmatprep.subr.bf16.mxu0 0
  %4118 = vmatpush1.bf16.msra.mxu0 0
  %4119 = vmatprep.subr.bf16.mxu0 0
  %4120 = vmatpush1.bf16.msra.mxu0 0
  %4121 = vmatprep.subr.bf16.mxu0 0
  %4122 = vmatpush1.bf16.msra.mxu0 0
  %4123 = vmatprep.subr.bf16.mxu0 0
  %4124 = vmatpush1.bf16.msra.mxu0 0
  %4125 = vmatprep.subr.bf16.mxu0 0
  %4126 = vmatpush1.bf16.msra.mxu0 0
  %4127 = vmatprep.subr.bf16.mxu0 0
  %4128 = vmatpush1.bf16.msra.mxu0 0
  %4129 = vmatprep.subr.bf16.mxu0 0
  %4130 = vmatpush1.bf16.msra.mxu0 0
  %4131 = vmatprep.subr.bf16.mxu0 0
  %4132 = vmatpush1.bf16.msra.mxu0 0
  %4133 = vmatprep.subr.bf16.mxu0 0
  %4134 = vmatpush1.bf16.msra.mxu0 0
  %4135 = vmatprep.subr.bf16.mxu0 0
  %4136 = vmatpush1.bf16.msra.mxu0 0
  %4137 = vmatprep.subr.bf16.mxu0 0
  %4138 = vmatpush1.bf16.msra.mxu0 0
  %4139 = vmatprep.subr.bf16.mxu0 0
  %4140 = vmatpush1.bf16.msra.mxu0 0
  %4141 = vmatprep.subr.bf16.mxu0 0
  %4142 = vmatpush1.bf16.msra.mxu0 0
  %4143 = vmatprep.subr.bf16.mxu0 0
  %4144 = vmatpush1.bf16.msra.mxu0 0
  %4145 = vmatprep.mubr.bf16.mxu0 0
  %4146 = vmatmul.mubr.bf16.gmra.mrb[0].mxu0 %v4111
  %v4147 = vpop.f32.mrb[0].mxu0
  %v4148 = vadd.f32 0.0, %v4147
  %v4149 = vpop.f32.mrb[0].mxu0
  %v4150 = vadd.f32 0.0, %v4149
  %v4151 = vpop.f32.mrb[0].mxu0
  %v4152 = vadd.f32 0.0, %v4151
  %v4153 = vpop.f32.mrb[0].mxu0
  %v4154 = vadd.f32 0.0, %v4153
  %4155 = vdwg.mxu0
  %4156 = vmatprep.subr.bf16.mxu0 %v2307
  %4157 = vmatpush1.bf16.msra.mxu0 %v2306
  %4158 = vmatprep.subr.bf16.mxu0 0
  %4159 = vmatpush1.bf16.msra.mxu0 0
  %4160 = vmatprep.subr.bf16.mxu0 0
  %4161 = vmatpush1.bf16.msra.mxu0 0
  %4162 = vmatprep.subr.bf16.mxu0 0
  %4163 = vmatpush1.bf16.msra.mxu0 0
  %4164 = vmatprep.subr.bf16.mxu0 0
  %4165 = vmatpush1.bf16.msra.mxu0 0
  %4166 = vmatprep.subr.bf16.mxu0 0
  %4167 = vmatpush1.bf16.msra.mxu0 0
  %4168 = vmatprep.subr.bf16.mxu0 0
  %4169 = vmatpush1.bf16.msra.mxu0 0
  %4170 = vmatprep.subr.bf16.mxu0 0
  %4171 = vmatpush1.bf16.msra.mxu0 0
  %4172 = vmatprep.subr.bf16.mxu0 0
  %4173 = vmatpush1.bf16.msra.mxu0 0
  %4174 = vmatprep.subr.bf16.mxu0 0
  %4175 = vmatpush1.bf16.msra.mxu0 0
  %4176 = vmatprep.subr.bf16.mxu0 0
  %4177 = vmatpush1.bf16.msra.mxu0 0
  %4178 = vmatprep.subr.bf16.mxu0 0
  %4179 = vmatpush1.bf16.msra.mxu0 0
  %4180 = vmatprep.subr.bf16.mxu0 0
  %4181 = vmatpush1.bf16.msra.mxu0 0
  %4182 = vmatprep.subr.bf16.mxu0 0
  %4183 = vmatpush1.bf16.msra.mxu0 0
  %4184 = vmatprep.subr.bf16.mxu0 0
  %4185 = vmatpush1.bf16.msra.mxu0 0
  %4186 = vmatprep.subr.bf16.mxu0 0
  %4187 = vmatpush1.bf16.msra.mxu0 0
  %4188 = vmatprep.mubr.bf16.mxu0 0
  %4189 = vmatmul.mubr.bf16.gmra.mrb[0].mxu0 %v4111
  %v4190 = vpop.f32.mrb[0].mxu0
  %v4191 = vadd.f32 0.0, %v4190
  %v4192 = vpop.f32.mrb[0].mxu0
  %v4193 = vadd.f32 0.0, %v4192
  %v4194 = vpop.f32.mrb[0].mxu0
  %v4195 = vadd.f32 0.0, %v4194
  %v4196 = vpop.f32.mrb[0].mxu0
  %v4197 = vadd.f32 0.0, %v4196
  %4198 = vdwg.mxu0
  %v4200 = vsel %vm857, %v4102, 0
  %4202 = vmatprep.subr.bf16.mxu0 %v4104
  %4203 = vmatpush1.bf16.msra.mxu0 %v4103
  %4204 = vmatprep.subr.bf16.mxu0 0
  %4205 = vmatpush1.bf16.msra.mxu0 0
  %4206 = vmatprep.subr.bf16.mxu0 0
  %4207 = vmatpush1.bf16.msra.mxu0 0
  %4208 = vmatprep.subr.bf16.mxu0 0
  %4209 = vmatpush1.bf16.msra.mxu0 0
  %4210 = vmatprep.subr.bf16.mxu0 0
  %4211 = vmatpush1.bf16.msra.mxu0 0
  %4212 = vmatprep.subr.bf16.mxu0 0
  %4213 = vmatpush1.bf16.msra.mxu0 0
  %4214 = vmatprep.subr.bf16.mxu0 0
  %4215 = vmatpush1.bf16.msra.mxu0 0
  %4216 = vmatprep.subr.bf16.mxu0 0
  %4217 = vmatpush1.bf16.msra.mxu0 0
  %4218 = vmatprep.subr.bf16.mxu0 0
  %4219 = vmatpush1.bf16.msra.mxu0 0
  %4220 = vmatprep.subr.bf16.mxu0 0
  %4221 = vmatpush1.bf16.msra.mxu0 0
  %4222 = vmatprep.subr.bf16.mxu0 0
  %4223 = vmatpush1.bf16.msra.mxu0 0
  %4224 = vmatprep.subr.bf16.mxu0 0
  %4225 = vmatpush1.bf16.msra.mxu0 0
  %4226 = vmatprep.subr.bf16.mxu0 0
  %4227 = vmatpush1.bf16.msra.mxu0 0
  %4228 = vmatprep.subr.bf16.mxu0 0
  %4229 = vmatpush1.bf16.msra.mxu0 0
  %4230 = vmatprep.subr.bf16.mxu0 0
  %4231 = vmatpush1.bf16.msra.mxu0 0
  %4232 = vmatprep.subr.bf16.mxu0 0
  %4233 = vmatpush1.bf16.msra.mxu0 0
  %4234 = vmatprep.mubr.bf16.mxu0 0
  %4235 = vmatmul.mubr.bf16.gmra.mrb[0].mxu0 %v4200
  %v4236 = vpop.f32.mrb[0].mxu0
  %v4237 = vadd.f32 %v4148, %v4236
  %v4238 = vpop.f32.mrb[0].mxu0
  %v4239 = vadd.f32 %v4150, %v4238
  %v4240 = vpop.f32.mrb[0].mxu0
  %v4241 = vadd.f32 %v4152, %v4240
  %v4242 = vpop.f32.mrb[0].mxu0
  %v4243 = vadd.f32 %v4154, %v4242
  %4244 = vdwg.mxu0
  %4245 = vmatprep.subr.bf16.mxu0 %v4106
  %4246 = vmatpush1.bf16.msra.mxu0 %v4105
  %4247 = vmatprep.subr.bf16.mxu0 0
  %4248 = vmatpush1.bf16.msra.mxu0 0
  %4249 = vmatprep.subr.bf16.mxu0 0
  %4250 = vmatpush1.bf16.msra.mxu0 0
  %4251 = vmatprep.subr.bf16.mxu0 0
  %4252 = vmatpush1.bf16.msra.mxu0 0
  %4253 = vmatprep.subr.bf16.mxu0 0
  %4254 = vmatpush1.bf16.msra.mxu0 0
  %4255 = vmatprep.subr.bf16.mxu0 0
  %4256 = vmatpush1.bf16.msra.mxu0 0
  %4257 = vmatprep.subr.bf16.mxu0 0
  %4258 = vmatpush1.bf16.msra.mxu0 0
  %4259 = vmatprep.subr.bf16.mxu0 0
  %4260 = vmatpush1.bf16.msra.mxu0 0
  %4261 = vmatprep.subr.bf16.mxu0 0
  %4262 = vmatpush1.bf16.msra.mxu0 0
  %4263 = vmatprep.subr.bf16.mxu0 0
  %4264 = vmatpush1.bf16.msra.mxu0 0
  %4265 = vmatprep.subr.bf16.mxu0 0
  %4266 = vmatpush1.bf16.msra.mxu0 0
  %4267 = vmatprep.subr.bf16.mxu0 0
  %4268 = vmatpush1.bf16.msra.mxu0 0
  %4269 = vmatprep.subr.bf16.mxu0 0
  %4270 = vmatpush1.bf16.msra.mxu0 0
  %4271 = vmatprep.subr.bf16.mxu0 0
  %4272 = vmatpush1.bf16.msra.mxu0 0
  %4273 = vmatprep.subr.bf16.mxu0 0
  %4274 = vmatpush1.bf16.msra.mxu0 0
  %4275 = vmatprep.subr.bf16.mxu0 0
  %4276 = vmatpush1.bf16.msra.mxu0 0
  %4277 = vmatprep.mubr.bf16.mxu0 0
  %4278 = vmatmul.mubr.bf16.gmra.mrb[0].mxu0 %v4200
  %v4279 = vpop.f32.mrb[0].mxu0
  %v4280 = vadd.f32 %v4191, %v4279
  %v4281 = vpop.f32.mrb[0].mxu0
  %v4282 = vadd.f32 %v4193, %v4281
  %v4283 = vpop.f32.mrb[0].mxu0
  %v4284 = vadd.f32 %v4195, %v4283
  %v4285 = vpop.f32.mrb[0].mxu0
  %v4286 = vadd.f32 %v4197, %v4285
  %4287 = vdwg.mxu0
  %4288 = vrot.lane.b32.xlu0 %v4058, 16
  %v4289 = vpop.permute.xlu0 %4288
  %4290 = vrot.lane.b32.xlu0 %v4062, 16
  %v4291 = vpop.permute.xlu0 %4290
  %4292 = vrot.lane.b32.xlu0 %v4059, 16
  %v4293 = vpop.permute.xlu0 %4292
  %4294 = vrot.lane.b32.xlu0 %v4063, 16
  %v4295 = vpop.permute.xlu0 %4294
  %4296 = vrot.lane.b32.xlu0 %v4060, 16
  %v4297 = vpop.permute.xlu0 %4296
  %4298 = vrot.lane.b32.xlu0 %v4064, 16
  %v4299 = vpop.permute.xlu0 %4298
  %4300 = vrot.lane.b32.xlu0 %v4061, 16
  %v4301 = vpop.permute.xlu0 %4300
  %4302 = vrot.lane.b32.xlu0 %v4065, 16
  %v4303 = vpop.permute.xlu0 %4302
  %v4304 = vsel %vm824, %v4297, %v4301
  %v4305 = vsel %vm824, %v4299, %v4303
  %v4306 = vsel %vm824, %v4293, %v4297
  %v4307 = vsel %vm824, %v4295, %v4299
  %v4308 = vsel %vm824, %v4289, %v4293
  %v4309 = vsel %vm824, %v4291, %v4295
  %v4310 = vsel %vm824, %v4301, %v4289
  %v4311 = vsel %vm824, %v4303, %v4291
  %v4312 = vsel %vm837, %v4310, 0.0
  %v4313 = vsel %vm838, %v4308, 0.0
  %v4314 = vsel %vm839, %v4306, 0.0
  %v4315 = vsel %vm840, %v4304, 0.0
  %v4316 = vsel %vm837, %v4311, 0.0
  %v4317 = vsel %vm838, %v4309, 0.0
  %v4318 = vsel %vm839, %v4307, 0.0
  %v4319 = vsel %vm840, %v4305, 0.0
  %s4320 = scalar_lea.vmem %s15, 16
  %v4321 = vld [vmem:[%s4320] sm:$0xff]
  %v4322 = vld [vmem:[%s4320 + $0x8] sm:$0xff]
  %v4323 = vpack.c.bf16 %v4322, %v4321
  %v4324 = vpack.c.bf16 %v4316, %v4312
  %v4325 = vpack.c.bf16 %v4317, %v4313
  %v4326 = vpack.c.bf16 %v4318, %v4314
  %v4327 = vpack.c.bf16 %v4319, %v4315
  %v4329 = vsel %vm857, %v4323, 0
  %4331 = vmatprep.subr.bf16.mxu0 %v4325
  %4332 = vmatpush1.bf16.msra.mxu0 %v4324
  %4333 = vmatprep.subr.bf16.mxu0 0
  %4334 = vmatpush1.bf16.msra.mxu0 0
  %4335 = vmatprep.subr.bf16.mxu0 0
  %4336 = vmatpush1.bf16.msra.mxu0 0
  %4337 = vmatprep.subr.bf16.mxu0 0
  %4338 = vmatpush1.bf16.msra.mxu0 0
  %4339 = vmatprep.subr.bf16.mxu0 0
  %4340 = vmatpush1.bf16.msra.mxu0 0
  %4341 = vmatprep.subr.bf16.mxu0 0
  %4342 = vmatpush1.bf16.msra.mxu0 0
  %4343 = vmatprep.subr.bf16.mxu0 0
  %4344 = vmatpush1.bf16.msra.mxu0 0
  %4345 = vmatprep.subr.bf16.mxu0 0
  %4346 = vmatpush1.bf16.msra.mxu0 0
  %4347 = vmatprep.subr.bf16.mxu0 0
  %4348 = vmatpush1.bf16.msra.mxu0 0
  %4349 = vmatprep.subr.bf16.mxu0 0
  %4350 = vmatpush1.bf16.msra.mxu0 0
  %4351 = vmatprep.subr.bf16.mxu0 0
  %4352 = vmatpush1.bf16.msra.mxu0 0
  %4353 = vmatprep.subr.bf16.mxu0 0
  %4354 = vmatpush1.bf16.msra.mxu0 0
  %4355 = vmatprep.subr.bf16.mxu0 0
  %4356 = vmatpush1.bf16.msra.mxu0 0
  %4357 = vmatprep.subr.bf16.mxu0 0
  %4358 = vmatpush1.bf16.msra.mxu0 0
  %4359 = vmatprep.subr.bf16.mxu0 0
  %4360 = vmatpush1.bf16.msra.mxu0 0
  %4361 = vmatprep.subr.bf16.mxu0 0
  %4362 = vmatpush1.bf16.msra.mxu0 0
  %4363 = vmatprep.mubr.bf16.mxu0 0
  %4364 = vmatmul.mubr.bf16.gmra.mrb[0].mxu0 %v4329
  %v4365 = vpop.f32.mrb[0].mxu0
  %v4366 = vadd.f32 0.0, %v4365
  %v4367 = vpop.f32.mrb[0].mxu0
  %v4368 = vadd.f32 0.0, %v4367
  %v4369 = vpop.f32.mrb[0].mxu0
  %v4370 = vadd.f32 0.0, %v4369
  %v4371 = vpop.f32.mrb[0].mxu0
  %v4372 = vadd.f32 0.0, %v4371
  %4373 = vdwg.mxu0
  %4374 = vmatprep.subr.bf16.mxu0 %v4327
  %4375 = vmatpush1.bf16.msra.mxu0 %v4326
  %4376 = vmatprep.subr.bf16.mxu0 0
  %4377 = vmatpush1.bf16.msra.mxu0 0
  %4378 = vmatprep.subr.bf16.mxu0 0
  %4379 = vmatpush1.bf16.msra.mxu0 0
  %4380 = vmatprep.subr.bf16.mxu0 0
  %4381 = vmatpush1.bf16.msra.mxu0 0
  %4382 = vmatprep.subr.bf16.mxu0 0
  %4383 = vmatpush1.bf16.msra.mxu0 0
  %4384 = vmatprep.subr.bf16.mxu0 0
  %4385 = vmatpush1.bf16.msra.mxu0 0
  %4386 = vmatprep.subr.bf16.mxu0 0
  %4387 = vmatpush1.bf16.msra.mxu0 0
  %4388 = vmatprep.subr.bf16.mxu0 0
  %4389 = vmatpush1.bf16.msra.mxu0 0
  %4390 = vmatprep.subr.bf16.mxu0 0
  %4391 = vmatpush1.bf16.msra.mxu0 0
  %4392 = vmatprep.subr.bf16.mxu0 0
  %4393 = vmatpush1.bf16.msra.mxu0 0
  %4394 = vmatprep.subr.bf16.mxu0 0
  %4395 = vmatpush1.bf16.msra.mxu0 0
  %4396 = vmatprep.subr.bf16.mxu0 0
  %4397 = vmatpush1.bf16.msra.mxu0 0
  %4398 = vmatprep.subr.bf16.mxu0 0
  %4399 = vmatpush1.bf16.msra.mxu0 0
  %4400 = vmatprep.subr.bf16.mxu0 0
  %4401 = vmatpush1.bf16.msra.mxu0 0
  %4402 = vmatprep.subr.bf16.mxu0 0
  %4403 = vmatpush1.bf16.msra.mxu0 0
  %4404 = vmatprep.subr.bf16.mxu0 0
  %4405 = vmatpush1.bf16.msra.mxu0 0
  %4406 = vmatprep.mubr.bf16.mxu0 0
  %4407 = vmatmul.mubr.bf16.gmra.mrb[0].mxu0 %v4329
  %v4408 = vpop.f32.mrb[0].mxu0
  %v4409 = vadd.f32 0.0, %v4408
  %v4410 = vpop.f32.mrb[0].mxu0
  %v4411 = vadd.f32 0.0, %v4410
  %v4412 = vpop.f32.mrb[0].mxu0
  %v4413 = vadd.f32 0.0, %v4412
  %v4414 = vpop.f32.mrb[0].mxu0
  %v4415 = vadd.f32 0.0, %v4414
  %4416 = vdwg.mxu0
  %v4417 = vadd.f32 %v4237, %v4366
  %v4418 = vadd.f32 %v4239, %v4368
  %v4419 = vadd.f32 %v4280, %v4409
  %v4420 = vadd.f32 %v4282, %v4411
  %v4421 = vadd.f32 %v4241, %v4370
  %v4422 = vadd.f32 %v4243, %v4372
  %v4423 = vadd.f32 %v4284, %v4413
  %v4424 = vadd.f32 %v4286, %v4415
  %s4425 = scalar_lea.vmem %s16, 16
  %v4426 = vld [vmem:[%s4425] sm:$0xff]
  %v4427 = vld [vmem:[%s4425 + $0x8] sm:$0xff]
  %v4428 = vpack.c.bf16 %v4427, %v4426
  %v4430 = vsel %vm857, %v4428, 0
  %4432 = vmatprep.subr.bf16.mxu0 %v2345
  %4433 = vmatpush1.bf16.msra.mxu0 %v2344
  %4434 = vmatprep.subr.bf16.mxu0 0
  %4435 = vmatpush1.bf16.msra.mxu0 0
  %4436 = vmatprep.subr.bf16.mxu0 0
  %4437 = vmatpush1.bf16.msra.mxu0 0
  %4438 = vmatprep.subr.bf16.mxu0 0
  %4439 = vmatpush1.bf16.msra.mxu0 0
  %4440 = vmatprep.subr.bf16.mxu0 0
  %4441 = vmatpush1.bf16.msra.mxu0 0
  %4442 = vmatprep.subr.bf16.mxu0 0
  %4443 = vmatpush1.bf16.msra.mxu0 0
  %4444 = vmatprep.subr.bf16.mxu0 0
  %4445 = vmatpush1.bf16.msra.mxu0 0
  %4446 = vmatprep.subr.bf16.mxu0 0
  %4447 = vmatpush1.bf16.msra.mxu0 0
  %4448 = vmatprep.subr.bf16.mxu0 0
  %4449 = vmatpush1.bf16.msra.mxu0 0
  %4450 = vmatprep.subr.bf16.mxu0 0
  %4451 = vmatpush1.bf16.msra.mxu0 0
  %4452 = vmatprep.subr.bf16.mxu0 0
  %4453 = vmatpush1.bf16.msra.mxu0 0
  %4454 = vmatprep.subr.bf16.mxu0 0
  %4455 = vmatpush1.bf16.msra.mxu0 0
  %4456 = vmatprep.subr.bf16.mxu0 0
  %4457 = vmatpush1.bf16.msra.mxu0 0
  %4458 = vmatprep.subr.bf16.mxu0 0
  %4459 = vmatpush1.bf16.msra.mxu0 0
  %4460 = vmatprep.subr.bf16.mxu0 0
  %4461 = vmatpush1.bf16.msra.mxu0 0
  %4462 = vmatprep.subr.bf16.mxu0 0
  %4463 = vmatpush1.bf16.msra.mxu0 0
  %4464 = vmatprep.mubr.bf16.mxu0 0
  %4465 = vmatmul.mubr.bf16.gmra.mrb[0].mxu0 %v4430
  %v4466 = vpop.f32.mrb[0].mxu0
  %v4467 = vadd.f32 0.0, %v4466
  %v4468 = vpop.f32.mrb[0].mxu0
  %v4469 = vadd.f32 0.0, %v4468
  %v4470 = vpop.f32.mrb[0].mxu0
  %v4471 = vadd.f32 0.0, %v4470
  %v4472 = vpop.f32.mrb[0].mxu0
  %v4473 = vadd.f32 0.0, %v4472
  %4474 = vdwg.mxu0
  %4475 = vmatprep.subr.bf16.mxu0 %v2347
  %4476 = vmatpush1.bf16.msra.mxu0 %v2346
  %4477 = vmatprep.subr.bf16.mxu0 0
  %4478 = vmatpush1.bf16.msra.mxu0 0
  %4479 = vmatprep.subr.bf16.mxu0 0
  %4480 = vmatpush1.bf16.msra.mxu0 0
  %4481 = vmatprep.subr.bf16.mxu0 0
  %4482 = vmatpush1.bf16.msra.mxu0 0
  %4483 = vmatprep.subr.bf16.mxu0 0
  %4484 = vmatpush1.bf16.msra.mxu0 0
  %4485 = vmatprep.subr.bf16.mxu0 0
  %4486 = vmatpush1.bf16.msra.mxu0 0
  %4487 = vmatprep.subr.bf16.mxu0 0
  %4488 = vmatpush1.bf16.msra.mxu0 0
  %4489 = vmatprep.subr.bf16.mxu0 0
  %4490 = vmatpush1.bf16.msra.mxu0 0
  %4491 = vmatprep.subr.bf16.mxu0 0
  %4492 = vmatpush1.bf16.msra.mxu0 0
  %4493 = vmatprep.subr.bf16.mxu0 0
  %4494 = vmatpush1.bf16.msra.mxu0 0
  %4495 = vmatprep.subr.bf16.mxu0 0
  %4496 = vmatpush1.bf16.msra.mxu0 0
  %4497 = vmatprep.subr.bf16.mxu0 0
  %4498 = vmatpush1.bf16.msra.mxu0 0
  %4499 = vmatprep.subr.bf16.mxu0 0
  %4500 = vmatpush1.bf16.msra.mxu0 0
  %4501 = vmatprep.subr.bf16.mxu0 0
  %4502 = vmatpush1.bf16.msra.mxu0 0
  %4503 = vmatprep.subr.bf16.mxu0 0
  %4504 = vmatpush1.bf16.msra.mxu0 0
  %4505 = vmatprep.subr.bf16.mxu0 0
  %4506 = vmatpush1.bf16.msra.mxu0 0
  %4507 = vmatprep.mubr.bf16.mxu0 0
  %4508 = vmatmul.mubr.bf16.gmra.mrb[0].mxu0 %v4430
  %v4509 = vpop.f32.mrb[0].mxu0
  %v4510 = vadd.f32 0.0, %v4509
  %v4511 = vpop.f32.mrb[0].mxu0
  %v4512 = vadd.f32 0.0, %v4511
  %v4513 = vpop.f32.mrb[0].mxu0
  %v4514 = vadd.f32 0.0, %v4513
  %v4515 = vpop.f32.mrb[0].mxu0
  %v4516 = vadd.f32 0.0, %v4515
  %4517 = vdwg.mxu0
  %v4518 = vadd.f32 %v4417, %v4467
  %v4519 = vadd.f32 %v4418, %v4469
  %v4520 = vadd.f32 %v4419, %v4510
  %v4521 = vadd.f32 %v4420, %v4512
  %v4522 = vadd.f32 %v4421, %v4471
  %v4523 = vadd.f32 %v4422, %v4473
  %v4524 = vadd.f32 %v4423, %v4514
  %v4525 = vadd.f32 %v4424, %v4516
  %4526 = vrot.lane.b32.xlu0 %v4058, 15
  %v4527 = vpop.permute.xlu0 %4526
  %4528 = vrot.lane.b32.xlu0 %v4062, 15
  %v4529 = vpop.permute.xlu0 %4528
  %4530 = vrot.lane.b32.xlu0 %v4059, 15
  %v4531 = vpop.permute.xlu0 %4530
  %4532 = vrot.lane.b32.xlu0 %v4063, 15
  %v4533 = vpop.permute.xlu0 %4532
  %4534 = vrot.lane.b32.xlu0 %v4060, 15
  %v4535 = vpop.permute.xlu0 %4534
  %4536 = vrot.lane.b32.xlu0 %v4064, 15
  %v4537 = vpop.permute.xlu0 %4536
  %4538 = vrot.lane.b32.xlu0 %v4061, 15
  %v4539 = vpop.permute.xlu0 %4538
  %4540 = vrot.lane.b32.xlu0 %v4065, 15
  %v4541 = vpop.permute.xlu0 %4540
  %v4542 = vsel %vm1060, %v4535, %v4539
  %v4543 = vsel %vm1060, %v4537, %v4541
  %v4544 = vsel %vm1060, %v4531, %v4535
  %v4545 = vsel %vm1060, %v4533, %v4537
  %v4546 = vsel %vm1060, %v4527, %v4531
  %v4547 = vsel %vm1060, %v4529, %v4533
  %v4548 = vsel %vm1060, %v4539, %v4527
  %v4549 = vsel %vm1060, %v4541, %v4529
  %v4550 = vsel %vm1073, %v4548, 0.0
  %v4551 = vsel %vm1074, %v4546, 0.0
  %v4552 = vsel %vm1075, %v4544, 0.0
  %v4553 = vsel %vm1076, %v4542, 0.0
  %v4554 = vsel %vm1073, %v4549, 0.0
  %v4555 = vsel %vm1074, %v4547, 0.0
  %v4556 = vsel %vm1075, %v4545, 0.0
  %v4557 = vsel %vm1076, %v4543, 0.0
  %s4558 = scalar_lea.vmem %s15, 32
  %v4559 = vld [vmem:[%s4558] sm:$0xff]
  %v4560 = vld [vmem:[%s4558 + $0x8] sm:$0xff]
  %v4561 = vpack.c.bf16 %v4560, %v4559
  %v4562 = vpack.c.bf16 %v4554, %v4550
  %v4563 = vpack.c.bf16 %v4555, %v4551
  %v4564 = vpack.c.bf16 %v4556, %v4552
  %v4565 = vpack.c.bf16 %v4557, %v4553
  %v4567 = vsel %vm857, %v4561, 0
  %4569 = vmatprep.subr.bf16.mxu0 %v4563
  %4570 = vmatpush1.bf16.msra.mxu0 %v4562
  %4571 = vmatprep.subr.bf16.mxu0 0
  %4572 = vmatpush1.bf16.msra.mxu0 0
  %4573 = vmatprep.subr.bf16.mxu0 0
  %4574 = vmatpush1.bf16.msra.mxu0 0
  %4575 = vmatprep.subr.bf16.mxu0 0
  %4576 = vmatpush1.bf16.msra.mxu0 0
  %4577 = vmatprep.subr.bf16.mxu0 0
  %4578 = vmatpush1.bf16.msra.mxu0 0
  %4579 = vmatprep.subr.bf16.mxu0 0
  %4580 = vmatpush1.bf16.msra.mxu0 0
  %4581 = vmatprep.subr.bf16.mxu0 0
  %4582 = vmatpush1.bf16.msra.mxu0 0
  %4583 = vmatprep.subr.bf16.mxu0 0
  %4584 = vmatpush1.bf16.msra.mxu0 0
  %4585 = vmatprep.subr.bf16.mxu0 0
  %4586 = vmatpush1.bf16.msra.mxu0 0
  %4587 = vmatprep.subr.bf16.mxu0 0
  %4588 = vmatpush1.bf16.msra.mxu0 0
  %4589 = vmatprep.subr.bf16.mxu0 0
  %4590 = vmatpush1.bf16.msra.mxu0 0
  %4591 = vmatprep.subr.bf16.mxu0 0
  %4592 = vmatpush1.bf16.msra.mxu0 0
  %4593 = vmatprep.subr.bf16.mxu0 0
  %4594 = vmatpush1.bf16.msra.mxu0 0
  %4595 = vmatprep.subr.bf16.mxu0 0
  %4596 = vmatpush1.bf16.msra.mxu0 0
  %4597 = vmatprep.subr.bf16.mxu0 0
  %4598 = vmatpush1.bf16.msra.mxu0 0
  %4599 = vmatprep.subr.bf16.mxu0 0
  %4600 = vmatpush1.bf16.msra.mxu0 0
  %4601 = vmatprep.mubr.bf16.mxu0 0
  %4602 = vmatmul.mubr.bf16.gmra.mrb[0].mxu0 %v4567
  %v4603 = vpop.f32.mrb[0].mxu0
  %v4604 = vadd.f32 0.0, %v4603
  %v4605 = vpop.f32.mrb[0].mxu0
  %v4606 = vadd.f32 0.0, %v4605
  %v4607 = vpop.f32.mrb[0].mxu0
  %v4608 = vadd.f32 0.0, %v4607
  %v4609 = vpop.f32.mrb[0].mxu0
  %v4610 = vadd.f32 0.0, %v4609
  %4611 = vdwg.mxu0
  %4612 = vmatprep.subr.bf16.mxu0 %v4565
  %4613 = vmatpush1.bf16.msra.mxu0 %v4564
  %4614 = vmatprep.subr.bf16.mxu0 0
  %4615 = vmatpush1.bf16.msra.mxu0 0
  %4616 = vmatprep.subr.bf16.mxu0 0
  %4617 = vmatpush1.bf16.msra.mxu0 0
  %4618 = vmatprep.subr.bf16.mxu0 0
  %4619 = vmatpush1.bf16.msra.mxu0 0
  %4620 = vmatprep.subr.bf16.mxu0 0
  %4621 = vmatpush1.bf16.msra.mxu0 0
  %4622 = vmatprep.subr.bf16.mxu0 0
  %4623 = vmatpush1.bf16.msra.mxu0 0
  %4624 = vmatprep.subr.bf16.mxu0 0
  %4625 = vmatpush1.bf16.msra.mxu0 0
  %4626 = vmatprep.subr.bf16.mxu0 0
  %4627 = vmatpush1.bf16.msra.mxu0 0
  %4628 = vmatprep.subr.bf16.mxu0 0
  %4629 = vmatpush1.bf16.msra.mxu0 0
  %4630 = vmatprep.subr.bf16.mxu0 0
  %4631 = vmatpush1.bf16.msra.mxu0 0
  %4632 = vmatprep.subr.bf16.mxu0 0
  %4633 = vmatpush1.bf16.msra.mxu0 0
  %4634 = vmatprep.subr.bf16.mxu0 0
  %4635 = vmatpush1.bf16.msra.mxu0 0
  %4636 = vmatprep.subr.bf16.mxu0 0
  %4637 = vmatpush1.bf16.msra.mxu0 0
  %4638 = vmatprep.subr.bf16.mxu0 0
  %4639 = vmatpush1.bf16.msra.mxu0 0
  %4640 = vmatprep.subr.bf16.mxu0 0
  %4641 = vmatpush1.bf16.msra.mxu0 0
  %4642 = vmatprep.subr.bf16.mxu0 0
  %4643 = vmatpush1.bf16.msra.mxu0 0
  %4644 = vmatprep.mubr.bf16.mxu0 0
  %4645 = vmatmul.mubr.bf16.gmra.mrb[0].mxu0 %v4567
  %v4646 = vpop.f32.mrb[0].mxu0
  %v4647 = vadd.f32 0.0, %v4646
  %v4648 = vpop.f32.mrb[0].mxu0
  %v4649 = vadd.f32 0.0, %v4648
  %v4650 = vpop.f32.mrb[0].mxu0
  %v4651 = vadd.f32 0.0, %v4650
  %v4652 = vpop.f32.mrb[0].mxu0
  %v4653 = vadd.f32 0.0, %v4652
  %4654 = vdwg.mxu0
  %v4655 = vadd.f32 %v4518, %v4604
  %v4656 = vadd.f32 %v4519, %v4606
  %v4657 = vadd.f32 %v4520, %v4647
  %v4658 = vadd.f32 %v4521, %v4649
  %v4659 = vadd.f32 %v4522, %v4608
  %v4660 = vadd.f32 %v4523, %v4610
  %v4661 = vadd.f32 %v4524, %v4651
  %v4662 = vadd.f32 %v4525, %v4653
  %s4663 = scalar_lea.vmem %s16, 32
  %v4664 = vld [vmem:[%s4663] sm:$0xff]
  %v4665 = vld [vmem:[%s4663 + $0x8] sm:$0xff]
  %v4666 = vpack.c.bf16 %v4665, %v4664
  %v4668 = vsel %vm857, %v4666, 0
  %4670 = vmatprep.subr.bf16.mxu0 %v2563
  %4671 = vmatpush1.bf16.msra.mxu0 %v2562
  %4672 = vmatprep.subr.bf16.mxu0 0
  %4673 = vmatpush1.bf16.msra.mxu0 0
  %4674 = vmatprep.subr.bf16.mxu0 0
  %4675 = vmatpush1.bf16.msra.mxu0 0
  %4676 = vmatprep.subr.bf16.mxu0 0
  %4677 = vmatpush1.bf16.msra.mxu0 0
  %4678 = vmatprep.subr.bf16.mxu0 0
  %4679 = vmatpush1.bf16.msra.mxu0 0
  %4680 = vmatprep.subr.bf16.mxu0 0
  %4681 = vmatpush1.bf16.msra.mxu0 0
  %4682 = vmatprep.subr.bf16.mxu0 0
  %4683 = vmatpush1.bf16.msra.mxu0 0
  %4684 = vmatprep.subr.bf16.mxu0 0
  %4685 = vmatpush1.bf16.msra.mxu0 0
  %4686 = vmatprep.subr.bf16.mxu0 0
  %4687 = vmatpush1.bf16.msra.mxu0 0
  %4688 = vmatprep.subr.bf16.mxu0 0
  %4689 = vmatpush1.bf16.msra.mxu0 0
  %4690 = vmatprep.subr.bf16.mxu0 0
  %4691 = vmatpush1.bf16.msra.mxu0 0
  %4692 = vmatprep.subr.bf16.mxu0 0
  %4693 = vmatpush1.bf16.msra.mxu0 0
  %4694 = vmatprep.subr.bf16.mxu0 0
  %4695 = vmatpush1.bf16.msra.mxu0 0
  %4696 = vmatprep.subr.bf16.mxu0 0
  %4697 = vmatpush1.bf16.msra.mxu0 0
  %4698 = vmatprep.subr.bf16.mxu0 0
  %4699 = vmatpush1.bf16.msra.mxu0 0
  %4700 = vmatprep.subr.bf16.mxu0 0
  %4701 = vmatpush1.bf16.msra.mxu0 0
  %4702 = vmatprep.mubr.bf16.mxu0 0
  %4703 = vmatmul.mubr.bf16.gmra.mrb[0].mxu0 %v4668
  %v4704 = vpop.f32.mrb[0].mxu0
  %v4705 = vadd.f32 0.0, %v4704
  %v4706 = vpop.f32.mrb[0].mxu0
  %v4707 = vadd.f32 0.0, %v4706
  %v4708 = vpop.f32.mrb[0].mxu0
  %v4709 = vadd.f32 0.0, %v4708
  %v4710 = vpop.f32.mrb[0].mxu0
  %v4711 = vadd.f32 0.0, %v4710
  %4712 = vdwg.mxu0
  %4713 = vmatprep.subr.bf16.mxu0 %v2565
  %4714 = vmatpush1.bf16.msra.mxu0 %v2564
  %4715 = vmatprep.subr.bf16.mxu0 0
  %4716 = vmatpush1.bf16.msra.mxu0 0
  %4717 = vmatprep.subr.bf16.mxu0 0
  %4718 = vmatpush1.bf16.msra.mxu0 0
  %4719 = vmatprep.subr.bf16.mxu0 0
  %4720 = vmatpush1.bf16.msra.mxu0 0
  %4721 = vmatprep.subr.bf16.mxu0 0
  %4722 = vmatpush1.bf16.msra.mxu0 0
  %4723 = vmatprep.subr.bf16.mxu0 0
  %4724 = vmatpush1.bf16.msra.mxu0 0
  %4725 = vmatprep.subr.bf16.mxu0 0
  %4726 = vmatpush1.bf16.msra.mxu0 0
  %4727 = vmatprep.subr.bf16.mxu0 0
  %4728 = vmatpush1.bf16.msra.mxu0 0
  %4729 = vmatprep.subr.bf16.mxu0 0
  %4730 = vmatpush1.bf16.msra.mxu0 0
  %4731 = vmatprep.subr.bf16.mxu0 0
  %4732 = vmatpush1.bf16.msra.mxu0 0
  %4733 = vmatprep.subr.bf16.mxu0 0
  %4734 = vmatpush1.bf16.msra.mxu0 0
  %4735 = vmatprep.subr.bf16.mxu0 0
  %4736 = vmatpush1.bf16.msra.mxu0 0
  %4737 = vmatprep.subr.bf16.mxu0 0
  %4738 = vmatpush1.bf16.msra.mxu0 0
  %4739 = vmatprep.subr.bf16.mxu0 0
  %4740 = vmatpush1.bf16.msra.mxu0 0
  %4741 = vmatprep.subr.bf16.mxu0 0
  %4742 = vmatpush1.bf16.msra.mxu0 0
  %4743 = vmatprep.subr.bf16.mxu0 0
  %4744 = vmatpush1.bf16.msra.mxu0 0
  %4745 = vmatprep.mubr.bf16.mxu0 0
  %4746 = vmatmul.mubr.bf16.gmra.mrb[0].mxu0 %v4668
  %v4747 = vpop.f32.mrb[0].mxu0
  %v4748 = vadd.f32 0.0, %v4747
  %v4749 = vpop.f32.mrb[0].mxu0
  %v4750 = vadd.f32 0.0, %v4749
  %v4751 = vpop.f32.mrb[0].mxu0
  %v4752 = vadd.f32 0.0, %v4751
  %v4753 = vpop.f32.mrb[0].mxu0
  %v4754 = vadd.f32 0.0, %v4753
  %4755 = vdwg.mxu0
  %v4756 = vadd.f32 %v4655, %v4705
  %v4757 = vadd.f32 %v4656, %v4707
  %v4758 = vadd.f32 %v4657, %v4748
  %v4759 = vadd.f32 %v4658, %v4750
  %v4760 = vadd.f32 %v4659, %v4709
  %v4761 = vadd.f32 %v4660, %v4711
  %v4762 = vadd.f32 %v4661, %v4752
  %v4763 = vadd.f32 %v4662, %v4754
  %4764 = vrot.lane.b32.xlu0 %v4058, 1
  %v4765 = vpop.permute.xlu0 %4764
  %4766 = vrot.lane.b32.xlu0 %v4062, 1
  %v4767 = vpop.permute.xlu0 %4766
  %4768 = vrot.lane.b32.xlu0 %v4059, 1
  %v4769 = vpop.permute.xlu0 %4768
  %4770 = vrot.lane.b32.xlu0 %v4063, 1
  %v4771 = vpop.permute.xlu0 %4770
  %4772 = vrot.lane.b32.xlu0 %v4060, 1
  %v4773 = vpop.permute.xlu0 %4772
  %4774 = vrot.lane.b32.xlu0 %v4064, 1
  %v4775 = vpop.permute.xlu0 %4774
  %4776 = vrot.lane.b32.xlu0 %v4061, 1
  %v4777 = vpop.permute.xlu0 %4776
  %4778 = vrot.lane.b32.xlu0 %v4065, 1
  %v4779 = vpop.permute.xlu0 %4778
  %v4780 = vsel %vm1206, %v4773, %v4777
  %v4781 = vsel %vm1206, %v4775, %v4779
  %v4782 = vsel %vm1206, %v4769, %v4773
  %v4783 = vsel %vm1206, %v4771, %v4775
  %v4784 = vsel %vm1206, %v4765, %v4769
  %v4785 = vsel %vm1206, %v4767, %v4771
  %v4786 = vsel %vm1206, %v4777, %v4765
  %v4787 = vsel %vm1206, %v4779, %v4767
  %v4788 = vsel %vm1219, %v4786, 0.0
  %v4789 = vsel %vm1220, %v4784, 0.0
  %v4790 = vsel %vm1221, %v4782, 0.0
  %v4791 = vsel %vm1222, %v4780, 0.0
  %v4792 = vsel %vm1219, %v4787, 0.0
  %v4793 = vsel %vm1220, %v4785, 0.0
  %v4794 = vsel %vm1221, %v4783, 0.0
  %v4795 = vsel %vm1222, %v4781, 0.0
  %s4796 = scalar_lea.vmem %s15, 48
  %v4797 = vld [vmem:[%s4796] sm:$0xff]
  %v4798 = vld [vmem:[%s4796 + $0x8] sm:$0xff]
  %v4799 = vpack.c.bf16 %v4798, %v4797
  %v4800 = vpack.c.bf16 %v4792, %v4788
  %v4801 = vpack.c.bf16 %v4793, %v4789
  %v4802 = vpack.c.bf16 %v4794, %v4790
  %v4803 = vpack.c.bf16 %v4795, %v4791
  %v4805 = vsel %vm857, %v4799, 0
  %4807 = vmatprep.subr.bf16.mxu0 %v4801
  %4808 = vmatpush1.bf16.msra.mxu0 %v4800
  %4809 = vmatprep.subr.bf16.mxu0 0
  %4810 = vmatpush1.bf16.msra.mxu0 0
  %4811 = vmatprep.subr.bf16.mxu0 0
  %4812 = vmatpush1.bf16.msra.mxu0 0
  %4813 = vmatprep.subr.bf16.mxu0 0
  %4814 = vmatpush1.bf16.msra.mxu0 0
  %4815 = vmatprep.subr.bf16.mxu0 0
  %4816 = vmatpush1.bf16.msra.mxu0 0
  %4817 = vmatprep.subr.bf16.mxu0 0
  %4818 = vmatpush1.bf16.msra.mxu0 0
  %4819 = vmatprep.subr.bf16.mxu0 0
  %4820 = vmatpush1.bf16.msra.mxu0 0
  %4821 = vmatprep.subr.bf16.mxu0 0
  %4822 = vmatpush1.bf16.msra.mxu0 0
  %4823 = vmatprep.subr.bf16.mxu0 0
  %4824 = vmatpush1.bf16.msra.mxu0 0
  %4825 = vmatprep.subr.bf16.mxu0 0
  %4826 = vmatpush1.bf16.msra.mxu0 0
  %4827 = vmatprep.subr.bf16.mxu0 0
  %4828 = vmatpush1.bf16.msra.mxu0 0
  %4829 = vmatprep.subr.bf16.mxu0 0
  %4830 = vmatpush1.bf16.msra.mxu0 0
  %4831 = vmatprep.subr.bf16.mxu0 0
  %4832 = vmatpush1.bf16.msra.mxu0 0
  %4833 = vmatprep.subr.bf16.mxu0 0
  %4834 = vmatpush1.bf16.msra.mxu0 0
  %4835 = vmatprep.subr.bf16.mxu0 0
  %4836 = vmatpush1.bf16.msra.mxu0 0
  %4837 = vmatprep.subr.bf16.mxu0 0
  %4838 = vmatpush1.bf16.msra.mxu0 0
  %4839 = vmatprep.mubr.bf16.mxu0 0
  %4840 = vmatmul.mubr.bf16.gmra.mrb[0].mxu0 %v4805
  %v4841 = vpop.f32.mrb[0].mxu0
  %v4842 = vadd.f32 0.0, %v4841
  %v4843 = vpop.f32.mrb[0].mxu0
  %v4844 = vadd.f32 0.0, %v4843
  %v4845 = vpop.f32.mrb[0].mxu0
  %v4846 = vadd.f32 0.0, %v4845
  %v4847 = vpop.f32.mrb[0].mxu0
  %v4848 = vadd.f32 0.0, %v4847
  %4849 = vdwg.mxu0
  %4850 = vmatprep.subr.bf16.mxu0 %v4803
  %4851 = vmatpush1.bf16.msra.mxu0 %v4802
  %4852 = vmatprep.subr.bf16.mxu0 0
  %4853 = vmatpush1.bf16.msra.mxu0 0
  %4854 = vmatprep.subr.bf16.mxu0 0
  %4855 = vmatpush1.bf16.msra.mxu0 0
  %4856 = vmatprep.subr.bf16.mxu0 0
  %4857 = vmatpush1.bf16.msra.mxu0 0
  %4858 = vmatprep.subr.bf16.mxu0 0
  %4859 = vmatpush1.bf16.msra.mxu0 0
  %4860 = vmatprep.subr.bf16.mxu0 0
  %4861 = vmatpush1.bf16.msra.mxu0 0
  %4862 = vmatprep.subr.bf16.mxu0 0
  %4863 = vmatpush1.bf16.msra.mxu0 0
  %4864 = vmatprep.subr.bf16.mxu0 0
  %4865 = vmatpush1.bf16.msra.mxu0 0
  %4866 = vmatprep.subr.bf16.mxu0 0
  %4867 = vmatpush1.bf16.msra.mxu0 0
  %4868 = vmatprep.subr.bf16.mxu0 0
  %4869 = vmatpush1.bf16.msra.mxu0 0
  %4870 = vmatprep.subr.bf16.mxu0 0
  %4871 = vmatpush1.bf16.msra.mxu0 0
  %4872 = vmatprep.subr.bf16.mxu0 0
  %4873 = vmatpush1.bf16.msra.mxu0 0
  %4874 = vmatprep.subr.bf16.mxu0 0
  %4875 = vmatpush1.bf16.msra.mxu0 0
  %4876 = vmatprep.subr.bf16.mxu0 0
  %4877 = vmatpush1.bf16.msra.mxu0 0
  %4878 = vmatprep.subr.bf16.mxu0 0
  %4879 = vmatpush1.bf16.msra.mxu0 0
  %4880 = vmatprep.subr.bf16.mxu0 0
  %4881 = vmatpush1.bf16.msra.mxu0 0
  %4882 = vmatprep.mubr.bf16.mxu0 0
  %4883 = vmatmul.mubr.bf16.gmra.mrb[0].mxu0 %v4805
  %v4884 = vpop.f32.mrb[0].mxu0
  %v4885 = vadd.f32 0.0, %v4884
  %v4886 = vpop.f32.mrb[0].mxu0
  %v4887 = vadd.f32 0.0, %v4886
  %v4888 = vpop.f32.mrb[0].mxu0
  %v4889 = vadd.f32 0.0, %v4888
  %v4890 = vpop.f32.mrb[0].mxu0
  %v4891 = vadd.f32 0.0, %v4890
  %4892 = vdwg.mxu0
  %v4893 = vadd.f32 %v4756, %v4842
  %v4894 = vadd.f32 %v4757, %v4844
  %v4895 = vadd.f32 %v4758, %v4885
  %v4896 = vadd.f32 %v4759, %v4887
  %v4897 = vadd.f32 %v4760, %v4846
  %v4898 = vadd.f32 %v4761, %v4848
  %v4899 = vadd.f32 %v4762, %v4889
  %v4900 = vadd.f32 %v4763, %v4891
  %s4901 = scalar_lea.vmem %s16, 48
  %v4902 = vld [vmem:[%s4901] sm:$0xff]
  %v4903 = vld [vmem:[%s4901 + $0x8] sm:$0xff]
  %v4904 = vpack.c.bf16 %v4903, %v4902
  %v4906 = vsel %vm857, %v4904, 0
  %4908 = vmatprep.subr.bf16.mxu0 %v2700
  %4909 = vmatpush1.bf16.msra.mxu0 %v2699
  %4910 = vmatprep.subr.bf16.mxu0 0
  %4911 = vmatpush1.bf16.msra.mxu0 0
  %4912 = vmatprep.subr.bf16.mxu0 0
  %4913 = vmatpush1.bf16.msra.mxu0 0
  %4914 = vmatprep.subr.bf16.mxu0 0
  %4915 = vmatpush1.bf16.msra.mxu0 0
  %4916 = vmatprep.subr.bf16.mxu0 0
  %4917 = vmatpush1.bf16.msra.mxu0 0
  %4918 = vmatprep.subr.bf16.mxu0 0
  %4919 = vmatpush1.bf16.msra.mxu0 0
  %4920 = vmatprep.subr.bf16.mxu0 0
  %4921 = vmatpush1.bf16.msra.mxu0 0
  %4922 = vmatprep.subr.bf16.mxu0 0
  %4923 = vmatpush1.bf16.msra.mxu0 0
  %4924 = vmatprep.subr.bf16.mxu0 0
  %4925 = vmatpush1.bf16.msra.mxu0 0
  %4926 = vmatprep.subr.bf16.mxu0 0
  %4927 = vmatpush1.bf16.msra.mxu0 0
  %4928 = vmatprep.subr.bf16.mxu0 0
  %4929 = vmatpush1.bf16.msra.mxu0 0
  %4930 = vmatprep.subr.bf16.mxu0 0
  %4931 = vmatpush1.bf16.msra.mxu0 0
  %4932 = vmatprep.subr.bf16.mxu0 0
  %4933 = vmatpush1.bf16.msra.mxu0 0
  %4934 = vmatprep.subr.bf16.mxu0 0
  %4935 = vmatpush1.bf16.msra.mxu0 0
  %4936 = vmatprep.subr.bf16.mxu0 0
  %4937 = vmatpush1.bf16.msra.mxu0 0
  %4938 = vmatprep.subr.bf16.mxu0 0
  %4939 = vmatpush1.bf16.msra.mxu0 0
  %4940 = vmatprep.mubr.bf16.mxu0 0
  %4941 = vmatmul.mubr.bf16.gmra.mrb[0].mxu0 %v4906
  %v4942 = vpop.f32.mrb[0].mxu0
  %v4943 = vadd.f32 0.0, %v4942
  %v4944 = vpop.f32.mrb[0].mxu0
  %v4945 = vadd.f32 0.0, %v4944
  %v4946 = vpop.f32.mrb[0].mxu0
  %v4947 = vadd.f32 0.0, %v4946
  %v4948 = vpop.f32.mrb[0].mxu0
  %v4949 = vadd.f32 0.0, %v4948
  %4950 = vdwg.mxu0
  %4951 = vmatprep.subr.bf16.mxu0 %v2702
  %4952 = vmatpush1.bf16.msra.mxu0 %v2701
  %4953 = vmatprep.subr.bf16.mxu0 0
  %4954 = vmatpush1.bf16.msra.mxu0 0
  %4955 = vmatprep.subr.bf16.mxu0 0
  %4956 = vmatpush1.bf16.msra.mxu0 0
  %4957 = vmatprep.subr.bf16.mxu0 0
  %4958 = vmatpush1.bf16.msra.mxu0 0
  %4959 = vmatprep.subr.bf16.mxu0 0
  %4960 = vmatpush1.bf16.msra.mxu0 0
  %4961 = vmatprep.subr.bf16.mxu0 0
  %4962 = vmatpush1.bf16.msra.mxu0 0
  %4963 = vmatprep.subr.bf16.mxu0 0
  %4964 = vmatpush1.bf16.msra.mxu0 0
  %4965 = vmatprep.subr.bf16.mxu0 0
  %4966 = vmatpush1.bf16.msra.mxu0 0
  %4967 = vmatprep.subr.bf16.mxu0 0
  %4968 = vmatpush1.bf16.msra.mxu0 0
  %4969 = vmatprep.subr.bf16.mxu0 0
  %4970 = vmatpush1.bf16.msra.mxu0 0
  %4971 = vmatprep.subr.bf16.mxu0 0
  %4972 = vmatpush1.bf16.msra.mxu0 0
  %4973 = vmatprep.subr.bf16.mxu0 0
  %4974 = vmatpush1.bf16.msra.mxu0 0
  %4975 = vmatprep.subr.bf16.mxu0 0
  %4976 = vmatpush1.bf16.msra.mxu0 0
  %4977 = vmatprep.subr.bf16.mxu0 0
  %4978 = vmatpush1.bf16.msra.mxu0 0
  %4979 = vmatprep.subr.bf16.mxu0 0
  %4980 = vmatpush1.bf16.msra.mxu0 0
  %4981 = vmatprep.subr.bf16.mxu0 0
  %4982 = vmatpush1.bf16.msra.mxu0 0
  %4983 = vmatprep.mubr.bf16.mxu0 0
  %4984 = vmatmul.mubr.bf16.gmra.mrb[0].mxu0 %v4906
  %v4985 = vpop.f32.mrb[0].mxu0
  %v4986 = vadd.f32 0.0, %v4985
  %v4987 = vpop.f32.mrb[0].mxu0
  %v4988 = vadd.f32 0.0, %v4987
  %v4989 = vpop.f32.mrb[0].mxu0
  %v4990 = vadd.f32 0.0, %v4989
  %v4991 = vpop.f32.mrb[0].mxu0
  %v4992 = vadd.f32 0.0, %v4991
  %4993 = vdwg.mxu0
  %v4994 = vadd.f32 %v4893, %v4943
  %v4995 = vadd.f32 %v4894, %v4945
  %v4996 = vadd.f32 %v4895, %v4986
  %v4997 = vadd.f32 %v4896, %v4988
  %v4998 = vadd.f32 %v4897, %v4947
  %v4999 = vadd.f32 %v4898, %v4949
  %v5000 = vadd.f32 %v4899, %v4990
  %v5001 = vadd.f32 %v4900, %v4992
  %s5002 = scalar_lea.vmem %s15, 64
  %v5003 = vld [vmem:[%s5002] sm:$0xff]
  %v5004 = vld [vmem:[%s5002 + $0x8] sm:$0xff]
  %v5005 = vpack.c.bf16 %v5004, %v5003
  %v5006 = vpack.c.bf16 %v4062, %v4058
  %v5007 = vpack.c.bf16 %v4063, %v4059
  %v5008 = vpack.c.bf16 %v4064, %v4060
  %v5009 = vpack.c.bf16 %v4065, %v4061
  %v5011 = vsel %vm857, %v5005, 0
  %5013 = vmatprep.subr.bf16.mxu0 %v5007
  %5014 = vmatpush1.bf16.msra.mxu0 %v5006
  %5015 = vmatprep.subr.bf16.mxu0 0
  %5016 = vmatpush1.bf16.msra.mxu0 0
  %5017 = vmatprep.subr.bf16.mxu0 0
  %5018 = vmatpush1.bf16.msra.mxu0 0
  %5019 = vmatprep.subr.bf16.mxu0 0
  %5020 = vmatpush1.bf16.msra.mxu0 0
  %5021 = vmatprep.subr.bf16.mxu0 0
  %5022 = vmatpush1.bf16.msra.mxu0 0
  %5023 = vmatprep.subr.bf16.mxu0 0
  %5024 = vmatpush1.bf16.msra.mxu0 0
  %5025 = vmatprep.subr.bf16.mxu0 0
  %5026 = vmatpush1.bf16.msra.mxu0 0
  %5027 = vmatprep.subr.bf16.mxu0 0
  %5028 = vmatpush1.bf16.msra.mxu0 0
  %5029 = vmatprep.subr.bf16.mxu0 0
  %5030 = vmatpush1.bf16.msra.mxu0 0
  %5031 = vmatprep.subr.bf16.mxu0 0
  %5032 = vmatpush1.bf16.msra.mxu0 0
  %5033 = vmatprep.subr.bf16.mxu0 0
  %5034 = vmatpush1.bf16.msra.mxu0 0
  %5035 = vmatprep.subr.bf16.mxu0 0
  %5036 = vmatpush1.bf16.msra.mxu0 0
  %5037 = vmatprep.subr.bf16.mxu0 0
  %5038 = vmatpush1.bf16.msra.mxu0 0
  %5039 = vmatprep.subr.bf16.mxu0 0
  %5040 = vmatpush1.bf16.msra.mxu0 0
  %5041 = vmatprep.subr.bf16.mxu0 0
  %5042 = vmatpush1.bf16.msra.mxu0 0
  %5043 = vmatprep.subr.bf16.mxu0 0
  %5044 = vmatpush1.bf16.msra.mxu0 0
  %5045 = vmatprep.mubr.bf16.mxu0 0
  %5046 = vmatmul.mubr.bf16.gmra.mrb[0].mxu0 %v5011
  %v5047 = vpop.f32.mrb[0].mxu0
  %v5048 = vadd.f32 0.0, %v5047
  %v5049 = vpop.f32.mrb[0].mxu0
  %v5050 = vadd.f32 0.0, %v5049
  %v5051 = vpop.f32.mrb[0].mxu0
  %v5052 = vadd.f32 0.0, %v5051
  %v5053 = vpop.f32.mrb[0].mxu0
  %v5054 = vadd.f32 0.0, %v5053
  %5055 = vdwg.mxu0
  %5056 = vmatprep.subr.bf16.mxu0 %v5009
  %5057 = vmatpush1.bf16.msra.mxu0 %v5008
  %5058 = vmatprep.subr.bf16.mxu0 0
  %5059 = vmatpush1.bf16.msra.mxu0 0
  %5060 = vmatprep.subr.bf16.mxu0 0
  %5061 = vmatpush1.bf16.msra.mxu0 0
  %5062 = vmatprep.subr.bf16.mxu0 0
  %5063 = vmatpush1.bf16.msra.mxu0 0
  %5064 = vmatprep.subr.bf16.mxu0 0
  %5065 = vmatpush1.bf16.msra.mxu0 0
  %5066 = vmatprep.subr.bf16.mxu0 0
  %5067 = vmatpush1.bf16.msra.mxu0 0
  %5068 = vmatprep.subr.bf16.mxu0 0
  %5069 = vmatpush1.bf16.msra.mxu0 0
  %5070 = vmatprep.subr.bf16.mxu0 0
  %5071 = vmatpush1.bf16.msra.mxu0 0
  %5072 = vmatprep.subr.bf16.mxu0 0
  %5073 = vmatpush1.bf16.msra.mxu0 0
  %5074 = vmatprep.subr.bf16.mxu0 0
  %5075 = vmatpush1.bf16.msra.mxu0 0
  %5076 = vmatprep.subr.bf16.mxu0 0
  %5077 = vmatpush1.bf16.msra.mxu0 0
  %5078 = vmatprep.subr.bf16.mxu0 0
  %5079 = vmatpush1.bf16.msra.mxu0 0
  %5080 = vmatprep.subr.bf16.mxu0 0
  %5081 = vmatpush1.bf16.msra.mxu0 0
  %5082 = vmatprep.subr.bf16.mxu0 0
  %5083 = vmatpush1.bf16.msra.mxu0 0
  %5084 = vmatprep.subr.bf16.mxu0 0
  %5085 = vmatpush1.bf16.msra.mxu0 0
  %5086 = vmatprep.subr.bf16.mxu0 0
  %5087 = vmatpush1.bf16.msra.mxu0 0
  %5088 = vmatprep.mubr.bf16.mxu0 0
  %5089 = vmatmul.mubr.bf16.gmra.mrb[0].mxu0 %v5011
  %v5090 = vpop.f32.mrb[0].mxu0
  %v5091 = vadd.f32 0.0, %v5090
  %v5092 = vpop.f32.mrb[0].mxu0
  %v5093 = vadd.f32 0.0, %v5092
  %v5094 = vpop.f32.mrb[0].mxu0
  %v5095 = vadd.f32 0.0, %v5094
  %v5096 = vpop.f32.mrb[0].mxu0
  %v5097 = vadd.f32 0.0, %v5096
  %5098 = vdwg.mxu0
  %v5099 = vadd.f32 %v4994, %v5048
  %v5100 = vadd.f32 %v4995, %v5050
  %v5101 = vadd.f32 %v4996, %v5091
  %v5102 = vadd.f32 %v4997, %v5093
  %v5103 = vadd.f32 %v4998, %v5052
  %v5104 = vadd.f32 %v4999, %v5054
  %v5105 = vadd.f32 %v5000, %v5095
  %v5106 = vadd.f32 %v5001, %v5097
  %s5107 = scalar_lea.vmem %s16, 64
  %v5108 = vld [vmem:[%s5107] sm:$0xff]
  %v5109 = vld [vmem:[%s5107 + $0x8] sm:$0xff]
  %v5110 = vpack.c.bf16 %v5109, %v5108
  %v5112 = vsel %vm857, %v5110, 0
  %5114 = vmatprep.subr.bf16.mxu0 %v2805
  %5115 = vmatpush1.bf16.msra.mxu0 %v2804
  %5116 = vmatprep.subr.bf16.mxu0 0
  %5117 = vmatpush1.bf16.msra.mxu0 0
  %5118 = vmatprep.subr.bf16.mxu0 0
  %5119 = vmatpush1.bf16.msra.mxu0 0
  %5120 = vmatprep.subr.bf16.mxu0 0
  %5121 = vmatpush1.bf16.msra.mxu0 0
  %5122 = vmatprep.subr.bf16.mxu0 0
  %5123 = vmatpush1.bf16.msra.mxu0 0
  %5124 = vmatprep.subr.bf16.mxu0 0
  %5125 = vmatpush1.bf16.msra.mxu0 0
  %5126 = vmatprep.subr.bf16.mxu0 0
  %5127 = vmatpush1.bf16.msra.mxu0 0
  %5128 = vmatprep.subr.bf16.mxu0 0
  %5129 = vmatpush1.bf16.msra.mxu0 0
  %5130 = vmatprep.subr.bf16.mxu0 0
  %5131 = vmatpush1.bf16.msra.mxu0 0
  %5132 = vmatprep.subr.bf16.mxu0 0
  %5133 = vmatpush1.bf16.msra.mxu0 0
  %5134 = vmatprep.subr.bf16.mxu0 0
  %5135 = vmatpush1.bf16.msra.mxu0 0
  %5136 = vmatprep.subr.bf16.mxu0 0
  %5137 = vmatpush1.bf16.msra.mxu0 0
  %5138 = vmatprep.subr.bf16.mxu0 0
  %5139 = vmatpush1.bf16.msra.mxu0 0
  %5140 = vmatprep.subr.bf16.mxu0 0
  %5141 = vmatpush1.bf16.msra.mxu0 0
  %5142 = vmatprep.subr.bf16.mxu0 0
  %5143 = vmatpush1.bf16.msra.mxu0 0
  %5144 = vmatprep.subr.bf16.mxu0 0
  %5145 = vmatpush1.bf16.msra.mxu0 0
  %5146 = vmatprep.mubr.bf16.mxu0 0
  %5147 = vmatmul.mubr.bf16.gmra.mrb[0].mxu0 %v5112
  %v5148 = vpop.f32.mrb[0].mxu0
  %v5149 = vadd.f32 0.0, %v5148
  %v5150 = vpop.f32.mrb[0].mxu0
  %v5151 = vadd.f32 0.0, %v5150
  %v5152 = vpop.f32.mrb[0].mxu0
  %v5153 = vadd.f32 0.0, %v5152
  %v5154 = vpop.f32.mrb[0].mxu0
  %v5155 = vadd.f32 0.0, %v5154
  %5156 = vdwg.mxu0
  %5157 = vmatprep.subr.bf16.mxu0 %v2807
  %5158 = vmatpush1.bf16.msra.mxu0 %v2806
  %5159 = vmatprep.subr.bf16.mxu0 0
  %5160 = vmatpush1.bf16.msra.mxu0 0
  %5161 = vmatprep.subr.bf16.mxu0 0
  %5162 = vmatpush1.bf16.msra.mxu0 0
  %5163 = vmatprep.subr.bf16.mxu0 0
  %5164 = vmatpush1.bf16.msra.mxu0 0
  %5165 = vmatprep.subr.bf16.mxu0 0
  %5166 = vmatpush1.bf16.msra.mxu0 0
  %5167 = vmatprep.subr.bf16.mxu0 0
  %5168 = vmatpush1.bf16.msra.mxu0 0
  %5169 = vmatprep.subr.bf16.mxu0 0
  %5170 = vmatpush1.bf16.msra.mxu0 0
  %5171 = vmatprep.subr.bf16.mxu0 0
  %5172 = vmatpush1.bf16.msra.mxu0 0
  %5173 = vmatprep.subr.bf16.mxu0 0
  %5174 = vmatpush1.bf16.msra.mxu0 0
  %5175 = vmatprep.subr.bf16.mxu0 0
  %5176 = vmatpush1.bf16.msra.mxu0 0
  %5177 = vmatprep.subr.bf16.mxu0 0
  %5178 = vmatpush1.bf16.msra.mxu0 0
  %5179 = vmatprep.subr.bf16.mxu0 0
  %5180 = vmatpush1.bf16.msra.mxu0 0
  %5181 = vmatprep.subr.bf16.mxu0 0
  %5182 = vmatpush1.bf16.msra.mxu0 0
  %5183 = vmatprep.subr.bf16.mxu0 0
  %5184 = vmatpush1.bf16.msra.mxu0 0
  %5185 = vmatprep.subr.bf16.mxu0 0
  %5186 = vmatpush1.bf16.msra.mxu0 0
  %5187 = vmatprep.subr.bf16.mxu0 0
  %5188 = vmatpush1.bf16.msra.mxu0 0
  %5189 = vmatprep.mubr.bf16.mxu0 0
  %5190 = vmatmul.mubr.bf16.gmra.mrb[0].mxu0 %v5112
  %v5191 = vpop.f32.mrb[0].mxu0
  %v5192 = vadd.f32 0.0, %v5191
  %v5193 = vpop.f32.mrb[0].mxu0
  %v5194 = vadd.f32 0.0, %v5193
  %v5195 = vpop.f32.mrb[0].mxu0
  %v5196 = vadd.f32 0.0, %v5195
  %v5197 = vpop.f32.mrb[0].mxu0
  %v5198 = vadd.f32 0.0, %v5197
  %5199 = vdwg.mxu0
  %v5200 = vadd.f32 %v5099, %v5149
  %v5201 = vadd.f32 %v5100, %v5151
  %v5202 = vadd.f32 %v5101, %v5192
  %v5203 = vadd.f32 %v5102, %v5194
  %v5204 = vadd.f32 %v5103, %v5153
  %v5205 = vadd.f32 %v5104, %v5155
  %v5206 = vadd.f32 %v5105, %v5196
  %v5207 = vadd.f32 %v5106, %v5198
  %5208 = vrot.lane.b32.xlu0 %v4058, 127
  %v5209 = vpop.permute.xlu0 %5208
  %5210 = vrot.lane.b32.xlu0 %v4062, 127
  %v5211 = vpop.permute.xlu0 %5210
  %5212 = vrot.lane.b32.xlu0 %v4059, 127
  %v5213 = vpop.permute.xlu0 %5212
  %5214 = vrot.lane.b32.xlu0 %v4063, 127
  %v5215 = vpop.permute.xlu0 %5214
  %5216 = vrot.lane.b32.xlu0 %v4060, 127
  %v5217 = vpop.permute.xlu0 %5216
  %5218 = vrot.lane.b32.xlu0 %v4064, 127
  %v5219 = vpop.permute.xlu0 %5218
  %5220 = vrot.lane.b32.xlu0 %v4061, 127
  %v5221 = vpop.permute.xlu0 %5220
  %5222 = vrot.lane.b32.xlu0 %v4065, 127
  %v5223 = vpop.permute.xlu0 %5222
  %v5224 = vsel %vm1457, %v5217, %v5221
  %v5225 = vsel %vm1457, %v5219, %v5223
  %v5226 = vsel %vm1457, %v5213, %v5217
  %v5227 = vsel %vm1457, %v5215, %v5219
  %v5228 = vsel %vm1457, %v5209, %v5213
  %v5229 = vsel %vm1457, %v5211, %v5215
  %v5230 = vsel %vm1457, %v5221, %v5209
  %v5231 = vsel %vm1457, %v5223, %v5211
  %v5232 = vsel %vm1470, %v5228, 0.0
  %v5233 = vsel %vm1471, %v5226, 0.0
  %v5234 = vsel %vm1472, %v5224, 0.0
  %v5235 = vsel %vm1473, %v5230, 0.0
  %v5236 = vsel %vm1470, %v5229, 0.0
  %v5237 = vsel %vm1471, %v5227, 0.0
  %v5238 = vsel %vm1472, %v5225, 0.0
  %v5239 = vsel %vm1473, %v5231, 0.0
  %s5240 = scalar_lea.vmem %s15, 80
  %v5241 = vld [vmem:[%s5240] sm:$0xff]
  %v5242 = vld [vmem:[%s5240 + $0x8] sm:$0xff]
  %v5243 = vpack.c.bf16 %v5242, %v5241
  %v5244 = vpack.c.bf16 %v5236, %v5232
  %v5245 = vpack.c.bf16 %v5237, %v5233
  %v5246 = vpack.c.bf16 %v5238, %v5234
  %v5247 = vpack.c.bf16 %v5239, %v5235
  %v5249 = vsel %vm857, %v5243, 0
  %5251 = vmatprep.subr.bf16.mxu0 %v5245
  %5252 = vmatpush1.bf16.msra.mxu0 %v5244
  %5253 = vmatprep.subr.bf16.mxu0 0
  %5254 = vmatpush1.bf16.msra.mxu0 0
  %5255 = vmatprep.subr.bf16.mxu0 0
  %5256 = vmatpush1.bf16.msra.mxu0 0
  %5257 = vmatprep.subr.bf16.mxu0 0
  %5258 = vmatpush1.bf16.msra.mxu0 0
  %5259 = vmatprep.subr.bf16.mxu0 0
  %5260 = vmatpush1.bf16.msra.mxu0 0
  %5261 = vmatprep.subr.bf16.mxu0 0
  %5262 = vmatpush1.bf16.msra.mxu0 0
  %5263 = vmatprep.subr.bf16.mxu0 0
  %5264 = vmatpush1.bf16.msra.mxu0 0
  %5265 = vmatprep.subr.bf16.mxu0 0
  %5266 = vmatpush1.bf16.msra.mxu0 0
  %5267 = vmatprep.subr.bf16.mxu0 0
  %5268 = vmatpush1.bf16.msra.mxu0 0
  %5269 = vmatprep.subr.bf16.mxu0 0
  %5270 = vmatpush1.bf16.msra.mxu0 0
  %5271 = vmatprep.subr.bf16.mxu0 0
  %5272 = vmatpush1.bf16.msra.mxu0 0
  %5273 = vmatprep.subr.bf16.mxu0 0
  %5274 = vmatpush1.bf16.msra.mxu0 0
  %5275 = vmatprep.subr.bf16.mxu0 0
  %5276 = vmatpush1.bf16.msra.mxu0 0
  %5277 = vmatprep.subr.bf16.mxu0 0
  %5278 = vmatpush1.bf16.msra.mxu0 0
  %5279 = vmatprep.subr.bf16.mxu0 0
  %5280 = vmatpush1.bf16.msra.mxu0 0
  %5281 = vmatprep.subr.bf16.mxu0 0
  %5282 = vmatpush1.bf16.msra.mxu0 0
  %5283 = vmatprep.mubr.bf16.mxu0 0
  %5284 = vmatmul.mubr.bf16.gmra.mrb[0].mxu0 %v5249
  %v5285 = vpop.f32.mrb[0].mxu0
  %v5286 = vadd.f32 0.0, %v5285
  %v5287 = vpop.f32.mrb[0].mxu0
  %v5288 = vadd.f32 0.0, %v5287
  %v5289 = vpop.f32.mrb[0].mxu0
  %v5290 = vadd.f32 0.0, %v5289
  %v5291 = vpop.f32.mrb[0].mxu0
  %v5292 = vadd.f32 0.0, %v5291
  %5293 = vdwg.mxu0
  %5294 = vmatprep.subr.bf16.mxu0 %v5247
  %5295 = vmatpush1.bf16.msra.mxu0 %v5246
  %5296 = vmatprep.subr.bf16.mxu0 0
  %5297 = vmatpush1.bf16.msra.mxu0 0
  %5298 = vmatprep.subr.bf16.mxu0 0
  %5299 = vmatpush1.bf16.msra.mxu0 0
  %5300 = vmatprep.subr.bf16.mxu0 0
  %5301 = vmatpush1.bf16.msra.mxu0 0
  %5302 = vmatprep.subr.bf16.mxu0 0
  %5303 = vmatpush1.bf16.msra.mxu0 0
  %5304 = vmatprep.subr.bf16.mxu0 0
  %5305 = vmatpush1.bf16.msra.mxu0 0
  %5306 = vmatprep.subr.bf16.mxu0 0
  %5307 = vmatpush1.bf16.msra.mxu0 0
  %5308 = vmatprep.subr.bf16.mxu0 0
  %5309 = vmatpush1.bf16.msra.mxu0 0
  %5310 = vmatprep.subr.bf16.mxu0 0
  %5311 = vmatpush1.bf16.msra.mxu0 0
  %5312 = vmatprep.subr.bf16.mxu0 0
  %5313 = vmatpush1.bf16.msra.mxu0 0
  %5314 = vmatprep.subr.bf16.mxu0 0
  %5315 = vmatpush1.bf16.msra.mxu0 0
  %5316 = vmatprep.subr.bf16.mxu0 0
  %5317 = vmatpush1.bf16.msra.mxu0 0
  %5318 = vmatprep.subr.bf16.mxu0 0
  %5319 = vmatpush1.bf16.msra.mxu0 0
  %5320 = vmatprep.subr.bf16.mxu0 0
  %5321 = vmatpush1.bf16.msra.mxu0 0
  %5322 = vmatprep.subr.bf16.mxu0 0
  %5323 = vmatpush1.bf16.msra.mxu0 0
  %5324 = vmatprep.subr.bf16.mxu0 0
  %5325 = vmatpush1.bf16.msra.mxu0 0
  %5326 = vmatprep.mubr.bf16.mxu0 0
  %5327 = vmatmul.mubr.bf16.gmra.mrb[0].mxu0 %v5249
  %v5328 = vpop.f32.mrb[0].mxu0
  %v5329 = vadd.f32 0.0, %v5328
  %v5330 = vpop.f32.mrb[0].mxu0
  %v5331 = vadd.f32 0.0, %v5330
  %v5332 = vpop.f32.mrb[0].mxu0
  %v5333 = vadd.f32 0.0, %v5332
  %v5334 = vpop.f32.mrb[0].mxu0
  %v5335 = vadd.f32 0.0, %v5334
  %5336 = vdwg.mxu0
  %v5337 = vadd.f32 %v5200, %v5286
  %v5338 = vadd.f32 %v5201, %v5288
  %v5339 = vadd.f32 %v5202, %v5329
  %v5340 = vadd.f32 %v5203, %v5331
  %v5341 = vadd.f32 %v5204, %v5290
  %v5342 = vadd.f32 %v5205, %v5292
  %v5343 = vadd.f32 %v5206, %v5333
  %v5344 = vadd.f32 %v5207, %v5335
  %s5345 = scalar_lea.vmem %s16, 80
  %v5346 = vld [vmem:[%s5345] sm:$0xff]
  %v5347 = vld [vmem:[%s5345 + $0x8] sm:$0xff]
  %v5348 = vpack.c.bf16 %v5347, %v5346
  %v5350 = vsel %vm857, %v5348, 0
  %5352 = vmatprep.subr.bf16.mxu0 %v2942
  %5353 = vmatpush1.bf16.msra.mxu0 %v2941
  %5354 = vmatprep.subr.bf16.mxu0 0
  %5355 = vmatpush1.bf16.msra.mxu0 0
  %5356 = vmatprep.subr.bf16.mxu0 0
  %5357 = vmatpush1.bf16.msra.mxu0 0
  %5358 = vmatprep.subr.bf16.mxu0 0
  %5359 = vmatpush1.bf16.msra.mxu0 0
  %5360 = vmatprep.subr.bf16.mxu0 0
  %5361 = vmatpush1.bf16.msra.mxu0 0
  %5362 = vmatprep.subr.bf16.mxu0 0
  %5363 = vmatpush1.bf16.msra.mxu0 0
  %5364 = vmatprep.subr.bf16.mxu0 0
  %5365 = vmatpush1.bf16.msra.mxu0 0
  %5366 = vmatprep.subr.bf16.mxu0 0
  %5367 = vmatpush1.bf16.msra.mxu0 0
  %5368 = vmatprep.subr.bf16.mxu0 0
  %5369 = vmatpush1.bf16.msra.mxu0 0
  %5370 = vmatprep.subr.bf16.mxu0 0
  %5371 = vmatpush1.bf16.msra.mxu0 0
  %5372 = vmatprep.subr.bf16.mxu0 0
  %5373 = vmatpush1.bf16.msra.mxu0 0
  %5374 = vmatprep.subr.bf16.mxu0 0
  %5375 = vmatpush1.bf16.msra.mxu0 0
  %5376 = vmatprep.subr.bf16.mxu0 0
  %5377 = vmatpush1.bf16.msra.mxu0 0
  %5378 = vmatprep.subr.bf16.mxu0 0
  %5379 = vmatpush1.bf16.msra.mxu0 0
  %5380 = vmatprep.subr.bf16.mxu0 0
  %5381 = vmatpush1.bf16.msra.mxu0 0
  %5382 = vmatprep.subr.bf16.mxu0 0
  %5383 = vmatpush1.bf16.msra.mxu0 0
  %5384 = vmatprep.mubr.bf16.mxu0 0
  %5385 = vmatmul.mubr.bf16.gmra.mrb[0].mxu0 %v5350
  %v5386 = vpop.f32.mrb[0].mxu0
  %v5387 = vadd.f32 0.0, %v5386
  %v5388 = vpop.f32.mrb[0].mxu0
  %v5389 = vadd.f32 0.0, %v5388
  %v5390 = vpop.f32.mrb[0].mxu0
  %v5391 = vadd.f32 0.0, %v5390
  %v5392 = vpop.f32.mrb[0].mxu0
  %v5393 = vadd.f32 0.0, %v5392
  %5394 = vdwg.mxu0
  %5395 = vmatprep.subr.bf16.mxu0 %v2944
  %5396 = vmatpush1.bf16.msra.mxu0 %v2943
  %5397 = vmatprep.subr.bf16.mxu0 0
  %5398 = vmatpush1.bf16.msra.mxu0 0
  %5399 = vmatprep.subr.bf16.mxu0 0
  %5400 = vmatpush1.bf16.msra.mxu0 0
  %5401 = vmatprep.subr.bf16.mxu0 0
  %5402 = vmatpush1.bf16.msra.mxu0 0
  %5403 = vmatprep.subr.bf16.mxu0 0
  %5404 = vmatpush1.bf16.msra.mxu0 0
  %5405 = vmatprep.subr.bf16.mxu0 0
  %5406 = vmatpush1.bf16.msra.mxu0 0
  %5407 = vmatprep.subr.bf16.mxu0 0
  %5408 = vmatpush1.bf16.msra.mxu0 0
  %5409 = vmatprep.subr.bf16.mxu0 0
  %5410 = vmatpush1.bf16.msra.mxu0 0
  %5411 = vmatprep.subr.bf16.mxu0 0
  %5412 = vmatpush1.bf16.msra.mxu0 0
  %5413 = vmatprep.subr.bf16.mxu0 0
  %5414 = vmatpush1.bf16.msra.mxu0 0
  %5415 = vmatprep.subr.bf16.mxu0 0
  %5416 = vmatpush1.bf16.msra.mxu0 0
  %5417 = vmatprep.subr.bf16.mxu0 0
  %5418 = vmatpush1.bf16.msra.mxu0 0
  %5419 = vmatprep.subr.bf16.mxu0 0
  %5420 = vmatpush1.bf16.msra.mxu0 0
  %5421 = vmatprep.subr.bf16.mxu0 0
  %5422 = vmatpush1.bf16.msra.mxu0 0
  %5423 = vmatprep.subr.bf16.mxu0 0
  %5424 = vmatpush1.bf16.msra.mxu0 0
  %5425 = vmatprep.subr.bf16.mxu0 0
  %5426 = vmatpush1.bf16.msra.mxu0 0
  %5427 = vmatprep.mubr.bf16.mxu0 0
  %5428 = vmatmul.mubr.bf16.gmra.mrb[0].mxu0 %v5350
  %v5429 = vpop.f32.mrb[0].mxu0
  %v5430 = vadd.f32 0.0, %v5429
  %v5431 = vpop.f32.mrb[0].mxu0
  %v5432 = vadd.f32 0.0, %v5431
  %v5433 = vpop.f32.mrb[0].mxu0
  %v5434 = vadd.f32 0.0, %v5433
  %v5435 = vpop.f32.mrb[0].mxu0
  %v5436 = vadd.f32 0.0, %v5435
  %5437 = vdwg.mxu0
  %v5438 = vadd.f32 %v5337, %v5387
  %v5439 = vadd.f32 %v5338, %v5389
  %v5440 = vadd.f32 %v5339, %v5430
  %v5441 = vadd.f32 %v5340, %v5432
  %v5442 = vadd.f32 %v5341, %v5391
  %v5443 = vadd.f32 %v5342, %v5393
  %v5444 = vadd.f32 %v5343, %v5434
  %v5445 = vadd.f32 %v5344, %v5436
  %5446 = vrot.lane.b32.xlu0 %v4058, 113
  %v5447 = vpop.permute.xlu0 %5446
  %5448 = vrot.lane.b32.xlu0 %v4062, 113
  %v5449 = vpop.permute.xlu0 %5448
  %5450 = vrot.lane.b32.xlu0 %v4059, 113
  %v5451 = vpop.permute.xlu0 %5450
  %5452 = vrot.lane.b32.xlu0 %v4063, 113
  %v5453 = vpop.permute.xlu0 %5452
  %5454 = vrot.lane.b32.xlu0 %v4060, 113
  %v5455 = vpop.permute.xlu0 %5454
  %5456 = vrot.lane.b32.xlu0 %v4064, 113
  %v5457 = vpop.permute.xlu0 %5456
  %5458 = vrot.lane.b32.xlu0 %v4061, 113
  %v5459 = vpop.permute.xlu0 %5458
  %5460 = vrot.lane.b32.xlu0 %v4065, 113
  %v5461 = vpop.permute.xlu0 %5460
  %v5462 = vsel %vm1611, %v5455, %v5459
  %v5463 = vsel %vm1611, %v5457, %v5461
  %v5464 = vsel %vm1611, %v5451, %v5455
  %v5465 = vsel %vm1611, %v5453, %v5457
  %v5466 = vsel %vm1611, %v5447, %v5451
  %v5467 = vsel %vm1611, %v5449, %v5453
  %v5468 = vsel %vm1611, %v5459, %v5447
  %v5469 = vsel %vm1611, %v5461, %v5449
  %v5470 = vsel %vm1624, %v5466, 0.0
  %v5471 = vsel %vm1625, %v5464, 0.0
  %v5472 = vsel %vm1626, %v5462, 0.0
  %v5473 = vsel %vm1627, %v5468, 0.0
  %v5474 = vsel %vm1624, %v5467, 0.0
  %v5475 = vsel %vm1625, %v5465, 0.0
  %v5476 = vsel %vm1626, %v5463, 0.0
  %v5477 = vsel %vm1627, %v5469, 0.0
  %s5478 = scalar_lea.vmem %s15, 96
  %v5479 = vld [vmem:[%s5478] sm:$0xff]
  %v5480 = vld [vmem:[%s5478 + $0x8] sm:$0xff]
  %v5481 = vpack.c.bf16 %v5480, %v5479
  %v5482 = vpack.c.bf16 %v5474, %v5470
  %v5483 = vpack.c.bf16 %v5475, %v5471
  %v5484 = vpack.c.bf16 %v5476, %v5472
  %v5485 = vpack.c.bf16 %v5477, %v5473
  %v5487 = vsel %vm857, %v5481, 0
  %5489 = vmatprep.subr.bf16.mxu0 %v5483
  %5490 = vmatpush1.bf16.msra.mxu0 %v5482
  %5491 = vmatprep.subr.bf16.mxu0 0
  %5492 = vmatpush1.bf16.msra.mxu0 0
  %5493 = vmatprep.subr.bf16.mxu0 0
  %5494 = vmatpush1.bf16.msra.mxu0 0
  %5495 = vmatprep.subr.bf16.mxu0 0
  %5496 = vmatpush1.bf16.msra.mxu0 0
  %5497 = vmatprep.subr.bf16.mxu0 0
  %5498 = vmatpush1.bf16.msra.mxu0 0
  %5499 = vmatprep.subr.bf16.mxu0 0
  %5500 = vmatpush1.bf16.msra.mxu0 0
  %5501 = vmatprep.subr.bf16.mxu0 0
  %5502 = vmatpush1.bf16.msra.mxu0 0
  %5503 = vmatprep.subr.bf16.mxu0 0
  %5504 = vmatpush1.bf16.msra.mxu0 0
  %5505 = vmatprep.subr.bf16.mxu0 0
  %5506 = vmatpush1.bf16.msra.mxu0 0
  %5507 = vmatprep.subr.bf16.mxu0 0
  %5508 = vmatpush1.bf16.msra.mxu0 0
  %5509 = vmatprep.subr.bf16.mxu0 0
  %5510 = vmatpush1.bf16.msra.mxu0 0
  %5511 = vmatprep.subr.bf16.mxu0 0
  %5512 = vmatpush1.bf16.msra.mxu0 0
  %5513 = vmatprep.subr.bf16.mxu0 0
  %5514 = vmatpush1.bf16.msra.mxu0 0
  %5515 = vmatprep.subr.bf16.mxu0 0
  %5516 = vmatpush1.bf16.msra.mxu0 0
  %5517 = vmatprep.subr.bf16.mxu0 0
  %5518 = vmatpush1.bf16.msra.mxu0 0
  %5519 = vmatprep.subr.bf16.mxu0 0
  %5520 = vmatpush1.bf16.msra.mxu0 0
  %5521 = vmatprep.mubr.bf16.mxu0 0
  %5522 = vmatmul.mubr.bf16.gmra.mrb[0].mxu0 %v5487
  %v5523 = vpop.f32.mrb[0].mxu0
  %v5524 = vadd.f32 0.0, %v5523
  %v5525 = vpop.f32.mrb[0].mxu0
  %v5526 = vadd.f32 0.0, %v5525
  %v5527 = vpop.f32.mrb[0].mxu0
  %v5528 = vadd.f32 0.0, %v5527
  %v5529 = vpop.f32.mrb[0].mxu0
  %v5530 = vadd.f32 0.0, %v5529
  %5531 = vdwg.mxu0
  %5532 = vmatprep.subr.bf16.mxu0 %v5485
  %5533 = vmatpush1.bf16.msra.mxu0 %v5484
  %5534 = vmatprep.subr.bf16.mxu0 0
  %5535 = vmatpush1.bf16.msra.mxu0 0
  %5536 = vmatprep.subr.bf16.mxu0 0
  %5537 = vmatpush1.bf16.msra.mxu0 0
  %5538 = vmatprep.subr.bf16.mxu0 0
  %5539 = vmatpush1.bf16.msra.mxu0 0
  %5540 = vmatprep.subr.bf16.mxu0 0
  %5541 = vmatpush1.bf16.msra.mxu0 0
  %5542 = vmatprep.subr.bf16.mxu0 0
  %5543 = vmatpush1.bf16.msra.mxu0 0
  %5544 = vmatprep.subr.bf16.mxu0 0
  %5545 = vmatpush1.bf16.msra.mxu0 0
  %5546 = vmatprep.subr.bf16.mxu0 0
  %5547 = vmatpush1.bf16.msra.mxu0 0
  %5548 = vmatprep.subr.bf16.mxu0 0
  %5549 = vmatpush1.bf16.msra.mxu0 0
  %5550 = vmatprep.subr.bf16.mxu0 0
  %5551 = vmatpush1.bf16.msra.mxu0 0
  %5552 = vmatprep.subr.bf16.mxu0 0
  %5553 = vmatpush1.bf16.msra.mxu0 0
  %5554 = vmatprep.subr.bf16.mxu0 0
  %5555 = vmatpush1.bf16.msra.mxu0 0
  %5556 = vmatprep.subr.bf16.mxu0 0
  %5557 = vmatpush1.bf16.msra.mxu0 0
  %5558 = vmatprep.subr.bf16.mxu0 0
  %5559 = vmatpush1.bf16.msra.mxu0 0
  %5560 = vmatprep.subr.bf16.mxu0 0
  %5561 = vmatpush1.bf16.msra.mxu0 0
  %5562 = vmatprep.subr.bf16.mxu0 0
  %5563 = vmatpush1.bf16.msra.mxu0 0
  %5564 = vmatprep.mubr.bf16.mxu0 0
  %5565 = vmatmul.mubr.bf16.gmra.mrb[0].mxu0 %v5487
  %v5566 = vpop.f32.mrb[0].mxu0
  %v5567 = vadd.f32 0.0, %v5566
  %v5568 = vpop.f32.mrb[0].mxu0
  %v5569 = vadd.f32 0.0, %v5568
  %v5570 = vpop.f32.mrb[0].mxu0
  %v5571 = vadd.f32 0.0, %v5570
  %v5572 = vpop.f32.mrb[0].mxu0
  %v5573 = vadd.f32 0.0, %v5572
  %5574 = vdwg.mxu0
  %v5575 = vadd.f32 %v5438, %v5524
  %v5576 = vadd.f32 %v5439, %v5526
  %v5577 = vadd.f32 %v5440, %v5567
  %v5578 = vadd.f32 %v5441, %v5569
  %v5579 = vadd.f32 %v5442, %v5528
  %v5580 = vadd.f32 %v5443, %v5530
  %v5581 = vadd.f32 %v5444, %v5571
  %v5582 = vadd.f32 %v5445, %v5573
  %s5583 = scalar_lea.vmem %s16, 96
  %v5584 = vld [vmem:[%s5583] sm:$0xff]
  %v5585 = vld [vmem:[%s5583 + $0x8] sm:$0xff]
  %v5586 = vpack.c.bf16 %v5585, %v5584
  %v5588 = vsel %vm857, %v5586, 0
  %5590 = vmatprep.subr.bf16.mxu0 %v3079
  %5591 = vmatpush1.bf16.msra.mxu0 %v3078
  %5592 = vmatprep.subr.bf16.mxu0 0
  %5593 = vmatpush1.bf16.msra.mxu0 0
  %5594 = vmatprep.subr.bf16.mxu0 0
  %5595 = vmatpush1.bf16.msra.mxu0 0
  %5596 = vmatprep.subr.bf16.mxu0 0
  %5597 = vmatpush1.bf16.msra.mxu0 0
  %5598 = vmatprep.subr.bf16.mxu0 0
  %5599 = vmatpush1.bf16.msra.mxu0 0
  %5600 = vmatprep.subr.bf16.mxu0 0
  %5601 = vmatpush1.bf16.msra.mxu0 0
  %5602 = vmatprep.subr.bf16.mxu0 0
  %5603 = vmatpush1.bf16.msra.mxu0 0
  %5604 = vmatprep.subr.bf16.mxu0 0
  %5605 = vmatpush1.bf16.msra.mxu0 0
  %5606 = vmatprep.subr.bf16.mxu0 0
  %5607 = vmatpush1.bf16.msra.mxu0 0
  %5608 = vmatprep.subr.bf16.mxu0 0
  %5609 = vmatpush1.bf16.msra.mxu0 0
  %5610 = vmatprep.subr.bf16.mxu0 0
  %5611 = vmatpush1.bf16.msra.mxu0 0
  %5612 = vmatprep.subr.bf16.mxu0 0
  %5613 = vmatpush1.bf16.msra.mxu0 0
  %5614 = vmatprep.subr.bf16.mxu0 0
  %5615 = vmatpush1.bf16.msra.mxu0 0
  %5616 = vmatprep.subr.bf16.mxu0 0
  %5617 = vmatpush1.bf16.msra.mxu0 0
  %5618 = vmatprep.subr.bf16.mxu0 0
  %5619 = vmatpush1.bf16.msra.mxu0 0
  %5620 = vmatprep.subr.bf16.mxu0 0
  %5621 = vmatpush1.bf16.msra.mxu0 0
  %5622 = vmatprep.mubr.bf16.mxu0 0
  %5623 = vmatmul.mubr.bf16.gmra.mrb[0].mxu0 %v5588
  %v5624 = vpop.f32.mrb[0].mxu0
  %v5625 = vadd.f32 0.0, %v5624
  %v5626 = vpop.f32.mrb[0].mxu0
  %v5627 = vadd.f32 0.0, %v5626
  %v5628 = vpop.f32.mrb[0].mxu0
  %v5629 = vadd.f32 0.0, %v5628
  %v5630 = vpop.f32.mrb[0].mxu0
  %v5631 = vadd.f32 0.0, %v5630
  %5632 = vdwg.mxu0
  %5633 = vmatprep.subr.bf16.mxu0 %v3081
  %5634 = vmatpush1.bf16.msra.mxu0 %v3080
  %5635 = vmatprep.subr.bf16.mxu0 0
  %5636 = vmatpush1.bf16.msra.mxu0 0
  %5637 = vmatprep.subr.bf16.mxu0 0
  %5638 = vmatpush1.bf16.msra.mxu0 0
  %5639 = vmatprep.subr.bf16.mxu0 0
  %5640 = vmatpush1.bf16.msra.mxu0 0
  %5641 = vmatprep.subr.bf16.mxu0 0
  %5642 = vmatpush1.bf16.msra.mxu0 0
  %5643 = vmatprep.subr.bf16.mxu0 0
  %5644 = vmatpush1.bf16.msra.mxu0 0
  %5645 = vmatprep.subr.bf16.mxu0 0
  %5646 = vmatpush1.bf16.msra.mxu0 0
  %5647 = vmatprep.subr.bf16.mxu0 0
  %5648 = vmatpush1.bf16.msra.mxu0 0
  %5649 = vmatprep.subr.bf16.mxu0 0
  %5650 = vmatpush1.bf16.msra.mxu0 0
  %5651 = vmatprep.subr.bf16.mxu0 0
  %5652 = vmatpush1.bf16.msra.mxu0 0
  %5653 = vmatprep.subr.bf16.mxu0 0
  %5654 = vmatpush1.bf16.msra.mxu0 0
  %5655 = vmatprep.subr.bf16.mxu0 0
  %5656 = vmatpush1.bf16.msra.mxu0 0
  %5657 = vmatprep.subr.bf16.mxu0 0
  %5658 = vmatpush1.bf16.msra.mxu0 0
  %5659 = vmatprep.subr.bf16.mxu0 0
  %5660 = vmatpush1.bf16.msra.mxu0 0
  %5661 = vmatprep.subr.bf16.mxu0 0
  %5662 = vmatpush1.bf16.msra.mxu0 0
  %5663 = vmatprep.subr.bf16.mxu0 0
  %5664 = vmatpush1.bf16.msra.mxu0 0
  %5665 = vmatprep.mubr.bf16.mxu0 0
  %5666 = vmatmul.mubr.bf16.gmra.mrb[0].mxu0 %v5588
  %v5667 = vpop.f32.mrb[0].mxu0
  %v5668 = vadd.f32 0.0, %v5667
  %v5669 = vpop.f32.mrb[0].mxu0
  %v5670 = vadd.f32 0.0, %v5669
  %v5671 = vpop.f32.mrb[0].mxu0
  %v5672 = vadd.f32 0.0, %v5671
  %v5673 = vpop.f32.mrb[0].mxu0
  %v5674 = vadd.f32 0.0, %v5673
  %5675 = vdwg.mxu0
  %v5676 = vadd.f32 %v5575, %v5625
  %v5677 = vadd.f32 %v5576, %v5627
  %v5678 = vadd.f32 %v5577, %v5668
  %v5679 = vadd.f32 %v5578, %v5670
  %v5680 = vadd.f32 %v5579, %v5629
  %v5681 = vadd.f32 %v5580, %v5631
  %v5682 = vadd.f32 %v5581, %v5672
  %v5683 = vadd.f32 %v5582, %v5674
  %5684 = vrot.lane.b32.xlu0 %v4058, 112
  %v5685 = vpop.permute.xlu0 %5684
  %5686 = vrot.lane.b32.xlu0 %v4062, 112
  %v5687 = vpop.permute.xlu0 %5686
  %5688 = vrot.lane.b32.xlu0 %v4059, 112
  %v5689 = vpop.permute.xlu0 %5688
  %5690 = vrot.lane.b32.xlu0 %v4063, 112
  %v5691 = vpop.permute.xlu0 %5690
  %5692 = vrot.lane.b32.xlu0 %v4060, 112
  %v5693 = vpop.permute.xlu0 %5692
  %5694 = vrot.lane.b32.xlu0 %v4064, 112
  %v5695 = vpop.permute.xlu0 %5694
  %5696 = vrot.lane.b32.xlu0 %v4061, 112
  %v5697 = vpop.permute.xlu0 %5696
  %5698 = vrot.lane.b32.xlu0 %v4065, 112
  %v5699 = vpop.permute.xlu0 %5698
  %v5700 = vsel %vm1757, %v5693, %v5697
  %v5701 = vsel %vm1757, %v5695, %v5699
  %v5702 = vsel %vm1757, %v5689, %v5693
  %v5703 = vsel %vm1757, %v5691, %v5695
  %v5704 = vsel %vm1757, %v5685, %v5689
  %v5705 = vsel %vm1757, %v5687, %v5691
  %v5706 = vsel %vm1757, %v5697, %v5685
  %v5707 = vsel %vm1757, %v5699, %v5687
  %v5708 = vsel %vm1770, %v5704, 0.0
  %v5709 = vsel %vm1771, %v5702, 0.0
  %v5710 = vsel %vm1772, %v5700, 0.0
  %v5711 = vsel %vm1773, %v5706, 0.0
  %v5712 = vsel %vm1770, %v5705, 0.0
  %v5713 = vsel %vm1771, %v5703, 0.0
  %v5714 = vsel %vm1772, %v5701, 0.0
  %v5715 = vsel %vm1773, %v5707, 0.0
  %s5716 = scalar_lea.vmem %s15, 112
  %v5717 = vld [vmem:[%s5716] sm:$0xff]
  %v5718 = vld [vmem:[%s5716 + $0x8] sm:$0xff]
  %v5719 = vpack.c.bf16 %v5718, %v5717
  %v5720 = vpack.c.bf16 %v5712, %v5708
  %v5721 = vpack.c.bf16 %v5713, %v5709
  %v5722 = vpack.c.bf16 %v5714, %v5710
  %v5723 = vpack.c.bf16 %v5715, %v5711
  %v5725 = vsel %vm857, %v5719, 0
  %5727 = vmatprep.subr.bf16.mxu0 %v5721
  %5728 = vmatpush1.bf16.msra.mxu0 %v5720
  %5729 = vmatprep.subr.bf16.mxu0 0
  %5730 = vmatpush1.bf16.msra.mxu0 0
  %5731 = vmatprep.subr.bf16.mxu0 0
  %5732 = vmatpush1.bf16.msra.mxu0 0
  %5733 = vmatprep.subr.bf16.mxu0 0
  %5734 = vmatpush1.bf16.msra.mxu0 0
  %5735 = vmatprep.subr.bf16.mxu0 0
  %5736 = vmatpush1.bf16.msra.mxu0 0
  %5737 = vmatprep.subr.bf16.mxu0 0
  %5738 = vmatpush1.bf16.msra.mxu0 0
  %5739 = vmatprep.subr.bf16.mxu0 0
  %5740 = vmatpush1.bf16.msra.mxu0 0
  %5741 = vmatprep.subr.bf16.mxu0 0
  %5742 = vmatpush1.bf16.msra.mxu0 0
  %5743 = vmatprep.subr.bf16.mxu0 0
  %5744 = vmatpush1.bf16.msra.mxu0 0
  %5745 = vmatprep.subr.bf16.mxu0 0
  %5746 = vmatpush1.bf16.msra.mxu0 0
  %5747 = vmatprep.subr.bf16.mxu0 0
  %5748 = vmatpush1.bf16.msra.mxu0 0
  %5749 = vmatprep.subr.bf16.mxu0 0
  %5750 = vmatpush1.bf16.msra.mxu0 0
  %5751 = vmatprep.subr.bf16.mxu0 0
  %5752 = vmatpush1.bf16.msra.mxu0 0
  %5753 = vmatprep.subr.bf16.mxu0 0
  %5754 = vmatpush1.bf16.msra.mxu0 0
  %5755 = vmatprep.subr.bf16.mxu0 0
  %5756 = vmatpush1.bf16.msra.mxu0 0
  %5757 = vmatprep.subr.bf16.mxu0 0
  %5758 = vmatpush1.bf16.msra.mxu0 0
  %5759 = vmatprep.mubr.bf16.mxu0 0
  %5760 = vmatmul.mubr.bf16.gmra.mrb[0].mxu0 %v5725
  %v5761 = vpop.f32.mrb[0].mxu0
  %v5762 = vadd.f32 0.0, %v5761
  %v5763 = vpop.f32.mrb[0].mxu0
  %v5764 = vadd.f32 0.0, %v5763
  %v5765 = vpop.f32.mrb[0].mxu0
  %v5766 = vadd.f32 0.0, %v5765
  %v5767 = vpop.f32.mrb[0].mxu0
  %v5768 = vadd.f32 0.0, %v5767
  %5769 = vdwg.mxu0
  %5770 = vmatprep.subr.bf16.mxu0 %v5723
  %5771 = vmatpush1.bf16.msra.mxu0 %v5722
  %5772 = vmatprep.subr.bf16.mxu0 0
  %5773 = vmatpush1.bf16.msra.mxu0 0
  %5774 = vmatprep.subr.bf16.mxu0 0
  %5775 = vmatpush1.bf16.msra.mxu0 0
  %5776 = vmatprep.subr.bf16.mxu0 0
  %5777 = vmatpush1.bf16.msra.mxu0 0
  %5778 = vmatprep.subr.bf16.mxu0 0
  %5779 = vmatpush1.bf16.msra.mxu0 0
  %5780 = vmatprep.subr.bf16.mxu0 0
  %5781 = vmatpush1.bf16.msra.mxu0 0
  %5782 = vmatprep.subr.bf16.mxu0 0
  %5783 = vmatpush1.bf16.msra.mxu0 0
  %5784 = vmatprep.subr.bf16.mxu0 0
  %5785 = vmatpush1.bf16.msra.mxu0 0
  %5786 = vmatprep.subr.bf16.mxu0 0
  %5787 = vmatpush1.bf16.msra.mxu0 0
  %5788 = vmatprep.subr.bf16.mxu0 0
  %5789 = vmatpush1.bf16.msra.mxu0 0
  %5790 = vmatprep.subr.bf16.mxu0 0
  %5791 = vmatpush1.bf16.msra.mxu0 0
  %5792 = vmatprep.subr.bf16.mxu0 0
  %5793 = vmatpush1.bf16.msra.mxu0 0
  %5794 = vmatprep.subr.bf16.mxu0 0
  %5795 = vmatpush1.bf16.msra.mxu0 0
  %5796 = vmatprep.subr.bf16.mxu0 0
  %5797 = vmatpush1.bf16.msra.mxu0 0
  %5798 = vmatprep.subr.bf16.mxu0 0
  %5799 = vmatpush1.bf16.msra.mxu0 0
  %5800 = vmatprep.subr.bf16.mxu0 0
  %5801 = vmatpush1.bf16.msra.mxu0 0
  %5802 = vmatprep.mubr.bf16.mxu0 0
  %5803 = vmatmul.mubr.bf16.gmra.mrb[0].mxu0 %v5725
  %v5804 = vpop.f32.mrb[0].mxu0
  %v5805 = vadd.f32 0.0, %v5804
  %v5806 = vpop.f32.mrb[0].mxu0
  %v5807 = vadd.f32 0.0, %v5806
  %v5808 = vpop.f32.mrb[0].mxu0
  %v5809 = vadd.f32 0.0, %v5808
  %v5810 = vpop.f32.mrb[0].mxu0
  %v5811 = vadd.f32 0.0, %v5810
  %5812 = vdwg.mxu0
  %v5813 = vadd.f32 %v5676, %v5762
  %v5814 = vadd.f32 %v5677, %v5764
  %v5815 = vadd.f32 %v5678, %v5805
  %v5816 = vadd.f32 %v5679, %v5807
  %v5817 = vadd.f32 %v5680, %v5766
  %v5818 = vadd.f32 %v5681, %v5768
  %v5819 = vadd.f32 %v5682, %v5809
  %v5820 = vadd.f32 %v5683, %v5811
  %s5821 = scalar_lea.vmem %s16, 112
  %v5822 = vld [vmem:[%s5821] sm:$0xff]
  %v5823 = vld [vmem:[%s5821 + $0x8] sm:$0xff]
  %v5824 = vpack.c.bf16 %v5823, %v5822
  %v5826 = vsel %vm857, %v5824, 0
  %5828 = vmatprep.subr.bf16.mxu0 %v3216
  %5829 = vmatpush1.bf16.msra.mxu0 %v3215
  %5830 = vmatprep.subr.bf16.mxu0 0
  %5831 = vmatpush1.bf16.msra.mxu0 0
  %5832 = vmatprep.subr.bf16.mxu0 0
  %5833 = vmatpush1.bf16.msra.mxu0 0
  %5834 = vmatprep.subr.bf16.mxu0 0
  %5835 = vmatpush1.bf16.msra.mxu0 0
  %5836 = vmatprep.subr.bf16.mxu0 0
  %5837 = vmatpush1.bf16.msra.mxu0 0
  %5838 = vmatprep.subr.bf16.mxu0 0
  %5839 = vmatpush1.bf16.msra.mxu0 0
  %5840 = vmatprep.subr.bf16.mxu0 0
  %5841 = vmatpush1.bf16.msra.mxu0 0
  %5842 = vmatprep.subr.bf16.mxu0 0
  %5843 = vmatpush1.bf16.msra.mxu0 0
  %5844 = vmatprep.subr.bf16.mxu0 0
  %5845 = vmatpush1.bf16.msra.mxu0 0
  %5846 = vmatprep.subr.bf16.mxu0 0
  %5847 = vmatpush1.bf16.msra.mxu0 0
  %5848 = vmatprep.subr.bf16.mxu0 0
  %5849 = vmatpush1.bf16.msra.mxu0 0
  %5850 = vmatprep.subr.bf16.mxu0 0
  %5851 = vmatpush1.bf16.msra.mxu0 0
  %5852 = vmatprep.subr.bf16.mxu0 0
  %5853 = vmatpush1.bf16.msra.mxu0 0
  %5854 = vmatprep.subr.bf16.mxu0 0
  %5855 = vmatpush1.bf16.msra.mxu0 0
  %5856 = vmatprep.subr.bf16.mxu0 0
  %5857 = vmatpush1.bf16.msra.mxu0 0
  %5858 = vmatprep.subr.bf16.mxu0 0
  %5859 = vmatpush1.bf16.msra.mxu0 0
  %5860 = vmatprep.mubr.bf16.mxu0 0
  %5861 = vmatmul.mubr.bf16.gmra.mrb[0].mxu0 %v5826
  %v5862 = vpop.f32.mrb[0].mxu0
  %v5863 = vadd.f32 0.0, %v5862
  %v5864 = vpop.f32.mrb[0].mxu0
  %v5865 = vadd.f32 0.0, %v5864
  %v5866 = vpop.f32.mrb[0].mxu0
  %v5867 = vadd.f32 0.0, %v5866
  %v5868 = vpop.f32.mrb[0].mxu0
  %v5869 = vadd.f32 0.0, %v5868
  %5870 = vdwg.mxu0
  %5871 = vmatprep.subr.bf16.mxu0 %v3218
  %5872 = vmatpush1.bf16.msra.mxu0 %v3217
  %5873 = vmatprep.subr.bf16.mxu0 0
  %5874 = vmatpush1.bf16.msra.mxu0 0
  %5875 = vmatprep.subr.bf16.mxu0 0
  %5876 = vmatpush1.bf16.msra.mxu0 0
  %5877 = vmatprep.subr.bf16.mxu0 0
  %5878 = vmatpush1.bf16.msra.mxu0 0
  %5879 = vmatprep.subr.bf16.mxu0 0
  %5880 = vmatpush1.bf16.msra.mxu0 0
  %5881 = vmatprep.subr.bf16.mxu0 0
  %5882 = vmatpush1.bf16.msra.mxu0 0
  %5883 = vmatprep.subr.bf16.mxu0 0
  %5884 = vmatpush1.bf16.msra.mxu0 0
  %5885 = vmatprep.subr.bf16.mxu0 0
  %5886 = vmatpush1.bf16.msra.mxu0 0
  %5887 = vmatprep.subr.bf16.mxu0 0
  %5888 = vmatpush1.bf16.msra.mxu0 0
  %5889 = vmatprep.subr.bf16.mxu0 0
  %5890 = vmatpush1.bf16.msra.mxu0 0
  %5891 = vmatprep.subr.bf16.mxu0 0
  %5892 = vmatpush1.bf16.msra.mxu0 0
  %5893 = vmatprep.subr.bf16.mxu0 0
  %5894 = vmatpush1.bf16.msra.mxu0 0
  %5895 = vmatprep.subr.bf16.mxu0 0
  %5896 = vmatpush1.bf16.msra.mxu0 0
  %5897 = vmatprep.subr.bf16.mxu0 0
  %5898 = vmatpush1.bf16.msra.mxu0 0
  %5899 = vmatprep.subr.bf16.mxu0 0
  %5900 = vmatpush1.bf16.msra.mxu0 0
  %5901 = vmatprep.subr.bf16.mxu0 0
  %5902 = vmatpush1.bf16.msra.mxu0 0
  %5903 = vmatprep.mubr.bf16.mxu0 0
  %5904 = vmatmul.mubr.bf16.gmra.mrb[0].mxu0 %v5826
  %v5905 = vpop.f32.mrb[0].mxu0
  %v5906 = vadd.f32 0.0, %v5905
  %v5907 = vpop.f32.mrb[0].mxu0
  %v5908 = vadd.f32 0.0, %v5907
  %v5909 = vpop.f32.mrb[0].mxu0
  %v5910 = vadd.f32 0.0, %v5909
  %v5911 = vpop.f32.mrb[0].mxu0
  %v5912 = vadd.f32 0.0, %v5911
  %5913 = vdwg.mxu0
  %v5914 = vadd.f32 %v5813, %v5863
  %v5915 = vadd.f32 %v5814, %v5865
  %v5916 = vadd.f32 %v5815, %v5906
  %v5917 = vadd.f32 %v5816, %v5908
  %v5918 = vadd.f32 %v5817, %v5867
  %v5919 = vadd.f32 %v5818, %v5869
  %v5920 = vadd.f32 %v5819, %v5910
  %v5921 = vadd.f32 %v5820, %v5912
  %5922 = vrot.lane.b32.xlu0 %v4058, 111
  %v5923 = vpop.permute.xlu0 %5922
  %5924 = vrot.lane.b32.xlu0 %v4062, 111
  %v5925 = vpop.permute.xlu0 %5924
  %5926 = vrot.lane.b32.xlu0 %v4059, 111
  %v5927 = vpop.permute.xlu0 %5926
  %5928 = vrot.lane.b32.xlu0 %v4063, 111
  %v5929 = vpop.permute.xlu0 %5928
  %5930 = vrot.lane.b32.xlu0 %v4060, 111
  %v5931 = vpop.permute.xlu0 %5930
  %5932 = vrot.lane.b32.xlu0 %v4064, 111
  %v5933 = vpop.permute.xlu0 %5932
  %5934 = vrot.lane.b32.xlu0 %v4061, 111
  %v5935 = vpop.permute.xlu0 %5934
  %5936 = vrot.lane.b32.xlu0 %v4065, 111
  %v5937 = vpop.permute.xlu0 %5936
  %v5938 = vsel %vm1907, %v5931, %v5935
  %v5939 = vsel %vm1907, %v5933, %v5937
  %v5940 = vsel %vm1907, %v5927, %v5931
  %v5941 = vsel %vm1907, %v5929, %v5933
  %v5942 = vsel %vm1907, %v5923, %v5927
  %v5943 = vsel %vm1907, %v5925, %v5929
  %v5944 = vsel %vm1907, %v5935, %v5923
  %v5945 = vsel %vm1907, %v5937, %v5925
  %v5946 = vsel %vm1920, %v5942, 0.0
  %v5947 = vsel %vm1921, %v5940, 0.0
  %v5948 = vsel %vm1922, %v5938, 0.0
  %v5949 = vsel %vm1923, %v5944, 0.0
  %v5950 = vsel %vm1920, %v5943, 0.0
  %v5951 = vsel %vm1921, %v5941, 0.0
  %v5952 = vsel %vm1922, %v5939, 0.0
  %v5953 = vsel %vm1923, %v5945, 0.0
  %s5954 = scalar_lea.vmem %s15, 128
  %v5955 = vld [vmem:[%s5954] sm:$0xff]
  %v5956 = vld [vmem:[%s5954 + $0x8] sm:$0xff]
  %v5957 = vpack.c.bf16 %v5956, %v5955
  %v5958 = vpack.c.bf16 %v5950, %v5946
  %v5959 = vpack.c.bf16 %v5951, %v5947
  %v5960 = vpack.c.bf16 %v5952, %v5948
  %v5961 = vpack.c.bf16 %v5953, %v5949
  %v5963 = vsel %vm857, %v5957, 0
  %5965 = vmatprep.subr.bf16.mxu0 %v5959
  %5966 = vmatpush1.bf16.msra.mxu0 %v5958
  %5967 = vmatprep.subr.bf16.mxu0 0
  %5968 = vmatpush1.bf16.msra.mxu0 0
  %5969 = vmatprep.subr.bf16.mxu0 0
  %5970 = vmatpush1.bf16.msra.mxu0 0
  %5971 = vmatprep.subr.bf16.mxu0 0
  %5972 = vmatpush1.bf16.msra.mxu0 0
  %5973 = vmatprep.subr.bf16.mxu0 0
  %5974 = vmatpush1.bf16.msra.mxu0 0
  %5975 = vmatprep.subr.bf16.mxu0 0
  %5976 = vmatpush1.bf16.msra.mxu0 0
  %5977 = vmatprep.subr.bf16.mxu0 0
  %5978 = vmatpush1.bf16.msra.mxu0 0
  %5979 = vmatprep.subr.bf16.mxu0 0
  %5980 = vmatpush1.bf16.msra.mxu0 0
  %5981 = vmatprep.subr.bf16.mxu0 0
  %5982 = vmatpush1.bf16.msra.mxu0 0
  %5983 = vmatprep.subr.bf16.mxu0 0
  %5984 = vmatpush1.bf16.msra.mxu0 0
  %5985 = vmatprep.subr.bf16.mxu0 0
  %5986 = vmatpush1.bf16.msra.mxu0 0
  %5987 = vmatprep.subr.bf16.mxu0 0
  %5988 = vmatpush1.bf16.msra.mxu0 0
  %5989 = vmatprep.subr.bf16.mxu0 0
  %5990 = vmatpush1.bf16.msra.mxu0 0
  %5991 = vmatprep.subr.bf16.mxu0 0
  %5992 = vmatpush1.bf16.msra.mxu0 0
  %5993 = vmatprep.subr.bf16.mxu0 0
  %5994 = vmatpush1.bf16.msra.mxu0 0
  %5995 = vmatprep.subr.bf16.mxu0 0
  %5996 = vmatpush1.bf16.msra.mxu0 0
  %5997 = vmatprep.mubr.bf16.mxu0 0
  %5998 = vmatmul.mubr.bf16.gmra.mrb[0].mxu0 %v5963
  %v5999 = vpop.f32.mrb[0].mxu0
  %v6000 = vadd.f32 0.0, %v5999
  %v6001 = vpop.f32.mrb[0].mxu0
  %v6002 = vadd.f32 0.0, %v6001
  %v6003 = vpop.f32.mrb[0].mxu0
  %v6004 = vadd.f32 0.0, %v6003
  %v6005 = vpop.f32.mrb[0].mxu0
  %v6006 = vadd.f32 0.0, %v6005
  %6007 = vdwg.mxu0
  %6008 = vmatprep.subr.bf16.mxu0 %v5961
  %6009 = vmatpush1.bf16.msra.mxu0 %v5960
  %6010 = vmatprep.subr.bf16.mxu0 0
  %6011 = vmatpush1.bf16.msra.mxu0 0
  %6012 = vmatprep.subr.bf16.mxu0 0
  %6013 = vmatpush1.bf16.msra.mxu0 0
  %6014 = vmatprep.subr.bf16.mxu0 0
  %6015 = vmatpush1.bf16.msra.mxu0 0
  %6016 = vmatprep.subr.bf16.mxu0 0
  %6017 = vmatpush1.bf16.msra.mxu0 0
  %6018 = vmatprep.subr.bf16.mxu0 0
  %6019 = vmatpush1.bf16.msra.mxu0 0
  %6020 = vmatprep.subr.bf16.mxu0 0
  %6021 = vmatpush1.bf16.msra.mxu0 0
  %6022 = vmatprep.subr.bf16.mxu0 0
  %6023 = vmatpush1.bf16.msra.mxu0 0
  %6024 = vmatprep.subr.bf16.mxu0 0
  %6025 = vmatpush1.bf16.msra.mxu0 0
  %6026 = vmatprep.subr.bf16.mxu0 0
  %6027 = vmatpush1.bf16.msra.mxu0 0
  %6028 = vmatprep.subr.bf16.mxu0 0
  %6029 = vmatpush1.bf16.msra.mxu0 0
  %6030 = vmatprep.subr.bf16.mxu0 0
  %6031 = vmatpush1.bf16.msra.mxu0 0
  %6032 = vmatprep.subr.bf16.mxu0 0
  %6033 = vmatpush1.bf16.msra.mxu0 0
  %6034 = vmatprep.subr.bf16.mxu0 0
  %6035 = vmatpush1.bf16.msra.mxu0 0
  %6036 = vmatprep.subr.bf16.mxu0 0
  %6037 = vmatpush1.bf16.msra.mxu0 0
  %6038 = vmatprep.subr.bf16.mxu0 0
  %6039 = vmatpush1.bf16.msra.mxu0 0
  %6040 = vmatprep.mubr.bf16.mxu0 0
  %6041 = vmatmul.mubr.bf16.gmra.mrb[0].mxu0 %v5963
  %v6042 = vpop.f32.mrb[0].mxu0
  %v6043 = vadd.f32 0.0, %v6042
  %v6044 = vpop.f32.mrb[0].mxu0
  %v6045 = vadd.f32 0.0, %v6044
  %v6046 = vpop.f32.mrb[0].mxu0
  %v6047 = vadd.f32 0.0, %v6046
  %v6048 = vpop.f32.mrb[0].mxu0
  %v6049 = vadd.f32 0.0, %v6048
  %6050 = vdwg.mxu0
  %v6051 = vadd.f32 %v5914, %v6000
  %v6052 = vadd.f32 %v5915, %v6002
  %v6053 = vadd.f32 %v5916, %v6043
  %v6054 = vadd.f32 %v5917, %v6045
  %v6055 = vadd.f32 %v5918, %v6004
  %v6056 = vadd.f32 %v5919, %v6006
  %v6057 = vadd.f32 %v5920, %v6047
  %v6058 = vadd.f32 %v5921, %v6049
  %s6059 = scalar_lea.vmem %s16, 128
  %v6060 = vld [vmem:[%s6059] sm:$0xff]
  %v6061 = vld [vmem:[%s6059 + $0x8] sm:$0xff]
  %v6062 = vpack.c.bf16 %v6061, %v6060
  %v6064 = vsel %vm857, %v6062, 0
  %6066 = vmatprep.subr.bf16.mxu0 %v3353
  %6067 = vmatpush1.bf16.msra.mxu0 %v3352
  %6068 = vmatprep.subr.bf16.mxu0 0
  %6069 = vmatpush1.bf16.msra.mxu0 0
  %6070 = vmatprep.subr.bf16.mxu0 0
  %6071 = vmatpush1.bf16.msra.mxu0 0
  %6072 = vmatprep.subr.bf16.mxu0 0
  %6073 = vmatpush1.bf16.msra.mxu0 0
  %6074 = vmatprep.subr.bf16.mxu0 0
  %6075 = vmatpush1.bf16.msra.mxu0 0
  %6076 = vmatprep.subr.bf16.mxu0 0
  %6077 = vmatpush1.bf16.msra.mxu0 0
  %6078 = vmatprep.subr.bf16.mxu0 0
  %6079 = vmatpush1.bf16.msra.mxu0 0
  %6080 = vmatprep.subr.bf16.mxu0 0
  %6081 = vmatpush1.bf16.msra.mxu0 0
  %6082 = vmatprep.subr.bf16.mxu0 0
  %6083 = vmatpush1.bf16.msra.mxu0 0
  %6084 = vmatprep.subr.bf16.mxu0 0
  %6085 = vmatpush1.bf16.msra.mxu0 0
  %6086 = vmatprep.subr.bf16.mxu0 0
  %6087 = vmatpush1.bf16.msra.mxu0 0
  %6088 = vmatprep.subr.bf16.mxu0 0
  %6089 = vmatpush1.bf16.msra.mxu0 0
  %6090 = vmatprep.subr.bf16.mxu0 0
  %6091 = vmatpush1.bf16.msra.mxu0 0
  %6092 = vmatprep.subr.bf16.mxu0 0
  %6093 = vmatpush1.bf16.msra.mxu0 0
  %6094 = vmatprep.subr.bf16.mxu0 0
  %6095 = vmatpush1.bf16.msra.mxu0 0
  %6096 = vmatprep.subr.bf16.mxu0 0
  %6097 = vmatpush1.bf16.msra.mxu0 0
  %6098 = vmatprep.mubr.bf16.mxu0 0
  %6099 = vmatmul.mubr.bf16.gmra.mrb[0].mxu0 %v6064
  %v6100 = vpop.f32.mrb[0].mxu0
  %v6101 = vadd.f32 0.0, %v6100
  %v6102 = vpop.f32.mrb[0].mxu0
  %v6103 = vadd.f32 0.0, %v6102
  %v6104 = vpop.f32.mrb[0].mxu0
  %v6105 = vadd.f32 0.0, %v6104
  %v6106 = vpop.f32.mrb[0].mxu0
  %v6107 = vadd.f32 0.0, %v6106
  %6108 = vdwg.mxu0
  %6109 = vmatprep.subr.bf16.mxu0 %v3355
  %6110 = vmatpush1.bf16.msra.mxu0 %v3354
  %6111 = vmatprep.subr.bf16.mxu0 0
  %6112 = vmatpush1.bf16.msra.mxu0 0
  %6113 = vmatprep.subr.bf16.mxu0 0
  %6114 = vmatpush1.bf16.msra.mxu0 0
  %6115 = vmatprep.subr.bf16.mxu0 0
  %6116 = vmatpush1.bf16.msra.mxu0 0
  %6117 = vmatprep.subr.bf16.mxu0 0
  %6118 = vmatpush1.bf16.msra.mxu0 0
  %6119 = vmatprep.subr.bf16.mxu0 0
  %6120 = vmatpush1.bf16.msra.mxu0 0
  %6121 = vmatprep.subr.bf16.mxu0 0
  %6122 = vmatpush1.bf16.msra.mxu0 0
  %6123 = vmatprep.subr.bf16.mxu0 0
  %6124 = vmatpush1.bf16.msra.mxu0 0
  %6125 = vmatprep.subr.bf16.mxu0 0
  %6126 = vmatpush1.bf16.msra.mxu0 0
  %6127 = vmatprep.subr.bf16.mxu0 0
  %6128 = vmatpush1.bf16.msra.mxu0 0
  %6129 = vmatprep.subr.bf16.mxu0 0
  %6130 = vmatpush1.bf16.msra.mxu0 0
  %6131 = vmatprep.subr.bf16.mxu0 0
  %6132 = vmatpush1.bf16.msra.mxu0 0
  %6133 = vmatprep.subr.bf16.mxu0 0
  %6134 = vmatpush1.bf16.msra.mxu0 0
  %6135 = vmatprep.subr.bf16.mxu0 0
  %6136 = vmatpush1.bf16.msra.mxu0 0
  %6137 = vmatprep.subr.bf16.mxu0 0
  %6138 = vmatpush1.bf16.msra.mxu0 0
  %6139 = vmatprep.subr.bf16.mxu0 0
  %6140 = vmatpush1.bf16.msra.mxu0 0
  %6141 = vmatprep.mubr.bf16.mxu0 0
  %6142 = vmatmul.mubr.bf16.gmra.mrb[0].mxu0 %v6064
  %v6143 = vpop.f32.mrb[0].mxu0
  %v6144 = vadd.f32 0.0, %v6143
  %v6145 = vpop.f32.mrb[0].mxu0
  %v6146 = vadd.f32 0.0, %v6145
  %v6147 = vpop.f32.mrb[0].mxu0
  %v6148 = vadd.f32 0.0, %v6147
  %v6149 = vpop.f32.mrb[0].mxu0
  %v6150 = vadd.f32 0.0, %v6149
  %6151 = vdwg.mxu0
  %v6152 = vadd.f32 %v6051, %v6101
  %v6153 = vadd.f32 %v6052, %v6103
  %v6154 = vadd.f32 %v6053, %v6144
  %v6155 = vadd.f32 %v6054, %v6146
  %v6156 = vadd.f32 %v6055, %v6105
  %v6157 = vadd.f32 %v6056, %v6107
  %v6158 = vadd.f32 %v6057, %v6148
  %v6159 = vadd.f32 %v6058, %v6150
  %6161 = vset.pattern.permute.xlu0 0
  %6162 = vperm.xlu0 %6161, %v4066
  %v6163 = vpop.permute.xlu0 %6162
  %6166 = vset.pattern.permute.xlu0 0
  %6167 = vperm.xlu0 %6166, %v4067
  %v6168 = vpop.permute.xlu0 %6167
  %v6170 = vmul.f32 %v6163, %v6152
  %v6171 = vmul.f32 %v6163, %v6153
  %v6172 = vmul.f32 %v6163, %v6154
  %v6173 = vmul.f32 %v6163, %v6155
  %v6174 = vmul.f32 %v6168, %v6156
  %v6175 = vmul.f32 %v6168, %v6157
  %v6176 = vmul.f32 %v6168, %v6158
  %v6177 = vmul.f32 %v6168, %v6159
  %v6178 = vld [vmem:[%s18] sm:$0xff]
  %v6179 = vld [vmem:[%s18 + $0x8] sm:$0xff]
  %6181 = vset.pattern.permute.xlu0 0
  %6182 = vperm.xlu0 %6181, %v6178
  %v6183 = vpop.permute.xlu0 %6182
  %6186 = vset.pattern.permute.xlu0 0
  %6187 = vperm.xlu0 %6186, %v6179
  %v6188 = vpop.permute.xlu0 %6187
  %v6190 = vadd.f32 %v6170, %v6183
  %v6191 = vadd.f32 %v6171, %v6183
  %v6192 = vadd.f32 %v6172, %v6183
  %v6193 = vadd.f32 %v6173, %v6183
  %v6194 = vadd.f32 %v6174, %v6188
  %v6195 = vadd.f32 %v6175, %v6188
  %v6196 = vadd.f32 %v6176, %v6188
  %v6197 = vadd.f32 %v6177, %v6188
  %vm6198 = vcmp.gt.f32.partialorder %v6190, 0.0
  %vm6199 = vcmp.gt.f32.partialorder %v6191, 0.0
  %vm6200 = vcmp.gt.f32.partialorder %v6192, 0.0
  %vm6201 = vcmp.gt.f32.partialorder %v6193, 0.0
  %vm6202 = vcmp.gt.f32.partialorder %v6194, 0.0
  %vm6203 = vcmp.gt.f32.partialorder %v6195, 0.0
  %vm6204 = vcmp.gt.f32.partialorder %v6196, 0.0
  %vm6205 = vcmp.gt.f32.partialorder %v6197, 0.0
  %v6206 = vmul.f32 %v6190, 0.1
  %v6207 = vmul.f32 %v6191, 0.1
  %v6208 = vmul.f32 %v6192, 0.1
  %v6209 = vmul.f32 %v6193, 0.1
  %v6210 = vmul.f32 %v6194, 0.1
  %v6211 = vmul.f32 %v6195, 0.1
  %v6212 = vmul.f32 %v6196, 0.1
  %v6213 = vmul.f32 %v6197, 0.1
  %v6214 = vsel %vm6198, %v6190, %v6206
  %v6215 = vsel %vm6199, %v6191, %v6207
  %v6216 = vsel %vm6200, %v6192, %v6208
  %v6217 = vsel %vm6201, %v6193, %v6209
  %v6218 = vsel %vm6202, %v6194, %v6210
  %v6219 = vsel %vm6203, %v6195, %v6211
  %v6220 = vsel %vm6204, %v6196, %v6212
  %v6221 = vsel %vm6205, %v6197, %v6213
  %v6222 = vld [vmem:[%s19] sm:$0xff]
  %v6223 = vld [vmem:[%s19 + $0x8] sm:$0xff]
  %v6224 = vld [vmem:[%s19 + $0x10] sm:$0xff]
  %v6225 = vpack.c.bf16 %v6223, %v6222
  %v6226 = vpack.c.bf16 %v6224, %v6224
  %v6227 = vpack.c.bf16 %v6218, %v6214
  %v6228 = vpack.c.bf16 %v6219, %v6215
  %v6229 = vpack.c.bf16 %v6220, %v6216
  %v6230 = vpack.c.bf16 %v6221, %v6217
  %v6231 = vld [vmem:[%s20] sm:$0xff]
  %v6232 = vld [vmem:[%s20 + $0x8] sm:$0xff]
  %v6233 = vld [vmem:[%s20 + $0x10] sm:$0xff]
  %6235 = vset.pattern.permute.xlu0 0
  %6236 = vperm.xlu0 %6235, %v6231
  %v6237 = vpop.permute.xlu0 %6236
  %6240 = vset.pattern.permute.xlu0 0
  %6241 = vperm.xlu0 %6240, %v6232
  %v6242 = vpop.permute.xlu0 %6241
  %6245 = vset.pattern.permute.xlu0 0
  %6246 = vperm.xlu0 %6245, %v6233
  %v6247 = vpop.permute.xlu0 %6246
  %v6250 = vsel %vm857, %v6225, 0
  %v6253 = vsel %vm857, %v6226, 0
  %6255 = vmatprep.subr.bf16.mxu0 %v6228
  %6256 = vmatpush1.bf16.msra.mxu0 %v6227
  %6257 = vmatprep.subr.bf16.mxu0 0
  %6258 = vmatpush1.bf16.msra.mxu0 0
  %6259 = vmatprep.subr.bf16.mxu0 0
  %6260 = vmatpush1.bf16.msra.mxu0 0
  %6261 = vmatprep.subr.bf16.mxu0 0
  %6262 = vmatpush1.bf16.msra.mxu0 0
  %6263 = vmatprep.subr.bf16.mxu0 0
  %6264 = vmatpush1.bf16.msra.mxu0 0
  %6265 = vmatprep.subr.bf16.mxu0 0
  %6266 = vmatpush1.bf16.msra.mxu0 0
  %6267 = vmatprep.subr.bf16.mxu0 0
  %6268 = vmatpush1.bf16.msra.mxu0 0
  %6269 = vmatprep.subr.bf16.mxu0 0
  %6270 = vmatpush1.bf16.msra.mxu0 0
  %6271 = vmatprep.subr.bf16.mxu0 0
  %6272 = vmatpush1.bf16.msra.mxu0 0
  %6273 = vmatprep.subr.bf16.mxu0 0
  %6274 = vmatpush1.bf16.msra.mxu0 0
  %6275 = vmatprep.subr.bf16.mxu0 0
  %6276 = vmatpush1.bf16.msra.mxu0 0
  %6277 = vmatprep.subr.bf16.mxu0 0
  %6278 = vmatpush1.bf16.msra.mxu0 0
  %6279 = vmatprep.subr.bf16.mxu0 0
  %6280 = vmatpush1.bf16.msra.mxu0 0
  %6281 = vmatprep.subr.bf16.mxu0 0
  %6282 = vmatpush1.bf16.msra.mxu0 0
  %6283 = vmatprep.subr.bf16.mxu0 0
  %6284 = vmatpush1.bf16.msra.mxu0 0
  %6285 = vmatprep.subr.bf16.mxu0 0
  %6286 = vmatpush1.bf16.msra.mxu0 0
  %6287 = vmatprep.mubr.bf16.mxu0 0
  %6288 = vmatmul.mubr.bf16.gmra.mrb[0].mxu0 %v6250
  %v6289 = vpop.f32.mrb[0].mxu0
  %v6290 = vadd.f32 %v6237, %v6289
  %v6291 = vpop.f32.mrb[0].mxu0
  %v6292 = vadd.f32 %v6237, %v6291
  %v6293 = vpop.f32.mrb[0].mxu0
  %v6294 = vadd.f32 %v6242, %v6293
  %v6295 = vpop.f32.mrb[0].mxu0
  %v6296 = vadd.f32 %v6242, %v6295
  %6297 = vmatprep.mubr.bf16.mxu0 0
  %6298 = vmatmul.mubr.bf16.gmra.mrb[0].mxu0 %v6253
  %v6299 = vpop.f32.mrb[0].mxu0
  %v6300 = vadd.f32 %v6247, %v6299
  %v6301 = vpop.f32.mrb[0].mxu0
  %v6302 = vadd.f32 %v6247, %v6301
  %v6303 = vpop.f32.mrb[0].mxu0
  %v6304 = vpop.f32.mrb[0].mxu0
  %6305 = vdwg.mxu0
  %6306 = vmatprep.subr.bf16.mxu0 %v6230
  %6307 = vmatpush1.bf16.msra.mxu0 %v6229
  %6308 = vmatprep.subr.bf16.mxu0 0
  %6309 = vmatpush1.bf16.msra.mxu0 0
  %6310 = vmatprep.subr.bf16.mxu0 0
  %6311 = vmatpush1.bf16.msra.mxu0 0
  %6312 = vmatprep.subr.bf16.mxu0 0
  %6313 = vmatpush1.bf16.msra.mxu0 0
  %6314 = vmatprep.subr.bf16.mxu0 0
  %6315 = vmatpush1.bf16.msra.mxu0 0
  %6316 = vmatprep.subr.bf16.mxu0 0
  %6317 = vmatpush1.bf16.msra.mxu0 0
  %6318 = vmatprep.subr.bf16.mxu0 0
  %6319 = vmatpush1.bf16.msra.mxu0 0
  %6320 = vmatprep.subr.bf16.mxu0 0
  %6321 = vmatpush1.bf16.msra.mxu0 0
  %6322 = vmatprep.subr.bf16.mxu0 0
  %6323 = vmatpush1.bf16.msra.mxu0 0
  %6324 = vmatprep.subr.bf16.mxu0 0
  %6325 = vmatpush1.bf16.msra.mxu0 0
  %6326 = vmatprep.subr.bf16.mxu0 0
  %6327 = vmatpush1.bf16.msra.mxu0 0
  %6328 = vmatprep.subr.bf16.mxu0 0
  %6329 = vmatpush1.bf16.msra.mxu0 0
  %6330 = vmatprep.subr.bf16.mxu0 0
  %6331 = vmatpush1.bf16.msra.mxu0 0
  %6332 = vmatprep.subr.bf16.mxu0 0
  %6333 = vmatpush1.bf16.msra.mxu0 0
  %6334 = vmatprep.subr.bf16.mxu0 0
  %6335 = vmatpush1.bf16.msra.mxu0 0
  %6336 = vmatprep.subr.bf16.mxu0 0
  %6337 = vmatpush1.bf16.msra.mxu0 0
  %6338 = vmatprep.mubr.bf16.mxu0 0
  %6339 = vmatmul.mubr.bf16.gmra.mrb[0].mxu0 %v6250
  %v6340 = vpop.f32.mrb[0].mxu0
  %v6341 = vadd.f32 %v6237, %v6340
  %v6342 = vpop.f32.mrb[0].mxu0
  %v6343 = vadd.f32 %v6237, %v6342
  %v6344 = vpop.f32.mrb[0].mxu0
  %v6345 = vadd.f32 %v6242, %v6344
  %v6346 = vpop.f32.mrb[0].mxu0
  %v6347 = vadd.f32 %v6242, %v6346
  %6348 = vmatprep.mubr.bf16.mxu0 0
  %6349 = vmatmul.mubr.bf16.gmra.mrb[0].mxu0 %v6253
  %v6350 = vpop.f32.mrb[0].mxu0
  %v6351 = vadd.f32 %v6247, %v6350
  %v6352 = vpop.f32.mrb[0].mxu0
  %v6353 = vadd.f32 %v6247, %v6352
  %v6354 = vpop.f32.mrb[0].mxu0
  %v6355 = vpop.f32.mrb[0].mxu0
  %6356 = vdwg.mxu0
  %v6357 = vsel %vm3683, 135.0, 344.0
  %v6358 = vsel %vm3684, 135.0, 344.0
  %v6359 = vsel %vm3685, 135.0, 344.0
  %v6360 = vsel %vm3680, 81.0, %v6357
  %v6361 = vsel %vm3681, 81.0, %v6358
  %v6362 = vsel %vm3682, 81.0, %v6359
  %v6363 = vsel %vm3683, 169.0, 319.0
  %v6364 = vsel %vm3684, 169.0, 319.0
  %v6365 = vsel %vm3685, 169.0, 319.0
  %v6366 = vsel %vm3680, 82.0, %v6363
  %v6367 = vsel %vm3681, 82.0, %v6364
  %v6368 = vsel %vm3682, 82.0, %v6365
  %v6369 = vcvt.s32.f32 %v76
  %v6370 = vcvt.s32.f32 %v77
  %v6371 = vcvt.s32.f32 %v78
  %v6372 = vcvt.s32.f32 %v79
  %v6373 = vcvt.s32.f32 %v84
  %v6374 = vcvt.s32.f32 %v85
  %v6375 = vcvt.s32.f32 %v86
  %v6376 = vcvt.s32.f32 %v87
  %v6377 = vxor.u32 %v6290, 2147483648
  %v6378 = vxor.u32 %v6292, 2147483648
  %v6379 = vxor.u32 %v6341, 2147483648
  %v6380 = vxor.u32 %v6343, 2147483648
  %v6381 = vxor.u32 %v6294, 2147483648
  %v6382 = vxor.u32 %v6296, 2147483648
  %v6383 = vxor.u32 %v6345, 2147483648
  %v6384 = vxor.u32 %v6347, 2147483648
  %v6385 = vxor.u32 %v6300, 2147483648
  %v6386 = vxor.u32 %v6302, 2147483648
  %v6387 = vxor.u32 %v6351, 2147483648
  %v6388 = vxor.u32 %v6353, 2147483648
  %v6389 = vmul.f32 %v6377, 1.442695
  %v6390 = vpow.pop %v6389
  %v6391 = vmul.f32 %v6378, 1.442695
  %v6392 = vpow.pop %v6391
  %v6393 = vmul.f32 %v6379, 1.442695
  %v6394 = vpow.pop %v6393
  %v6395 = vmul.f32 %v6380, 1.442695
  %v6396 = vpow.pop %v6395
  %v6397 = vmul.f32 %v6381, 1.442695
  %v6398 = vpow.pop %v6397
  %v6399 = vmul.f32 %v6382, 1.442695
  %v6400 = vpow.pop %v6399
  %v6401 = vmul.f32 %v6383, 1.442695
  %v6402 = vpow.pop %v6401
  %v6403 = vmul.f32 %v6384, 1.442695
  %v6404 = vpow.pop %v6403
  %v6405 = vmul.f32 %v6385, 1.442695
  %v6406 = vpow.pop %v6405
  %v6407 = vmul.f32 %v6386, 1.442695
  %v6408 = vpow.pop %v6407
  %v6409 = vmul.f32 %v6387, 1.442695
  %v6410 = vpow.pop %v6409
  %v6411 = vmul.f32 %v6388, 1.442695
  %v6412 = vpow.pop %v6411
  %v6413 = vadd.f32 %v6390, 1.0
  %v6414 = vadd.f32 %v6392, 1.0
  %v6415 = vadd.f32 %v6394, 1.0
  %v6416 = vadd.f32 %v6396, 1.0
  %v6417 = vadd.f32 %v6398, 1.0
  %v6418 = vadd.f32 %v6400, 1.0
  %v6419 = vadd.f32 %v6402, 1.0
  %v6420 = vadd.f32 %v6404, 1.0
  %v6421 = vadd.f32 %v6406, 1.0
  %v6422 = vadd.f32 %v6408, 1.0
  %v6423 = vadd.f32 %v6410, 1.0
  %v6424 = vadd.f32 %v6412, 1.0
  %v6425 = vrcp.pop %v6413
  %v6426 = vmul.f32 1.0, %v6425
  %v6427 = vrcp.pop %v6414
  %v6428 = vmul.f32 1.0, %v6427
  %v6429 = vrcp.pop %v6415
  %v6430 = vmul.f32 1.0, %v6429
  %v6431 = vrcp.pop %v6416
  %v6432 = vmul.f32 1.0, %v6431
  %v6433 = vrcp.pop %v6417
  %v6434 = vmul.f32 1.0, %v6433
  %v6435 = vrcp.pop %v6418
  %v6436 = vmul.f32 1.0, %v6435
  %v6437 = vrcp.pop %v6419
  %v6438 = vmul.f32 1.0, %v6437
  %v6439 = vrcp.pop %v6420
  %v6440 = vmul.f32 1.0, %v6439
  %v6441 = vrcp.pop %v6421
  %v6442 = vmul.f32 1.0, %v6441
  %v6443 = vrcp.pop %v6422
  %v6444 = vmul.f32 1.0, %v6443
  %v6445 = vrcp.pop %v6423
  %v6446 = vmul.f32 1.0, %v6445
  %v6447 = vrcp.pop %v6424
  %v6448 = vmul.f32 1.0, %v6447
  %v6449 = vmul.f32 %v6290, 1.442695
  %v6450 = vpow.pop %v6449
  %v6451 = vmul.f32 %v6292, 1.442695
  %v6452 = vpow.pop %v6451
  %v6453 = vmul.f32 %v6341, 1.442695
  %v6454 = vpow.pop %v6453
  %v6455 = vmul.f32 %v6343, 1.442695
  %v6456 = vpow.pop %v6455
  %v6457 = vmul.f32 %v6294, 1.442695
  %v6458 = vpow.pop %v6457
  %v6459 = vmul.f32 %v6296, 1.442695
  %v6460 = vpow.pop %v6459
  %v6461 = vmul.f32 %v6345, 1.442695
  %v6462 = vpow.pop %v6461
  %v6463 = vmul.f32 %v6347, 1.442695
  %v6464 = vpow.pop %v6463
  %v6465 = vmul.f32 %v6300, 1.442695
  %v6466 = vpow.pop %v6465
  %v6467 = vmul.f32 %v6302, 1.442695
  %v6468 = vpow.pop %v6467
  %v6469 = vmul.f32 %v6351, 1.442695
  %v6470 = vpow.pop %v6469
  %v6471 = vmul.f32 %v6353, 1.442695
  %v6472 = vpow.pop %v6471
  %v6473 = vadd.f32 %v6426, %v6369
  %v6474 = vadd.f32 %v6428, %v6370
  %v6475 = vadd.f32 %v6430, %v6371
  %v6476 = vadd.f32 %v6432, %v6372
  %v6477 = vadd.f32 %v6434, %v6369
  %v6478 = vadd.f32 %v6436, %v6370
  %v6479 = vadd.f32 %v6438, %v6371
  %v6480 = vadd.f32 %v6440, %v6372
  %v6481 = vadd.f32 %v6442, %v6369
  %v6482 = vadd.f32 %v6444, %v6370
  %v6483 = vadd.f32 %v6446, %v6371
  %v6484 = vadd.f32 %v6448, %v6372
  %v6485 = vmul.f32 %v6473, 2.0
  %v6486 = vmul.f32 %v6474, 2.0
  %v6487 = vmul.f32 %v6475, 2.0
  %v6488 = vmul.f32 %v6476, 2.0
  %v6489 = vmul.f32 %v6477, 2.0
  %v6490 = vmul.f32 %v6478, 2.0
  %v6491 = vmul.f32 %v6479, 2.0
  %v6492 = vmul.f32 %v6480, 2.0
  %v6493 = vmul.f32 %v6481, 2.0
  %v6494 = vmul.f32 %v6482, 2.0
  %v6495 = vmul.f32 %v6483, 2.0
  %v6496 = vmul.f32 %v6484, 2.0
  %v6497 = vadd.f32 %v6426, %v6373
  %v6498 = vadd.f32 %v6428, %v6374
  %v6499 = vadd.f32 %v6430, %v6375
  %v6500 = vadd.f32 %v6432, %v6376
  %v6501 = vadd.f32 %v6434, %v6373
  %v6502 = vadd.f32 %v6436, %v6374
  %v6503 = vadd.f32 %v6438, %v6375
  %v6504 = vadd.f32 %v6440, %v6376
  %v6505 = vadd.f32 %v6442, %v6373
  %v6506 = vadd.f32 %v6444, %v6374
  %v6507 = vadd.f32 %v6446, %v6375
  %v6508 = vadd.f32 %v6448, %v6376
  %v6509 = vmul.f32 %v6497, 2.0
  %v6510 = vmul.f32 %v6498, 2.0
  %v6511 = vmul.f32 %v6499, 2.0
  %v6512 = vmul.f32 %v6500, 2.0
  %v6513 = vmul.f32 %v6501, 2.0
  %v6514 = vmul.f32 %v6502, 2.0
  %v6515 = vmul.f32 %v6503, 2.0
  %v6516 = vmul.f32 %v6504, 2.0
  %v6517 = vmul.f32 %v6505, 2.0
  %v6518 = vmul.f32 %v6506, 2.0
  %v6519 = vmul.f32 %v6507, 2.0
  %v6520 = vmul.f32 %v6508, 2.0
  %v6521 = vmul.f32 %v6450, %v6360
  %v6522 = vmul.f32 %v6452, %v6360
  %v6523 = vmul.f32 %v6454, %v6360
  %v6524 = vmul.f32 %v6456, %v6360
  %v6525 = vmul.f32 %v6458, %v6361
  %v6526 = vmul.f32 %v6460, %v6361
  %v6527 = vmul.f32 %v6462, %v6361
  %v6528 = vmul.f32 %v6464, %v6361
  %v6529 = vmul.f32 %v6466, %v6362
  %v6530 = vmul.f32 %v6468, %v6362
  %v6531 = vmul.f32 %v6470, %v6362
  %v6532 = vmul.f32 %v6472, %v6362
  %v6533 = vmul.f32 %v6450, %v6366
  %v6534 = vmul.f32 %v6452, %v6366
  %v6535 = vmul.f32 %v6454, %v6366
  %v6536 = vmul.f32 %v6456, %v6366
  %v6537 = vmul.f32 %v6458, %v6367
  %v6538 = vmul.f32 %v6460, %v6367
  %v6539 = vmul.f32 %v6462, %v6367
  %v6540 = vmul.f32 %v6464, %v6367
  %v6541 = vmul.f32 %v6466, %v6368
  %v6542 = vmul.f32 %v6468, %v6368
  %v6543 = vmul.f32 %v6470, %v6368
  %v6544 = vmul.f32 %v6472, %v6368
  %v6545 = vsel %vm3889, %v6533, %v6426
  %v6546 = vsel %vm3889, %v6534, %v6428
  %v6547 = vsel %vm3889, %v6535, %v6430
  %v6548 = vsel %vm3889, %v6536, %v6432
  %v6549 = vsel %vm3890, %v6537, %v6434
  %v6550 = vsel %vm3890, %v6538, %v6436
  %v6551 = vsel %vm3890, %v6539, %v6438
  %v6552 = vsel %vm3890, %v6540, %v6440
  %v6553 = vsel %vm3891, %v6541, %v6442
  %v6554 = vsel %vm3891, %v6542, %v6444
  %v6555 = vsel %vm3891, %v6543, %v6446
  %v6556 = vsel %vm3891, %v6544, %v6448
  %v6557 = vsel %vm3907, %v6521, %v6545
  %v6558 = vsel %vm3907, %v6522, %v6546
  %v6559 = vsel %vm3907, %v6523, %v6547
  %v6560 = vsel %vm3907, %v6524, %v6548
  %v6561 = vsel %vm3908, %v6525, %v6549
  %v6562 = vsel %vm3908, %v6526, %v6550
  %v6563 = vsel %vm3908, %v6527, %v6551
  %v6564 = vsel %vm3908, %v6528, %v6552
  %v6565 = vsel %vm3909, %v6529, %v6553
  %v6566 = vsel %vm3909, %v6530, %v6554
  %v6567 = vsel %vm3909, %v6531, %v6555
  %v6568 = vsel %vm3909, %v6532, %v6556
  %v6569 = vsel %vm3925, %v6509, %v6557
  %v6570 = vsel %vm3925, %v6510, %v6558
  %v6571 = vsel %vm3925, %v6511, %v6559
  %v6572 = vsel %vm3925, %v6512, %v6560
  %v6573 = vsel %vm3926, %v6513, %v6561
  %v6574 = vsel %vm3926, %v6514, %v6562
  %v6575 = vsel %vm3926, %v6515, %v6563
  %v6576 = vsel %vm3926, %v6516, %v6564
  %v6577 = vsel %vm3927, %v6517, %v6565
  %v6578 = vsel %vm3927, %v6518, %v6566
  %v6579 = vsel %vm3927, %v6519, %v6567
  %v6580 = vsel %vm3927, %v6520, %v6568
  %v6581 = vsel %vm3943, %v6485, %v6569
  %v6582 = vsel %vm3943, %v6486, %v6570
  %v6583 = vsel %vm3943, %v6487, %v6571
  %v6584 = vsel %vm3943, %v6488, %v6572
  %v6585 = vsel %vm3944, %v6489, %v6573
  %v6586 = vsel %vm3944, %v6490, %v6574
  %v6587 = vsel %vm3944, %v6491, %v6575
  %v6588 = vsel %vm3944, %v6492, %v6576
  %v6589 = vsel %vm3945, %v6493, %v6577
  %v6590 = vsel %vm3945, %v6494, %v6578
  %v6591 = vsel %vm3945, %v6495, %v6579
  %v6592 = vsel %vm3945, %v6496, %v6580
  %6593 = vst [vmem:[%s22] sm:$0xff] %v6581
  %6594 = vst [vmem:[%s22 + $0x8] sm:$0xff] %v6582
  %6595 = vst [vmem:[%s22 + $0x10] sm:$0xff] %v6583
  %6596 = vst [vmem:[%s22 + $0x18] sm:$0xff] %v6584
  %6597 = vst [vmem:[%s22 + $0x20] sm:$0xff] %v6585
  %6598 = vst [vmem:[%s22 + $0x28] sm:$0xff] %v6586
  %6599 = vst [vmem:[%s22 + $0x30] sm:$0xff] %v6587
  %6600 = vst [vmem:[%s22 + $0x38] sm:$0xff] %v6588
  %6601 = vst [vmem:[%s22 + $0x40] sm:$0xff] %v6589
  %6602 = vst [vmem:[%s22 + $0x48] sm:$0xff] %v6590
  %6603 = vst [vmem:[%s22 + $0x50] sm:$0xff] %v6591
  %6604 = vst [vmem:[%s22 + $0x58] sm:$0xff] %v6592
  // Predicated region
  $region86: #{_lambda_.1} parent=0 // pred_check
    _
  $region87: #{_lambda_.1} parent=0 // pred_check_branch
    %6606 = sbr.rel (0) target = $region89
  $region88: #{_lambda_.1} parent=0 // pred_region
    _
  $region89: #{_lambda_.1} parent=0 // pred_fallthru
    _
  // Predicated region
  $region90: #{_lambda_.1} parent=0 // pred_check
    _
  $region91: #{_lambda_.1} parent=0 // pred_check_branch
    %6608 = sbr.rel (0) target = $region93
  $region92: #{_lambda_.1} parent=0 // pred_region
    _
  $region93: #{_lambda_.1} parent=0 // pred_fallthru
    _
  // Predicated region
  $region94: #{_lambda_.1} parent=0 // pred_check
    _
  $region95: #{_lambda_.1} parent=0 // pred_check_branch
    %6610 = sbr.rel (0) target = $region97
  $region96: #{_lambda_.1} parent=0 // pred_region
    _
  $region97: #{_lambda_.1} parent=0 // pred_fallthru
    _
  // Predicated region
  $region98: #{_lambda_.1} parent=0 // pred_check
    _
  $region99: #{_lambda_.1} parent=0 // pred_check_branch
    %6612 = sbr.rel (0) target = $region101
  $region100: #{_lambda_.1} parent=0 // pred_region
    _
  $region101: #{_lambda_.1} parent=0 // pred_fallthru
    _

</llo_original>
